<compile_context>
chip_gen: v6e
topology: v6e:2x2x1
jax: 0.10.0
libtpu: 0.0.40
codegen_flags: <defaults>
</compile_context>

<pallas_src>
import jax
import jax.numpy as jnp
import numpy as np
from jax.experimental import pallas as pl
from jax.experimental.pallas import tpu as pltpu


def pointer_decoder_kernel(
    emb_seq_ref,            # (C, Bp, E)      this chunk's embedded inputs
    hid0_ref,               # (Bp, H)         initial hidden state
    enc_ref,                # (Bp, S, EH)     encoder outputs (VMEM-resident)
    ea_ref,                 # (Bp, S, V)      precomputed enc@w_ea + folded biases
    one_hot_ref,            # (Bp, S, n_tok)  bf16 precomputed pointer one-hot
    w_ih_r_ref, w_ih_z_ref, w_ih_n_ref,       # GRU input weights per gate (E,H) bf16
    w_hh_r_ref, w_hh_z_ref, w_hh_n_ref,       # GRU hidden weights per gate (H,H) bf16
    b_r_ref, b_z_ref, b_in_ref, b_hn_ref,     # GRU biases (r/z merged)
    w_ha_ref, values_ref,                     # additive attention
    w_lin_h_ref, w_lin_c_ref, b_lin_ref,      # output projection (split, bf16)
    pgc_ref, pgh_ref, pgi_ref, pgb_ref,       # p_gen gate (as (.,1) columns)
    probas_ref,             # (C, Bp, n_tok) out
    new_hidden_ref,         # (Bp, H)        out (resident; single HBM writeback at end)
    h_scratch,              # VMEM (Bp, H) f32 hidden carried across grid steps
):
  g = pl.program_id(0)
  f32 = jnp.float32
  bf16 = jnp.bfloat16

  @pl.when(g == 0)
  def _():
    h_scratch[...] = hid0_ref[...]

  # Step-invariant operands: load (and cast) once per grid chunk, not per time step.
  enc = enc_ref[...]                           # (Bp, S, EH) f32
  ea = ea_ref[...]                             # (Bp, S, V)  f32
  one_hot = one_hot_ref[...].astype(f32)       # exact 0/1
  C = emb_seq_ref.shape[0]

  def step(c, h):
    emb = emb_seq_ref[c]                       # (Bp, E) f32
    emb_b = emb.astype(bf16)
    h_b = h.astype(bf16)

    # --- GRUCell: per-gate bf16 x bf16 -> f32 matmuls (no lane slicing) ---
    r = jax.nn.sigmoid(
        jnp.dot(emb_b, w_ih_r_ref[...], preferred_element_type=f32)
        + jnp.dot(h_b, w_hh_r_ref[...], preferred_element_type=f32)
        + b_r_ref[...])
    z = jax.nn.sigmoid(
        jnp.dot(emb_b, w_ih_z_ref[...], preferred_element_type=f32)
        + jnp.dot(h_b, w_hh_z_ref[...], preferred_element_type=f32)
        + b_z_ref[...])
    n = jnp.tanh(
        jnp.dot(emb_b, w_ih_n_ref[...], preferred_element_type=f32) + b_in_ref[...]
        + r * (jnp.dot(h_b, w_hh_n_ref[...], preferred_element_type=f32)
               + b_hn_ref[...]))
    new_h = (1.0 - z) * n + z * h              # (Bp, H)

    # --- additive attention over encoder outputs (uses OLD hidden, as in module) ---
    ha = jnp.dot(h, w_ha_ref[...], preferred_element_type=f32)          # (Bp, V)
    th = jnp.tanh(ea + ha[:, None, :])                                  # (Bp, S, V)
    attn_logit = jnp.sum(values_ref[...][None, :, :] * th, axis=-1)     # (Bp, S)
    attn_logit = attn_logit - jnp.max(attn_logit, axis=-1, keepdims=True)
    exl = jnp.exp(attn_logit)
    attn_w = exl * pl.reciprocal(jnp.sum(exl, axis=-1, keepdims=True), approx=True)
    context = jnp.sum(enc * attn_w[:, :, None], axis=1)                 # (Bp, EH)

    # --- vocabulary distribution: split-linear, bf16 weights & activations ---
    logits = (jnp.dot(new_h.astype(bf16), w_lin_h_ref[...], preferred_element_type=f32)
              + jnp.dot(context.astype(bf16), w_lin_c_ref[...], preferred_element_type=f32)
              + b_lin_ref[...])                                         # (Bp, n_tok)
    logits = logits - jnp.max(logits, axis=-1, keepdims=True)
    exo = jnp.exp(logits)
    out = exo * pl.reciprocal(jnp.sum(exo, axis=-1, keepdims=True), approx=True)

    # --- p_gen gate as three tiny MXU matvecs ---
    p_gen = jax.nn.sigmoid(
        jnp.dot(context, pgc_ref[...], preferred_element_type=f32)
        + jnp.dot(new_h, pgh_ref[...], preferred_element_type=f32)
        + jnp.dot(emb, pgi_ref[...], preferred_element_type=f32)
        + pgb_ref[...])                                                 # (Bp, 1)

    # --- scatter_add_(1, lemmas, attn_w): select-and-sum over the precomputed one-hot ---
    p_gen_matrix = jnp.sum(attn_w[:, :, None] * one_hot, axis=1)        # (Bp, n_tok)

    probas = p_gen * out + (1.0 - p_gen) * p_gen_matrix
    probas_ref[c] = jnp.maximum(probas, 1e-8)
    return new_h

  h_final = jax.lax.fori_loop(0, C, step, h_scratch[...], unroll=True)
  h_scratch[...] = h_final
  new_hidden_ref[...] = h_final   # const index_map -> written back to HBM once, at end


def _const_spec(shape):
  nd = len(shape)
  return pl.BlockSpec(shape, lambda g, _nd=nd: (0,) * _nd)


def prepare_kernel_params(p, matmul_dtype=jnp.bfloat16):
  """Original (already (in,out)-transposed) params -> kernel-ready params."""
  H = p['w_hh'].shape[0]
  w_ih, w_hh = p['w_ih'], p['w_hh']
  return dict(
      # GRU, split per gate (PyTorch gate order r, z, n); r/z biases folded.
      w_ih_r=w_ih[:, 0:H].astype(matmul_dtype),
      w_ih_z=w_ih[:, H:2 * H].astype(matmul_dtype),
      w_ih_n=w_ih[:, 2 * H:3 * H].astype(matmul_dtype),
      w_hh_r=w_hh[:, 0:H].astype(matmul_dtype),
      w_hh_z=w_hh[:, H:2 * H].astype(matmul_dtype),
      w_hh_n=w_hh[:, 2 * H:3 * H].astype(matmul_dtype),
      b_r=p['b_ih'][:, 0:H] + p['b_hh'][:, 0:H],
      b_z=p['b_ih'][:, H:2 * H] + p['b_hh'][:, H:2 * H],
      b_in=p['b_ih'][:, 2 * H:3 * H],
      b_hn=p['b_hh'][:, 2 * H:3 * H],
      # Attention: enc @ w_ea is hoisted to the wrapper; fold ALL constant biases into it.
      w_ea=p['w_ea'],
      ea_bias=p['b_ea'] + p['b_ha'] + p['attn_bias'],     # (1, V)
      w_ha=p['w_ha'],
      values=p['values'],                                 # (1, V)
      # Output projection split so no lane concat is needed.
      w_lin_h=p['w_lin'][:H].astype(matmul_dtype),        # (H,  n_tokens)
      w_lin_c=p['w_lin'][H:].astype(matmul_dtype),        # (EH, n_tokens)
      b_lin=p['b_lin'],
      # p_gen gate as (in, 1) columns -> MXU matvecs.
      p_gen_context=p['p_gen_context'].T,                 # (EH, 1)
      p_gen_hidden=p['p_gen_hidden'].T,                   # (H, 1)
      p_gen_input=p['p_gen_input'].T,                     # (E, 1)
      p_gen_bias=p['p_gen_bias'],                         # (1, 1)
  )


_WEIGHT_ORDER = ('w_ih_r', 'w_ih_z', 'w_ih_n', 'w_hh_r', 'w_hh_z', 'w_hh_n',
                 'b_r', 'b_z', 'b_in', 'b_hn',
                 'w_ha', 'values',
                 'w_lin_h', 'w_lin_c', 'b_lin',
                 'p_gen_context', 'p_gen_hidden', 'p_gen_input', 'p_gen_bias')


def _pick_time_chunk(T, max_chunk=8):
  for c in range(min(T, max_chunk), 0, -1):
    if T % c == 0:
      return c
  return 1


def pointer_decoder_steps(embedded_seq, hidden, encoder_output, lemmas, kp,
                          time_chunk=None):
  """Run T fused decode steps. embedded_seq: (T, B, E). Returns ((T,B,n_tokens), (B,H))."""
  T, B, E = embedded_seq.shape
  _, S, EH = encoder_output.shape
  H = hidden.shape[1]
  n_tokens = kp['w_lin_h'].shape[1]
  V = kp['w_ha'].shape[1]

  # Pad batch to a multiple of 8 (f32 sublane) so vregs aren't mostly padding.
  Bp = max(8, ((B + 7) // 8) * 8)
  pad = Bp - B
  if pad:
    embedded_seq = jnp.pad(embedded_seq, ((0, 0), (0, pad), (0, 0)))
    hidden = jnp.pad(hidden, ((0, pad), (0, 0)))
    encoder_output = jnp.pad(encoder_output, ((0, pad), (0, 0), (0, 0)))
    lemmas = jnp.pad(lemmas, ((0, pad), (0, 0)))

  # Step-invariant precomputes, done ONCE outside the sequential decode loop:
  #   encoder attention projection (with all constant biases folded) and the
  #   pointer one-hot scatter matrix (bf16: 0/1 exactly representable).
  ea = (jnp.einsum('bse,ev->bsv', encoder_output, kp['w_ea'],
                   preferred_element_type=jnp.float32)
        + kp['ea_bias'][None, :, :]).astype(jnp.float32)                 # (Bp, S, V)
  one_hot = (lemmas[:, :, None] ==
             jnp.arange(n_tokens, dtype=lemmas.dtype)[None, None, :]
             ).astype(jnp.bfloat16)                                      # (Bp, S, n_tok)

  C = time_chunk or _pick_time_chunk(T)
  assert T % C == 0, "time_chunk must divide T"
  weights = [kp[k] for k in _WEIGHT_ORDER]

  in_specs = [
      pl.BlockSpec((C, Bp, E), lambda g: (g, 0, 0)),      # per-chunk embedded inputs
      _const_spec((Bp, H)),                               # initial hidden
      _const_spec((Bp, S, EH)),                           # encoder outputs (resident)
      _const_spec((Bp, S, V)),                            # precomputed enc projection
      _const_spec((Bp, S, n_tokens)),                     # precomputed one-hot (bf16)
  ] + [_const_spec(w.shape) for w in weights]             # weights: fetched once, resident

  out_specs = [
      pl.BlockSpec((C, Bp, n_tokens), lambda g: (g, 0, 0)),   # lane-dense per-chunk out
      _const_spec((Bp, H)),                                   # final hidden
  ]

  grid_spec = pltpu.PrefetchScalarGridSpec(
      num_scalar_prefetch=0,
      grid=(T // C,),
      in_specs=in_specs,
      out_specs=out_specs,
      scratch_shapes=[pltpu.VMEM((Bp, H), jnp.float32)],
  )

  probas_seq, new_hidden = pl.pallas_call(
      pointer_decoder_kernel,
      out_shape=(jax.ShapeDtypeStruct((T, Bp, n_tokens), jnp.float32),
                 jax.ShapeDtypeStruct((Bp, H), jnp.float32)),
      grid_spec=grid_spec,
      compiler_params=pltpu.CompilerParams(
          dimension_semantics=("arbitrary",),             # time is sequential (h carry)
          vmem_limit_bytes=32 * 1024 * 1024),             # v5e default is only 16 MiB
  )(embedded_seq, hidden, encoder_output, ea, one_hot, *weights)

  return probas_seq[:, :B, :], new_hidden[:B, :]


def pointer_decoder(embedded, hidden, encoder_output, lemmas, kp):
  """Single decode step (same semantics as the PyTorch module's forward)."""
  probas_seq, new_hidden = pointer_decoder_steps(
      embedded[None], hidden, encoder_output, lemmas, kp)
  return probas_seq[0], new_hidden


def reference_step(embedded, hidden, enc, lemmas, p, matmul_dtype=jnp.bfloat16):
  """Pure-JAX mirror of the PyTorch forward using the same bf16-matmul precision the
  kernel deliberately uses (isolates kernel math from the bf16 storage choice)."""
  f32 = jnp.float32
  H = hidden.shape[1]
  n_tokens = p['w_lin'].shape[1]

  def mm(a, w):  # bf16 x bf16 -> f32, like the kernel's MXU dots
    return jnp.dot(a.astype(matmul_dtype), w.astype(matmul_dtype),
                   preferred_element_type=f32)

  gi = mm(embedded, p['w_ih']) + p['b_ih']
  gh = mm(hidden, p['w_hh']) + p['b_hh']
  r = jax.nn.sigmoid(gi[:, :H] + gh[:, :H])
  z = jax.nn.sigmoid(gi[:, H:2 * H] + gh[:, H:2 * H])
  n = jnp.tanh(gi[:, 2 * H:] + r * gh[:, 2 * H:])
  new_h = (1 - z) * n + z * hidden
  before_tanh = (jnp.einsum('bse,ev->bsv', enc, p['w_ea']) + p['b_ea'][None, :, :]
                 + (hidden @ p['w_ha'] + p['b_ha'])[:, None, :]
                 + p['attn_bias'][None, :, :])
  attn_logit = jnp.sum(p['values'][None, :, :] * jnp.tanh(before_tanh), axis=-1)
  attn_w = jax.nn.softmax(attn_logit, axis=-1)
  context = jnp.sum(enc * attn_w[:, :, None], axis=1)
  logits = mm(new_h, p['w_lin'][:H]) + mm(context, p['w_lin'][H:]) + p['b_lin']
  out = jax.nn.softmax(logits, -1)
  p_gen = jax.nn.sigmoid(jnp.sum(p['p_gen_context'] * context, -1)
                         + jnp.sum(p['p_gen_hidden'] * new_h, -1)
                         + jnp.sum(p['p_gen_input'] * embedded, -1)
                         + p['p_gen_bias'][0])
  B = out.shape[0]
  pgm = jnp.zeros((B, n_tokens)).at[jnp.arange(B)[:, None], lemmas].add(attn_w)
  probas = p_gen[:, None] * out + (1 - p_gen)[:, None] * pgm
  return jnp.maximum(probas, 1e-8), new_h


if __name__ == "__main__":
  # small shapes implied by the module; T teacher-forced decode steps fused in-kernel
  B, S, T = 2, 8, 4
  n_tokens, E, H, EH, V = 128, 32, 32, 32, 32

  key = jax.random.PRNGKey(0)
  ks = jax.random.split(key, 24)
  u = lambda k, shape, s=0.1: jax.random.uniform(k, shape, jnp.float32, -s, s)

  emb_table = u(ks[0], (n_tokens, E), 0.5)
  params = dict(
      w_ih=u(ks[1], (E, 3 * H)), w_hh=u(ks[2], (H, 3 * H)),
      b_ih=u(ks[3], (1, 3 * H)), b_hh=u(ks[4], (1, 3 * H)),
      w_ea=u(ks[5], (EH, V)), b_ea=u(ks[6], (1, V)),
      w_ha=u(ks[7], (H, V)), b_ha=u(ks[8], (1, V)),
      attn_bias=jax.random.uniform(ks[9], (1, V)),
      values=jax.random.uniform(ks[10], (1, V)),
      w_lin=u(ks[11], (H + EH, n_tokens)), b_lin=u(ks[12], (1, n_tokens)),
      p_gen_context=jax.random.uniform(ks[13], (1, EH)),
      p_gen_hidden=jax.random.uniform(ks[14], (1, H)),
      p_gen_input=jax.random.uniform(ks[15], (1, E)),
      p_gen_bias=jax.random.uniform(ks[16], (1, 1)),
  )

  x_seq = jax.random.randint(ks[17], (T, B), 0, n_tokens, jnp.int32)   # teacher-forced ids
  hidden0 = u(ks[18], (B, H), 0.5)
  encoder_output = u(ks[19], (B, S, EH), 0.5)
  lemmas = jax.random.randint(ks[20], (B, S), 0, n_tokens, jnp.int32)

  # TODO(synk): nn.Embedding gather stays as plain-JAX glue (data-dependent row gather).
  embedded_seq = emb_table[x_seq]                                      # (T, B, E)

  kparams = prepare_kernel_params(params)                              # bf16 matmul weights
  probas_seq, new_hidden = jax.block_until_ready(
      pointer_decoder_steps(embedded_seq, hidden0, encoder_output, lemmas, kparams))

  # Reference uses the same bf16-matmul precision the kernel consumed, so the check
  # isolates kernel math from the deliberate bf16 storage/compute choice.
  ref_probas = []
  h_ref = hidden0
  for t in range(T):
    pr, h_ref = reference_step(embedded_seq[t], h_ref, encoder_output, lemmas, params)
    ref_probas.append(pr)
  ref_probas = jnp.stack(ref_probas)

  np.testing.assert_allclose(np.asarray(probas_seq), np.asarray(ref_probas),
                             rtol=2e-3, atol=2e-3)
  np.testing.assert_allclose(np.asarray(new_hidden), np.asarray(h_ref),
                             rtol=2e-3, atol=2e-3)
  assert probas_seq.shape == (T, B, n_tokens) and new_hidden.shape == (B, H)
  print("KERNEL_OK")
</pallas_src>

<mosaic_0001>
module attributes {stable_mosaic.version = 11 : i64} {
  func.func @pointer_decoder_kernel(%arg0: i32, %arg1: memref<4x8x32xf32, #tpu.memory_space<vmem>>, %arg2: memref<8x32xf32, #tpu.memory_space<vmem>>, %arg3: memref<8x8x32xf32, #tpu.memory_space<vmem>>, %arg4: memref<8x8x32xf32, #tpu.memory_space<vmem>>, %arg5: memref<8x8x128xbf16, #tpu.memory_space<vmem>>, %arg6: memref<32x32xbf16, #tpu.memory_space<vmem>>, %arg7: memref<32x32xbf16, #tpu.memory_space<vmem>>, %arg8: memref<32x32xbf16, #tpu.memory_space<vmem>>, %arg9: memref<32x32xbf16, #tpu.memory_space<vmem>>, %arg10: memref<32x32xbf16, #tpu.memory_space<vmem>>, %arg11: memref<32x32xbf16, #tpu.memory_space<vmem>>, %arg12: memref<1x32xf32, #tpu.memory_space<vmem>>, %arg13: memref<1x32xf32, #tpu.memory_space<vmem>>, %arg14: memref<1x32xf32, #tpu.memory_space<vmem>>, %arg15: memref<1x32xf32, #tpu.memory_space<vmem>>, %arg16: memref<32x32xf32, #tpu.memory_space<vmem>>, %arg17: memref<1x32xf32, #tpu.memory_space<vmem>>, %arg18: memref<32x128xbf16, #tpu.memory_space<vmem>>, %arg19: memref<32x128xbf16, #tpu.memory_space<vmem>>, %arg20: memref<1x128xf32, #tpu.memory_space<vmem>>, %arg21: memref<32x1xf32, #tpu.memory_space<vmem>>, %arg22: memref<32x1xf32, #tpu.memory_space<vmem>>, %arg23: memref<32x1xf32, #tpu.memory_space<vmem>>, %arg24: memref<1x1xf32, #tpu.memory_space<vmem>>, %arg25: memref<4x8x128xf32, #tpu.memory_space<vmem>>, %arg26: memref<8x32xf32, #tpu.memory_space<vmem>>, %arg27: memref<8x32xf32, #tpu.memory_space<vmem>>) attributes {dimension_semantics = [#tpu.dimension_semantics<arbitrary>], iteration_bounds = array<i64: 1>, scalar_prefetch = 0 : i64, scratch_operands = 1 : i64, tpu.core_type = #tpu.core_type<tc>, window_params = [{transform_indices = @transform_0, window_bounds = array<i64: 4, 8, 32>}, {pipeline_mode = #tpu.pipeline_mode<synchronous>, transform_indices = @transform_1, window_bounds = array<i64: 8, 32>}, {pipeline_mode = #tpu.pipeline_mode<synchronous>, transform_indices = @transform_2, window_bounds = array<i64: 8, 8, 32>}, {pipeline_mode = #tpu.pipeline_mode<synchronous>, transform_indices = @transform_3, window_bounds = array<i64: 8, 8, 32>}, {pipeline_mode = #tpu.pipeline_mode<synchronous>, transform_indices = @transform_4, window_bounds = array<i64: 8, 8, 128>}, {pipeline_mode = #tpu.pipeline_mode<synchronous>, transform_indices = @transform_5, window_bounds = array<i64: 32, 32>}, {pipeline_mode = #tpu.pipeline_mode<synchronous>, transform_indices = @transform_6, window_bounds = array<i64: 32, 32>}, {pipeline_mode = #tpu.pipeline_mode<synchronous>, transform_indices = @transform_7, window_bounds = array<i64: 32, 32>}, {pipeline_mode = #tpu.pipeline_mode<synchronous>, transform_indices = @transform_8, window_bounds = array<i64: 32, 32>}, {pipeline_mode = #tpu.pipeline_mode<synchronous>, transform_indices = @transform_9, window_bounds = array<i64: 32, 32>}, {pipeline_mode = #tpu.pipeline_mode<synchronous>, transform_indices = @transform_10, window_bounds = array<i64: 32, 32>}, {pipeline_mode = #tpu.pipeline_mode<synchronous>, transform_indices = @transform_11, window_bounds = array<i64: 1, 32>}, {pipeline_mode = #tpu.pipeline_mode<synchronous>, transform_indices = @transform_12, window_bounds = array<i64: 1, 32>}, {pipeline_mode = #tpu.pipeline_mode<synchronous>, transform_indices = @transform_13, window_bounds = array<i64: 1, 32>}, {pipeline_mode = #tpu.pipeline_mode<synchronous>, transform_indices = @transform_14, window_bounds = array<i64: 1, 32>}, {pipeline_mode = #tpu.pipeline_mode<synchronous>, transform_indices = @transform_15, window_bounds = array<i64: 32, 32>}, {pipeline_mode = #tpu.pipeline_mode<synchronous>, transform_indices = @transform_16, window_bounds = array<i64: 1, 32>}, {pipeline_mode = #tpu.pipeline_mode<synchronous>, transform_indices = @transform_17, window_bounds = array<i64: 32, 128>}, {pipeline_mode = #tpu.pipeline_mode<synchronous>, transform_indices = @transform_18, window_bounds = array<i64: 32, 128>}, {pipeline_mode = #tpu.pipeline_mode<synchronous>, transform_indices = @transform_19, window_bounds = array<i64: 1, 128>}, {pipeline_mode = #tpu.pipeline_mode<synchronous>, transform_indices = @transform_20, window_bounds = array<i64: 32, 1>}, {pipeline_mode = #tpu.pipeline_mode<synchronous>, transform_indices = @transform_21, window_bounds = array<i64: 32, 1>}, {pipeline_mode = #tpu.pipeline_mode<synchronous>, transform_indices = @transform_22, window_bounds = array<i64: 32, 1>}, {pipeline_mode = #tpu.pipeline_mode<synchronous>, transform_indices = @transform_23, window_bounds = array<i64: 1, 1>}, {transform_indices = @transform_24, window_bounds = array<i64: 4, 8, 128>}, {pipeline_mode = #tpu.pipeline_mode<synchronous>, transform_indices = @transform_25, window_bounds = array<i64: 8, 32>}]} {
    %c0_i32 = arith.constant 0 : i32
    %0 = arith.cmpi eq, %arg0, %c0_i32 : i32
    %1 = arith.extui %0 : i1 to i32
    %c0_i32_0 = arith.constant 0 : i32
    %2 = arith.cmpi ne, %1, %c0_i32_0 : i32
    scf.if %2 {
      %c0_283 = arith.constant 0 : index
      %c0_284 = arith.constant 0 : index
      %518 = vector.load %arg2[%c0_283, %c0_284] : memref<8x32xf32, #tpu.memory_space<vmem>>, vector<8x32xf32>
      %c0_285 = arith.constant 0 : index
      %c0_286 = arith.constant 0 : index
      %519 = vector.load %arg27[%c0_285, %c0_286] : memref<8x32xf32, #tpu.memory_space<vmem>>, vector<8x32xf32>
      tpu.vector_store %arg27[%c0_285, %c0_286], %518 {strides = array<i32>} : memref<8x32xf32, #tpu.memory_space<vmem>>, vector<8x32xf32>,
    } else {
    }
    %c0 = arith.constant 0 : index
    %c0_1 = arith.constant 0 : index
    %c0_2 = arith.constant 0 : index
    %3 = vector.load %arg3[%c0, %c0_1, %c0_2] : memref<8x8x32xf32, #tpu.memory_space<vmem>>, vector<8x8x32xf32>
    %c0_3 = arith.constant 0 : index
    %c0_4 = arith.constant 0 : index
    %c0_5 = arith.constant 0 : index
    %4 = vector.load %arg4[%c0_3, %c0_4, %c0_5] : memref<8x8x32xf32, #tpu.memory_space<vmem>>, vector<8x8x32xf32>
    %c0_6 = arith.constant 0 : index
    %c0_7 = arith.constant 0 : index
    %c0_8 = arith.constant 0 : index
    %5 = vector.load %arg5[%c0_6, %c0_7, %c0_8] : memref<8x8x128xbf16, #tpu.memory_space<vmem>>, vector<8x8x128xbf16>
    %6 = arith.extf %5 : vector<8x8x128xbf16> to vector<8x8x128xf32>
    %c0_9 = arith.constant 0 : index
    %c0_10 = arith.constant 0 : index
    %7 = vector.load %arg27[%c0_9, %c0_10] : memref<8x32xf32, #tpu.memory_space<vmem>>, vector<8x32xf32>
    %c0_i32_11 = arith.constant 0 : i32
    %8 = arith.index_cast %c0_i32_11 : i32 to index
    %c0_12 = arith.constant 0 : index
    %c0_13 = arith.constant 0 : index
    %9 = vector.load %arg1[%8, %c0_12, %c0_13] : memref<4x8x32xf32, #tpu.memory_space<vmem>>, vector<1x8x32xf32>
    %10 = vector.shape_cast %9 : vector<1x8x32xf32> to vector<8x32xf32>
    %11 = arith.truncf %10 : vector<8x32xf32> to vector<8x32xbf16>
    %12 = arith.truncf %7 : vector<8x32xf32> to vector<8x32xbf16>
    %c0_14 = arith.constant 0 : index
    %c0_15 = arith.constant 0 : index
    %13 = vector.load %arg6[%c0_14, %c0_15] : memref<32x32xbf16, #tpu.memory_space<vmem>>, vector<32x32xbf16>
    %cst = arith.constant dense<0.000000e+00> : vector<8x32xf32>
    %14 = tpu.matmul %11, %13, %cst {dimension_numbers = #tpu.dot_dimension_numbers<[1], [0], [0], [1], [0, 0, 1, 1], [], []>} : vector<8x32xbf16>, vector<32x32xbf16>, vector<8x32xf32> -> vector<8x32xf32>
    %c0_16 = arith.constant 0 : index
    %c0_17 = arith.constant 0 : index
    %15 = vector.load %arg9[%c0_16, %c0_17] : memref<32x32xbf16, #tpu.memory_space<vmem>>, vector<32x32xbf16>
    %cst_18 = arith.constant dense<0.000000e+00> : vector<8x32xf32>
    %16 = tpu.matmul %12, %15, %cst_18 {dimension_numbers = #tpu.dot_dimension_numbers<[1], [0], [0], [1], [0, 0, 1, 1], [], []>} : vector<8x32xbf16>, vector<32x32xbf16>, vector<8x32xf32> -> vector<8x32xf32>
    %17 = arith.addf %14, %16 : vector<8x32xf32>
    %c0_19 = arith.constant 0 : index
    %c0_20 = arith.constant 0 : index
    %18 = vector.load %arg12[%c0_19, %c0_20] : memref<1x32xf32, #tpu.memory_space<vmem>>, vector<1x32xf32>
    %19 = vector.broadcast %18 : vector<1x32xf32> to vector<8x32xf32>
    %20 = arith.addf %17, %19 : vector<8x32xf32>
    %21 = arith.negf %20 : vector<8x32xf32>
    %22 = math.exp %21 : vector<8x32xf32>
    %cst_21 = arith.constant 1.000000e+00 : f32
    %23 = vector.broadcast %cst_21 : f32 to vector<8x32xf32>
    %24 = arith.addf %23, %22 : vector<8x32xf32>
    %25 = arith.divf %23, %24 : vector<8x32xf32>
    %c0_22 = arith.constant 0 : index
    %c0_23 = arith.constant 0 : index
    %26 = vector.load %arg7[%c0_22, %c0_23] : memref<32x32xbf16, #tpu.memory_space<vmem>>, vector<32x32xbf16>
    %cst_24 = arith.constant dense<0.000000e+00> : vector<8x32xf32>
    %27 = tpu.matmul %11, %26, %cst_24 {dimension_numbers = #tpu.dot_dimension_numbers<[1], [0], [0], [1], [0, 0, 1, 1], [], []>} : vector<8x32xbf16>, vector<32x32xbf16>, vector<8x32xf32> -> vector<8x32xf32>
    %c0_25 = arith.constant 0 : index
    %c0_26 = arith.constant 0 : index
    %28 = vector.load %arg10[%c0_25, %c0_26] : memref<32x32xbf16, #tpu.memory_space<vmem>>, vector<32x32xbf16>
    %cst_27 = arith.constant dense<0.000000e+00> : vector<8x32xf32>
    %29 = tpu.matmul %12, %28, %cst_27 {dimension_numbers = #tpu.dot_dimension_numbers<[1], [0], [0], [1], [0, 0, 1, 1], [], []>} : vector<8x32xbf16>, vector<32x32xbf16>, vector<8x32xf32> -> vector<8x32xf32>
    %30 = arith.addf %27, %29 : vector<8x32xf32>
    %c0_28 = arith.constant 0 : index
    %c0_29 = arith.constant 0 : index
    %31 = vector.load %arg13[%c0_28, %c0_29] : memref<1x32xf32, #tpu.memory_space<vmem>>, vector<1x32xf32>
    %32 = vector.broadcast %31 : vector<1x32xf32> to vector<8x32xf32>
    %33 = arith.addf %30, %32 : vector<8x32xf32>
    %34 = arith.negf %33 : vector<8x32xf32>
    %35 = math.exp %34 : vector<8x32xf32>
    %cst_30 = arith.constant 1.000000e+00 : f32
    %36 = vector.broadcast %cst_30 : f32 to vector<8x32xf32>
    %37 = arith.addf %36, %35 : vector<8x32xf32>
    %38 = arith.divf %36, %37 : vector<8x32xf32>
    %c0_31 = arith.constant 0 : index
    %c0_32 = arith.constant 0 : index
    %39 = vector.load %arg8[%c0_31, %c0_32] : memref<32x32xbf16, #tpu.memory_space<vmem>>, vector<32x32xbf16>
    %cst_33 = arith.constant dense<0.000000e+00> : vector<8x32xf32>
    %40 = tpu.matmul %11, %39, %cst_33 {dimension_numbers = #tpu.dot_dimension_numbers<[1], [0], [0], [1], [0, 0, 1, 1], [], []>} : vector<8x32xbf16>, vector<32x32xbf16>, vector<8x32xf32> -> vector<8x32xf32>
    %c0_34 = arith.constant 0 : index
    %c0_35 = arith.constant 0 : index
    %41 = vector.load %arg14[%c0_34, %c0_35] : memref<1x32xf32, #tpu.memory_space<vmem>>, vector<1x32xf32>
    %42 = vector.broadcast %41 : vector<1x32xf32> to vector<8x32xf32>
    %43 = arith.addf %40, %42 : vector<8x32xf32>
    %c0_36 = arith.constant 0 : index
    %c0_37 = arith.constant 0 : index
    %44 = vector.load %arg11[%c0_36, %c0_37] : memref<32x32xbf16, #tpu.memory_space<vmem>>, vector<32x32xbf16>
    %cst_38 = arith.constant dense<0.000000e+00> : vector<8x32xf32>
    %45 = tpu.matmul %12, %44, %cst_38 {dimension_numbers = #tpu.dot_dimension_numbers<[1], [0], [0], [1], [0, 0, 1, 1], [], []>} : vector<8x32xbf16>, vector<32x32xbf16>, vector<8x32xf32> -> vector<8x32xf32>
    %c0_39 = arith.constant 0 : index
    %c0_40 = arith.constant 0 : index
    %46 = vector.load %arg15[%c0_39, %c0_40] : memref<1x32xf32, #tpu.memory_space<vmem>>, vector<1x32xf32>
    %47 = vector.broadcast %46 : vector<1x32xf32> to vector<8x32xf32>
    %48 = arith.addf %45, %47 : vector<8x32xf32>
    %49 = arith.mulf %25, %48 : vector<8x32xf32>
    %50 = arith.addf %43, %49 : vector<8x32xf32>
    %51 = math.tanh %50 : vector<8x32xf32>
    %cst_41 = arith.constant 1.000000e+00 : f32
    %52 = vector.broadcast %cst_41 : f32 to vector<8x32xf32>
    %53 = arith.subf %52, %38 : vector<8x32xf32>
    %54 = arith.mulf %53, %51 : vector<8x32xf32>
    %55 = arith.mulf %38, %7 : vector<8x32xf32>
    %56 = arith.addf %54, %55 : vector<8x32xf32>
    %c0_42 = arith.constant 0 : index
    %c0_43 = arith.constant 0 : index
    %57 = vector.load %arg16[%c0_42, %c0_43] : memref<32x32xf32, #tpu.memory_space<vmem>>, vector<32x32xf32>
    %cst_44 = arith.constant dense<0.000000e+00> : vector<8x32xf32>
    %58 = tpu.matmul %7, %57, %cst_44 {dimension_numbers = #tpu.dot_dimension_numbers<[1], [0], [0], [1], [0, 0, 1, 1], [], []>} : vector<8x32xf32>, vector<32x32xf32>, vector<8x32xf32> -> vector<8x32xf32>
    %59 = vector.shape_cast %58 : vector<8x32xf32> to vector<8x1x32xf32>
    %60 = vector.broadcast %59 : vector<8x1x32xf32> to vector<8x8x32xf32>
    %61 = arith.addf %4, %60 : vector<8x8x32xf32>
    %62 = math.tanh %61 : vector<8x8x32xf32>
    %c0_45 = arith.constant 0 : index
    %c0_46 = arith.constant 0 : index
    %63 = vector.load %arg17[%c0_45, %c0_46] : memref<1x32xf32, #tpu.memory_space<vmem>>, vector<1x32xf32>
    %64 = vector.shape_cast %63 : vector<1x32xf32> to vector<1x1x32xf32>
    %65 = vector.broadcast %64 : vector<1x1x32xf32> to vector<8x8x32xf32>
    %66 = arith.mulf %65, %62 : vector<8x8x32xf32>
    %cst_47 = arith.constant dense<0.000000e+00> : vector<8x8xf32>
    %67 = vector.multi_reduction <add>, %66, %cst_47 [2] : vector<8x8x32xf32> to vector<8x8xf32>
    %cst_48 = arith.constant dense<0xFF800000> : vector<8xf32>
    %68 = vector.multi_reduction <maximumf>, %67, %cst_48 [1] : vector<8x8xf32> to vector<8xf32>
    %69 = vector.shape_cast %68 : vector<8xf32> to vector<8x1xf32>
    %70 = vector.broadcast %69 : vector<8x1xf32> to vector<8x8xf32>
    %71 = arith.subf %67, %70 : vector<8x8xf32>
    %72 = math.exp %71 : vector<8x8xf32>
    %cst_49 = arith.constant dense<0.000000e+00> : vector<8xf32>
    %73 = vector.multi_reduction <add>, %72, %cst_49 [1] : vector<8x8xf32> to vector<8xf32>
    %74 = vector.shape_cast %73 : vector<8xf32> to vector<8x1xf32>
    %75 = tpu.reciprocal %74 {approx = true} : vector<8x1xf32> -> vector<8x1xf32>
    %76 = vector.broadcast %75 : vector<8x1xf32> to vector<8x8xf32>
    %77 = arith.mulf %72, %76 : vector<8x8xf32>
    %78 = vector.shape_cast %77 : vector<8x8xf32> to vector<8x8x1xf32>
    %79 = vector.broadcast %78 : vector<8x8x1xf32> to vector<8x8x32xf32>
    %80 = arith.mulf %3, %79 : vector<8x8x32xf32>
    %cst_50 = arith.constant dense<0.000000e+00> : vector<8x32xf32>
    %81 = vector.multi_reduction <add>, %80, %cst_50 [1] : vector<8x8x32xf32> to vector<8x32xf32>
    %82 = arith.truncf %56 : vector<8x32xf32> to vector<8x32xbf16>
    %c0_51 = arith.constant 0 : index
    %c0_52 = arith.constant 0 : index
    %83 = vector.load %arg18[%c0_51, %c0_52] : memref<32x128xbf16, #tpu.memory_space<vmem>>, vector<32x128xbf16>
    %cst_53 = arith.constant dense<0.000000e+00> : vector<8x128xf32>
    %84 = tpu.matmul %82, %83, %cst_53 {dimension_numbers = #tpu.dot_dimension_numbers<[1], [0], [0], [1], [0, 0, 1, 1], [], []>} : vector<8x32xbf16>, vector<32x128xbf16>, vector<8x128xf32> -> vector<8x128xf32>
    %85 = arith.truncf %81 : vector<8x32xf32> to vector<8x32xbf16>
    %c0_54 = arith.constant 0 : index
    %c0_55 = arith.constant 0 : index
    %86 = vector.load %arg19[%c0_54, %c0_55] : memref<32x128xbf16, #tpu.memory_space<vmem>>, vector<32x128xbf16>
    %cst_56 = arith.constant dense<0.000000e+00> : vector<8x128xf32>
    %87 = tpu.matmul %85, %86, %cst_56 {dimension_numbers = #tpu.dot_dimension_numbers<[1], [0], [0], [1], [0, 0, 1, 1], [], []>} : vector<8x32xbf16>, vector<32x128xbf16>, vector<8x128xf32> -> vector<8x128xf32>
    %88 = arith.addf %84, %87 : vector<8x128xf32>
    %c0_57 = arith.constant 0 : index
    %c0_58 = arith.constant 0 : index
    %89 = vector.load %arg20[%c0_57, %c0_58] : memref<1x128xf32, #tpu.memory_space<vmem>>, vector<1x128xf32>
    %90 = vector.broadcast %89 : vector<1x128xf32> to vector<8x128xf32>
    %91 = arith.addf %88, %90 : vector<8x128xf32>
    %cst_59 = arith.constant dense<0xFF800000> : vector<8xf32>
    %92 = vector.multi_reduction <maximumf>, %91, %cst_59 [1] : vector<8x128xf32> to vector<8xf32>
    %93 = vector.shape_cast %92 : vector<8xf32> to vector<8x1xf32>
    %94 = vector.broadcast %93 : vector<8x1xf32> to vector<8x128xf32>
    %95 = arith.subf %91, %94 : vector<8x128xf32>
    %96 = math.exp %95 : vector<8x128xf32>
    %cst_60 = arith.constant dense<0.000000e+00> : vector<8xf32>
    %97 = vector.multi_reduction <add>, %96, %cst_60 [1] : vector<8x128xf32> to vector<8xf32>
    %98 = vector.shape_cast %97 : vector<8xf32> to vector<8x1xf32>
    %99 = tpu.reciprocal %98 {approx = true} : vector<8x1xf32> -> vector<8x1xf32>
    %100 = vector.broadcast %99 : vector<8x1xf32> to vector<8x128xf32>
    %101 = arith.mulf %96, %100 : vector<8x128xf32>
    %c0_61 = arith.constant 0 : index
    %c0_62 = arith.constant 0 : index
    %102 = vector.load %arg21[%c0_61, %c0_62] : memref<32x1xf32, #tpu.memory_space<vmem>>, vector<32x1xf32>
    %cst_63 = arith.constant dense<0.000000e+00> : vector<8x1xf32>
    %103 = tpu.matmul %81, %102, %cst_63 {dimension_numbers = #tpu.dot_dimension_numbers<[1], [0], [0], [1], [0, 0, 1, 1], [], []>} : vector<8x32xf32>, vector<32x1xf32>, vector<8x1xf32> -> vector<8x1xf32>
    %c0_64 = arith.constant 0 : index
    %c0_65 = arith.constant 0 : index
    %104 = vector.load %arg22[%c0_64, %c0_65] : memref<32x1xf32, #tpu.memory_space<vmem>>, vector<32x1xf32>
    %cst_66 = arith.constant dense<0.000000e+00> : vector<8x1xf32>
    %105 = tpu.matmul %56, %104, %cst_66 {dimension_numbers = #tpu.dot_dimension_numbers<[1], [0], [0], [1], [0, 0, 1, 1], [], []>} : vector<8x32xf32>, vector<32x1xf32>, vector<8x1xf32> -> vector<8x1xf32>
    %106 = arith.addf %103, %105 : vector<8x1xf32>
    %c0_67 = arith.constant 0 : index
    %c0_68 = arith.constant 0 : index
    %107 = vector.load %arg23[%c0_67, %c0_68] : memref<32x1xf32, #tpu.memory_space<vmem>>, vector<32x1xf32>
    %cst_69 = arith.constant dense<0.000000e+00> : vector<8x1xf32>
    %108 = tpu.matmul %10, %107, %cst_69 {dimension_numbers = #tpu.dot_dimension_numbers<[1], [0], [0], [1], [0, 0, 1, 1], [], []>} : vector<8x32xf32>, vector<32x1xf32>, vector<8x1xf32> -> vector<8x1xf32>
    %109 = arith.addf %106, %108 : vector<8x1xf32>
    %c0_70 = arith.constant 0 : index
    %c0_71 = arith.constant 0 : index
    %110 = vector.load %arg24[%c0_70, %c0_71] : memref<1x1xf32, #tpu.memory_space<vmem>>, vector<1x1xf32>
    %111 = vector.broadcast %110 : vector<1x1xf32> to vector<8x1xf32>
    %112 = arith.addf %109, %111 : vector<8x1xf32>
    %113 = arith.negf %112 : vector<8x1xf32>
    %114 = math.exp %113 : vector<8x1xf32>
    %cst_72 = arith.constant 1.000000e+00 : f32
    %115 = vector.broadcast %cst_72 : f32 to vector<8x1xf32>
    %116 = arith.addf %115, %114 : vector<8x1xf32>
    %117 = arith.divf %115, %116 : vector<8x1xf32>
    %118 = vector.shape_cast %77 : vector<8x8xf32> to vector<8x8x1xf32>
    %119 = vector.broadcast %118 : vector<8x8x1xf32> to vector<8x8x128xf32>
    %120 = arith.mulf %119, %6 : vector<8x8x128xf32>
    %cst_73 = arith.constant dense<0.000000e+00> : vector<8x128xf32>
    %121 = vector.multi_reduction <add>, %120, %cst_73 [1] : vector<8x8x128xf32> to vector<8x128xf32>
    %122 = vector.broadcast %117 : vector<8x1xf32> to vector<8x128xf32>
    %123 = arith.mulf %122, %101 : vector<8x128xf32>
    %cst_74 = arith.constant 1.000000e+00 : f32
    %124 = vector.broadcast %cst_74 : f32 to vector<8x1xf32>
    %125 = arith.subf %124, %117 : vector<8x1xf32>
    %126 = vector.broadcast %125 : vector<8x1xf32> to vector<8x128xf32>
    %127 = arith.mulf %126, %121 : vector<8x128xf32>
    %128 = arith.addf %123, %127 : vector<8x128xf32>
    %cst_75 = arith.constant 9.99999993E-9 : f32
    %129 = vector.broadcast %cst_75 : f32 to vector<8x128xf32>
    %130 = arith.maximumf %128, %129 : vector<8x128xf32>
    %131 = arith.index_cast %c0_i32_11 : i32 to index
    %c0_76 = arith.constant 0 : index
    %c0_77 = arith.constant 0 : index
    %132 = vector.load %arg25[%131, %c0_76, %c0_77] : memref<4x8x128xf32, #tpu.memory_space<vmem>>, vector<1x8x128xf32>
    %133 = vector.shape_cast %132 : vector<1x8x128xf32> to vector<8x128xf32>
    %134 = vector.shape_cast %130 : vector<8x128xf32> to vector<1x8x128xf32>
    tpu.vector_store %arg25[%131, %c0_76, %c0_77], %134 {strides = array<i32>} : memref<4x8x128xf32, #tpu.memory_space<vmem>>, vector<1x8x128xf32>,
    %c1_i32 = arith.constant 1 : i32
    %135 = arith.index_cast %c1_i32 : i32 to index
    %c0_78 = arith.constant 0 : index
    %c0_79 = arith.constant 0 : index
    %136 = vector.load %arg1[%135, %c0_78, %c0_79] : memref<4x8x32xf32, #tpu.memory_space<vmem>>, vector<1x8x32xf32>
    %137 = vector.shape_cast %136 : vector<1x8x32xf32> to vector<8x32xf32>
    %138 = arith.truncf %137 : vector<8x32xf32> to vector<8x32xbf16>
    %139 = arith.truncf %56 : vector<8x32xf32> to vector<8x32xbf16>
    %c0_80 = arith.constant 0 : index
    %c0_81 = arith.constant 0 : index
    %140 = vector.load %arg6[%c0_80, %c0_81] : memref<32x32xbf16, #tpu.memory_space<vmem>>, vector<32x32xbf16>
    %cst_82 = arith.constant dense<0.000000e+00> : vector<8x32xf32>
    %141 = tpu.matmul %138, %140, %cst_82 {dimension_numbers = #tpu.dot_dimension_numbers<[1], [0], [0], [1], [0, 0, 1, 1], [], []>} : vector<8x32xbf16>, vector<32x32xbf16>, vector<8x32xf32> -> vector<8x32xf32>
    %c0_83 = arith.constant 0 : index
    %c0_84 = arith.constant 0 : index
    %142 = vector.load %arg9[%c0_83, %c0_84] : memref<32x32xbf16, #tpu.memory_space<vmem>>, vector<32x32xbf16>
    %cst_85 = arith.constant dense<0.000000e+00> : vector<8x32xf32>
    %143 = tpu.matmul %139, %142, %cst_85 {dimension_numbers = #tpu.dot_dimension_numbers<[1], [0], [0], [1], [0, 0, 1, 1], [], []>} : vector<8x32xbf16>, vector<32x32xbf16>, vector<8x32xf32> -> vector<8x32xf32>
    %144 = arith.addf %141, %143 : vector<8x32xf32>
    %c0_86 = arith.constant 0 : index
    %c0_87 = arith.constant 0 : index
    %145 = vector.load %arg12[%c0_86, %c0_87] : memref<1x32xf32, #tpu.memory_space<vmem>>, vector<1x32xf32>
    %146 = vector.broadcast %145 : vector<1x32xf32> to vector<8x32xf32>
    %147 = arith.addf %144, %146 : vector<8x32xf32>
    %148 = arith.negf %147 : vector<8x32xf32>
    %149 = math.exp %148 : vector<8x32xf32>
    %cst_88 = arith.constant 1.000000e+00 : f32
    %150 = vector.broadcast %cst_88 : f32 to vector<8x32xf32>
    %151 = arith.addf %150, %149 : vector<8x32xf32>
    %152 = arith.divf %150, %151 : vector<8x32xf32>
    %c0_89 = arith.constant 0 : index
    %c0_90 = arith.constant 0 : index
    %153 = vector.load %arg7[%c0_89, %c0_90] : memref<32x32xbf16, #tpu.memory_space<vmem>>, vector<32x32xbf16>
    %cst_91 = arith.constant dense<0.000000e+00> : vector<8x32xf32>
    %154 = tpu.matmul %138, %153, %cst_91 {dimension_numbers = #tpu.dot_dimension_numbers<[1], [0], [0], [1], [0, 0, 1, 1], [], []>} : vector<8x32xbf16>, vector<32x32xbf16>, vector<8x32xf32> -> vector<8x32xf32>
    %c0_92 = arith.constant 0 : index
    %c0_93 = arith.constant 0 : index
    %155 = vector.load %arg10[%c0_92, %c0_93] : memref<32x32xbf16, #tpu.memory_space<vmem>>, vector<32x32xbf16>
    %cst_94 = arith.constant dense<0.000000e+00> : vector<8x32xf32>
    %156 = tpu.matmul %139, %155, %cst_94 {dimension_numbers = #tpu.dot_dimension_numbers<[1], [0], [0], [1], [0, 0, 1, 1], [], []>} : vector<8x32xbf16>, vector<32x32xbf16>, vector<8x32xf32> -> vector<8x32xf32>
    %157 = arith.addf %154, %156 : vector<8x32xf32>
    %c0_95 = arith.constant 0 : index
    %c0_96 = arith.constant 0 : index
    %158 = vector.load %arg13[%c0_95, %c0_96] : memref<1x32xf32, #tpu.memory_space<vmem>>, vector<1x32xf32>
    %159 = vector.broadcast %158 : vector<1x32xf32> to vector<8x32xf32>
    %160 = arith.addf %157, %159 : vector<8x32xf32>
    %161 = arith.negf %160 : vector<8x32xf32>
    %162 = math.exp %161 : vector<8x32xf32>
    %cst_97 = arith.constant 1.000000e+00 : f32
    %163 = vector.broadcast %cst_97 : f32 to vector<8x32xf32>
    %164 = arith.addf %163, %162 : vector<8x32xf32>
    %165 = arith.divf %163, %164 : vector<8x32xf32>
    %c0_98 = arith.constant 0 : index
    %c0_99 = arith.constant 0 : index
    %166 = vector.load %arg8[%c0_98, %c0_99] : memref<32x32xbf16, #tpu.memory_space<vmem>>, vector<32x32xbf16>
    %cst_100 = arith.constant dense<0.000000e+00> : vector<8x32xf32>
    %167 = tpu.matmul %138, %166, %cst_100 {dimension_numbers = #tpu.dot_dimension_numbers<[1], [0], [0], [1], [0, 0, 1, 1], [], []>} : vector<8x32xbf16>, vector<32x32xbf16>, vector<8x32xf32> -> vector<8x32xf32>
    %c0_101 = arith.constant 0 : index
    %c0_102 = arith.constant 0 : index
    %168 = vector.load %arg14[%c0_101, %c0_102] : memref<1x32xf32, #tpu.memory_space<vmem>>, vector<1x32xf32>
    %169 = vector.broadcast %168 : vector<1x32xf32> to vector<8x32xf32>
    %170 = arith.addf %167, %169 : vector<8x32xf32>
    %c0_103 = arith.constant 0 : index
    %c0_104 = arith.constant 0 : index
    %171 = vector.load %arg11[%c0_103, %c0_104] : memref<32x32xbf16, #tpu.memory_space<vmem>>, vector<32x32xbf16>
    %cst_105 = arith.constant dense<0.000000e+00> : vector<8x32xf32>
    %172 = tpu.matmul %139, %171, %cst_105 {dimension_numbers = #tpu.dot_dimension_numbers<[1], [0], [0], [1], [0, 0, 1, 1], [], []>} : vector<8x32xbf16>, vector<32x32xbf16>, vector<8x32xf32> -> vector<8x32xf32>
    %c0_106 = arith.constant 0 : index
    %c0_107 = arith.constant 0 : index
    %173 = vector.load %arg15[%c0_106, %c0_107] : memref<1x32xf32, #tpu.memory_space<vmem>>, vector<1x32xf32>
    %174 = vector.broadcast %173 : vector<1x32xf32> to vector<8x32xf32>
    %175 = arith.addf %172, %174 : vector<8x32xf32>
    %176 = arith.mulf %152, %175 : vector<8x32xf32>
    %177 = arith.addf %170, %176 : vector<8x32xf32>
    %178 = math.tanh %177 : vector<8x32xf32>
    %cst_108 = arith.constant 1.000000e+00 : f32
    %179 = vector.broadcast %cst_108 : f32 to vector<8x32xf32>
    %180 = arith.subf %179, %165 : vector<8x32xf32>
    %181 = arith.mulf %180, %178 : vector<8x32xf32>
    %182 = arith.mulf %165, %56 : vector<8x32xf32>
    %183 = arith.addf %181, %182 : vector<8x32xf32>
    %c0_109 = arith.constant 0 : index
    %c0_110 = arith.constant 0 : index
    %184 = vector.load %arg16[%c0_109, %c0_110] : memref<32x32xf32, #tpu.memory_space<vmem>>, vector<32x32xf32>
    %cst_111 = arith.constant dense<0.000000e+00> : vector<8x32xf32>
    %185 = tpu.matmul %56, %184, %cst_111 {dimension_numbers = #tpu.dot_dimension_numbers<[1], [0], [0], [1], [0, 0, 1, 1], [], []>} : vector<8x32xf32>, vector<32x32xf32>, vector<8x32xf32> -> vector<8x32xf32>
    %186 = vector.shape_cast %185 : vector<8x32xf32> to vector<8x1x32xf32>
    %187 = vector.broadcast %186 : vector<8x1x32xf32> to vector<8x8x32xf32>
    %188 = arith.addf %4, %187 : vector<8x8x32xf32>
    %189 = math.tanh %188 : vector<8x8x32xf32>
    %c0_112 = arith.constant 0 : index
    %c0_113 = arith.constant 0 : index
    %190 = vector.load %arg17[%c0_112, %c0_113] : memref<1x32xf32, #tpu.memory_space<vmem>>, vector<1x32xf32>
    %191 = vector.shape_cast %190 : vector<1x32xf32> to vector<1x1x32xf32>
    %192 = vector.broadcast %191 : vector<1x1x32xf32> to vector<8x8x32xf32>
    %193 = arith.mulf %192, %189 : vector<8x8x32xf32>
    %cst_114 = arith.constant dense<0.000000e+00> : vector<8x8xf32>
    %194 = vector.multi_reduction <add>, %193, %cst_114 [2] : vector<8x8x32xf32> to vector<8x8xf32>
    %cst_115 = arith.constant dense<0xFF800000> : vector<8xf32>
    %195 = vector.multi_reduction <maximumf>, %194, %cst_115 [1] : vector<8x8xf32> to vector<8xf32>
    %196 = vector.shape_cast %195 : vector<8xf32> to vector<8x1xf32>
    %197 = vector.broadcast %196 : vector<8x1xf32> to vector<8x8xf32>
    %198 = arith.subf %194, %197 : vector<8x8xf32>
    %199 = math.exp %198 : vector<8x8xf32>
    %cst_116 = arith.constant dense<0.000000e+00> : vector<8xf32>
    %200 = vector.multi_reduction <add>, %199, %cst_116 [1] : vector<8x8xf32> to vector<8xf32>
    %201 = vector.shape_cast %200 : vector<8xf32> to vector<8x1xf32>
    %202 = tpu.reciprocal %201 {approx = true} : vector<8x1xf32> -> vector<8x1xf32>
    %203 = vector.broadcast %202 : vector<8x1xf32> to vector<8x8xf32>
    %204 = arith.mulf %199, %203 : vector<8x8xf32>
    %205 = vector.shape_cast %204 : vector<8x8xf32> to vector<8x8x1xf32>
    %206 = vector.broadcast %205 : vector<8x8x1xf32> to vector<8x8x32xf32>
    %207 = arith.mulf %3, %206 : vector<8x8x32xf32>
    %cst_117 = arith.constant dense<0.000000e+00> : vector<8x32xf32>
    %208 = vector.multi_reduction <add>, %207, %cst_117 [1] : vector<8x8x32xf32> to vector<8x32xf32>
    %209 = arith.truncf %183 : vector<8x32xf32> to vector<8x32xbf16>
    %c0_118 = arith.constant 0 : index
    %c0_119 = arith.constant 0 : index
    %210 = vector.load %arg18[%c0_118, %c0_119] : memref<32x128xbf16, #tpu.memory_space<vmem>>, vector<32x128xbf16>
    %cst_120 = arith.constant dense<0.000000e+00> : vector<8x128xf32>
    %211 = tpu.matmul %209, %210, %cst_120 {dimension_numbers = #tpu.dot_dimension_numbers<[1], [0], [0], [1], [0, 0, 1, 1], [], []>} : vector<8x32xbf16>, vector<32x128xbf16>, vector<8x128xf32> -> vector<8x128xf32>
    %212 = arith.truncf %208 : vector<8x32xf32> to vector<8x32xbf16>
    %c0_121 = arith.constant 0 : index
    %c0_122 = arith.constant 0 : index
    %213 = vector.load %arg19[%c0_121, %c0_122] : memref<32x128xbf16, #tpu.memory_space<vmem>>, vector<32x128xbf16>
    %cst_123 = arith.constant dense<0.000000e+00> : vector<8x128xf32>
    %214 = tpu.matmul %212, %213, %cst_123 {dimension_numbers = #tpu.dot_dimension_numbers<[1], [0], [0], [1], [0, 0, 1, 1], [], []>} : vector<8x32xbf16>, vector<32x128xbf16>, vector<8x128xf32> -> vector<8x128xf32>
    %215 = arith.addf %211, %214 : vector<8x128xf32>
    %c0_124 = arith.constant 0 : index
    %c0_125 = arith.constant 0 : index
    %216 = vector.load %arg20[%c0_124, %c0_125] : memref<1x128xf32, #tpu.memory_space<vmem>>, vector<1x128xf32>
    %217 = vector.broadcast %216 : vector<1x128xf32> to vector<8x128xf32>
    %218 = arith.addf %215, %217 : vector<8x128xf32>
    %cst_126 = arith.constant dense<0xFF800000> : vector<8xf32>
    %219 = vector.multi_reduction <maximumf>, %218, %cst_126 [1] : vector<8x128xf32> to vector<8xf32>
    %220 = vector.shape_cast %219 : vector<8xf32> to vector<8x1xf32>
    %221 = vector.broadcast %220 : vector<8x1xf32> to vector<8x128xf32>
    %222 = arith.subf %218, %221 : vector<8x128xf32>
    %223 = math.exp %222 : vector<8x128xf32>
    %cst_127 = arith.constant dense<0.000000e+00> : vector<8xf32>
    %224 = vector.multi_reduction <add>, %223, %cst_127 [1] : vector<8x128xf32> to vector<8xf32>
    %225 = vector.shape_cast %224 : vector<8xf32> to vector<8x1xf32>
    %226 = tpu.reciprocal %225 {approx = true} : vector<8x1xf32> -> vector<8x1xf32>
    %227 = vector.broadcast %226 : vector<8x1xf32> to vector<8x128xf32>
    %228 = arith.mulf %223, %227 : vector<8x128xf32>
    %c0_128 = arith.constant 0 : index
    %c0_129 = arith.constant 0 : index
    %229 = vector.load %arg21[%c0_128, %c0_129] : memref<32x1xf32, #tpu.memory_space<vmem>>, vector<32x1xf32>
    %cst_130 = arith.constant dense<0.000000e+00> : vector<8x1xf32>
    %230 = tpu.matmul %208, %229, %cst_130 {dimension_numbers = #tpu.dot_dimension_numbers<[1], [0], [0], [1], [0, 0, 1, 1], [], []>} : vector<8x32xf32>, vector<32x1xf32>, vector<8x1xf32> -> vector<8x1xf32>
    %c0_131 = arith.constant 0 : index
    %c0_132 = arith.constant 0 : index
    %231 = vector.load %arg22[%c0_131, %c0_132] : memref<32x1xf32, #tpu.memory_space<vmem>>, vector<32x1xf32>
    %cst_133 = arith.constant dense<0.000000e+00> : vector<8x1xf32>
    %232 = tpu.matmul %183, %231, %cst_133 {dimension_numbers = #tpu.dot_dimension_numbers<[1], [0], [0], [1], [0, 0, 1, 1], [], []>} : vector<8x32xf32>, vector<32x1xf32>, vector<8x1xf32> -> vector<8x1xf32>
    %233 = arith.addf %230, %232 : vector<8x1xf32>
    %c0_134 = arith.constant 0 : index
    %c0_135 = arith.constant 0 : index
    %234 = vector.load %arg23[%c0_134, %c0_135] : memref<32x1xf32, #tpu.memory_space<vmem>>, vector<32x1xf32>
    %cst_136 = arith.constant dense<0.000000e+00> : vector<8x1xf32>
    %235 = tpu.matmul %137, %234, %cst_136 {dimension_numbers = #tpu.dot_dimension_numbers<[1], [0], [0], [1], [0, 0, 1, 1], [], []>} : vector<8x32xf32>, vector<32x1xf32>, vector<8x1xf32> -> vector<8x1xf32>
    %236 = arith.addf %233, %235 : vector<8x1xf32>
    %c0_137 = arith.constant 0 : index
    %c0_138 = arith.constant 0 : index
    %237 = vector.load %arg24[%c0_137, %c0_138] : memref<1x1xf32, #tpu.memory_space<vmem>>, vector<1x1xf32>
    %238 = vector.broadcast %237 : vector<1x1xf32> to vector<8x1xf32>
    %239 = arith.addf %236, %238 : vector<8x1xf32>
    %240 = arith.negf %239 : vector<8x1xf32>
    %241 = math.exp %240 : vector<8x1xf32>
    %cst_139 = arith.constant 1.000000e+00 : f32
    %242 = vector.broadcast %cst_139 : f32 to vector<8x1xf32>
    %243 = arith.addf %242, %241 : vector<8x1xf32>
    %244 = arith.divf %242, %243 : vector<8x1xf32>
    %245 = vector.shape_cast %204 : vector<8x8xf32> to vector<8x8x1xf32>
    %246 = vector.broadcast %245 : vector<8x8x1xf32> to vector<8x8x128xf32>
    %247 = arith.mulf %246, %6 : vector<8x8x128xf32>
    %cst_140 = arith.constant dense<0.000000e+00> : vector<8x128xf32>
    %248 = vector.multi_reduction <add>, %247, %cst_140 [1] : vector<8x8x128xf32> to vector<8x128xf32>
    %249 = vector.broadcast %244 : vector<8x1xf32> to vector<8x128xf32>
    %250 = arith.mulf %249, %228 : vector<8x128xf32>
    %cst_141 = arith.constant 1.000000e+00 : f32
    %251 = vector.broadcast %cst_141 : f32 to vector<8x1xf32>
    %252 = arith.subf %251, %244 : vector<8x1xf32>
    %253 = vector.broadcast %252 : vector<8x1xf32> to vector<8x128xf32>
    %254 = arith.mulf %253, %248 : vector<8x128xf32>
    %255 = arith.addf %250, %254 : vector<8x128xf32>
    %cst_142 = arith.constant 9.99999993E-9 : f32
    %256 = vector.broadcast %cst_142 : f32 to vector<8x128xf32>
    %257 = arith.maximumf %255, %256 : vector<8x128xf32>
    %258 = arith.index_cast %c1_i32 : i32 to index
    %c0_143 = arith.constant 0 : index
    %c0_144 = arith.constant 0 : index
    %259 = vector.load %arg25[%258, %c0_143, %c0_144] : memref<4x8x128xf32, #tpu.memory_space<vmem>>, vector<1x8x128xf32>
    %260 = vector.shape_cast %259 : vector<1x8x128xf32> to vector<8x128xf32>
    %261 = vector.shape_cast %257 : vector<8x128xf32> to vector<1x8x128xf32>
    tpu.vector_store %arg25[%258, %c0_143, %c0_144], %261 {strides = array<i32>} : memref<4x8x128xf32, #tpu.memory_space<vmem>>, vector<1x8x128xf32>,
    %c2_i32 = arith.constant 2 : i32
    %262 = arith.index_cast %c2_i32 : i32 to index
    %c0_145 = arith.constant 0 : index
    %c0_146 = arith.constant 0 : index
    %263 = vector.load %arg1[%262, %c0_145, %c0_146] : memref<4x8x32xf32, #tpu.memory_space<vmem>>, vector<1x8x32xf32>
    %264 = vector.shape_cast %263 : vector<1x8x32xf32> to vector<8x32xf32>
    %265 = arith.truncf %264 : vector<8x32xf32> to vector<8x32xbf16>
    %266 = arith.truncf %183 : vector<8x32xf32> to vector<8x32xbf16>
    %c0_147 = arith.constant 0 : index
    %c0_148 = arith.constant 0 : index
    %267 = vector.load %arg6[%c0_147, %c0_148] : memref<32x32xbf16, #tpu.memory_space<vmem>>, vector<32x32xbf16>
    %cst_149 = arith.constant dense<0.000000e+00> : vector<8x32xf32>
    %268 = tpu.matmul %265, %267, %cst_149 {dimension_numbers = #tpu.dot_dimension_numbers<[1], [0], [0], [1], [0, 0, 1, 1], [], []>} : vector<8x32xbf16>, vector<32x32xbf16>, vector<8x32xf32> -> vector<8x32xf32>
    %c0_150 = arith.constant 0 : index
    %c0_151 = arith.constant 0 : index
    %269 = vector.load %arg9[%c0_150, %c0_151] : memref<32x32xbf16, #tpu.memory_space<vmem>>, vector<32x32xbf16>
    %cst_152 = arith.constant dense<0.000000e+00> : vector<8x32xf32>
    %270 = tpu.matmul %266, %269, %cst_152 {dimension_numbers = #tpu.dot_dimension_numbers<[1], [0], [0], [1], [0, 0, 1, 1], [], []>} : vector<8x32xbf16>, vector<32x32xbf16>, vector<8x32xf32> -> vector<8x32xf32>
    %271 = arith.addf %268, %270 : vector<8x32xf32>
    %c0_153 = arith.constant 0 : index
    %c0_154 = arith.constant 0 : index
    %272 = vector.load %arg12[%c0_153, %c0_154] : memref<1x32xf32, #tpu.memory_space<vmem>>, vector<1x32xf32>
    %273 = vector.broadcast %272 : vector<1x32xf32> to vector<8x32xf32>
    %274 = arith.addf %271, %273 : vector<8x32xf32>
    %275 = arith.negf %274 : vector<8x32xf32>
    %276 = math.exp %275 : vector<8x32xf32>
    %cst_155 = arith.constant 1.000000e+00 : f32
    %277 = vector.broadcast %cst_155 : f32 to vector<8x32xf32>
    %278 = arith.addf %277, %276 : vector<8x32xf32>
    %279 = arith.divf %277, %278 : vector<8x32xf32>
    %c0_156 = arith.constant 0 : index
    %c0_157 = arith.constant 0 : index
    %280 = vector.load %arg7[%c0_156, %c0_157] : memref<32x32xbf16, #tpu.memory_space<vmem>>, vector<32x32xbf16>
    %cst_158 = arith.constant dense<0.000000e+00> : vector<8x32xf32>
    %281 = tpu.matmul %265, %280, %cst_158 {dimension_numbers = #tpu.dot_dimension_numbers<[1], [0], [0], [1], [0, 0, 1, 1], [], []>} : vector<8x32xbf16>, vector<32x32xbf16>, vector<8x32xf32> -> vector<8x32xf32>
    %c0_159 = arith.constant 0 : index
    %c0_160 = arith.constant 0 : index
    %282 = vector.load %arg10[%c0_159, %c0_160] : memref<32x32xbf16, #tpu.memory_space<vmem>>, vector<32x32xbf16>
    %cst_161 = arith.constant dense<0.000000e+00> : vector<8x32xf32>
    %283 = tpu.matmul %266, %282, %cst_161 {dimension_numbers = #tpu.dot_dimension_numbers<[1], [0], [0], [1], [0, 0, 1, 1], [], []>} : vector<8x32xbf16>, vector<32x32xbf16>, vector<8x32xf32> -> vector<8x32xf32>
    %284 = arith.addf %281, %283 : vector<8x32xf32>
    %c0_162 = arith.constant 0 : index
    %c0_163 = arith.constant 0 : index
    %285 = vector.load %arg13[%c0_162, %c0_163] : memref<1x32xf32, #tpu.memory_space<vmem>>, vector<1x32xf32>
    %286 = vector.broadcast %285 : vector<1x32xf32> to vector<8x32xf32>
    %287 = arith.addf %284, %286 : vector<8x32xf32>
    %288 = arith.negf %287 : vector<8x32xf32>
    %289 = math.exp %288 : vector<8x32xf32>
    %cst_164 = arith.constant 1.000000e+00 : f32
    %290 = vector.broadcast %cst_164 : f32 to vector<8x32xf32>
    %291 = arith.addf %290, %289 : vector<8x32xf32>
    %292 = arith.divf %290, %291 : vector<8x32xf32>
    %c0_165 = arith.constant 0 : index
    %c0_166 = arith.constant 0 : index
    %293 = vector.load %arg8[%c0_165, %c0_166] : memref<32x32xbf16, #tpu.memory_space<vmem>>, vector<32x32xbf16>
    %cst_167 = arith.constant dense<0.000000e+00> : vector<8x32xf32>
    %294 = tpu.matmul %265, %293, %cst_167 {dimension_numbers = #tpu.dot_dimension_numbers<[1], [0], [0], [1], [0, 0, 1, 1], [], []>} : vector<8x32xbf16>, vector<32x32xbf16>, vector<8x32xf32> -> vector<8x32xf32>
    %c0_168 = arith.constant 0 : index
    %c0_169 = arith.constant 0 : index
    %295 = vector.load %arg14[%c0_168, %c0_169] : memref<1x32xf32, #tpu.memory_space<vmem>>, vector<1x32xf32>
    %296 = vector.broadcast %295 : vector<1x32xf32> to vector<8x32xf32>
    %297 = arith.addf %294, %296 : vector<8x32xf32>
    %c0_170 = arith.constant 0 : index
    %c0_171 = arith.constant 0 : index
    %298 = vector.load %arg11[%c0_170, %c0_171] : memref<32x32xbf16, #tpu.memory_space<vmem>>, vector<32x32xbf16>
    %cst_172 = arith.constant dense<0.000000e+00> : vector<8x32xf32>
    %299 = tpu.matmul %266, %298, %cst_172 {dimension_numbers = #tpu.dot_dimension_numbers<[1], [0], [0], [1], [0, 0, 1, 1], [], []>} : vector<8x32xbf16>, vector<32x32xbf16>, vector<8x32xf32> -> vector<8x32xf32>
    %c0_173 = arith.constant 0 : index
    %c0_174 = arith.constant 0 : index
    %300 = vector.load %arg15[%c0_173, %c0_174] : memref<1x32xf32, #tpu.memory_space<vmem>>, vector<1x32xf32>
    %301 = vector.broadcast %300 : vector<1x32xf32> to vector<8x32xf32>
    %302 = arith.addf %299, %301 : vector<8x32xf32>
    %303 = arith.mulf %279, %302 : vector<8x32xf32>
    %304 = arith.addf %297, %303 : vector<8x32xf32>
    %305 = math.tanh %304 : vector<8x32xf32>
    %cst_175 = arith.constant 1.000000e+00 : f32
    %306 = vector.broadcast %cst_175 : f32 to vector<8x32xf32>
    %307 = arith.subf %306, %292 : vector<8x32xf32>
    %308 = arith.mulf %307, %305 : vector<8x32xf32>
    %309 = arith.mulf %292, %183 : vector<8x32xf32>
    %310 = arith.addf %308, %309 : vector<8x32xf32>
    %c0_176 = arith.constant 0 : index
    %c0_177 = arith.constant 0 : index
    %311 = vector.load %arg16[%c0_176, %c0_177] : memref<32x32xf32, #tpu.memory_space<vmem>>, vector<32x32xf32>
    %cst_178 = arith.constant dense<0.000000e+00> : vector<8x32xf32>
    %312 = tpu.matmul %183, %311, %cst_178 {dimension_numbers = #tpu.dot_dimension_numbers<[1], [0], [0], [1], [0, 0, 1, 1], [], []>} : vector<8x32xf32>, vector<32x32xf32>, vector<8x32xf32> -> vector<8x32xf32>
    %313 = vector.shape_cast %312 : vector<8x32xf32> to vector<8x1x32xf32>
    %314 = vector.broadcast %313 : vector<8x1x32xf32> to vector<8x8x32xf32>
    %315 = arith.addf %4, %314 : vector<8x8x32xf32>
    %316 = math.tanh %315 : vector<8x8x32xf32>
    %c0_179 = arith.constant 0 : index
    %c0_180 = arith.constant 0 : index
    %317 = vector.load %arg17[%c0_179, %c0_180] : memref<1x32xf32, #tpu.memory_space<vmem>>, vector<1x32xf32>
    %318 = vector.shape_cast %317 : vector<1x32xf32> to vector<1x1x32xf32>
    %319 = vector.broadcast %318 : vector<1x1x32xf32> to vector<8x8x32xf32>
    %320 = arith.mulf %319, %316 : vector<8x8x32xf32>
    %cst_181 = arith.constant dense<0.000000e+00> : vector<8x8xf32>
    %321 = vector.multi_reduction <add>, %320, %cst_181 [2] : vector<8x8x32xf32> to vector<8x8xf32>
    %cst_182 = arith.constant dense<0xFF800000> : vector<8xf32>
    %322 = vector.multi_reduction <maximumf>, %321, %cst_182 [1] : vector<8x8xf32> to vector<8xf32>
    %323 = vector.shape_cast %322 : vector<8xf32> to vector<8x1xf32>
    %324 = vector.broadcast %323 : vector<8x1xf32> to vector<8x8xf32>
    %325 = arith.subf %321, %324 : vector<8x8xf32>
    %326 = math.exp %325 : vector<8x8xf32>
    %cst_183 = arith.constant dense<0.000000e+00> : vector<8xf32>
    %327 = vector.multi_reduction <add>, %326, %cst_183 [1] : vector<8x8xf32> to vector<8xf32>
    %328 = vector.shape_cast %327 : vector<8xf32> to vector<8x1xf32>
    %329 = tpu.reciprocal %328 {approx = true} : vector<8x1xf32> -> vector<8x1xf32>
    %330 = vector.broadcast %329 : vector<8x1xf32> to vector<8x8xf32>
    %331 = arith.mulf %326, %330 : vector<8x8xf32>
    %332 = vector.shape_cast %331 : vector<8x8xf32> to vector<8x8x1xf32>
    %333 = vector.broadcast %332 : vector<8x8x1xf32> to vector<8x8x32xf32>
    %334 = arith.mulf %3, %333 : vector<8x8x32xf32>
    %cst_184 = arith.constant dense<0.000000e+00> : vector<8x32xf32>
    %335 = vector.multi_reduction <add>, %334, %cst_184 [1] : vector<8x8x32xf32> to vector<8x32xf32>
    %336 = arith.truncf %310 : vector<8x32xf32> to vector<8x32xbf16>
    %c0_185 = arith.constant 0 : index
    %c0_186 = arith.constant 0 : index
    %337 = vector.load %arg18[%c0_185, %c0_186] : memref<32x128xbf16, #tpu.memory_space<vmem>>, vector<32x128xbf16>
    %cst_187 = arith.constant dense<0.000000e+00> : vector<8x128xf32>
    %338 = tpu.matmul %336, %337, %cst_187 {dimension_numbers = #tpu.dot_dimension_numbers<[1], [0], [0], [1], [0, 0, 1, 1], [], []>} : vector<8x32xbf16>, vector<32x128xbf16>, vector<8x128xf32> -> vector<8x128xf32>
    %339 = arith.truncf %335 : vector<8x32xf32> to vector<8x32xbf16>
    %c0_188 = arith.constant 0 : index
    %c0_189 = arith.constant 0 : index
    %340 = vector.load %arg19[%c0_188, %c0_189] : memref<32x128xbf16, #tpu.memory_space<vmem>>, vector<32x128xbf16>
    %cst_190 = arith.constant dense<0.000000e+00> : vector<8x128xf32>
    %341 = tpu.matmul %339, %340, %cst_190 {dimension_numbers = #tpu.dot_dimension_numbers<[1], [0], [0], [1], [0, 0, 1, 1], [], []>} : vector<8x32xbf16>, vector<32x128xbf16>, vector<8x128xf32> -> vector<8x128xf32>
    %342 = arith.addf %338, %341 : vector<8x128xf32>
    %c0_191 = arith.constant 0 : index
    %c0_192 = arith.constant 0 : index
    %343 = vector.load %arg20[%c0_191, %c0_192] : memref<1x128xf32, #tpu.memory_space<vmem>>, vector<1x128xf32>
    %344 = vector.broadcast %343 : vector<1x128xf32> to vector<8x128xf32>
    %345 = arith.addf %342, %344 : vector<8x128xf32>
    %cst_193 = arith.constant dense<0xFF800000> : vector<8xf32>
    %346 = vector.multi_reduction <maximumf>, %345, %cst_193 [1] : vector<8x128xf32> to vector<8xf32>
    %347 = vector.shape_cast %346 : vector<8xf32> to vector<8x1xf32>
    %348 = vector.broadcast %347 : vector<8x1xf32> to vector<8x128xf32>
    %349 = arith.subf %345, %348 : vector<8x128xf32>
    %350 = math.exp %349 : vector<8x128xf32>
    %cst_194 = arith.constant dense<0.000000e+00> : vector<8xf32>
    %351 = vector.multi_reduction <add>, %350, %cst_194 [1] : vector<8x128xf32> to vector<8xf32>
    %352 = vector.shape_cast %351 : vector<8xf32> to vector<8x1xf32>
    %353 = tpu.reciprocal %352 {approx = true} : vector<8x1xf32> -> vector<8x1xf32>
    %354 = vector.broadcast %353 : vector<8x1xf32> to vector<8x128xf32>
    %355 = arith.mulf %350, %354 : vector<8x128xf32>
    %c0_195 = arith.constant 0 : index
    %c0_196 = arith.constant 0 : index
    %356 = vector.load %arg21[%c0_195, %c0_196] : memref<32x1xf32, #tpu.memory_space<vmem>>, vector<32x1xf32>
    %cst_197 = arith.constant dense<0.000000e+00> : vector<8x1xf32>
    %357 = tpu.matmul %335, %356, %cst_197 {dimension_numbers = #tpu.dot_dimension_numbers<[1], [0], [0], [1], [0, 0, 1, 1], [], []>} : vector<8x32xf32>, vector<32x1xf32>, vector<8x1xf32> -> vector<8x1xf32>
    %c0_198 = arith.constant 0 : index
    %c0_199 = arith.constant 0 : index
    %358 = vector.load %arg22[%c0_198, %c0_199] : memref<32x1xf32, #tpu.memory_space<vmem>>, vector<32x1xf32>
    %cst_200 = arith.constant dense<0.000000e+00> : vector<8x1xf32>
    %359 = tpu.matmul %310, %358, %cst_200 {dimension_numbers = #tpu.dot_dimension_numbers<[1], [0], [0], [1], [0, 0, 1, 1], [], []>} : vector<8x32xf32>, vector<32x1xf32>, vector<8x1xf32> -> vector<8x1xf32>
    %360 = arith.addf %357, %359 : vector<8x1xf32>
    %c0_201 = arith.constant 0 : index
    %c0_202 = arith.constant 0 : index
    %361 = vector.load %arg23[%c0_201, %c0_202] : memref<32x1xf32, #tpu.memory_space<vmem>>, vector<32x1xf32>
    %cst_203 = arith.constant dense<0.000000e+00> : vector<8x1xf32>
    %362 = tpu.matmul %264, %361, %cst_203 {dimension_numbers = #tpu.dot_dimension_numbers<[1], [0], [0], [1], [0, 0, 1, 1], [], []>} : vector<8x32xf32>, vector<32x1xf32>, vector<8x1xf32> -> vector<8x1xf32>
    %363 = arith.addf %360, %362 : vector<8x1xf32>
    %c0_204 = arith.constant 0 : index
    %c0_205 = arith.constant 0 : index
    %364 = vector.load %arg24[%c0_204, %c0_205] : memref<1x1xf32, #tpu.memory_space<vmem>>, vector<1x1xf32>
    %365 = vector.broadcast %364 : vector<1x1xf32> to vector<8x1xf32>
    %366 = arith.addf %363, %365 : vector<8x1xf32>
    %367 = arith.negf %366 : vector<8x1xf32>
    %368 = math.exp %367 : vector<8x1xf32>
    %cst_206 = arith.constant 1.000000e+00 : f32
    %369 = vector.broadcast %cst_206 : f32 to vector<8x1xf32>
    %370 = arith.addf %369, %368 : vector<8x1xf32>
    %371 = arith.divf %369, %370 : vector<8x1xf32>
    %372 = vector.shape_cast %331 : vector<8x8xf32> to vector<8x8x1xf32>
    %373 = vector.broadcast %372 : vector<8x8x1xf32> to vector<8x8x128xf32>
    %374 = arith.mulf %373, %6 : vector<8x8x128xf32>
    %cst_207 = arith.constant dense<0.000000e+00> : vector<8x128xf32>
    %375 = vector.multi_reduction <add>, %374, %cst_207 [1] : vector<8x8x128xf32> to vector<8x128xf32>
    %376 = vector.broadcast %371 : vector<8x1xf32> to vector<8x128xf32>
    %377 = arith.mulf %376, %355 : vector<8x128xf32>
    %cst_208 = arith.constant 1.000000e+00 : f32
    %378 = vector.broadcast %cst_208 : f32 to vector<8x1xf32>
    %379 = arith.subf %378, %371 : vector<8x1xf32>
    %380 = vector.broadcast %379 : vector<8x1xf32> to vector<8x128xf32>
    %381 = arith.mulf %380, %375 : vector<8x128xf32>
    %382 = arith.addf %377, %381 : vector<8x128xf32>
    %cst_209 = arith.constant 9.99999993E-9 : f32
    %383 = vector.broadcast %cst_209 : f32 to vector<8x128xf32>
    %384 = arith.maximumf %382, %383 : vector<8x128xf32>
    %385 = arith.index_cast %c2_i32 : i32 to index
    %c0_210 = arith.constant 0 : index
    %c0_211 = arith.constant 0 : index
    %386 = vector.load %arg25[%385, %c0_210, %c0_211] : memref<4x8x128xf32, #tpu.memory_space<vmem>>, vector<1x8x128xf32>
    %387 = vector.shape_cast %386 : vector<1x8x128xf32> to vector<8x128xf32>
    %388 = vector.shape_cast %384 : vector<8x128xf32> to vector<1x8x128xf32>
    tpu.vector_store %arg25[%385, %c0_210, %c0_211], %388 {strides = array<i32>} : memref<4x8x128xf32, #tpu.memory_space<vmem>>, vector<1x8x128xf32>,
    %c3_i32 = arith.constant 3 : i32
    %389 = arith.index_cast %c3_i32 : i32 to index
    %c0_212 = arith.constant 0 : index
    %c0_213 = arith.constant 0 : index
    %390 = vector.load %arg1[%389, %c0_212, %c0_213] : memref<4x8x32xf32, #tpu.memory_space<vmem>>, vector<1x8x32xf32>
    %391 = vector.shape_cast %390 : vector<1x8x32xf32> to vector<8x32xf32>
    %392 = arith.truncf %391 : vector<8x32xf32> to vector<8x32xbf16>
    %393 = arith.truncf %310 : vector<8x32xf32> to vector<8x32xbf16>
    %c0_214 = arith.constant 0 : index
    %c0_215 = arith.constant 0 : index
    %394 = vector.load %arg6[%c0_214, %c0_215] : memref<32x32xbf16, #tpu.memory_space<vmem>>, vector<32x32xbf16>
    %cst_216 = arith.constant dense<0.000000e+00> : vector<8x32xf32>
    %395 = tpu.matmul %392, %394, %cst_216 {dimension_numbers = #tpu.dot_dimension_numbers<[1], [0], [0], [1], [0, 0, 1, 1], [], []>} : vector<8x32xbf16>, vector<32x32xbf16>, vector<8x32xf32> -> vector<8x32xf32>
    %c0_217 = arith.constant 0 : index
    %c0_218 = arith.constant 0 : index
    %396 = vector.load %arg9[%c0_217, %c0_218] : memref<32x32xbf16, #tpu.memory_space<vmem>>, vector<32x32xbf16>
    %cst_219 = arith.constant dense<0.000000e+00> : vector<8x32xf32>
    %397 = tpu.matmul %393, %396, %cst_219 {dimension_numbers = #tpu.dot_dimension_numbers<[1], [0], [0], [1], [0, 0, 1, 1], [], []>} : vector<8x32xbf16>, vector<32x32xbf16>, vector<8x32xf32> -> vector<8x32xf32>
    %398 = arith.addf %395, %397 : vector<8x32xf32>
    %c0_220 = arith.constant 0 : index
    %c0_221 = arith.constant 0 : index
    %399 = vector.load %arg12[%c0_220, %c0_221] : memref<1x32xf32, #tpu.memory_space<vmem>>, vector<1x32xf32>
    %400 = vector.broadcast %399 : vector<1x32xf32> to vector<8x32xf32>
    %401 = arith.addf %398, %400 : vector<8x32xf32>
    %402 = arith.negf %401 : vector<8x32xf32>
    %403 = math.exp %402 : vector<8x32xf32>
    %cst_222 = arith.constant 1.000000e+00 : f32
    %404 = vector.broadcast %cst_222 : f32 to vector<8x32xf32>
    %405 = arith.addf %404, %403 : vector<8x32xf32>
    %406 = arith.divf %404, %405 : vector<8x32xf32>
    %c0_223 = arith.constant 0 : index
    %c0_224 = arith.constant 0 : index
    %407 = vector.load %arg7[%c0_223, %c0_224] : memref<32x32xbf16, #tpu.memory_space<vmem>>, vector<32x32xbf16>
    %cst_225 = arith.constant dense<0.000000e+00> : vector<8x32xf32>
    %408 = tpu.matmul %392, %407, %cst_225 {dimension_numbers = #tpu.dot_dimension_numbers<[1], [0], [0], [1], [0, 0, 1, 1], [], []>} : vector<8x32xbf16>, vector<32x32xbf16>, vector<8x32xf32> -> vector<8x32xf32>
    %c0_226 = arith.constant 0 : index
    %c0_227 = arith.constant 0 : index
    %409 = vector.load %arg10[%c0_226, %c0_227] : memref<32x32xbf16, #tpu.memory_space<vmem>>, vector<32x32xbf16>
    %cst_228 = arith.constant dense<0.000000e+00> : vector<8x32xf32>
    %410 = tpu.matmul %393, %409, %cst_228 {dimension_numbers = #tpu.dot_dimension_numbers<[1], [0], [0], [1], [0, 0, 1, 1], [], []>} : vector<8x32xbf16>, vector<32x32xbf16>, vector<8x32xf32> -> vector<8x32xf32>
    %411 = arith.addf %408, %410 : vector<8x32xf32>
    %c0_229 = arith.constant 0 : index
    %c0_230 = arith.constant 0 : index
    %412 = vector.load %arg13[%c0_229, %c0_230] : memref<1x32xf32, #tpu.memory_space<vmem>>, vector<1x32xf32>
    %413 = vector.broadcast %412 : vector<1x32xf32> to vector<8x32xf32>
    %414 = arith.addf %411, %413 : vector<8x32xf32>
    %415 = arith.negf %414 : vector<8x32xf32>
    %416 = math.exp %415 : vector<8x32xf32>
    %cst_231 = arith.constant 1.000000e+00 : f32
    %417 = vector.broadcast %cst_231 : f32 to vector<8x32xf32>
    %418 = arith.addf %417, %416 : vector<8x32xf32>
    %419 = arith.divf %417, %418 : vector<8x32xf32>
    %c0_232 = arith.constant 0 : index
    %c0_233 = arith.constant 0 : index
    %420 = vector.load %arg8[%c0_232, %c0_233] : memref<32x32xbf16, #tpu.memory_space<vmem>>, vector<32x32xbf16>
    %cst_234 = arith.constant dense<0.000000e+00> : vector<8x32xf32>
    %421 = tpu.matmul %392, %420, %cst_234 {dimension_numbers = #tpu.dot_dimension_numbers<[1], [0], [0], [1], [0, 0, 1, 1], [], []>} : vector<8x32xbf16>, vector<32x32xbf16>, vector<8x32xf32> -> vector<8x32xf32>
    %c0_235 = arith.constant 0 : index
    %c0_236 = arith.constant 0 : index
    %422 = vector.load %arg14[%c0_235, %c0_236] : memref<1x32xf32, #tpu.memory_space<vmem>>, vector<1x32xf32>
    %423 = vector.broadcast %422 : vector<1x32xf32> to vector<8x32xf32>
    %424 = arith.addf %421, %423 : vector<8x32xf32>
    %c0_237 = arith.constant 0 : index
    %c0_238 = arith.constant 0 : index
    %425 = vector.load %arg11[%c0_237, %c0_238] : memref<32x32xbf16, #tpu.memory_space<vmem>>, vector<32x32xbf16>
    %cst_239 = arith.constant dense<0.000000e+00> : vector<8x32xf32>
    %426 = tpu.matmul %393, %425, %cst_239 {dimension_numbers = #tpu.dot_dimension_numbers<[1], [0], [0], [1], [0, 0, 1, 1], [], []>} : vector<8x32xbf16>, vector<32x32xbf16>, vector<8x32xf32> -> vector<8x32xf32>
    %c0_240 = arith.constant 0 : index
    %c0_241 = arith.constant 0 : index
    %427 = vector.load %arg15[%c0_240, %c0_241] : memref<1x32xf32, #tpu.memory_space<vmem>>, vector<1x32xf32>
    %428 = vector.broadcast %427 : vector<1x32xf32> to vector<8x32xf32>
    %429 = arith.addf %426, %428 : vector<8x32xf32>
    %430 = arith.mulf %406, %429 : vector<8x32xf32>
    %431 = arith.addf %424, %430 : vector<8x32xf32>
    %432 = math.tanh %431 : vector<8x32xf32>
    %cst_242 = arith.constant 1.000000e+00 : f32
    %433 = vector.broadcast %cst_242 : f32 to vector<8x32xf32>
    %434 = arith.subf %433, %419 : vector<8x32xf32>
    %435 = arith.mulf %434, %432 : vector<8x32xf32>
    %436 = arith.mulf %419, %310 : vector<8x32xf32>
    %437 = arith.addf %435, %436 : vector<8x32xf32>
    %c0_243 = arith.constant 0 : index
    %c0_244 = arith.constant 0 : index
    %438 = vector.load %arg16[%c0_243, %c0_244] : memref<32x32xf32, #tpu.memory_space<vmem>>, vector<32x32xf32>
    %cst_245 = arith.constant dense<0.000000e+00> : vector<8x32xf32>
    %439 = tpu.matmul %310, %438, %cst_245 {dimension_numbers = #tpu.dot_dimension_numbers<[1], [0], [0], [1], [0, 0, 1, 1], [], []>} : vector<8x32xf32>, vector<32x32xf32>, vector<8x32xf32> -> vector<8x32xf32>
    %440 = vector.shape_cast %439 : vector<8x32xf32> to vector<8x1x32xf32>
    %441 = vector.broadcast %440 : vector<8x1x32xf32> to vector<8x8x32xf32>
    %442 = arith.addf %4, %441 : vector<8x8x32xf32>
    %443 = math.tanh %442 : vector<8x8x32xf32>
    %c0_246 = arith.constant 0 : index
    %c0_247 = arith.constant 0 : index
    %444 = vector.load %arg17[%c0_246, %c0_247] : memref<1x32xf32, #tpu.memory_space<vmem>>, vector<1x32xf32>
    %445 = vector.shape_cast %444 : vector<1x32xf32> to vector<1x1x32xf32>
    %446 = vector.broadcast %445 : vector<1x1x32xf32> to vector<8x8x32xf32>
    %447 = arith.mulf %446, %443 : vector<8x8x32xf32>
    %cst_248 = arith.constant dense<0.000000e+00> : vector<8x8xf32>
    %448 = vector.multi_reduction <add>, %447, %cst_248 [2] : vector<8x8x32xf32> to vector<8x8xf32>
    %cst_249 = arith.constant dense<0xFF800000> : vector<8xf32>
    %449 = vector.multi_reduction <maximumf>, %448, %cst_249 [1] : vector<8x8xf32> to vector<8xf32>
    %450 = vector.shape_cast %449 : vector<8xf32> to vector<8x1xf32>
    %451 = vector.broadcast %450 : vector<8x1xf32> to vector<8x8xf32>
    %452 = arith.subf %448, %451 : vector<8x8xf32>
    %453 = math.exp %452 : vector<8x8xf32>
    %cst_250 = arith.constant dense<0.000000e+00> : vector<8xf32>
    %454 = vector.multi_reduction <add>, %453, %cst_250 [1] : vector<8x8xf32> to vector<8xf32>
    %455 = vector.shape_cast %454 : vector<8xf32> to vector<8x1xf32>
    %456 = tpu.reciprocal %455 {approx = true} : vector<8x1xf32> -> vector<8x1xf32>
    %457 = vector.broadcast %456 : vector<8x1xf32> to vector<8x8xf32>
    %458 = arith.mulf %453, %457 : vector<8x8xf32>
    %459 = vector.shape_cast %458 : vector<8x8xf32> to vector<8x8x1xf32>
    %460 = vector.broadcast %459 : vector<8x8x1xf32> to vector<8x8x32xf32>
    %461 = arith.mulf %3, %460 : vector<8x8x32xf32>
    %cst_251 = arith.constant dense<0.000000e+00> : vector<8x32xf32>
    %462 = vector.multi_reduction <add>, %461, %cst_251 [1] : vector<8x8x32xf32> to vector<8x32xf32>
    %463 = arith.truncf %437 : vector<8x32xf32> to vector<8x32xbf16>
    %c0_252 = arith.constant 0 : index
    %c0_253 = arith.constant 0 : index
    %464 = vector.load %arg18[%c0_252, %c0_253] : memref<32x128xbf16, #tpu.memory_space<vmem>>, vector<32x128xbf16>
    %cst_254 = arith.constant dense<0.000000e+00> : vector<8x128xf32>
    %465 = tpu.matmul %463, %464, %cst_254 {dimension_numbers = #tpu.dot_dimension_numbers<[1], [0], [0], [1], [0, 0, 1, 1], [], []>} : vector<8x32xbf16>, vector<32x128xbf16>, vector<8x128xf32> -> vector<8x128xf32>
    %466 = arith.truncf %462 : vector<8x32xf32> to vector<8x32xbf16>
    %c0_255 = arith.constant 0 : index
    %c0_256 = arith.constant 0 : index
    %467 = vector.load %arg19[%c0_255, %c0_256] : memref<32x128xbf16, #tpu.memory_space<vmem>>, vector<32x128xbf16>
    %cst_257 = arith.constant dense<0.000000e+00> : vector<8x128xf32>
    %468 = tpu.matmul %466, %467, %cst_257 {dimension_numbers = #tpu.dot_dimension_numbers<[1], [0], [0], [1], [0, 0, 1, 1], [], []>} : vector<8x32xbf16>, vector<32x128xbf16>, vector<8x128xf32> -> vector<8x128xf32>
    %469 = arith.addf %465, %468 : vector<8x128xf32>
    %c0_258 = arith.constant 0 : index
    %c0_259 = arith.constant 0 : index
    %470 = vector.load %arg20[%c0_258, %c0_259] : memref<1x128xf32, #tpu.memory_space<vmem>>, vector<1x128xf32>
    %471 = vector.broadcast %470 : vector<1x128xf32> to vector<8x128xf32>
    %472 = arith.addf %469, %471 : vector<8x128xf32>
    %cst_260 = arith.constant dense<0xFF800000> : vector<8xf32>
    %473 = vector.multi_reduction <maximumf>, %472, %cst_260 [1] : vector<8x128xf32> to vector<8xf32>
    %474 = vector.shape_cast %473 : vector<8xf32> to vector<8x1xf32>
    %475 = vector.broadcast %474 : vector<8x1xf32> to vector<8x128xf32>
    %476 = arith.subf %472, %475 : vector<8x128xf32>
    %477 = math.exp %476 : vector<8x128xf32>
    %cst_261 = arith.constant dense<0.000000e+00> : vector<8xf32>
    %478 = vector.multi_reduction <add>, %477, %cst_261 [1] : vector<8x128xf32> to vector<8xf32>
    %479 = vector.shape_cast %478 : vector<8xf32> to vector<8x1xf32>
    %480 = tpu.reciprocal %479 {approx = true} : vector<8x1xf32> -> vector<8x1xf32>
    %481 = vector.broadcast %480 : vector<8x1xf32> to vector<8x128xf32>
    %482 = arith.mulf %477, %481 : vector<8x128xf32>
    %c0_262 = arith.constant 0 : index
    %c0_263 = arith.constant 0 : index
    %483 = vector.load %arg21[%c0_262, %c0_263] : memref<32x1xf32, #tpu.memory_space<vmem>>, vector<32x1xf32>
    %cst_264 = arith.constant dense<0.000000e+00> : vector<8x1xf32>
    %484 = tpu.matmul %462, %483, %cst_264 {dimension_numbers = #tpu.dot_dimension_numbers<[1], [0], [0], [1], [0, 0, 1, 1], [], []>} : vector<8x32xf32>, vector<32x1xf32>, vector<8x1xf32> -> vector<8x1xf32>
    %c0_265 = arith.constant 0 : index
    %c0_266 = arith.constant 0 : index
    %485 = vector.load %arg22[%c0_265, %c0_266] : memref<32x1xf32, #tpu.memory_space<vmem>>, vector<32x1xf32>
    %cst_267 = arith.constant dense<0.000000e+00> : vector<8x1xf32>
    %486 = tpu.matmul %437, %485, %cst_267 {dimension_numbers = #tpu.dot_dimension_numbers<[1], [0], [0], [1], [0, 0, 1, 1], [], []>} : vector<8x32xf32>, vector<32x1xf32>, vector<8x1xf32> -> vector<8x1xf32>
    %487 = arith.addf %484, %486 : vector<8x1xf32>
    %c0_268 = arith.constant 0 : index
    %c0_269 = arith.constant 0 : index
    %488 = vector.load %arg23[%c0_268, %c0_269] : memref<32x1xf32, #tpu.memory_space<vmem>>, vector<32x1xf32>
    %cst_270 = arith.constant dense<0.000000e+00> : vector<8x1xf32>
    %489 = tpu.matmul %391, %488, %cst_270 {dimension_numbers = #tpu.dot_dimension_numbers<[1], [0], [0], [1], [0, 0, 1, 1], [], []>} : vector<8x32xf32>, vector<32x1xf32>, vector<8x1xf32> -> vector<8x1xf32>
    %490 = arith.addf %487, %489 : vector<8x1xf32>
    %c0_271 = arith.constant 0 : index
    %c0_272 = arith.constant 0 : index
    %491 = vector.load %arg24[%c0_271, %c0_272] : memref<1x1xf32, #tpu.memory_space<vmem>>, vector<1x1xf32>
    %492 = vector.broadcast %491 : vector<1x1xf32> to vector<8x1xf32>
    %493 = arith.addf %490, %492 : vector<8x1xf32>
    %494 = arith.negf %493 : vector<8x1xf32>
    %495 = math.exp %494 : vector<8x1xf32>
    %cst_273 = arith.constant 1.000000e+00 : f32
    %496 = vector.broadcast %cst_273 : f32 to vector<8x1xf32>
    %497 = arith.addf %496, %495 : vector<8x1xf32>
    %498 = arith.divf %496, %497 : vector<8x1xf32>
    %499 = vector.shape_cast %458 : vector<8x8xf32> to vector<8x8x1xf32>
    %500 = vector.broadcast %499 : vector<8x8x1xf32> to vector<8x8x128xf32>
    %501 = arith.mulf %500, %6 : vector<8x8x128xf32>
    %cst_274 = arith.constant dense<0.000000e+00> : vector<8x128xf32>
    %502 = vector.multi_reduction <add>, %501, %cst_274 [1] : vector<8x8x128xf32> to vector<8x128xf32>
    %503 = vector.broadcast %498 : vector<8x1xf32> to vector<8x128xf32>
    %504 = arith.mulf %503, %482 : vector<8x128xf32>
    %cst_275 = arith.constant 1.000000e+00 : f32
    %505 = vector.broadcast %cst_275 : f32 to vector<8x1xf32>
    %506 = arith.subf %505, %498 : vector<8x1xf32>
    %507 = vector.broadcast %506 : vector<8x1xf32> to vector<8x128xf32>
    %508 = arith.mulf %507, %502 : vector<8x128xf32>
    %509 = arith.addf %504, %508 : vector<8x128xf32>
    %cst_276 = arith.constant 9.99999993E-9 : f32
    %510 = vector.broadcast %cst_276 : f32 to vector<8x128xf32>
    %511 = arith.maximumf %509, %510 : vector<8x128xf32>
    %512 = arith.index_cast %c3_i32 : i32 to index
    %c0_277 = arith.constant 0 : index
    %c0_278 = arith.constant 0 : index
    %513 = vector.load %arg25[%512, %c0_277, %c0_278] : memref<4x8x128xf32, #tpu.memory_space<vmem>>, vector<1x8x128xf32>
    %514 = vector.shape_cast %513 : vector<1x8x128xf32> to vector<8x128xf32>
    %515 = vector.shape_cast %511 : vector<8x128xf32> to vector<1x8x128xf32>
    tpu.vector_store %arg25[%512, %c0_277, %c0_278], %515 {strides = array<i32>} : memref<4x8x128xf32, #tpu.memory_space<vmem>>, vector<1x8x128xf32>,
    %c4_i32 = arith.constant 4 : i32
    %c0_279 = arith.constant 0 : index
    %c0_280 = arith.constant 0 : index
    %516 = vector.load %arg27[%c0_279, %c0_280] : memref<8x32xf32, #tpu.memory_space<vmem>>, vector<8x32xf32>
    tpu.vector_store %arg27[%c0_279, %c0_280], %437 {strides = array<i32>} : memref<8x32xf32, #tpu.memory_space<vmem>>, vector<8x32xf32>,
    %c0_281 = arith.constant 0 : index
    %c0_282 = arith.constant 0 : index
    %517 = vector.load %arg26[%c0_281, %c0_282] : memref<8x32xf32, #tpu.memory_space<vmem>>, vector<8x32xf32>
    tpu.vector_store %arg26[%c0_281, %c0_282], %437 {strides = array<i32>} : memref<8x32xf32, #tpu.memory_space<vmem>>, vector<8x32xf32>,
    return
  }
  func.func @transform_0(%arg0: i32) -> (i32, i32, i32) {
    %c0_i32 = arith.constant 0 : i32
    %c0_i32_0 = arith.constant 0 : i32
    %c0_i32_1 = arith.constant 0 : i32
    return %arg0, %c0_i32, %c0_i32_0 : i32, i32, i32
  }
  func.func @transform_1(%arg0: i32) -> (i32, i32) {
    %c0_i32 = arith.constant 0 : i32
    %c0_i32_0 = arith.constant 0 : i32
    %c0_i32_1 = arith.constant 0 : i32
    return %c0_i32, %c0_i32_0 : i32, i32
  }
  func.func @transform_2(%arg0: i32) -> (i32, i32, i32) {
    %c0_i32 = arith.constant 0 : i32
    %c0_i32_0 = arith.constant 0 : i32
    %c0_i32_1 = arith.constant 0 : i32
    %c0_i32_2 = arith.constant 0 : i32
    return %c0_i32, %c0_i32_0, %c0_i32_1 : i32, i32, i32
  }
  func.func @transform_3(%arg0: i32) -> (i32, i32, i32) {
    %c0_i32 = arith.constant 0 : i32
    %c0_i32_0 = arith.constant 0 : i32
    %c0_i32_1 = arith.constant 0 : i32
    %c0_i32_2 = arith.constant 0 : i32
    return %c0_i32, %c0_i32_0, %c0_i32_1 : i32, i32, i32
  }
  func.func @transform_4(%arg0: i32) -> (i32, i32, i32) {
    %c0_i32 = arith.constant 0 : i32
    %c0_i32_0 = arith.constant 0 : i32
    %c0_i32_1 = arith.constant 0 : i32
    %c0_i32_2 = arith.constant 0 : i32
    return %c0_i32, %c0_i32_0, %c0_i32_1 : i32, i32, i32
  }
  func.func @transform_5(%arg0: i32) -> (i32, i32) {
    %c0_i32 = arith.constant 0 : i32
    %c0_i32_0 = arith.constant 0 : i32
    %c0_i32_1 = arith.constant 0 : i32
    return %c0_i32, %c0_i32_0 : i32, i32
  }
  func.func @transform_6(%arg0: i32) -> (i32, i32) {
    %c0_i32 = arith.constant 0 : i32
    %c0_i32_0 = arith.constant 0 : i32
    %c0_i32_1 = arith.constant 0 : i32
    return %c0_i32, %c0_i32_0 : i32, i32
  }
  func.func @transform_7(%arg0: i32) -> (i32, i32) {
    %c0_i32 = arith.constant 0 : i32
    %c0_i32_0 = arith.constant 0 : i32
    %c0_i32_1 = arith.constant 0 : i32
    return %c0_i32, %c0_i32_0 : i32, i32
  }
  func.func @transform_8(%arg0: i32) -> (i32, i32) {
    %c0_i32 = arith.constant 0 : i32
    %c0_i32_0 = arith.constant 0 : i32
    %c0_i32_1 = arith.constant 0 : i32
    return %c0_i32, %c0_i32_0 : i32, i32
  }
  func.func @transform_9(%arg0: i32) -> (i32, i32) {
    %c0_i32 = arith.constant 0 : i32
    %c0_i32_0 = arith.constant 0 : i32
    %c0_i32_1 = arith.constant 0 : i32
    return %c0_i32, %c0_i32_0 : i32, i32
  }
  func.func @transform_10(%arg0: i32) -> (i32, i32) {
    %c0_i32 = arith.constant 0 : i32
    %c0_i32_0 = arith.constant 0 : i32
    %c0_i32_1 = arith.constant 0 : i32
    return %c0_i32, %c0_i32_0 : i32, i32
  }
  func.func @transform_11(%arg0: i32) -> (i32, i32) {
    %c0_i32 = arith.constant 0 : i32
    %c0_i32_0 = arith.constant 0 : i32
    %c0_i32_1 = arith.constant 0 : i32
    return %c0_i32, %c0_i32_0 : i32, i32
  }
  func.func @transform_12(%arg0: i32) -> (i32, i32) {
    %c0_i32 = arith.constant 0 : i32
    %c0_i32_0 = arith.constant 0 : i32
    %c0_i32_1 = arith.constant 0 : i32
    return %c0_i32, %c0_i32_0 : i32, i32
  }
  func.func @transform_13(%arg0: i32) -> (i32, i32) {
    %c0_i32 = arith.constant 0 : i32
    %c0_i32_0 = arith.constant 0 : i32
    %c0_i32_1 = arith.constant 0 : i32
    return %c0_i32, %c0_i32_0 : i32, i32
  }
  func.func @transform_14(%arg0: i32) -> (i32, i32) {
    %c0_i32 = arith.constant 0 : i32
    %c0_i32_0 = arith.constant 0 : i32
    %c0_i32_1 = arith.constant 0 : i32
    return %c0_i32, %c0_i32_0 : i32, i32
  }
  func.func @transform_15(%arg0: i32) -> (i32, i32) {
    %c0_i32 = arith.constant 0 : i32
    %c0_i32_0 = arith.constant 0 : i32
    %c0_i32_1 = arith.constant 0 : i32
    return %c0_i32, %c0_i32_0 : i32, i32
  }
  func.func @transform_16(%arg0: i32) -> (i32, i32) {
    %c0_i32 = arith.constant 0 : i32
    %c0_i32_0 = arith.constant 0 : i32
    %c0_i32_1 = arith.constant 0 : i32
    return %c0_i32, %c0_i32_0 : i32, i32
  }
  func.func @transform_17(%arg0: i32) -> (i32, i32) {
    %c0_i32 = arith.constant 0 : i32
    %c0_i32_0 = arith.constant 0 : i32
    %c0_i32_1 = arith.constant 0 : i32
    return %c0_i32, %c0_i32_0 : i32, i32
  }
  func.func @transform_18(%arg0: i32) -> (i32, i32) {
    %c0_i32 = arith.constant 0 : i32
    %c0_i32_0 = arith.constant 0 : i32
    %c0_i32_1 = arith.constant 0 : i32
    return %c0_i32, %c0_i32_0 : i32, i32
  }
  func.func @transform_19(%arg0: i32) -> (i32, i32) {
    %c0_i32 = arith.constant 0 : i32
    %c0_i32_0 = arith.constant 0 : i32
    %c0_i32_1 = arith.constant 0 : i32
    return %c0_i32, %c0_i32_0 : i32, i32
  }
  func.func @transform_20(%arg0: i32) -> (i32, i32) {
    %c0_i32 = arith.constant 0 : i32
    %c0_i32_0 = arith.constant 0 : i32
    %c0_i32_1 = arith.constant 0 : i32
    return %c0_i32, %c0_i32_0 : i32, i32
  }
  func.func @transform_21(%arg0: i32) -> (i32, i32) {
    %c0_i32 = arith.constant 0 : i32
    %c0_i32_0 = arith.constant 0 : i32
    %c0_i32_1 = arith.constant 0 : i32
    return %c0_i32, %c0_i32_0 : i32, i32
  }
  func.func @transform_22(%arg0: i32) -> (i32, i32) {
    %c0_i32 = arith.constant 0 : i32
    %c0_i32_0 = arith.constant 0 : i32
    %c0_i32_1 = arith.constant 0 : i32
    return %c0_i32, %c0_i32_0 : i32, i32
  }
  func.func @transform_23(%arg0: i32) -> (i32, i32) {
    %c0_i32 = arith.constant 0 : i32
    %c0_i32_0 = arith.constant 0 : i32
    %c0_i32_1 = arith.constant 0 : i32
    return %c0_i32, %c0_i32_0 : i32, i32
  }
  func.func @transform_24(%arg0: i32) -> (i32, i32, i32) {
    %c0_i32 = arith.constant 0 : i32
    %c0_i32_0 = arith.constant 0 : i32
    %c0_i32_1 = arith.constant 0 : i32
    return %arg0, %c0_i32, %c0_i32_0 : i32, i32, i32
  }
  func.func @transform_25(%arg0: i32) -> (i32, i32) {
    %c0_i32 = arith.constant 0 : i32
    %c0_i32_0 = arith.constant 0 : i32
    %c0_i32_1 = arith.constant 0 : i32
    return %c0_i32, %c0_i32_0 : i32, i32
  }
}

</mosaic_0001>

<llo_original>
// kernel: tpu_custom_call.1
$region0: #{tpu_custom_call.1}
  #allocation0 [shape = 'u32[]', space=smem, size = 0x4, offset = 0x4, fixed_abs, tag = 'smem constant byte address 0x4 - core index']
  #allocation1 [shape = 'u32[144,128]{1,0:T(1,128)}', space=vmem, size = 0x12000, scoped, tag = 'internal scratch']
  #allocation2 [shape = 'f32[8,32]{1,0:T(8,128)}', space=vmem, size = 0x1000, scoped, tag = 'scratch operand']
  #allocation3 [shape = 'f32[1,1]{1,0:T(1,128)S(1)}', space=vmem, size = 0x200, scoped, tag = 'scoped memory for tpu_custom_call.1']
  %s0 = inlined_call_operand.vmem [shape: f32[4,8,32], index: 0, kind: input, shape index: {}]
  %s1 = inlined_call_operand.hbm [shape: f32[8,32], index: 1, kind: input, shape index: {}]
  %s2 = inlined_call_operand.vmem [shape: f32[8,8,32], index: 2, kind: input, shape index: {}]
  %s3 = inlined_call_operand.hbm [shape: f32[8,8,32], index: 3, kind: input, shape index: {}]
  %s4 = inlined_call_operand.hbm [shape: bf16[8,8,128], index: 4, kind: input, shape index: {}]
  %s5 = inlined_call_operand.hbm [shape: bf16[32,32], index: 5, kind: input, shape index: {}]
  %s6 = inlined_call_operand.hbm [shape: bf16[32,32], index: 6, kind: input, shape index: {}]
  %s7 = inlined_call_operand.hbm [shape: bf16[32,32], index: 7, kind: input, shape index: {}]
  %s8 = inlined_call_operand.hbm [shape: bf16[32,32], index: 8, kind: input, shape index: {}]
  %s9 = inlined_call_operand.hbm [shape: bf16[32,32], index: 9, kind: input, shape index: {}]
  %s10 = inlined_call_operand.hbm [shape: bf16[32,32], index: 10, kind: input, shape index: {}]
  %s11 = inlined_call_operand.hbm [shape: f32[1,32], index: 11, kind: input, shape index: {}]
  %s12 = inlined_call_operand.hbm [shape: f32[1,32], index: 12, kind: input, shape index: {}]
  %s13 = inlined_call_operand.hbm [shape: f32[1,32], index: 13, kind: input, shape index: {}]
  %s14 = inlined_call_operand.hbm [shape: f32[1,32], index: 14, kind: input, shape index: {}]
  %s15 = inlined_call_operand.vmem [shape: f32[32,32], index: 15, kind: input, shape index: {}]
  %s16 = inlined_call_operand.vmem [shape: f32[1,32], index: 16, kind: input, shape index: {}]
  %s17 = inlined_call_operand.hbm [shape: bf16[32,128], index: 17, kind: input, shape index: {}]
  %s18 = inlined_call_operand.hbm [shape: bf16[32,128], index: 18, kind: input, shape index: {}]
  %s19 = inlined_call_operand.vmem [shape: f32[1,128], index: 19, kind: input, shape index: {}]
  %s20 = inlined_call_operand.vmem [shape: f32[32,1], index: 20, kind: input, shape index: {}]
  %s21 = inlined_call_operand.vmem [shape: f32[32,1], index: 21, kind: input, shape index: {}]
  %s22 = inlined_call_operand.vmem [shape: f32[32,1], index: 22, kind: input, shape index: {}]
  %s23 = inlined_call_operand.<no memory space> [shape: f32[1,1], index: 23, kind: input, shape index: {}]
  %s24 = inlined_call_operand.hbm [shape: f32[4,8,128], index: 24, kind: output, shape index: {0}]
  %s25 = inlined_call_operand.hbm [shape: f32[8,32], index: 25, kind: output, shape index: {1}]
  %26 = xla_tuple %s24, %s25
  %s27 = sld [smem:[#allocation0]]
  $region178: #{tpu_custom_call.1} parent=0
    _
  %s29 = ssub.s32 1, %s27
  %s30 = scalar_select 0, %s29, %s27
  %v31 = vstv %s23
  %32 = vst [vmem:[#allocation3] sm:$0x1] %v31
  $region1: #{tpu_custom_call.1} parent=0
    #allocation4 [shape = 'u8[4096]{0}', space=vmem, size = 0x1000, scoped, tag = 'input window, operand 1, single buffered']
    #allocation5 [shape = 's32[1]{0}', space=sflag, size = 0x4, scoped, tag = 'scoped memory for tpu_custom_call.1']
    #allocation6 [shape = 's32[1]{0}', space=sflag, size = 0x4, scoped, tag = 'scoped memory for tpu_custom_call.1']
    #allocation7 [shape = 'u8[32768]{0}', space=vmem, size = 0x8000, scoped, tag = 'input window, operand 3, single buffered']
    #allocation8 [shape = 's32[1]{0}', space=sflag, size = 0x4, scoped, tag = 'scoped memory for tpu_custom_call.1']
    #allocation9 [shape = 'u8[16384]{0}', space=vmem, size = 0x4000, scoped, tag = 'input window, operand 4, single buffered']
    #allocation10 [shape = 'u8[8192]{0}', space=vmem, size = 0x2000, scoped, tag = 'input window, operand 5, single buffered']
    #allocation11 [shape = 's32[1]{0}', space=sflag, size = 0x4, scoped, tag = 'scoped memory for tpu_custom_call.1']
    #allocation12 [shape = 'u8[8192]{0}', space=vmem, size = 0x2000, scoped, tag = 'input window, operand 6, single buffered']
    #allocation13 [shape = 'u8[8192]{0}', space=vmem, size = 0x2000, scoped, tag = 'input window, operand 7, single buffered']
    #allocation14 [shape = 's32[1]{0}', space=sflag, size = 0x4, scoped, tag = 'scoped memory for tpu_custom_call.1']
    #allocation15 [shape = 'u8[8192]{0}', space=vmem, size = 0x2000, scoped, tag = 'input window, operand 8, single buffered']
    #allocation16 [shape = 'u8[8192]{0}', space=vmem, size = 0x2000, scoped, tag = 'input window, operand 9, single buffered']
    #allocation17 [shape = 's32[1]{0}', space=sflag, size = 0x4, scoped, tag = 'scoped memory for tpu_custom_call.1']
    #allocation18 [shape = 'u8[8192]{0}', space=vmem, size = 0x2000, scoped, tag = 'input window, operand 10, single buffered']
    #allocation19 [shape = 'u8[512]{0}', space=vmem, size = 0x400, scoped, tag = 'input window, operand 11, single buffered']
    #allocation20 [shape = 's32[1]{0}', space=sflag, size = 0x4, scoped, tag = 'scoped memory for tpu_custom_call.1']
    #allocation21 [shape = 'u8[512]{0}', space=vmem, size = 0x400, scoped, tag = 'input window, operand 12, single buffered']
    #allocation22 [shape = 'u8[512]{0}', space=vmem, size = 0x400, scoped, tag = 'input window, operand 13, single buffered']
    #allocation23 [shape = 's32[1]{0}', space=sflag, size = 0x4, scoped, tag = 'scoped memory for tpu_custom_call.1']
    #allocation24 [shape = 'u8[512]{0}', space=vmem, size = 0x400, scoped, tag = 'input window, operand 14, single buffered']
    #allocation25 [shape = 'u8[8192]{0}', space=vmem, size = 0x2000, scoped, tag = 'input window, operand 17, single buffered']
    #allocation26 [shape = 's32[1]{0}', space=sflag, size = 0x4, scoped, tag = 'scoped memory for tpu_custom_call.1']
    #allocation27 [shape = 'u8[8192]{0}', space=vmem, size = 0x2000, scoped, tag = 'input window, operand 18, single buffered']
    #allocation28 [shape = 'u8[16384]{0}', space=vmem, size = 0x4000, scoped, tag = 'output window, operand 0, single buffered']
    #allocation29 [shape = 'u8[4096]{0}', space=vmem, size = 0x1000, scoped, tag = 'output window, operand 1, single buffered']
    #allocation30 [shape = 's32[1]{0}', space=sflag, size = 0x4, scoped, tag = 'scoped memory for tpu_custom_call.1']
    %33 = vsyncpa [#allocation5], 0
    %34 = vsyncpa [#allocation8], 0
    %35 = vsyncpa [#allocation11], 0
    %36 = vsyncpa [#allocation14], 0
    %37 = vsyncpa [#allocation17], 0
    %38 = vsyncpa [#allocation20], 0
    %39 = vsyncpa [#allocation23], 0
    %40 = vsyncpa [#allocation26], 0
    %41 = vsyncpa [#allocation6], 0
    %42 = vsyncpa [#allocation30], 0
    // Predicated region
    $region2: #{tpu_custom_call.1} parent=1 // pred_check
      _
    $region3: #{tpu_custom_call.1} parent=1 // pred_check_branch
      %44 = sbr.rel (0) target = $region5
    $region4: #{tpu_custom_call.1} parent=1 // pred_region
      _
    $region5: #{tpu_custom_call.1} parent=1 // pred_fallthru
      _
    // Predicated region
    $region6: #{tpu_custom_call.1} parent=1 // pred_check
      _
    $region7: #{tpu_custom_call.1} parent=1 // pred_check_branch
      %46 = sbr.rel (0) target = $region9
    $region8: #{tpu_custom_call.1} parent=1 // pred_region
      %s48 = ssub.s32 128, 128
      %49 = vsyncadd [#allocation5], %s48
      %s51 = sshll.u32 [#allocation4], 4
      %s52 = int_to_ptr.vmem [resolvable:$true] %s51
      %54 = dma.hbm_to_vmem [thread:$0]  %s1, 128, %s52, [#allocation5]
    $region9: #{tpu_custom_call.1} parent=1 // pred_fallthru
      _
    // Predicated region
    $region10: #{tpu_custom_call.1} parent=1 // pred_check
      _
    $region11: #{tpu_custom_call.1} parent=1 // pred_check_branch
      %56 = sbr.rel (0) target = $region13
    $region12: #{tpu_custom_call.1} parent=1 // pred_region
      _
    $region13: #{tpu_custom_call.1} parent=1 // pred_fallthru
      _
    // Predicated region
    $region14: #{tpu_custom_call.1} parent=1 // pred_check
      _
    $region15: #{tpu_custom_call.1} parent=1 // pred_check_branch
      %58 = sbr.rel (0) target = $region17
    $region16: #{tpu_custom_call.1} parent=1 // pred_region
      %s60 = ssub.s32 1024, 1024
      %61 = vsyncadd [#allocation8], %s60
      %s62 = sshll.u32 [#allocation7], 4
      %s63 = int_to_ptr.vmem [resolvable:$true] %s62
      %68 = dma.hbm_to_vmem [thread:$0]  %s3, 1024, %s63, [#allocation8], 128, 128, 8
    $region17: #{tpu_custom_call.1} parent=1 // pred_fallthru
      _
    // Predicated region
    $region18: #{tpu_custom_call.1} parent=1 // pred_check
      _
    $region19: #{tpu_custom_call.1} parent=1 // pred_check_branch
      %70 = sbr.rel (0) target = $region21
    $region20: #{tpu_custom_call.1} parent=1 // pred_region
      %s72 = ssub.s32 512, 512
      %73 = vsyncadd [#allocation8], %s72
      %s74 = sshll.u32 [#allocation9], 4
      %s75 = int_to_ptr.vmem [resolvable:$true] %s74
      %80 = dma.hbm_to_vmem [thread:$0]  %s4, 512, %s75, [#allocation8], 64, 64, 4
    $region21: #{tpu_custom_call.1} parent=1 // pred_fallthru
      _
    // Predicated region
    $region22: #{tpu_custom_call.1} parent=1 // pred_check
      _
    $region23: #{tpu_custom_call.1} parent=1 // pred_check_branch
      %82 = sbr.rel (0) target = $region25
    $region24: #{tpu_custom_call.1} parent=1 // pred_region
      %s84 = ssub.s32 256, 256
      %85 = vsyncadd [#allocation11], %s84
      %s86 = sshll.u32 [#allocation10], 4
      %s87 = int_to_ptr.vmem [resolvable:$true] %s86
      %92 = dma.hbm_to_vmem [thread:$0]  %s5, 256, %s87, [#allocation11], 64, 64, 4
    $region25: #{tpu_custom_call.1} parent=1 // pred_fallthru
      _
    // Predicated region
    $region26: #{tpu_custom_call.1} parent=1 // pred_check
      _
    $region27: #{tpu_custom_call.1} parent=1 // pred_check_branch
      %94 = sbr.rel (0) target = $region29
    $region28: #{tpu_custom_call.1} parent=1 // pred_region
      %s96 = ssub.s32 256, 256
      %97 = vsyncadd [#allocation11], %s96
      %s98 = sshll.u32 [#allocation12], 4
      %s99 = int_to_ptr.vmem [resolvable:$true] %s98
      %104 = dma.hbm_to_vmem [thread:$0]  %s6, 256, %s99, [#allocation11], 64, 64, 4
    $region29: #{tpu_custom_call.1} parent=1 // pred_fallthru
      _
    // Predicated region
    $region30: #{tpu_custom_call.1} parent=1 // pred_check
      _
    $region31: #{tpu_custom_call.1} parent=1 // pred_check_branch
      %106 = sbr.rel (0) target = $region33
    $region32: #{tpu_custom_call.1} parent=1 // pred_region
      %s108 = ssub.s32 256, 256
      %109 = vsyncadd [#allocation14], %s108
      %s110 = sshll.u32 [#allocation13], 4
      %s111 = int_to_ptr.vmem [resolvable:$true] %s110
      %116 = dma.hbm_to_vmem [thread:$0]  %s7, 256, %s111, [#allocation14], 64, 64, 4
    $region33: #{tpu_custom_call.1} parent=1 // pred_fallthru
      _
    // Predicated region
    $region34: #{tpu_custom_call.1} parent=1 // pred_check
      _
    $region35: #{tpu_custom_call.1} parent=1 // pred_check_branch
      %118 = sbr.rel (0) target = $region37
    $region36: #{tpu_custom_call.1} parent=1 // pred_region
      %s120 = ssub.s32 256, 256
      %121 = vsyncadd [#allocation14], %s120
      %s122 = sshll.u32 [#allocation15], 4
      %s123 = int_to_ptr.vmem [resolvable:$true] %s122
      %128 = dma.hbm_to_vmem [thread:$0]  %s8, 256, %s123, [#allocation14], 64, 64, 4
    $region37: #{tpu_custom_call.1} parent=1 // pred_fallthru
      _
    // Predicated region
    $region38: #{tpu_custom_call.1} parent=1 // pred_check
      _
    $region39: #{tpu_custom_call.1} parent=1 // pred_check_branch
      %130 = sbr.rel (0) target = $region41
    $region40: #{tpu_custom_call.1} parent=1 // pred_region
      %s132 = ssub.s32 256, 256
      %133 = vsyncadd [#allocation17], %s132
      %s134 = sshll.u32 [#allocation16], 4
      %s135 = int_to_ptr.vmem [resolvable:$true] %s134
      %140 = dma.hbm_to_vmem [thread:$0]  %s9, 256, %s135, [#allocation17], 64, 64, 4
    $region41: #{tpu_custom_call.1} parent=1 // pred_fallthru
      _
    // Predicated region
    $region42: #{tpu_custom_call.1} parent=1 // pred_check
      _
    $region43: #{tpu_custom_call.1} parent=1 // pred_check_branch
      %142 = sbr.rel (0) target = $region45
    $region44: #{tpu_custom_call.1} parent=1 // pred_region
      %s144 = ssub.s32 256, 256
      %145 = vsyncadd [#allocation17], %s144
      %s146 = sshll.u32 [#allocation18], 4
      %s147 = int_to_ptr.vmem [resolvable:$true] %s146
      %152 = dma.hbm_to_vmem [thread:$0]  %s10, 256, %s147, [#allocation17], 64, 64, 4
    $region45: #{tpu_custom_call.1} parent=1 // pred_fallthru
      _
    // Predicated region
    $region46: #{tpu_custom_call.1} parent=1 // pred_check
      _
    $region47: #{tpu_custom_call.1} parent=1 // pred_check_branch
      %154 = sbr.rel (0) target = $region49
    $region48: #{tpu_custom_call.1} parent=1 // pred_region
      %s156 = ssub.s32 16, 16
      %157 = vsyncadd [#allocation20], %s156
      %s159 = sshll.u32 [#allocation19], 4
      %s160 = int_to_ptr.vmem [resolvable:$true] %s159
      %162 = dma.hbm_to_vmem [thread:$0]  %s11, 16, %s160, [#allocation20]
    $region49: #{tpu_custom_call.1} parent=1 // pred_fallthru
      _
    // Predicated region
    $region50: #{tpu_custom_call.1} parent=1 // pred_check
      _
    $region51: #{tpu_custom_call.1} parent=1 // pred_check_branch
      %164 = sbr.rel (0) target = $region53
    $region52: #{tpu_custom_call.1} parent=1 // pred_region
      %s166 = ssub.s32 16, 16
      %167 = vsyncadd [#allocation20], %s166
      %s169 = sshll.u32 [#allocation21], 4
      %s170 = int_to_ptr.vmem [resolvable:$true] %s169
      %172 = dma.hbm_to_vmem [thread:$0]  %s12, 16, %s170, [#allocation20]
    $region53: #{tpu_custom_call.1} parent=1 // pred_fallthru
      _
    // Predicated region
    $region54: #{tpu_custom_call.1} parent=1 // pred_check
      _
    $region55: #{tpu_custom_call.1} parent=1 // pred_check_branch
      %174 = sbr.rel (0) target = $region57
    $region56: #{tpu_custom_call.1} parent=1 // pred_region
      %s176 = ssub.s32 16, 16
      %177 = vsyncadd [#allocation23], %s176
      %s179 = sshll.u32 [#allocation22], 4
      %s180 = int_to_ptr.vmem [resolvable:$true] %s179
      %182 = dma.hbm_to_vmem [thread:$0]  %s13, 16, %s180, [#allocation23]
    $region57: #{tpu_custom_call.1} parent=1 // pred_fallthru
      _
    // Predicated region
    $region58: #{tpu_custom_call.1} parent=1 // pred_check
      _
    $region59: #{tpu_custom_call.1} parent=1 // pred_check_branch
      %184 = sbr.rel (0) target = $region61
    $region60: #{tpu_custom_call.1} parent=1 // pred_region
      %s186 = ssub.s32 16, 16
      %187 = vsyncadd [#allocation23], %s186
      %s189 = sshll.u32 [#allocation24], 4
      %s190 = int_to_ptr.vmem [resolvable:$true] %s189
      %192 = dma.hbm_to_vmem [thread:$0]  %s14, 16, %s190, [#allocation23]
    $region61: #{tpu_custom_call.1} parent=1 // pred_fallthru
      _
    // Predicated region
    $region62: #{tpu_custom_call.1} parent=1 // pred_check
      _
    $region63: #{tpu_custom_call.1} parent=1 // pred_check_branch
      %194 = sbr.rel (0) target = $region65
    $region64: #{tpu_custom_call.1} parent=1 // pred_region
      _
    $region65: #{tpu_custom_call.1} parent=1 // pred_fallthru
      _
    // Predicated region
    $region66: #{tpu_custom_call.1} parent=1 // pred_check
      _
    $region67: #{tpu_custom_call.1} parent=1 // pred_check_branch
      %196 = sbr.rel (0) target = $region69
    $region68: #{tpu_custom_call.1} parent=1 // pred_region
      _
    $region69: #{tpu_custom_call.1} parent=1 // pred_fallthru
      _
    // Predicated region
    $region70: #{tpu_custom_call.1} parent=1 // pred_check
      _
    $region71: #{tpu_custom_call.1} parent=1 // pred_check_branch
      %198 = sbr.rel (0) target = $region73
    $region72: #{tpu_custom_call.1} parent=1 // pred_region
      %s200 = ssub.s32 256, 256
      %201 = vsyncadd [#allocation26], %s200
      %s202 = sshll.u32 [#allocation25], 4
      %s203 = int_to_ptr.vmem [resolvable:$true] %s202
      %208 = dma.hbm_to_vmem [thread:$0]  %s17, 256, %s203, [#allocation26], 64, 64, 4
    $region73: #{tpu_custom_call.1} parent=1 // pred_fallthru
      _
    // Predicated region
    $region74: #{tpu_custom_call.1} parent=1 // pred_check
      _
    $region75: #{tpu_custom_call.1} parent=1 // pred_check_branch
      %210 = sbr.rel (0) target = $region77
    $region76: #{tpu_custom_call.1} parent=1 // pred_region
      %s212 = ssub.s32 256, 256
      %213 = vsyncadd [#allocation26], %s212
      %s214 = sshll.u32 [#allocation27], 4
      %s215 = int_to_ptr.vmem [resolvable:$true] %s214
      %220 = dma.hbm_to_vmem [thread:$0]  %s18, 256, %s215, [#allocation26], 64, 64, 4
    $region77: #{tpu_custom_call.1} parent=1 // pred_fallthru
      _
    // Predicated region
    $region78: #{tpu_custom_call.1} parent=1 // pred_check
      _
    $region79: #{tpu_custom_call.1} parent=1 // pred_check_branch
      %222 = sbr.rel (0) target = $region81
    $region80: #{tpu_custom_call.1} parent=1 // pred_region
      _
    $region81: #{tpu_custom_call.1} parent=1 // pred_fallthru
      _
    // Predicated region
    $region82: #{tpu_custom_call.1} parent=1 // pred_check
      _
    $region83: #{tpu_custom_call.1} parent=1 // pred_check_branch
      %224 = sbr.rel (0) target = $region85
    $region84: #{tpu_custom_call.1} parent=1 // pred_region
      _
    $region85: #{tpu_custom_call.1} parent=1 // pred_fallthru
      _
    // Predicated region
    $region86: #{tpu_custom_call.1} parent=1 // pred_check
      _
    $region87: #{tpu_custom_call.1} parent=1 // pred_check_branch
      %226 = sbr.rel (0) target = $region89
    $region88: #{tpu_custom_call.1} parent=1 // pred_region
      _
    $region89: #{tpu_custom_call.1} parent=1 // pred_fallthru
      _
    // Predicated region
    $region90: #{tpu_custom_call.1} parent=1 // pred_check
      _
    $region91: #{tpu_custom_call.1} parent=1 // pred_check_branch
      %228 = sbr.rel (0) target = $region93
    $region92: #{tpu_custom_call.1} parent=1 // pred_region
      _
    $region93: #{tpu_custom_call.1} parent=1 // pred_fallthru
      _
    // Predicated region
    $region94: #{tpu_custom_call.1} parent=1 // pred_check
      _
    $region95: #{tpu_custom_call.1} parent=1 // pred_check_branch
      %230 = sbr.rel (0) target = $region97
    $region96: #{tpu_custom_call.1} parent=1 // pred_region
      _
    $region97: #{tpu_custom_call.1} parent=1 // pred_fallthru
      _
    // Predicated region
    $region98: #{tpu_custom_call.1} parent=1 // pred_check
      _
    $region99: #{tpu_custom_call.1} parent=1 // pred_check_branch
      %232 = sbr.rel (0) target = $region101
    $region100: #{tpu_custom_call.1} parent=1 // pred_region
      %233 = dma.done [#allocation5], 128
    $region101: #{tpu_custom_call.1} parent=1 // pred_fallthru
      _
    // Predicated region
    $region102: #{tpu_custom_call.1} parent=1 // pred_check
      _
    $region103: #{tpu_custom_call.1} parent=1 // pred_check_branch
      %235 = sbr.rel (0) target = $region105
    $region104: #{tpu_custom_call.1} parent=1 // pred_region
      %236 = dma.done [#allocation8], 1024
    $region105: #{tpu_custom_call.1} parent=1 // pred_fallthru
      _
    // Predicated region
    $region106: #{tpu_custom_call.1} parent=1 // pred_check
      _
    $region107: #{tpu_custom_call.1} parent=1 // pred_check_branch
      %238 = sbr.rel (0) target = $region109
    $region108: #{tpu_custom_call.1} parent=1 // pred_region
      %239 = dma.done [#allocation8], 512
    $region109: #{tpu_custom_call.1} parent=1 // pred_fallthru
      _
    // Predicated region
    $region110: #{tpu_custom_call.1} parent=1 // pred_check
      _
    $region111: #{tpu_custom_call.1} parent=1 // pred_check_branch
      %241 = sbr.rel (0) target = $region113
    $region112: #{tpu_custom_call.1} parent=1 // pred_region
      %242 = dma.done [#allocation11], 256
    $region113: #{tpu_custom_call.1} parent=1 // pred_fallthru
      _
    // Predicated region
    $region114: #{tpu_custom_call.1} parent=1 // pred_check
      _
    $region115: #{tpu_custom_call.1} parent=1 // pred_check_branch
      %244 = sbr.rel (0) target = $region117
    $region116: #{tpu_custom_call.1} parent=1 // pred_region
      %245 = dma.done [#allocation11], 256
    $region117: #{tpu_custom_call.1} parent=1 // pred_fallthru
      _
    // Predicated region
    $region118: #{tpu_custom_call.1} parent=1 // pred_check
      _
    $region119: #{tpu_custom_call.1} parent=1 // pred_check_branch
      %247 = sbr.rel (0) target = $region121
    $region120: #{tpu_custom_call.1} parent=1 // pred_region
      %248 = dma.done [#allocation14], 256
    $region121: #{tpu_custom_call.1} parent=1 // pred_fallthru
      _
    // Predicated region
    $region122: #{tpu_custom_call.1} parent=1 // pred_check
      _
    $region123: #{tpu_custom_call.1} parent=1 // pred_check_branch
      %250 = sbr.rel (0) target = $region125
    $region124: #{tpu_custom_call.1} parent=1 // pred_region
      %251 = dma.done [#allocation14], 256
    $region125: #{tpu_custom_call.1} parent=1 // pred_fallthru
      _
    // Predicated region
    $region126: #{tpu_custom_call.1} parent=1 // pred_check
      _
    $region127: #{tpu_custom_call.1} parent=1 // pred_check_branch
      %253 = sbr.rel (0) target = $region129
    $region128: #{tpu_custom_call.1} parent=1 // pred_region
      %254 = dma.done [#allocation17], 256
    $region129: #{tpu_custom_call.1} parent=1 // pred_fallthru
      _
    // Predicated region
    $region130: #{tpu_custom_call.1} parent=1 // pred_check
      _
    $region131: #{tpu_custom_call.1} parent=1 // pred_check_branch
      %256 = sbr.rel (0) target = $region133
    $region132: #{tpu_custom_call.1} parent=1 // pred_region
      %257 = dma.done [#allocation17], 256
    $region133: #{tpu_custom_call.1} parent=1 // pred_fallthru
      _
    // Predicated region
    $region134: #{tpu_custom_call.1} parent=1 // pred_check
      _
    $region135: #{tpu_custom_call.1} parent=1 // pred_check_branch
      %259 = sbr.rel (0) target = $region137
    $region136: #{tpu_custom_call.1} parent=1 // pred_region
      %260 = dma.done [#allocation20], 16
    $region137: #{tpu_custom_call.1} parent=1 // pred_fallthru
      _
    // Predicated region
    $region138: #{tpu_custom_call.1} parent=1 // pred_check
      _
    $region139: #{tpu_custom_call.1} parent=1 // pred_check_branch
      %262 = sbr.rel (0) target = $region141
    $region140: #{tpu_custom_call.1} parent=1 // pred_region
      %263 = dma.done [#allocation20], 16
    $region141: #{tpu_custom_call.1} parent=1 // pred_fallthru
      _
    // Predicated region
    $region142: #{tpu_custom_call.1} parent=1 // pred_check
      _
    $region143: #{tpu_custom_call.1} parent=1 // pred_check_branch
      %265 = sbr.rel (0) target = $region145
    $region144: #{tpu_custom_call.1} parent=1 // pred_region
      %266 = dma.done [#allocation23], 16
    $region145: #{tpu_custom_call.1} parent=1 // pred_fallthru
      _
    // Predicated region
    $region146: #{tpu_custom_call.1} parent=1 // pred_check
      _
    $region147: #{tpu_custom_call.1} parent=1 // pred_check_branch
      %268 = sbr.rel (0) target = $region149
    $region148: #{tpu_custom_call.1} parent=1 // pred_region
      %269 = dma.done [#allocation23], 16
    $region149: #{tpu_custom_call.1} parent=1 // pred_fallthru
      _
    // Predicated region
    $region150: #{tpu_custom_call.1} parent=1 // pred_check
      _
    $region151: #{tpu_custom_call.1} parent=1 // pred_check_branch
      %271 = sbr.rel (0) target = $region153
    $region152: #{tpu_custom_call.1} parent=1 // pred_region
      %272 = dma.done [#allocation26], 256
    $region153: #{tpu_custom_call.1} parent=1 // pred_fallthru
      _
    // Predicated region
    $region154: #{tpu_custom_call.1} parent=1 // pred_check
      _
    $region155: #{tpu_custom_call.1} parent=1 // pred_check_branch
      %274 = sbr.rel (0) target = $region157
    $region156: #{tpu_custom_call.1} parent=1 // pred_region
      %275 = dma.done [#allocation26], 256
    $region157: #{tpu_custom_call.1} parent=1 // pred_fallthru
      _
    %p277 = scmp.eq.s32.totalorder 0, 0
    // Predicated region
    $region158: #{tpu_custom_call.1} parent=1 // pred_check
      %p278 = pneg %p277
    $region159: #{tpu_custom_call.1} parent=1 // pred_check_branch
      %280 = sbr.rel (%p278) target = $region161
    $region160: #{tpu_custom_call.1} parent=1 // pred_region
      %v281 = vld [vmem:[#allocation4] sm:$0xff]
      %vm282 = vcmask 261120
      %283 = vst.msk [vmem:[#allocation2] sm:$0xff] %vm282, %v281
    $region161: #{tpu_custom_call.1} parent=1 // pred_fallthru
      _
    %v284 = vld [vmem:[%s2] sm:$0xff]
    %v285 = vld [vmem:[%s2 + $0x8] sm:$0xff]
    %v286 = vld [vmem:[%s2 + $0x10] sm:$0xff]
    %v287 = vld [vmem:[%s2 + $0x18] sm:$0xff]
    %v288 = vld [vmem:[%s2 + $0x20] sm:$0xff]
    %v289 = vld [vmem:[%s2 + $0x28] sm:$0xff]
    %v290 = vld [vmem:[%s2 + $0x30] sm:$0xff]
    %v291 = vld [vmem:[%s2 + $0x38] sm:$0xff]
    %v292 = vld [vmem:[#allocation7] sm:$0xff]
    %v293 = vld [vmem:[#allocation7 + $0x8] sm:$0xff]
    %v294 = vld [vmem:[#allocation7 + $0x10] sm:$0xff]
    %v295 = vld [vmem:[#allocation7 + $0x18] sm:$0xff]
    %v296 = vld [vmem:[#allocation7 + $0x20] sm:$0xff]
    %v297 = vld [vmem:[#allocation7 + $0x28] sm:$0xff]
    %v298 = vld [vmem:[#allocation7 + $0x30] sm:$0xff]
    %v299 = vld [vmem:[#allocation7 + $0x38] sm:$0xff]
    %v300 = vld [vmem:[#allocation9] sm:$0xf]
    %v301 = vld [vmem:[#allocation9 + $0x4] sm:$0xf]
    %v302 = vld [vmem:[#allocation9 + $0x8] sm:$0xf]
    %v303 = vld [vmem:[#allocation9 + $0xc] sm:$0xf]
    %v304 = vld [vmem:[#allocation9 + $0x10] sm:$0xf]
    %v305 = vld [vmem:[#allocation9 + $0x14] sm:$0xf]
    %v306 = vld [vmem:[#allocation9 + $0x18] sm:$0xf]
    %v307 = vld [vmem:[#allocation9 + $0x1c] sm:$0xf]
    %v308 = vunpack.c.l.bf16 %v300
    %v309 = vunpack.c.l.bf16 %v301
    %v310 = vunpack.c.l.bf16 %v302
    %v311 = vunpack.c.l.bf16 %v303
    %v312 = vunpack.c.l.bf16 %v304
    %v313 = vunpack.c.l.bf16 %v305
    %v314 = vunpack.c.l.bf16 %v306
    %v315 = vunpack.c.l.bf16 %v307
    %v316 = vld [vmem:[#allocation2] sm:$0xff]
    %v317 = vld [vmem:[%s0] sm:$0xff]
    %v318 = vpack.c.bf16 %v317, %v317
    %v319 = vpack.c.bf16 %v316, %v316
    %v320 = vld [vmem:[#allocation10] sm:$0xf]
    %v321 = vld [vmem:[#allocation10 + $0x4] sm:$0xf]
    %v322 = vld [vmem:[#allocation10 + $0x8] sm:$0xf]
    %v323 = vld [vmem:[#allocation10 + $0xc] sm:$0xf]
    %v324 = vld [vmem:[#allocation15] sm:$0xf]
    %v325 = vld [vmem:[#allocation15 + $0x4] sm:$0xf]
    %v326 = vld [vmem:[#allocation15 + $0x8] sm:$0xf]
    %v327 = vld [vmem:[#allocation15 + $0xc] sm:$0xf]
    %v332 = vunpack.c.l.b16 %v324
    %v333 = vunpack.c.l.b16 %v325
    %v334 = vunpack.c.l.b16 %v326
    %v335 = vunpack.c.l.b16 %v327
    %v336 = vpack.c.b16 %v333, %v332
    %v337 = vpack.c.b16 %v335, %v334
    %vm340 = vcmask 261120
    %v342 = vsel %vm340, %v319, 0
    %344 = vmatprep.subr.bf16.mxu0 0
    %345 = vmatpush1.bf16.msra.mxu0 0
    %346 = vmatprep.subr.bf16.mxu0 0
    %347 = vmatpush1.bf16.msra.mxu0 0
    %348 = vmatprep.subr.bf16.mxu0 0
    %349 = vmatpush1.bf16.msra.mxu0 0
    %350 = vmatprep.subr.bf16.mxu0 0
    %351 = vmatpush1.bf16.msra.mxu0 0
    %352 = vmatprep.subr.bf16.mxu0 0
    %353 = vmatpush1.bf16.msra.mxu0 0
    %354 = vmatprep.subr.bf16.mxu0 0
    %355 = vmatpush1.bf16.msra.mxu0 0
    %356 = vmatprep.subr.bf16.mxu0 0
    %357 = vmatpush1.bf16.msra.mxu0 %v337
    %358 = vmatprep.subr.bf16.mxu0 0
    %359 = vmatpush1.bf16.msra.mxu0 %v336
    %360 = vmatprep.subr.bf16.mxu0 0
    %361 = vmatpush2.bf16.msra.mxu0 0
    %362 = vmatprep.subr.bf16.mxu0 0
    %363 = vmatpush2.bf16.msra.mxu0 0
    %364 = vmatprep.subr.bf16.mxu0 0
    %365 = vmatpush2.bf16.msra.mxu0 0
    %366 = vmatprep.subr.bf16.mxu0 0
    %367 = vmatpush2.bf16.msra.mxu0 0
    %368 = vmatprep.subr.bf16.mxu0 0
    %369 = vmatpush2.bf16.msra.mxu0 0
    %370 = vmatprep.subr.bf16.mxu0 0
    %371 = vmatpush2.bf16.msra.mxu0 0
    %372 = vmatprep.subr.bf16.mxu0 0
    %373 = vmatpush2.bf16.msra.mxu0 0
    %374 = vmatprep.subr.bf16.mxu0 0
    %375 = vmatpush2.bf16.msra.mxu0 0
    %376 = vmatprep.mubr.bf16.mxu0 0
    %377 = vmatmul.mubr.bf16.gmra.mxu0 %v342
    %v378 = vpop.f32.mrf.mxu0
    %v379 = vadd.f32 0.0, %v378
    %v380 = vpop.f32.mrf.mxu0
    %v381 = vpop.f32.mrf.mxu0
    %v382 = vpop.f32.mrf.mxu0
    %383 = vdwg.mxu0
    %v388 = vunpack.c.l.b16 %v320
    %v389 = vunpack.c.l.b16 %v321
    %v390 = vunpack.c.l.b16 %v322
    %v391 = vunpack.c.l.b16 %v323
    %v392 = vpack.c.b16 %v389, %v388
    %v393 = vpack.c.b16 %v391, %v390
    %v397 = vsel %vm340, %v318, 0
    %399 = vmatprep.subr.bf16.mxu0 0
    %400 = vmatpush1.bf16.msra.mxu0 0
    %401 = vmatprep.subr.bf16.mxu0 0
    %402 = vmatpush1.bf16.msra.mxu0 0
    %403 = vmatprep.subr.bf16.mxu0 0
    %404 = vmatpush1.bf16.msra.mxu0 0
    %405 = vmatprep.subr.bf16.mxu0 0
    %406 = vmatpush1.bf16.msra.mxu0 0
    %407 = vmatprep.subr.bf16.mxu0 0
    %408 = vmatpush1.bf16.msra.mxu0 0
    %409 = vmatprep.subr.bf16.mxu0 0
    %410 = vmatpush1.bf16.msra.mxu0 0
    %411 = vmatprep.subr.bf16.mxu0 0
    %412 = vmatpush1.bf16.msra.mxu0 %v393
    %413 = vmatprep.subr.bf16.mxu0 0
    %414 = vmatpush1.bf16.msra.mxu0 %v392
    %415 = vmatprep.subr.bf16.mxu0 0
    %416 = vmatpush2.bf16.msra.mxu0 0
    %417 = vmatprep.subr.bf16.mxu0 0
    %418 = vmatpush2.bf16.msra.mxu0 0
    %419 = vmatprep.subr.bf16.mxu0 0
    %420 = vmatpush2.bf16.msra.mxu0 0
    %421 = vmatprep.subr.bf16.mxu0 0
    %422 = vmatpush2.bf16.msra.mxu0 0
    %423 = vmatprep.subr.bf16.mxu0 0
    %424 = vmatpush2.bf16.msra.mxu0 0
    %425 = vmatprep.subr.bf16.mxu0 0
    %426 = vmatpush2.bf16.msra.mxu0 0
    %427 = vmatprep.subr.bf16.mxu0 0
    %428 = vmatpush2.bf16.msra.mxu0 0
    %429 = vmatprep.subr.bf16.mxu0 0
    %430 = vmatpush2.bf16.msra.mxu0 0
    %431 = vmatprep.mubr.bf16.mxu0 0
    %432 = vmatmul.mubr.bf16.gmra.mxu0 %v397
    %v433 = vpop.f32.mrf.mxu0
    %v434 = vadd.f32 %v379, %v433
    %v435 = vpop.f32.mrf.mxu0
    %v436 = vpop.f32.mrf.mxu0
    %v437 = vpop.f32.mrf.mxu0
    %438 = vdwg.mxu0
    %v439 = vld [vmem:[#allocation19] sm:$0x1]
    %v441 = vlaneseq
    %v442 = vshrl.u32 %v441, 7
    %v443 = vsub.s32 0, %v442
    %v444 = vrot.slane %v439, %v443
    %v446 = vadd.f32 %v434, %v444
    %v447 = vxor.u32 %v446, 2147483648
    %v448 = vmul.f32 %v447, 1.442695
    %v449 = vpow.pop %v448
    %v450 = vadd.f32 %v449, 1.0
    %v451 = vrcp.pop %v450
    %v452 = vmul.f32 1.0, %v451
    %v453 = vld [vmem:[#allocation12] sm:$0xf]
    %v454 = vld [vmem:[#allocation12 + $0x4] sm:$0xf]
    %v455 = vld [vmem:[#allocation12 + $0x8] sm:$0xf]
    %v456 = vld [vmem:[#allocation12 + $0xc] sm:$0xf]
    %v457 = vld [vmem:[#allocation16] sm:$0xf]
    %v458 = vld [vmem:[#allocation16 + $0x4] sm:$0xf]
    %v459 = vld [vmem:[#allocation16 + $0x8] sm:$0xf]
    %v460 = vld [vmem:[#allocation16 + $0xc] sm:$0xf]
    %v465 = vunpack.c.l.b16 %v457
    %v466 = vunpack.c.l.b16 %v458
    %v467 = vunpack.c.l.b16 %v459
    %v468 = vunpack.c.l.b16 %v460
    %v469 = vpack.c.b16 %v466, %v465
    %v470 = vpack.c.b16 %v468, %v467
    %473 = vmatprep.subr.bf16.mxu0 0
    %474 = vmatpush1.bf16.msra.mxu0 0
    %475 = vmatprep.subr.bf16.mxu0 0
    %476 = vmatpush1.bf16.msra.mxu0 0
    %477 = vmatprep.subr.bf16.mxu0 0
    %478 = vmatpush1.bf16.msra.mxu0 0
    %479 = vmatprep.subr.bf16.mxu0 0
    %480 = vmatpush1.bf16.msra.mxu0 0
    %481 = vmatprep.subr.bf16.mxu0 0
    %482 = vmatpush1.bf16.msra.mxu0 0
    %483 = vmatprep.subr.bf16.mxu0 0
    %484 = vmatpush1.bf16.msra.mxu0 0
    %485 = vmatprep.subr.bf16.mxu0 0
    %486 = vmatpush1.bf16.msra.mxu0 %v470
    %487 = vmatprep.subr.bf16.mxu0 0
    %488 = vmatpush1.bf16.msra.mxu0 %v469
    %489 = vmatprep.subr.bf16.mxu0 0
    %490 = vmatpush2.bf16.msra.mxu0 0
    %491 = vmatprep.subr.bf16.mxu0 0
    %492 = vmatpush2.bf16.msra.mxu0 0
    %493 = vmatprep.subr.bf16.mxu0 0
    %494 = vmatpush2.bf16.msra.mxu0 0
    %495 = vmatprep.subr.bf16.mxu0 0
    %496 = vmatpush2.bf16.msra.mxu0 0
    %497 = vmatprep.subr.bf16.mxu0 0
    %498 = vmatpush2.bf16.msra.mxu0 0
    %499 = vmatprep.subr.bf16.mxu0 0
    %500 = vmatpush2.bf16.msra.mxu0 0
    %501 = vmatprep.subr.bf16.mxu0 0
    %502 = vmatpush2.bf16.msra.mxu0 0
    %503 = vmatprep.subr.bf16.mxu0 0
    %504 = vmatpush2.bf16.msra.mxu0 0
    %505 = vmatprep.mubr.bf16.mxu0 0
    %506 = vmatmul.mubr.bf16.gmra.mxu0 %v342
    %v507 = vpop.f32.mrf.mxu0
    %v508 = vadd.f32 0.0, %v507
    %v509 = vpop.f32.mrf.mxu0
    %v510 = vpop.f32.mrf.mxu0
    %v511 = vpop.f32.mrf.mxu0
    %512 = vdwg.mxu0
    %v517 = vunpack.c.l.b16 %v453
    %v518 = vunpack.c.l.b16 %v454
    %v519 = vunpack.c.l.b16 %v455
    %v520 = vunpack.c.l.b16 %v456
    %v521 = vpack.c.b16 %v518, %v517
    %v522 = vpack.c.b16 %v520, %v519
    %525 = vmatprep.subr.bf16.mxu0 0
    %526 = vmatpush1.bf16.msra.mxu0 0
    %527 = vmatprep.subr.bf16.mxu0 0
    %528 = vmatpush1.bf16.msra.mxu0 0
    %529 = vmatprep.subr.bf16.mxu0 0
    %530 = vmatpush1.bf16.msra.mxu0 0
    %531 = vmatprep.subr.bf16.mxu0 0
    %532 = vmatpush1.bf16.msra.mxu0 0
    %533 = vmatprep.subr.bf16.mxu0 0
    %534 = vmatpush1.bf16.msra.mxu0 0
    %535 = vmatprep.subr.bf16.mxu0 0
    %536 = vmatpush1.bf16.msra.mxu0 0
    %537 = vmatprep.subr.bf16.mxu0 0
    %538 = vmatpush1.bf16.msra.mxu0 %v522
    %539 = vmatprep.subr.bf16.mxu0 0
    %540 = vmatpush1.bf16.msra.mxu0 %v521
    %541 = vmatprep.subr.bf16.mxu0 0
    %542 = vmatpush2.bf16.msra.mxu0 0
    %543 = vmatprep.subr.bf16.mxu0 0
    %544 = vmatpush2.bf16.msra.mxu0 0
    %545 = vmatprep.subr.bf16.mxu0 0
    %546 = vmatpush2.bf16.msra.mxu0 0
    %547 = vmatprep.subr.bf16.mxu0 0
    %548 = vmatpush2.bf16.msra.mxu0 0
    %549 = vmatprep.subr.bf16.mxu0 0
    %550 = vmatpush2.bf16.msra.mxu0 0
    %551 = vmatprep.subr.bf16.mxu0 0
    %552 = vmatpush2.bf16.msra.mxu0 0
    %553 = vmatprep.subr.bf16.mxu0 0
    %554 = vmatpush2.bf16.msra.mxu0 0
    %555 = vmatprep.subr.bf16.mxu0 0
    %556 = vmatpush2.bf16.msra.mxu0 0
    %557 = vmatprep.mubr.bf16.mxu0 0
    %558 = vmatmul.mubr.bf16.gmra.mxu0 %v397
    %v559 = vpop.f32.mrf.mxu0
    %v560 = vadd.f32 %v508, %v559
    %v561 = vpop.f32.mrf.mxu0
    %v562 = vpop.f32.mrf.mxu0
    %v563 = vpop.f32.mrf.mxu0
    %564 = vdwg.mxu0
    %v565 = vld [vmem:[#allocation21] sm:$0x1]
    %v567 = vlaneseq
    %v568 = vshrl.u32 %v567, 7
    %v569 = vsub.s32 0, %v568
    %v570 = vrot.slane %v565, %v569
    %v572 = vadd.f32 %v560, %v570
    %v573 = vxor.u32 %v572, 2147483648
    %v574 = vmul.f32 %v573, 1.442695
    %v575 = vpow.pop %v574
    %v576 = vadd.f32 %v575, 1.0
    %v577 = vrcp.pop %v576
    %v578 = vmul.f32 1.0, %v577
    %v579 = vld [vmem:[#allocation13] sm:$0xf]
    %v580 = vld [vmem:[#allocation13 + $0x4] sm:$0xf]
    %v581 = vld [vmem:[#allocation13 + $0x8] sm:$0xf]
    %v582 = vld [vmem:[#allocation13 + $0xc] sm:$0xf]
    %v583 = vld [vmem:[#allocation22] sm:$0x1]
    %v585 = vlaneseq
    %v586 = vshrl.u32 %v585, 7
    %v587 = vsub.s32 0, %v586
    %v588 = vrot.slane %v583, %v587
    %v594 = vunpack.c.l.b16 %v579
    %v595 = vunpack.c.l.b16 %v580
    %v596 = vunpack.c.l.b16 %v581
    %v597 = vunpack.c.l.b16 %v582
    %v598 = vpack.c.b16 %v595, %v594
    %v599 = vpack.c.b16 %v597, %v596
    %602 = vmatprep.subr.bf16.mxu0 0
    %603 = vmatpush1.bf16.msra.mxu0 0
    %604 = vmatprep.subr.bf16.mxu0 0
    %605 = vmatpush1.bf16.msra.mxu0 0
    %606 = vmatprep.subr.bf16.mxu0 0
    %607 = vmatpush1.bf16.msra.mxu0 0
    %608 = vmatprep.subr.bf16.mxu0 0
    %609 = vmatpush1.bf16.msra.mxu0 0
    %610 = vmatprep.subr.bf16.mxu0 0
    %611 = vmatpush1.bf16.msra.mxu0 0
    %612 = vmatprep.subr.bf16.mxu0 0
    %613 = vmatpush1.bf16.msra.mxu0 0
    %614 = vmatprep.subr.bf16.mxu0 0
    %615 = vmatpush1.bf16.msra.mxu0 %v599
    %616 = vmatprep.subr.bf16.mxu0 0
    %617 = vmatpush1.bf16.msra.mxu0 %v598
    %618 = vmatprep.subr.bf16.mxu0 0
    %619 = vmatpush2.bf16.msra.mxu0 0
    %620 = vmatprep.subr.bf16.mxu0 0
    %621 = vmatpush2.bf16.msra.mxu0 0
    %622 = vmatprep.subr.bf16.mxu0 0
    %623 = vmatpush2.bf16.msra.mxu0 0
    %624 = vmatprep.subr.bf16.mxu0 0
    %625 = vmatpush2.bf16.msra.mxu0 0
    %626 = vmatprep.subr.bf16.mxu0 0
    %627 = vmatpush2.bf16.msra.mxu0 0
    %628 = vmatprep.subr.bf16.mxu0 0
    %629 = vmatpush2.bf16.msra.mxu0 0
    %630 = vmatprep.subr.bf16.mxu0 0
    %631 = vmatpush2.bf16.msra.mxu0 0
    %632 = vmatprep.subr.bf16.mxu0 0
    %633 = vmatpush2.bf16.msra.mxu0 0
    %634 = vmatprep.mubr.bf16.mxu0 0
    %635 = vmatmul.mubr.bf16.gmra.mxu0 %v397
    %v636 = vpop.f32.mrf.mxu0
    %v637 = vadd.f32 %v588, %v636
    %v638 = vpop.f32.mrf.mxu0
    %v639 = vpop.f32.mrf.mxu0
    %v640 = vpop.f32.mrf.mxu0
    %641 = vdwg.mxu0
    %v642 = vld [vmem:[#allocation18] sm:$0xf]
    %v643 = vld [vmem:[#allocation18 + $0x4] sm:$0xf]
    %v644 = vld [vmem:[#allocation18 + $0x8] sm:$0xf]
    %v645 = vld [vmem:[#allocation18 + $0xc] sm:$0xf]
    %v646 = vld [vmem:[#allocation24] sm:$0x1]
    %v648 = vlaneseq
    %v649 = vshrl.u32 %v648, 7
    %v650 = vsub.s32 0, %v649
    %v651 = vrot.slane %v646, %v650
    %v657 = vunpack.c.l.b16 %v642
    %v658 = vunpack.c.l.b16 %v643
    %v659 = vunpack.c.l.b16 %v644
    %v660 = vunpack.c.l.b16 %v645
    %v661 = vpack.c.b16 %v658, %v657
    %v662 = vpack.c.b16 %v660, %v659
    %665 = vmatprep.subr.bf16.mxu0 0
    %666 = vmatpush1.bf16.msra.mxu0 0
    %667 = vmatprep.subr.bf16.mxu0 0
    %668 = vmatpush1.bf16.msra.mxu0 0
    %669 = vmatprep.subr.bf16.mxu0 0
    %670 = vmatpush1.bf16.msra.mxu0 0
    %671 = vmatprep.subr.bf16.mxu0 0
    %672 = vmatpush1.bf16.msra.mxu0 0
    %673 = vmatprep.subr.bf16.mxu0 0
    %674 = vmatpush1.bf16.msra.mxu0 0
    %675 = vmatprep.subr.bf16.mxu0 0
    %676 = vmatpush1.bf16.msra.mxu0 0
    %677 = vmatprep.subr.bf16.mxu0 0
    %678 = vmatpush1.bf16.msra.mxu0 %v662
    %679 = vmatprep.subr.bf16.mxu0 0
    %680 = vmatpush1.bf16.msra.mxu0 %v661
    %681 = vmatprep.subr.bf16.mxu0 0
    %682 = vmatpush2.bf16.msra.mxu0 0
    %683 = vmatprep.subr.bf16.mxu0 0
    %684 = vmatpush2.bf16.msra.mxu0 0
    %685 = vmatprep.subr.bf16.mxu0 0
    %686 = vmatpush2.bf16.msra.mxu0 0
    %687 = vmatprep.subr.bf16.mxu0 0
    %688 = vmatpush2.bf16.msra.mxu0 0
    %689 = vmatprep.subr.bf16.mxu0 0
    %690 = vmatpush2.bf16.msra.mxu0 0
    %691 = vmatprep.subr.bf16.mxu0 0
    %692 = vmatpush2.bf16.msra.mxu0 0
    %693 = vmatprep.subr.bf16.mxu0 0
    %694 = vmatpush2.bf16.msra.mxu0 0
    %695 = vmatprep.subr.bf16.mxu0 0
    %696 = vmatpush2.bf16.msra.mxu0 0
    %697 = vmatprep.mubr.bf16.mxu0 0
    %698 = vmatmul.mubr.bf16.gmra.mxu0 %v342
    %v699 = vpop.f32.mrf.mxu0
    %v700 = vadd.f32 %v651, %v699
    %v701 = vpop.f32.mrf.mxu0
    %v702 = vpop.f32.mrf.mxu0
    %v703 = vpop.f32.mrf.mxu0
    %704 = vdwg.mxu0
    %v705 = vmul.f32 %v452, %v700
    %v706 = vadd.f32 %v637, %v705
    %v707 = vtanh.pop %v706
    %v708 = vsub.f32 1.0, %v578
    %v709 = vmul.f32 %v708, %v707
    %v710 = vmul.f32 %v578, %v316
    %v711 = vadd.f32 %v709, %v710
    %v712 = vld [vmem:[%s15] sm:$0xff]
    %v713 = vld [vmem:[%s15 + $0x8] sm:$0xff]
    %v714 = vld [vmem:[%s15 + $0x10] sm:$0xff]
    %v715 = vld [vmem:[%s15 + $0x18] sm:$0xff]
    %v717 = vsel %vm340, %v316, 0
    %719 = vmatprep.subr.mxu0 0.0
    %720 = vmatpush1.msra.mxu0 0.0
    %721 = vmatprep.subr.mxu0 0.0
    %722 = vmatpush1.msra.mxu0 0.0
    %723 = vmatprep.subr.mxu0 0.0
    %724 = vmatpush1.msra.mxu0 0.0
    %725 = vmatprep.subr.mxu0 0.0
    %726 = vmatpush1.msra.mxu0 0.0
    %727 = vmatprep.subr.mxu0 0.0
    %728 = vmatpush1.msra.mxu0 0.0
    %729 = vmatprep.subr.mxu0 0.0
    %730 = vmatpush1.msra.mxu0 0.0
    %731 = vmatprep.subr.mxu0 0.0
    %732 = vmatpush1.msra.mxu0 0.0
    %733 = vmatprep.subr.mxu0 0.0
    %734 = vmatpush1.msra.mxu0 0.0
    %735 = vmatprep.subr.mxu0 0.0
    %736 = vmatpush1.msra.mxu0 0.0
    %737 = vmatprep.subr.mxu0 0.0
    %738 = vmatpush1.msra.mxu0 0.0
    %739 = vmatprep.subr.mxu0 0.0
    %740 = vmatpush1.msra.mxu0 0.0
    %741 = vmatprep.subr.mxu0 0.0
    %742 = vmatpush1.msra.mxu0 0.0
    %743 = vmatprep.subr.mxu0 0.0
    %744 = vmatpush1.msra.mxu0 %v715
    %745 = vmatprep.subr.mxu0 0.0
    %746 = vmatpush1.msra.mxu0 %v714
    %747 = vmatprep.subr.mxu0 0.0
    %748 = vmatpush1.msra.mxu0 %v713
    %749 = vmatprep.subr.mxu0 0.0
    %750 = vmatpush1.msra.mxu0 %v712
    %751 = vmatprep.subr.mxu0 0.0
    %752 = vmatpush2.msra.mxu0 0.0
    %753 = vmatprep.subr.mxu0 0.0
    %754 = vmatpush2.msra.mxu0 0.0
    %755 = vmatprep.subr.mxu0 0.0
    %756 = vmatpush2.msra.mxu0 0.0
    %757 = vmatprep.subr.mxu0 0.0
    %758 = vmatpush2.msra.mxu0 0.0
    %759 = vmatprep.subr.mxu0 0.0
    %760 = vmatpush2.msra.mxu0 0.0
    %761 = vmatprep.subr.mxu0 0.0
    %762 = vmatpush2.msra.mxu0 0.0
    %763 = vmatprep.subr.mxu0 0.0
    %764 = vmatpush2.msra.mxu0 0.0
    %765 = vmatprep.subr.mxu0 0.0
    %766 = vmatpush2.msra.mxu0 0.0
    %767 = vmatprep.subr.mxu0 0.0
    %768 = vmatpush2.msra.mxu0 0.0
    %769 = vmatprep.subr.mxu0 0.0
    %770 = vmatpush2.msra.mxu0 0.0
    %771 = vmatprep.subr.mxu0 0.0
    %772 = vmatpush2.msra.mxu0 0.0
    %773 = vmatprep.subr.mxu0 0.0
    %774 = vmatpush2.msra.mxu0 0.0
    %775 = vmatprep.subr.mxu0 0.0
    %776 = vmatpush2.msra.mxu0 0.0
    %777 = vmatprep.subr.mxu0 0.0
    %778 = vmatpush2.msra.mxu0 0.0
    %779 = vmatprep.subr.mxu0 0.0
    %780 = vmatpush2.msra.mxu0 0.0
    %781 = vmatprep.subr.mxu0 0.0
    %782 = vmatpush2.msra.mxu0 0.0
    %783 = vmatprep.mubr.f32.mxu0 0.0
    %784 = vmatmul.mubr.f32.gmra.mxu0 %v717
    %v785 = vpop.f32.mrf.mxu0
    %v786 = vadd.f32 0.0, %v785
    %v787 = vpop.f32.mrf.mxu0
    %788 = vdwg.mxu0
    %v790 = vcombine.high %v786, %v786
    %v792 = vunpack.c.l.s4 1966171168
    %v793 = vunpack.c.0.s8 %v792
    %v794 = vlaneseq
    %v795 = vshrl.u32 %v794, 7
    %v796 = vsub.s32 %v793, %v795
    %v797 = vrot.slane %v786, %v796
    %v799 = vunpack.c.l.s4 1966171168
    %v800 = vunpack.c.0.s8 %v799
    %v801 = vlaneseq
    %v802 = vshrl.u32 %v801, 7
    %v803 = vsub.s32 %v800, %v802
    %v804 = vrot.slane %v790, %v803
    %v805 = vcombine.high %v797, %v797
    %v806 = vcombine.high %v804, %v804
    %v808 = vunpack.c.l.s4 1966171168
    %v809 = vunpack.c.0.s8 %v808
    %v810 = vlaneseq
    %v811 = vshrl.u32 %v810, 7
    %v812 = vsub.s32 %v809, %v811
    %v813 = vrot.slane %v797, %v812
    %v815 = vunpack.c.l.s4 1966171168
    %v816 = vunpack.c.0.s8 %v815
    %v817 = vlaneseq
    %v818 = vshrl.u32 %v817, 7
    %v819 = vsub.s32 %v816, %v818
    %v820 = vrot.slane %v804, %v819
    %v822 = vunpack.c.l.s4 1966171168
    %v823 = vunpack.c.0.s8 %v822
    %v824 = vlaneseq
    %v825 = vshrl.u32 %v824, 7
    %v826 = vsub.s32 %v823, %v825
    %v827 = vrot.slane %v805, %v826
    %v829 = vunpack.c.l.s4 1966171168
    %v830 = vunpack.c.0.s8 %v829
    %v831 = vlaneseq
    %v832 = vshrl.u32 %v831, 7
    %v833 = vsub.s32 %v830, %v832
    %v834 = vrot.slane %v806, %v833
    %v835 = vcombine.high %v813, %v813
    %v836 = vcombine.high %v820, %v820
    %v837 = vcombine.high %v827, %v827
    %v838 = vcombine.high %v834, %v834
    %v839 = vlaneseq
    %v840 = vshrl.u32 %v839, 7
    %v841 = vsub.s32 0, %v840
    %v842 = vrot.slane %v813, %v841
    %v843 = vlaneseq
    %v844 = vshrl.u32 %v843, 7
    %v845 = vsub.s32 0, %v844
    %v846 = vrot.slane %v827, %v845
    %v847 = vlaneseq
    %v848 = vshrl.u32 %v847, 7
    %v849 = vsub.s32 0, %v848
    %v850 = vrot.slane %v835, %v849
    %v851 = vlaneseq
    %v852 = vshrl.u32 %v851, 7
    %v853 = vsub.s32 0, %v852
    %v854 = vrot.slane %v837, %v853
    %v855 = vlaneseq
    %v856 = vshrl.u32 %v855, 7
    %v857 = vsub.s32 0, %v856
    %v858 = vrot.slane %v820, %v857
    %v859 = vlaneseq
    %v860 = vshrl.u32 %v859, 7
    %v861 = vsub.s32 0, %v860
    %v862 = vrot.slane %v834, %v861
    %v863 = vlaneseq
    %v864 = vshrl.u32 %v863, 7
    %v865 = vsub.s32 0, %v864
    %v866 = vrot.slane %v836, %v865
    %v867 = vlaneseq
    %v868 = vshrl.u32 %v867, 7
    %v869 = vsub.s32 0, %v868
    %v870 = vrot.slane %v838, %v869
    %v879 = vadd.f32 %v292, %v842
    %v880 = vadd.f32 %v293, %v846
    %v881 = vadd.f32 %v294, %v850
    %v882 = vadd.f32 %v295, %v854
    %v883 = vadd.f32 %v296, %v858
    %v884 = vadd.f32 %v297, %v862
    %v885 = vadd.f32 %v298, %v866
    %v886 = vadd.f32 %v299, %v870
    %v887 = vtanh.pop %v879
    %v888 = vtanh.pop %v880
    %v889 = vtanh.pop %v881
    %v890 = vtanh.pop %v882
    %v891 = vtanh.pop %v883
    %v892 = vtanh.pop %v884
    %v893 = vtanh.pop %v885
    %v894 = vtanh.pop %v886
    %v895 = vld [vmem:[%s16] sm:$0x1]
    %v897 = vlaneseq
    %v898 = vshrl.u32 %v897, 7
    %v899 = vsub.s32 0, %v898
    %v900 = vrot.slane %v895, %v899
    %v902 = vmul.f32 %v900, %v887
    %v903 = vmul.f32 %v900, %v888
    %v904 = vmul.f32 %v900, %v889
    %v905 = vmul.f32 %v900, %v890
    %v906 = vmul.f32 %v900, %v891
    %v907 = vmul.f32 %v900, %v892
    %v908 = vmul.f32 %v900, %v893
    %v909 = vmul.f32 %v900, %v894
    %v910 = vsel %vm340, %v902, 0.0
    %911 = vadd.xlane.f32.xlu0 %v910
    %v912 = vpop.xlane.xlu0 %911
    %v913 = vsel %vm340, %v903, 0.0
    %914 = vadd.xlane.f32.xlu0 %v913
    %v915 = vpop.xlane.xlu0 %914
    %v916 = vsel %vm340, %v904, 0.0
    %917 = vadd.xlane.f32.xlu0 %v916
    %v918 = vpop.xlane.xlu0 %917
    %v919 = vsel %vm340, %v905, 0.0
    %920 = vadd.xlane.f32.xlu0 %v919
    %v921 = vpop.xlane.xlu0 %920
    %v922 = vsel %vm340, %v906, 0.0
    %923 = vadd.xlane.f32.xlu0 %v922
    %v924 = vpop.xlane.xlu0 %923
    %v925 = vsel %vm340, %v907, 0.0
    %926 = vadd.xlane.f32.xlu0 %v925
    %v927 = vpop.xlane.xlu0 %926
    %v928 = vsel %vm340, %v908, 0.0
    %929 = vadd.xlane.f32.xlu0 %v928
    %v930 = vpop.xlane.xlu0 %929
    %v931 = vsel %vm340, %v909, 0.0
    %932 = vadd.xlane.f32.xlu0 %v931
    %v933 = vpop.xlane.xlu0 %932
    %v942 = vlaneseq
    %v943 = vand.u32 %v942, 127
    %v944 = vlaneseq
    %v945 = vshrl.u32 %v944, 7
    %v946 = vsub.s32 %v943, %v945
    %v947 = vrot.slane %v912, %v946
    %v948 = vlaneseq
    %v949 = vshrl.u32 %v948, 7
    %v950 = vsub.s32 %v943, %v949
    %v951 = vrot.slane %v915, %v950
    %v952 = vlaneseq
    %v953 = vshrl.u32 %v952, 7
    %v954 = vsub.s32 %v943, %v953
    %v955 = vrot.slane %v918, %v954
    %v956 = vlaneseq
    %v957 = vshrl.u32 %v956, 7
    %v958 = vsub.s32 %v943, %v957
    %v959 = vrot.slane %v921, %v958
    %v960 = vlaneseq
    %v961 = vshrl.u32 %v960, 7
    %v962 = vsub.s32 %v943, %v961
    %v963 = vrot.slane %v924, %v962
    %v964 = vlaneseq
    %v965 = vshrl.u32 %v964, 7
    %v966 = vsub.s32 %v943, %v965
    %v967 = vrot.slane %v927, %v966
    %v968 = vlaneseq
    %v969 = vshrl.u32 %v968, 7
    %v970 = vsub.s32 %v943, %v969
    %v971 = vrot.slane %v930, %v970
    %v972 = vlaneseq
    %v973 = vshrl.u32 %v972, 7
    %v974 = vsub.s32 %v943, %v973
    %v975 = vrot.slane %v933, %v974
    %vm976 = vcmask 1041409
    %v977 = vsel %vm976, %v951, %v947
    %vm978 = vcmask 1042434
    %v979 = vsel %vm978, %v955, %v977
    %vm980 = vcmask 1043459
    %v981 = vsel %vm980, %v959, %v979
    %vm982 = vcmask 1044484
    %v983 = vsel %vm982, %v963, %v981
    %vm984 = vcmask 1045509
    %v985 = vsel %vm984, %v967, %v983
    %vm986 = vcmask 1046534
    %v987 = vsel %vm986, %v971, %v985
    %vm988 = vcmask 1047559
    %v989 = vsel %vm988, %v975, %v987
    %vm991 = vcmask 64512
    %v992 = vsel %vm991, %v989, -inf
    %993 = vmax.xlane.f32.xlu0 %v992
    %v994 = vpop.xlane.xlu0 %993
    %v996 = vlaneseq
    %v997 = vshrl.u32 %v996, 7
    %v998 = vsub.s32 0, %v997
    %v999 = vrot.slane %v994, %v998
    %v1000 = vlaneseq
    %v1001 = vshrl.u32 %v1000, 7
    %v1002 = vsub.s32 1, %v1001
    %v1003 = vrot.slane %v994, %v1002
    %v1004 = vlaneseq
    %v1005 = vshrl.u32 %v1004, 7
    %v1006 = vsub.s32 2, %v1005
    %v1007 = vrot.slane %v994, %v1006
    %v1008 = vlaneseq
    %v1009 = vshrl.u32 %v1008, 7
    %v1010 = vsub.s32 3, %v1009
    %v1011 = vrot.slane %v994, %v1010
    %v1012 = vlaneseq
    %v1013 = vshrl.u32 %v1012, 7
    %v1014 = vsub.s32 4, %v1013
    %v1015 = vrot.slane %v994, %v1014
    %v1016 = vlaneseq
    %v1017 = vshrl.u32 %v1016, 7
    %v1018 = vsub.s32 5, %v1017
    %v1019 = vrot.slane %v994, %v1018
    %v1020 = vlaneseq
    %v1021 = vshrl.u32 %v1020, 7
    %v1022 = vsub.s32 6, %v1021
    %v1023 = vrot.slane %v994, %v1022
    %v1024 = vlaneseq
    %v1025 = vshrl.u32 %v1024, 7
    %v1026 = vsub.s32 7, %v1025
    %v1027 = vrot.slane %v994, %v1026
    %v1036 = vsub.f32 %v912, %v999
    %v1037 = vsub.f32 %v915, %v1003
    %v1038 = vsub.f32 %v918, %v1007
    %v1039 = vsub.f32 %v921, %v1011
    %v1040 = vsub.f32 %v924, %v1015
    %v1041 = vsub.f32 %v927, %v1019
    %v1042 = vsub.f32 %v930, %v1023
    %v1043 = vsub.f32 %v933, %v1027
    %v1044 = vmul.f32 %v1036, 1.442695
    %v1045 = vpow.pop %v1044
    %v1046 = vmul.f32 %v1037, 1.442695
    %v1047 = vpow.pop %v1046
    %v1048 = vmul.f32 %v1038, 1.442695
    %v1049 = vpow.pop %v1048
    %v1050 = vmul.f32 %v1039, 1.442695
    %v1051 = vpow.pop %v1050
    %v1052 = vmul.f32 %v1040, 1.442695
    %v1053 = vpow.pop %v1052
    %v1054 = vmul.f32 %v1041, 1.442695
    %v1055 = vpow.pop %v1054
    %v1056 = vmul.f32 %v1042, 1.442695
    %v1057 = vpow.pop %v1056
    %v1058 = vmul.f32 %v1043, 1.442695
    %v1059 = vpow.pop %v1058
    %1068 = vset.pattern.permute.xlu0 0
    %1069 = vperm.xlu0 %1068, %v1045
    %v1070 = vpop.permute.xlu0 %1069
    %1071 = vset.pattern.permute.xlu0 0
    %1072 = vperm.xlu0 %1071, %v1047
    %v1073 = vpop.permute.xlu0 %1072
    %1074 = vset.pattern.permute.xlu0 0
    %1075 = vperm.xlu0 %1074, %v1049
    %v1076 = vpop.permute.xlu0 %1075
    %1077 = vset.pattern.permute.xlu0 0
    %1078 = vperm.xlu0 %1077, %v1051
    %v1079 = vpop.permute.xlu0 %1078
    %1080 = vset.pattern.permute.xlu0 0
    %1081 = vperm.xlu0 %1080, %v1053
    %v1082 = vpop.permute.xlu0 %1081
    %1083 = vset.pattern.permute.xlu0 0
    %1084 = vperm.xlu0 %1083, %v1055
    %v1085 = vpop.permute.xlu0 %1084
    %1086 = vset.pattern.permute.xlu0 0
    %1087 = vperm.xlu0 %1086, %v1057
    %v1088 = vpop.permute.xlu0 %1087
    %1089 = vset.pattern.permute.xlu0 0
    %1090 = vperm.xlu0 %1089, %v1059
    %v1091 = vpop.permute.xlu0 %1090
    %v1092 = vlaneseq
    %v1093 = vshrl.u32 %v1092, 7
    %v1094 = vsub.s32 %v943, %v1093
    %v1095 = vrot.slane %v1070, %v1094
    %v1096 = vlaneseq
    %v1097 = vshrl.u32 %v1096, 7
    %v1098 = vsub.s32 %v943, %v1097
    %v1099 = vrot.slane %v1073, %v1098
    %v1100 = vlaneseq
    %v1101 = vshrl.u32 %v1100, 7
    %v1102 = vsub.s32 %v943, %v1101
    %v1103 = vrot.slane %v1076, %v1102
    %v1104 = vlaneseq
    %v1105 = vshrl.u32 %v1104, 7
    %v1106 = vsub.s32 %v943, %v1105
    %v1107 = vrot.slane %v1079, %v1106
    %v1108 = vlaneseq
    %v1109 = vshrl.u32 %v1108, 7
    %v1110 = vsub.s32 %v943, %v1109
    %v1111 = vrot.slane %v1082, %v1110
    %v1112 = vlaneseq
    %v1113 = vshrl.u32 %v1112, 7
    %v1114 = vsub.s32 %v943, %v1113
    %v1115 = vrot.slane %v1085, %v1114
    %v1116 = vlaneseq
    %v1117 = vshrl.u32 %v1116, 7
    %v1118 = vsub.s32 %v943, %v1117
    %v1119 = vrot.slane %v1088, %v1118
    %v1120 = vlaneseq
    %v1121 = vshrl.u32 %v1120, 7
    %v1122 = vsub.s32 %v943, %v1121
    %v1123 = vrot.slane %v1091, %v1122
    %v1124 = vsel %vm976, %v1099, %v1095
    %v1125 = vsel %vm978, %v1103, %v1124
    %v1126 = vsel %vm980, %v1107, %v1125
    %v1127 = vsel %vm982, %v1111, %v1126
    %v1128 = vsel %vm984, %v1115, %v1127
    %v1129 = vsel %vm986, %v1119, %v1128
    %v1130 = vsel %vm988, %v1123, %v1129
    %v1132 = vsel %vm991, %v1130, 0.0
    %1133 = vadd.xlane.f32.xlu0 %v1132
    %v1134 = vpop.xlane.xlu0 %1133
    %v1135 = vrcp.pop %v1134
    %v1137 = vlaneseq
    %v1138 = vshrl.u32 %v1137, 7
    %v1139 = vsub.s32 0, %v1138
    %v1140 = vrot.slane %v1135, %v1139
    %v1141 = vlaneseq
    %v1142 = vshrl.u32 %v1141, 7
    %v1143 = vsub.s32 1, %v1142
    %v1144 = vrot.slane %v1135, %v1143
    %v1145 = vlaneseq
    %v1146 = vshrl.u32 %v1145, 7
    %v1147 = vsub.s32 2, %v1146
    %v1148 = vrot.slane %v1135, %v1147
    %v1149 = vlaneseq
    %v1150 = vshrl.u32 %v1149, 7
    %v1151 = vsub.s32 3, %v1150
    %v1152 = vrot.slane %v1135, %v1151
    %v1153 = vlaneseq
    %v1154 = vshrl.u32 %v1153, 7
    %v1155 = vsub.s32 4, %v1154
    %v1156 = vrot.slane %v1135, %v1155
    %v1157 = vlaneseq
    %v1158 = vshrl.u32 %v1157, 7
    %v1159 = vsub.s32 5, %v1158
    %v1160 = vrot.slane %v1135, %v1159
    %v1161 = vlaneseq
    %v1162 = vshrl.u32 %v1161, 7
    %v1163 = vsub.s32 6, %v1162
    %v1164 = vrot.slane %v1135, %v1163
    %v1165 = vlaneseq
    %v1166 = vshrl.u32 %v1165, 7
    %v1167 = vsub.s32 7, %v1166
    %v1168 = vrot.slane %v1135, %v1167
    %v1177 = vmul.f32 %v1045, %v1140
    %v1178 = vmul.f32 %v1047, %v1144
    %v1179 = vmul.f32 %v1049, %v1148
    %v1180 = vmul.f32 %v1051, %v1152
    %v1181 = vmul.f32 %v1053, %v1156
    %v1182 = vmul.f32 %v1055, %v1160
    %v1183 = vmul.f32 %v1057, %v1164
    %v1184 = vmul.f32 %v1059, %v1168
    %1186 = vset.pattern.permute.xlu0 0
    %1187 = vperm.xlu0 %1186, %v1177
    %v1188 = vpop.permute.xlu0 %1187
    %1191 = vset.pattern.permute.xlu0 0
    %1192 = vperm.xlu0 %1191, %v1178
    %v1193 = vpop.permute.xlu0 %1192
    %1196 = vset.pattern.permute.xlu0 0
    %1197 = vperm.xlu0 %1196, %v1179
    %v1198 = vpop.permute.xlu0 %1197
    %1201 = vset.pattern.permute.xlu0 0
    %1202 = vperm.xlu0 %1201, %v1180
    %v1203 = vpop.permute.xlu0 %1202
    %1206 = vset.pattern.permute.xlu0 0
    %1207 = vperm.xlu0 %1206, %v1181
    %v1208 = vpop.permute.xlu0 %1207
    %1211 = vset.pattern.permute.xlu0 0
    %1212 = vperm.xlu0 %1211, %v1182
    %v1213 = vpop.permute.xlu0 %1212
    %1216 = vset.pattern.permute.xlu0 0
    %1217 = vperm.xlu0 %1216, %v1183
    %v1218 = vpop.permute.xlu0 %1217
    %1221 = vset.pattern.permute.xlu0 0
    %1222 = vperm.xlu0 %1221, %v1184
    %v1223 = vpop.permute.xlu0 %1222
    %v1225 = vmul.f32 %v284, %v1188
    %v1226 = vmul.f32 %v285, %v1193
    %v1227 = vmul.f32 %v286, %v1198
    %v1228 = vmul.f32 %v287, %v1203
    %v1229 = vmul.f32 %v288, %v1208
    %v1230 = vmul.f32 %v289, %v1213
    %v1231 = vmul.f32 %v290, %v1218
    %v1232 = vmul.f32 %v291, %v1223
    %v1233 = vsel %vm340, %v1225, 0.0
    %v1234 = vrot.slane %v1233, 4
    %v1235 = vadd.f32 %v1233, %v1234
    %v1236 = vrot.slane %v1235, 2
    %v1237 = vadd.f32 %v1235, %v1236
    %v1238 = vrot.slane %v1237, 1
    %v1239 = vadd.f32 %v1237, %v1238
    %v1240 = vsel %vm340, %v1226, 0.0
    %v1241 = vrot.slane %v1240, 4
    %v1242 = vadd.f32 %v1240, %v1241
    %v1243 = vrot.slane %v1242, 2
    %v1244 = vadd.f32 %v1242, %v1243
    %v1245 = vrot.slane %v1244, 1
    %v1246 = vadd.f32 %v1244, %v1245
    %v1247 = vsel %vm340, %v1227, 0.0
    %v1248 = vrot.slane %v1247, 4
    %v1249 = vadd.f32 %v1247, %v1248
    %v1250 = vrot.slane %v1249, 2
    %v1251 = vadd.f32 %v1249, %v1250
    %v1252 = vrot.slane %v1251, 1
    %v1253 = vadd.f32 %v1251, %v1252
    %v1254 = vsel %vm340, %v1228, 0.0
    %v1255 = vrot.slane %v1254, 4
    %v1256 = vadd.f32 %v1254, %v1255
    %v1257 = vrot.slane %v1256, 2
    %v1258 = vadd.f32 %v1256, %v1257
    %v1259 = vrot.slane %v1258, 1
    %v1260 = vadd.f32 %v1258, %v1259
    %v1261 = vsel %vm340, %v1229, 0.0
    %v1262 = vrot.slane %v1261, 4
    %v1263 = vadd.f32 %v1261, %v1262
    %v1264 = vrot.slane %v1263, 2
    %v1265 = vadd.f32 %v1263, %v1264
    %v1266 = vrot.slane %v1265, 1
    %v1267 = vadd.f32 %v1265, %v1266
    %v1268 = vsel %vm340, %v1230, 0.0
    %v1269 = vrot.slane %v1268, 4
    %v1270 = vadd.f32 %v1268, %v1269
    %v1271 = vrot.slane %v1270, 2
    %v1272 = vadd.f32 %v1270, %v1271
    %v1273 = vrot.slane %v1272, 1
    %v1274 = vadd.f32 %v1272, %v1273
    %v1275 = vsel %vm340, %v1231, 0.0
    %v1276 = vrot.slane %v1275, 4
    %v1277 = vadd.f32 %v1275, %v1276
    %v1278 = vrot.slane %v1277, 2
    %v1279 = vadd.f32 %v1277, %v1278
    %v1280 = vrot.slane %v1279, 1
    %v1281 = vadd.f32 %v1279, %v1280
    %v1282 = vsel %vm340, %v1232, 0.0
    %v1283 = vrot.slane %v1282, 4
    %v1284 = vadd.f32 %v1282, %v1283
    %v1285 = vrot.slane %v1284, 2
    %v1286 = vadd.f32 %v1284, %v1285
    %v1287 = vrot.slane %v1286, 1
    %v1288 = vadd.f32 %v1286, %v1287
    %v1289 = vpack.c.bf16 %v711, %v711
    %v1290 = vld [vmem:[#allocation25] sm:$0xf]
    %v1291 = vld [vmem:[#allocation25 + $0x4] sm:$0xf]
    %v1292 = vld [vmem:[#allocation25 + $0x8] sm:$0xf]
    %v1293 = vld [vmem:[#allocation25 + $0xc] sm:$0xf]
    %v1294 = vpack.c.bf16 %v1239, %v1239
    %v1295 = vpack.c.bf16 %v1246, %v1246
    %v1296 = vpack.c.bf16 %v1253, %v1253
    %v1297 = vpack.c.bf16 %v1260, %v1260
    %v1298 = vpack.c.bf16 %v1267, %v1267
    %v1299 = vpack.c.bf16 %v1274, %v1274
    %v1300 = vpack.c.bf16 %v1281, %v1281
    %v1301 = vpack.c.bf16 %v1288, %v1288
    %v1302 = vld [vmem:[#allocation27] sm:$0xf]
    %v1303 = vld [vmem:[#allocation27 + $0x4] sm:$0xf]
    %v1304 = vld [vmem:[#allocation27 + $0x8] sm:$0xf]
    %v1305 = vld [vmem:[#allocation27 + $0xc] sm:$0xf]
    %v1314 = vunpack.c.l.b16 %v1294
    %v1315 = vunpack.c.l.b16 %v1295
    %v1316 = vunpack.c.l.b16 %v1296
    %v1317 = vunpack.c.l.b16 %v1297
    %v1318 = vunpack.c.l.b16 %v1298
    %v1319 = vunpack.c.l.b16 %v1299
    %v1320 = vunpack.c.l.b16 %v1300
    %v1321 = vunpack.c.l.b16 %v1301
    %v1322 = vsel %vm976, %v1315, %v1314
    %v1323 = vsel %vm978, %v1316, %v1322
    %v1324 = vsel %vm980, %v1317, %v1323
    %v1325 = vsel %vm982, %v1318, %v1324
    %v1326 = vsel %vm984, %v1319, %v1325
    %v1327 = vsel %vm986, %v1320, %v1326
    %v1328 = vsel %vm988, %v1321, %v1327
    %v1329 = vpack.c.b16 %v1328, %v1328
    %v1334 = vunpack.c.l.b16 %v1302
    %v1335 = vunpack.c.l.b16 %v1303
    %v1336 = vunpack.c.l.b16 %v1304
    %v1337 = vunpack.c.l.b16 %v1305
    %v1338 = vpack.c.b16 %v1335, %v1334
    %v1339 = vpack.c.b16 %v1337, %v1336
    %v1343 = vsel %vm340, %v1329, 0
    %1345 = vmatprep.subr.bf16.mxu0 0
    %1346 = vmatpush1.bf16.msra.mxu0 0
    %1347 = vmatprep.subr.bf16.mxu0 0
    %1348 = vmatpush1.bf16.msra.mxu0 0
    %1349 = vmatprep.subr.bf16.mxu0 0
    %1350 = vmatpush1.bf16.msra.mxu0 0
    %1351 = vmatprep.subr.bf16.mxu0 0
    %1352 = vmatpush1.bf16.msra.mxu0 0
    %1353 = vmatprep.subr.bf16.mxu0 0
    %1354 = vmatpush1.bf16.msra.mxu0 0
    %1355 = vmatprep.subr.bf16.mxu0 0
    %1356 = vmatpush1.bf16.msra.mxu0 0
    %1357 = vmatprep.subr.bf16.mxu0 0
    %1358 = vmatpush1.bf16.msra.mxu0 %v1339
    %1359 = vmatprep.subr.bf16.mxu0 0
    %1360 = vmatpush1.bf16.msra.mxu0 %v1338
    %1361 = vmatprep.subr.bf16.mxu0 0
    %1362 = vmatpush2.bf16.msra.mxu0 0
    %1363 = vmatprep.subr.bf16.mxu0 0
    %1364 = vmatpush2.bf16.msra.mxu0 0
    %1365 = vmatprep.subr.bf16.mxu0 0
    %1366 = vmatpush2.bf16.msra.mxu0 0
    %1367 = vmatprep.subr.bf16.mxu0 0
    %1368 = vmatpush2.bf16.msra.mxu0 0
    %1369 = vmatprep.subr.bf16.mxu0 0
    %1370 = vmatpush2.bf16.msra.mxu0 0
    %1371 = vmatprep.subr.bf16.mxu0 0
    %1372 = vmatpush2.bf16.msra.mxu0 0
    %1373 = vmatprep.subr.bf16.mxu0 0
    %1374 = vmatpush2.bf16.msra.mxu0 0
    %1375 = vmatprep.subr.bf16.mxu0 0
    %1376 = vmatpush2.bf16.msra.mxu0 0
    %1377 = vmatprep.mubr.bf16.mxu0 0
    %1378 = vmatmul.mubr.bf16.gmra.mxu0 %v1343
    %v1379 = vpop.f32.mrf.mxu0
    %v1380 = vadd.f32 0.0, %v1379
    %v1381 = vpop.f32.mrf.mxu0
    %v1382 = vpop.f32.mrf.mxu0
    %v1383 = vpop.f32.mrf.mxu0
    %1384 = vdwg.mxu0
    %v1389 = vunpack.c.l.b16 %v1290
    %v1390 = vunpack.c.l.b16 %v1291
    %v1391 = vunpack.c.l.b16 %v1292
    %v1392 = vunpack.c.l.b16 %v1293
    %v1393 = vpack.c.b16 %v1390, %v1389
    %v1394 = vpack.c.b16 %v1392, %v1391
    %v1398 = vsel %vm340, %v1289, 0
    %1400 = vmatprep.subr.bf16.mxu0 0
    %1401 = vmatpush1.bf16.msra.mxu0 0
    %1402 = vmatprep.subr.bf16.mxu0 0
    %1403 = vmatpush1.bf16.msra.mxu0 0
    %1404 = vmatprep.subr.bf16.mxu0 0
    %1405 = vmatpush1.bf16.msra.mxu0 0
    %1406 = vmatprep.subr.bf16.mxu0 0
    %1407 = vmatpush1.bf16.msra.mxu0 0
    %1408 = vmatprep.subr.bf16.mxu0 0
    %1409 = vmatpush1.bf16.msra.mxu0 0
    %1410 = vmatprep.subr.bf16.mxu0 0
    %1411 = vmatpush1.bf16.msra.mxu0 0
    %1412 = vmatprep.subr.bf16.mxu0 0
    %1413 = vmatpush1.bf16.msra.mxu0 %v1394
    %1414 = vmatprep.subr.bf16.mxu0 0
    %1415 = vmatpush1.bf16.msra.mxu0 %v1393
    %1416 = vmatprep.subr.bf16.mxu0 0
    %1417 = vmatpush2.bf16.msra.mxu0 0
    %1418 = vmatprep.subr.bf16.mxu0 0
    %1419 = vmatpush2.bf16.msra.mxu0 0
    %1420 = vmatprep.subr.bf16.mxu0 0
    %1421 = vmatpush2.bf16.msra.mxu0 0
    %1422 = vmatprep.subr.bf16.mxu0 0
    %1423 = vmatpush2.bf16.msra.mxu0 0
    %1424 = vmatprep.subr.bf16.mxu0 0
    %1425 = vmatpush2.bf16.msra.mxu0 0
    %1426 = vmatprep.subr.bf16.mxu0 0
    %1427 = vmatpush2.bf16.msra.mxu0 0
    %1428 = vmatprep.subr.bf16.mxu0 0
    %1429 = vmatpush2.bf16.msra.mxu0 0
    %1430 = vmatprep.subr.bf16.mxu0 0
    %1431 = vmatpush2.bf16.msra.mxu0 0
    %1432 = vmatprep.mubr.bf16.mxu0 0
    %1433 = vmatmul.mubr.bf16.gmra.mxu0 %v1398
    %v1434 = vpop.f32.mrf.mxu0
    %v1435 = vadd.f32 %v1380, %v1434
    %v1436 = vpop.f32.mrf.mxu0
    %v1437 = vpop.f32.mrf.mxu0
    %v1438 = vpop.f32.mrf.mxu0
    %1439 = vdwg.mxu0
    %v1440 = vld [vmem:[%s19] sm:$0x1]
    %v1442 = vlaneseq
    %v1443 = vshrl.u32 %v1442, 7
    %v1444 = vsub.s32 0, %v1443
    %v1445 = vrot.slane %v1440, %v1444
    %v1447 = vadd.f32 %v1435, %v1445
    %1448 = vmax.xlane.f32.xlu0 %v1447
    %v1449 = vpop.xlane.xlu0 %1448
    %v1450 = vsub.f32 %v1447, %v1449
    %v1451 = vmul.f32 %v1450, 1.442695
    %v1452 = vpow.pop %v1451
    %1453 = vadd.xlane.f32.xlu0 %v1452
    %v1454 = vpop.xlane.xlu0 %1453
    %v1455 = vrcp.pop %v1454
    %v1456 = vmul.f32 %v1452, %v1455
    %v1457 = vld [vmem:[%s20] sm:$0xff]
    %v1458 = vld [vmem:[%s20 + $0x8] sm:$0xff]
    %v1459 = vld [vmem:[%s20 + $0x10] sm:$0xff]
    %v1460 = vld [vmem:[%s20 + $0x18] sm:$0xff]
    %v1461 = vld [vmem:[%s21] sm:$0xff]
    %v1462 = vld [vmem:[%s21 + $0x8] sm:$0xff]
    %v1463 = vld [vmem:[%s21 + $0x10] sm:$0xff]
    %v1464 = vld [vmem:[%s21 + $0x18] sm:$0xff]
    %v1466 = vsel %vm340, %v711, 0
    %1468 = vmatprep.subr.mxu0 0.0
    %1469 = vmatpush1.msra.mxu0 0.0
    %1470 = vmatprep.subr.mxu0 0.0
    %1471 = vmatpush1.msra.mxu0 0.0
    %1472 = vmatprep.subr.mxu0 0.0
    %1473 = vmatpush1.msra.mxu0 0.0
    %1474 = vmatprep.subr.mxu0 0.0
    %1475 = vmatpush1.msra.mxu0 0.0
    %1476 = vmatprep.subr.mxu0 0.0
    %1477 = vmatpush1.msra.mxu0 0.0
    %1478 = vmatprep.subr.mxu0 0.0
    %1479 = vmatpush1.msra.mxu0 0.0
    %1480 = vmatprep.subr.mxu0 0.0
    %1481 = vmatpush1.msra.mxu0 0.0
    %1482 = vmatprep.subr.mxu0 0.0
    %1483 = vmatpush1.msra.mxu0 0.0
    %1484 = vmatprep.subr.mxu0 0.0
    %1485 = vmatpush1.msra.mxu0 0.0
    %1486 = vmatprep.subr.mxu0 0.0
    %1487 = vmatpush1.msra.mxu0 0.0
    %1488 = vmatprep.subr.mxu0 0.0
    %1489 = vmatpush1.msra.mxu0 0.0
    %1490 = vmatprep.subr.mxu0 0.0
    %1491 = vmatpush1.msra.mxu0 0.0
    %1492 = vmatprep.subr.mxu0 0.0
    %1493 = vmatpush1.msra.mxu0 %v1464
    %1494 = vmatprep.subr.mxu0 0.0
    %1495 = vmatpush1.msra.mxu0 %v1463
    %1496 = vmatprep.subr.mxu0 0.0
    %1497 = vmatpush1.msra.mxu0 %v1462
    %1498 = vmatprep.subr.mxu0 0.0
    %1499 = vmatpush1.msra.mxu0 %v1461
    %1500 = vmatprep.subr.mxu0 0.0
    %1501 = vmatpush2.msra.mxu0 0.0
    %1502 = vmatprep.subr.mxu0 0.0
    %1503 = vmatpush2.msra.mxu0 0.0
    %1504 = vmatprep.subr.mxu0 0.0
    %1505 = vmatpush2.msra.mxu0 0.0
    %1506 = vmatprep.subr.mxu0 0.0
    %1507 = vmatpush2.msra.mxu0 0.0
    %1508 = vmatprep.subr.mxu0 0.0
    %1509 = vmatpush2.msra.mxu0 0.0
    %1510 = vmatprep.subr.mxu0 0.0
    %1511 = vmatpush2.msra.mxu0 0.0
    %1512 = vmatprep.subr.mxu0 0.0
    %1513 = vmatpush2.msra.mxu0 0.0
    %1514 = vmatprep.subr.mxu0 0.0
    %1515 = vmatpush2.msra.mxu0 0.0
    %1516 = vmatprep.subr.mxu0 0.0
    %1517 = vmatpush2.msra.mxu0 0.0
    %1518 = vmatprep.subr.mxu0 0.0
    %1519 = vmatpush2.msra.mxu0 0.0
    %1520 = vmatprep.subr.mxu0 0.0
    %1521 = vmatpush2.msra.mxu0 0.0
    %1522 = vmatprep.subr.mxu0 0.0
    %1523 = vmatpush2.msra.mxu0 0.0
    %1524 = vmatprep.subr.mxu0 0.0
    %1525 = vmatpush2.msra.mxu0 0.0
    %1526 = vmatprep.subr.mxu0 0.0
    %1527 = vmatpush2.msra.mxu0 0.0
    %1528 = vmatprep.subr.mxu0 0.0
    %1529 = vmatpush2.msra.mxu0 0.0
    %1530 = vmatprep.subr.mxu0 0.0
    %1531 = vmatpush2.msra.mxu0 0.0
    %1532 = vmatprep.mubr.f32.mxu0 0.0
    %1533 = vmatmul.mubr.f32.gmra.mxu0 %v1466
    %v1534 = vpop.f32.mrf.mxu0
    %v1535 = vadd.f32 0.0, %v1534
    %v1536 = vpop.f32.mrf.mxu0
    %1537 = vdwg.mxu0
    %v1546 = vsel %vm976, %v1246, %v1239
    %v1547 = vsel %vm978, %v1253, %v1546
    %v1548 = vsel %vm980, %v1260, %v1547
    %v1549 = vsel %vm982, %v1267, %v1548
    %v1550 = vsel %vm984, %v1274, %v1549
    %v1551 = vsel %vm986, %v1281, %v1550
    %v1552 = vsel %vm988, %v1288, %v1551
    %v1553 = vsel %vm340, %v1552, 0
    %1555 = vmatprep.subr.mxu0 0.0
    %1556 = vmatpush1.msra.mxu0 0.0
    %1557 = vmatprep.subr.mxu0 0.0
    %1558 = vmatpush1.msra.mxu0 0.0
    %1559 = vmatprep.subr.mxu0 0.0
    %1560 = vmatpush1.msra.mxu0 0.0
    %1561 = vmatprep.subr.mxu0 0.0
    %1562 = vmatpush1.msra.mxu0 0.0
    %1563 = vmatprep.subr.mxu0 0.0
    %1564 = vmatpush1.msra.mxu0 0.0
    %1565 = vmatprep.subr.mxu0 0.0
    %1566 = vmatpush1.msra.mxu0 0.0
    %1567 = vmatprep.subr.mxu0 0.0
    %1568 = vmatpush1.msra.mxu0 0.0
    %1569 = vmatprep.subr.mxu0 0.0
    %1570 = vmatpush1.msra.mxu0 0.0
    %1571 = vmatprep.subr.mxu0 0.0
    %1572 = vmatpush1.msra.mxu0 0.0
    %1573 = vmatprep.subr.mxu0 0.0
    %1574 = vmatpush1.msra.mxu0 0.0
    %1575 = vmatprep.subr.mxu0 0.0
    %1576 = vmatpush1.msra.mxu0 0.0
    %1577 = vmatprep.subr.mxu0 0.0
    %1578 = vmatpush1.msra.mxu0 0.0
    %1579 = vmatprep.subr.mxu0 0.0
    %1580 = vmatpush1.msra.mxu0 %v1460
    %1581 = vmatprep.subr.mxu0 0.0
    %1582 = vmatpush1.msra.mxu0 %v1459
    %1583 = vmatprep.subr.mxu0 0.0
    %1584 = vmatpush1.msra.mxu0 %v1458
    %1585 = vmatprep.subr.mxu0 0.0
    %1586 = vmatpush1.msra.mxu0 %v1457
    %1587 = vmatprep.subr.mxu0 0.0
    %1588 = vmatpush2.msra.mxu0 0.0
    %1589 = vmatprep.subr.mxu0 0.0
    %1590 = vmatpush2.msra.mxu0 0.0
    %1591 = vmatprep.subr.mxu0 0.0
    %1592 = vmatpush2.msra.mxu0 0.0
    %1593 = vmatprep.subr.mxu0 0.0
    %1594 = vmatpush2.msra.mxu0 0.0
    %1595 = vmatprep.subr.mxu0 0.0
    %1596 = vmatpush2.msra.mxu0 0.0
    %1597 = vmatprep.subr.mxu0 0.0
    %1598 = vmatpush2.msra.mxu0 0.0
    %1599 = vmatprep.subr.mxu0 0.0
    %1600 = vmatpush2.msra.mxu0 0.0
    %1601 = vmatprep.subr.mxu0 0.0
    %1602 = vmatpush2.msra.mxu0 0.0
    %1603 = vmatprep.subr.mxu0 0.0
    %1604 = vmatpush2.msra.mxu0 0.0
    %1605 = vmatprep.subr.mxu0 0.0
    %1606 = vmatpush2.msra.mxu0 0.0
    %1607 = vmatprep.subr.mxu0 0.0
    %1608 = vmatpush2.msra.mxu0 0.0
    %1609 = vmatprep.subr.mxu0 0.0
    %1610 = vmatpush2.msra.mxu0 0.0
    %1611 = vmatprep.subr.mxu0 0.0
    %1612 = vmatpush2.msra.mxu0 0.0
    %1613 = vmatprep.subr.mxu0 0.0
    %1614 = vmatpush2.msra.mxu0 0.0
    %1615 = vmatprep.subr.mxu0 0.0
    %1616 = vmatpush2.msra.mxu0 0.0
    %1617 = vmatprep.subr.mxu0 0.0
    %1618 = vmatpush2.msra.mxu0 0.0
    %1619 = vmatprep.mubr.f32.mxu0 0.0
    %1620 = vmatmul.mubr.f32.gmra.mxu0 %v1553
    %v1621 = vpop.f32.mrf.mxu0
    %v1622 = vadd.f32 %v1535, %v1621
    %v1623 = vpop.f32.mrf.mxu0
    %1624 = vdwg.mxu0
    %v1625 = vld [vmem:[%s22] sm:$0xff]
    %v1626 = vld [vmem:[%s22 + $0x8] sm:$0xff]
    %v1627 = vld [vmem:[%s22 + $0x10] sm:$0xff]
    %v1628 = vld [vmem:[%s22 + $0x18] sm:$0xff]
    %v1630 = vsel %vm340, %v317, 0
    %1632 = vmatprep.subr.mxu0 0.0
    %1633 = vmatpush1.msra.mxu0 0.0
    %1634 = vmatprep.subr.mxu0 0.0
    %1635 = vmatpush1.msra.mxu0 0.0
    %1636 = vmatprep.subr.mxu0 0.0
    %1637 = vmatpush1.msra.mxu0 0.0
    %1638 = vmatprep.subr.mxu0 0.0
    %1639 = vmatpush1.msra.mxu0 0.0
    %1640 = vmatprep.subr.mxu0 0.0
    %1641 = vmatpush1.msra.mxu0 0.0
    %1642 = vmatprep.subr.mxu0 0.0
    %1643 = vmatpush1.msra.mxu0 0.0
    %1644 = vmatprep.subr.mxu0 0.0
    %1645 = vmatpush1.msra.mxu0 0.0
    %1646 = vmatprep.subr.mxu0 0.0
    %1647 = vmatpush1.msra.mxu0 0.0
    %1648 = vmatprep.subr.mxu0 0.0
    %1649 = vmatpush1.msra.mxu0 0.0
    %1650 = vmatprep.subr.mxu0 0.0
    %1651 = vmatpush1.msra.mxu0 0.0
    %1652 = vmatprep.subr.mxu0 0.0
    %1653 = vmatpush1.msra.mxu0 0.0
    %1654 = vmatprep.subr.mxu0 0.0
    %1655 = vmatpush1.msra.mxu0 0.0
    %1656 = vmatprep.subr.mxu0 0.0
    %1657 = vmatpush1.msra.mxu0 %v1628
    %1658 = vmatprep.subr.mxu0 0.0
    %1659 = vmatpush1.msra.mxu0 %v1627
    %1660 = vmatprep.subr.mxu0 0.0
    %1661 = vmatpush1.msra.mxu0 %v1626
    %1662 = vmatprep.subr.mxu0 0.0
    %1663 = vmatpush1.msra.mxu0 %v1625
    %1664 = vmatprep.subr.mxu0 0.0
    %1665 = vmatpush2.msra.mxu0 0.0
    %1666 = vmatprep.subr.mxu0 0.0
    %1667 = vmatpush2.msra.mxu0 0.0
    %1668 = vmatprep.subr.mxu0 0.0
    %1669 = vmatpush2.msra.mxu0 0.0
    %1670 = vmatprep.subr.mxu0 0.0
    %1671 = vmatpush2.msra.mxu0 0.0
    %1672 = vmatprep.subr.mxu0 0.0
    %1673 = vmatpush2.msra.mxu0 0.0
    %1674 = vmatprep.subr.mxu0 0.0
    %1675 = vmatpush2.msra.mxu0 0.0
    %1676 = vmatprep.subr.mxu0 0.0
    %1677 = vmatpush2.msra.mxu0 0.0
    %1678 = vmatprep.subr.mxu0 0.0
    %1679 = vmatpush2.msra.mxu0 0.0
    %1680 = vmatprep.subr.mxu0 0.0
    %1681 = vmatpush2.msra.mxu0 0.0
    %1682 = vmatprep.subr.mxu0 0.0
    %1683 = vmatpush2.msra.mxu0 0.0
    %1684 = vmatprep.subr.mxu0 0.0
    %1685 = vmatpush2.msra.mxu0 0.0
    %1686 = vmatprep.subr.mxu0 0.0
    %1687 = vmatpush2.msra.mxu0 0.0
    %1688 = vmatprep.subr.mxu0 0.0
    %1689 = vmatpush2.msra.mxu0 0.0
    %1690 = vmatprep.subr.mxu0 0.0
    %1691 = vmatpush2.msra.mxu0 0.0
    %1692 = vmatprep.subr.mxu0 0.0
    %1693 = vmatpush2.msra.mxu0 0.0
    %1694 = vmatprep.subr.mxu0 0.0
    %1695 = vmatpush2.msra.mxu0 0.0
    %1696 = vmatprep.mubr.f32.mxu0 0.0
    %1697 = vmatmul.mubr.f32.gmra.mxu0 %v1630
    %v1698 = vpop.f32.mrf.mxu0
    %v1699 = vadd.f32 0.0, %v1698
    %v1700 = vpop.f32.mrf.mxu0
    %1701 = vdwg.mxu0
    %v1702 = vadd.f32 %v1622, %v1699
    %v1703 = vld [vmem:[#allocation3] sm:$0x1]
    %v1705 = vlaneseq
    %v1706 = vshrl.u32 %v1705, 7
    %v1707 = vsub.s32 0, %v1706
    %v1708 = vrot.slane %v1703, %v1707
    %v1710 = vadd.f32 %v1702, %v1708
    %v1711 = vxor.u32 %v1710, 2147483648
    %v1712 = vmul.f32 %v1711, 1.442695
    %v1713 = vpow.pop %v1712
    %v1714 = vadd.f32 %v1713, 1.0
    %v1715 = vrcp.pop %v1714
    %v1716 = vmul.f32 1.0, %v1715
    %v1717 = vmul.f32 %v1188, %v308
    %v1718 = vmul.f32 %v1193, %v309
    %v1719 = vmul.f32 %v1198, %v310
    %v1720 = vmul.f32 %v1203, %v311
    %v1721 = vmul.f32 %v1208, %v312
    %v1722 = vmul.f32 %v1213, %v313
    %v1723 = vmul.f32 %v1218, %v314
    %v1724 = vmul.f32 %v1223, %v315
    %v1725 = vrot.slane %v1717, 4
    %v1726 = vadd.f32 %v1717, %v1725
    %v1727 = vrot.slane %v1726, 2
    %v1728 = vadd.f32 %v1726, %v1727
    %v1729 = vrot.slane %v1728, 1
    %v1730 = vadd.f32 %v1728, %v1729
    %v1731 = vrot.slane %v1718, 4
    %v1732 = vadd.f32 %v1718, %v1731
    %v1733 = vrot.slane %v1732, 2
    %v1734 = vadd.f32 %v1732, %v1733
    %v1735 = vrot.slane %v1734, 1
    %v1736 = vadd.f32 %v1734, %v1735
    %v1737 = vrot.slane %v1719, 4
    %v1738 = vadd.f32 %v1719, %v1737
    %v1739 = vrot.slane %v1738, 2
    %v1740 = vadd.f32 %v1738, %v1739
    %v1741 = vrot.slane %v1740, 1
    %v1742 = vadd.f32 %v1740, %v1741
    %v1743 = vrot.slane %v1720, 4
    %v1744 = vadd.f32 %v1720, %v1743
    %v1745 = vrot.slane %v1744, 2
    %v1746 = vadd.f32 %v1744, %v1745
    %v1747 = vrot.slane %v1746, 1
    %v1748 = vadd.f32 %v1746, %v1747
    %v1749 = vrot.slane %v1721, 4
    %v1750 = vadd.f32 %v1721, %v1749
    %v1751 = vrot.slane %v1750, 2
    %v1752 = vadd.f32 %v1750, %v1751
    %v1753 = vrot.slane %v1752, 1
    %v1754 = vadd.f32 %v1752, %v1753
    %v1755 = vrot.slane %v1722, 4
    %v1756 = vadd.f32 %v1722, %v1755
    %v1757 = vrot.slane %v1756, 2
    %v1758 = vadd.f32 %v1756, %v1757
    %v1759 = vrot.slane %v1758, 1
    %v1760 = vadd.f32 %v1758, %v1759
    %v1761 = vrot.slane %v1723, 4
    %v1762 = vadd.f32 %v1723, %v1761
    %v1763 = vrot.slane %v1762, 2
    %v1764 = vadd.f32 %v1762, %v1763
    %v1765 = vrot.slane %v1764, 1
    %v1766 = vadd.f32 %v1764, %v1765
    %v1767 = vrot.slane %v1724, 4
    %v1768 = vadd.f32 %v1724, %v1767
    %v1769 = vrot.slane %v1768, 2
    %v1770 = vadd.f32 %v1768, %v1769
    %v1771 = vrot.slane %v1770, 1
    %v1772 = vadd.f32 %v1770, %v1771
    %1774 = vset.pattern.permute.xlu0 0
    %1775 = vperm.xlu0 %1774, %v1716
    %v1776 = vpop.permute.xlu0 %1775
    %v1778 = vmul.f32 %v1776, %v1456
    %v1779 = vsub.f32 1.0, %v1716
    %1781 = vset.pattern.permute.xlu0 0
    %1782 = vperm.xlu0 %1781, %v1779
    %v1783 = vpop.permute.xlu0 %1782
    %v1793 = vsel %vm976, %v1736, %v1730
    %v1794 = vsel %vm978, %v1742, %v1793
    %v1795 = vsel %vm980, %v1748, %v1794
    %v1796 = vsel %vm982, %v1754, %v1795
    %v1797 = vsel %vm984, %v1760, %v1796
    %v1798 = vsel %vm986, %v1766, %v1797
    %v1799 = vsel %vm988, %v1772, %v1798
    %v1801 = vmul.f32 %v1783, %v1799
    %v1802 = vadd.f32 %v1778, %v1801
    %v1803 = vmax.f32 %v1802, 1e-08
    %1804 = vst [vmem:[#allocation28] sm:$0xff] %v1803
    %s1805 = scalar_lea.vmem %s0, 8
    %v1806 = vld [vmem:[%s1805] sm:$0xff]
    %v1807 = vpack.c.bf16 %v1806, %v1806
    %v1808 = vld [vmem:[#allocation10] sm:$0xf]
    %v1809 = vld [vmem:[#allocation10 + $0x4] sm:$0xf]
    %v1810 = vld [vmem:[#allocation10 + $0x8] sm:$0xf]
    %v1811 = vld [vmem:[#allocation10 + $0xc] sm:$0xf]
    %v1812 = vld [vmem:[#allocation15] sm:$0xf]
    %v1813 = vld [vmem:[#allocation15 + $0x4] sm:$0xf]
    %v1814 = vld [vmem:[#allocation15 + $0x8] sm:$0xf]
    %v1815 = vld [vmem:[#allocation15 + $0xc] sm:$0xf]
    %v1820 = vunpack.c.l.b16 %v1812
    %v1821 = vunpack.c.l.b16 %v1813
    %v1822 = vunpack.c.l.b16 %v1814
    %v1823 = vunpack.c.l.b16 %v1815
    %v1824 = vpack.c.b16 %v1821, %v1820
    %v1825 = vpack.c.b16 %v1823, %v1822
    %1828 = vmatprep.subr.bf16.mxu0 0
    %1829 = vmatpush1.bf16.msra.mxu0 0
    %1830 = vmatprep.subr.bf16.mxu0 0
    %1831 = vmatpush1.bf16.msra.mxu0 0
    %1832 = vmatprep.subr.bf16.mxu0 0
    %1833 = vmatpush1.bf16.msra.mxu0 0
    %1834 = vmatprep.subr.bf16.mxu0 0
    %1835 = vmatpush1.bf16.msra.mxu0 0
    %1836 = vmatprep.subr.bf16.mxu0 0
    %1837 = vmatpush1.bf16.msra.mxu0 0
    %1838 = vmatprep.subr.bf16.mxu0 0
    %1839 = vmatpush1.bf16.msra.mxu0 0
    %1840 = vmatprep.subr.bf16.mxu0 0
    %1841 = vmatpush1.bf16.msra.mxu0 %v1825
    %1842 = vmatprep.subr.bf16.mxu0 0
    %1843 = vmatpush1.bf16.msra.mxu0 %v1824
    %1844 = vmatprep.subr.bf16.mxu0 0
    %1845 = vmatpush2.bf16.msra.mxu0 0
    %1846 = vmatprep.subr.bf16.mxu0 0
    %1847 = vmatpush2.bf16.msra.mxu0 0
    %1848 = vmatprep.subr.bf16.mxu0 0
    %1849 = vmatpush2.bf16.msra.mxu0 0
    %1850 = vmatprep.subr.bf16.mxu0 0
    %1851 = vmatpush2.bf16.msra.mxu0 0
    %1852 = vmatprep.subr.bf16.mxu0 0
    %1853 = vmatpush2.bf16.msra.mxu0 0
    %1854 = vmatprep.subr.bf16.mxu0 0
    %1855 = vmatpush2.bf16.msra.mxu0 0
    %1856 = vmatprep.subr.bf16.mxu0 0
    %1857 = vmatpush2.bf16.msra.mxu0 0
    %1858 = vmatprep.subr.bf16.mxu0 0
    %1859 = vmatpush2.bf16.msra.mxu0 0
    %1860 = vmatprep.mubr.bf16.mxu0 0
    %1861 = vmatmul.mubr.bf16.gmra.mxu0 %v1398
    %v1862 = vpop.f32.mrf.mxu0
    %v1863 = vadd.f32 0.0, %v1862
    %v1864 = vpop.f32.mrf.mxu0
    %v1865 = vpop.f32.mrf.mxu0
    %v1866 = vpop.f32.mrf.mxu0
    %1867 = vdwg.mxu0
    %v1872 = vunpack.c.l.b16 %v1808
    %v1873 = vunpack.c.l.b16 %v1809
    %v1874 = vunpack.c.l.b16 %v1810
    %v1875 = vunpack.c.l.b16 %v1811
    %v1876 = vpack.c.b16 %v1873, %v1872
    %v1877 = vpack.c.b16 %v1875, %v1874
    %v1881 = vsel %vm340, %v1807, 0
    %1883 = vmatprep.subr.bf16.mxu0 0
    %1884 = vmatpush1.bf16.msra.mxu0 0
    %1885 = vmatprep.subr.bf16.mxu0 0
    %1886 = vmatpush1.bf16.msra.mxu0 0
    %1887 = vmatprep.subr.bf16.mxu0 0
    %1888 = vmatpush1.bf16.msra.mxu0 0
    %1889 = vmatprep.subr.bf16.mxu0 0
    %1890 = vmatpush1.bf16.msra.mxu0 0
    %1891 = vmatprep.subr.bf16.mxu0 0
    %1892 = vmatpush1.bf16.msra.mxu0 0
    %1893 = vmatprep.subr.bf16.mxu0 0
    %1894 = vmatpush1.bf16.msra.mxu0 0
    %1895 = vmatprep.subr.bf16.mxu0 0
    %1896 = vmatpush1.bf16.msra.mxu0 %v1877
    %1897 = vmatprep.subr.bf16.mxu0 0
    %1898 = vmatpush1.bf16.msra.mxu0 %v1876
    %1899 = vmatprep.subr.bf16.mxu0 0
    %1900 = vmatpush2.bf16.msra.mxu0 0
    %1901 = vmatprep.subr.bf16.mxu0 0
    %1902 = vmatpush2.bf16.msra.mxu0 0
    %1903 = vmatprep.subr.bf16.mxu0 0
    %1904 = vmatpush2.bf16.msra.mxu0 0
    %1905 = vmatprep.subr.bf16.mxu0 0
    %1906 = vmatpush2.bf16.msra.mxu0 0
    %1907 = vmatprep.subr.bf16.mxu0 0
    %1908 = vmatpush2.bf16.msra.mxu0 0
    %1909 = vmatprep.subr.bf16.mxu0 0
    %1910 = vmatpush2.bf16.msra.mxu0 0
    %1911 = vmatprep.subr.bf16.mxu0 0
    %1912 = vmatpush2.bf16.msra.mxu0 0
    %1913 = vmatprep.subr.bf16.mxu0 0
    %1914 = vmatpush2.bf16.msra.mxu0 0
    %1915 = vmatprep.mubr.bf16.mxu0 0
    %1916 = vmatmul.mubr.bf16.gmra.mxu0 %v1881
    %v1917 = vpop.f32.mrf.mxu0
    %v1918 = vadd.f32 %v1863, %v1917
    %v1919 = vpop.f32.mrf.mxu0
    %v1920 = vpop.f32.mrf.mxu0
    %v1921 = vpop.f32.mrf.mxu0
    %1922 = vdwg.mxu0
    %v1923 = vld [vmem:[#allocation19] sm:$0x1]
    %v1925 = vlaneseq
    %v1926 = vshrl.u32 %v1925, 7
    %v1927 = vsub.s32 0, %v1926
    %v1928 = vrot.slane %v1923, %v1927
    %v1930 = vadd.f32 %v1918, %v1928
    %v1931 = vxor.u32 %v1930, 2147483648
    %v1932 = vmul.f32 %v1931, 1.442695
    %v1933 = vpow.pop %v1932
    %v1934 = vadd.f32 %v1933, 1.0
    %v1935 = vrcp.pop %v1934
    %v1936 = vmul.f32 1.0, %v1935
    %v1937 = vld [vmem:[#allocation12] sm:$0xf]
    %v1938 = vld [vmem:[#allocation12 + $0x4] sm:$0xf]
    %v1939 = vld [vmem:[#allocation12 + $0x8] sm:$0xf]
    %v1940 = vld [vmem:[#allocation12 + $0xc] sm:$0xf]
    %v1941 = vld [vmem:[#allocation16] sm:$0xf]
    %v1942 = vld [vmem:[#allocation16 + $0x4] sm:$0xf]
    %v1943 = vld [vmem:[#allocation16 + $0x8] sm:$0xf]
    %v1944 = vld [vmem:[#allocation16 + $0xc] sm:$0xf]
    %v1949 = vunpack.c.l.b16 %v1941
    %v1950 = vunpack.c.l.b16 %v1942
    %v1951 = vunpack.c.l.b16 %v1943
    %v1952 = vunpack.c.l.b16 %v1944
    %v1953 = vpack.c.b16 %v1950, %v1949
    %v1954 = vpack.c.b16 %v1952, %v1951
    %1957 = vmatprep.subr.bf16.mxu0 0
    %1958 = vmatpush1.bf16.msra.mxu0 0
    %1959 = vmatprep.subr.bf16.mxu0 0
    %1960 = vmatpush1.bf16.msra.mxu0 0
    %1961 = vmatprep.subr.bf16.mxu0 0
    %1962 = vmatpush1.bf16.msra.mxu0 0
    %1963 = vmatprep.subr.bf16.mxu0 0
    %1964 = vmatpush1.bf16.msra.mxu0 0
    %1965 = vmatprep.subr.bf16.mxu0 0
    %1966 = vmatpush1.bf16.msra.mxu0 0
    %1967 = vmatprep.subr.bf16.mxu0 0
    %1968 = vmatpush1.bf16.msra.mxu0 0
    %1969 = vmatprep.subr.bf16.mxu0 0
    %1970 = vmatpush1.bf16.msra.mxu0 %v1954
    %1971 = vmatprep.subr.bf16.mxu0 0
    %1972 = vmatpush1.bf16.msra.mxu0 %v1953
    %1973 = vmatprep.subr.bf16.mxu0 0
    %1974 = vmatpush2.bf16.msra.mxu0 0
    %1975 = vmatprep.subr.bf16.mxu0 0
    %1976 = vmatpush2.bf16.msra.mxu0 0
    %1977 = vmatprep.subr.bf16.mxu0 0
    %1978 = vmatpush2.bf16.msra.mxu0 0
    %1979 = vmatprep.subr.bf16.mxu0 0
    %1980 = vmatpush2.bf16.msra.mxu0 0
    %1981 = vmatprep.subr.bf16.mxu0 0
    %1982 = vmatpush2.bf16.msra.mxu0 0
    %1983 = vmatprep.subr.bf16.mxu0 0
    %1984 = vmatpush2.bf16.msra.mxu0 0
    %1985 = vmatprep.subr.bf16.mxu0 0
    %1986 = vmatpush2.bf16.msra.mxu0 0
    %1987 = vmatprep.subr.bf16.mxu0 0
    %1988 = vmatpush2.bf16.msra.mxu0 0
    %1989 = vmatprep.mubr.bf16.mxu0 0
    %1990 = vmatmul.mubr.bf16.gmra.mxu0 %v1398
    %v1991 = vpop.f32.mrf.mxu0
    %v1992 = vadd.f32 0.0, %v1991
    %v1993 = vpop.f32.mrf.mxu0
    %v1994 = vpop.f32.mrf.mxu0
    %v1995 = vpop.f32.mrf.mxu0
    %1996 = vdwg.mxu0
    %v2001 = vunpack.c.l.b16 %v1937
    %v2002 = vunpack.c.l.b16 %v1938
    %v2003 = vunpack.c.l.b16 %v1939
    %v2004 = vunpack.c.l.b16 %v1940
    %v2005 = vpack.c.b16 %v2002, %v2001
    %v2006 = vpack.c.b16 %v2004, %v2003
    %2009 = vmatprep.subr.bf16.mxu0 0
    %2010 = vmatpush1.bf16.msra.mxu0 0
    %2011 = vmatprep.subr.bf16.mxu0 0
    %2012 = vmatpush1.bf16.msra.mxu0 0
    %2013 = vmatprep.subr.bf16.mxu0 0
    %2014 = vmatpush1.bf16.msra.mxu0 0
    %2015 = vmatprep.subr.bf16.mxu0 0
    %2016 = vmatpush1.bf16.msra.mxu0 0
    %2017 = vmatprep.subr.bf16.mxu0 0
    %2018 = vmatpush1.bf16.msra.mxu0 0
    %2019 = vmatprep.subr.bf16.mxu0 0
    %2020 = vmatpush1.bf16.msra.mxu0 0
    %2021 = vmatprep.subr.bf16.mxu0 0
    %2022 = vmatpush1.bf16.msra.mxu0 %v2006
    %2023 = vmatprep.subr.bf16.mxu0 0
    %2024 = vmatpush1.bf16.msra.mxu0 %v2005
    %2025 = vmatprep.subr.bf16.mxu0 0
    %2026 = vmatpush2.bf16.msra.mxu0 0
    %2027 = vmatprep.subr.bf16.mxu0 0
    %2028 = vmatpush2.bf16.msra.mxu0 0
    %2029 = vmatprep.subr.bf16.mxu0 0
    %2030 = vmatpush2.bf16.msra.mxu0 0
    %2031 = vmatprep.subr.bf16.mxu0 0
    %2032 = vmatpush2.bf16.msra.mxu0 0
    %2033 = vmatprep.subr.bf16.mxu0 0
    %2034 = vmatpush2.bf16.msra.mxu0 0
    %2035 = vmatprep.subr.bf16.mxu0 0
    %2036 = vmatpush2.bf16.msra.mxu0 0
    %2037 = vmatprep.subr.bf16.mxu0 0
    %2038 = vmatpush2.bf16.msra.mxu0 0
    %2039 = vmatprep.subr.bf16.mxu0 0
    %2040 = vmatpush2.bf16.msra.mxu0 0
    %2041 = vmatprep.mubr.bf16.mxu0 0
    %2042 = vmatmul.mubr.bf16.gmra.mxu0 %v1881
    %v2043 = vpop.f32.mrf.mxu0
    %v2044 = vadd.f32 %v1992, %v2043
    %v2045 = vpop.f32.mrf.mxu0
    %v2046 = vpop.f32.mrf.mxu0
    %v2047 = vpop.f32.mrf.mxu0
    %2048 = vdwg.mxu0
    %v2049 = vld [vmem:[#allocation21] sm:$0x1]
    %v2051 = vlaneseq
    %v2052 = vshrl.u32 %v2051, 7
    %v2053 = vsub.s32 0, %v2052
    %v2054 = vrot.slane %v2049, %v2053
    %v2056 = vadd.f32 %v2044, %v2054
    %v2057 = vxor.u32 %v2056, 2147483648
    %v2058 = vmul.f32 %v2057, 1.442695
    %v2059 = vpow.pop %v2058
    %v2060 = vadd.f32 %v2059, 1.0
    %v2061 = vrcp.pop %v2060
    %v2062 = vmul.f32 1.0, %v2061
    %v2063 = vld [vmem:[#allocation13] sm:$0xf]
    %v2064 = vld [vmem:[#allocation13 + $0x4] sm:$0xf]
    %v2065 = vld [vmem:[#allocation13 + $0x8] sm:$0xf]
    %v2066 = vld [vmem:[#allocation13 + $0xc] sm:$0xf]
    %v2067 = vld [vmem:[#allocation22] sm:$0x1]
    %v2069 = vlaneseq
    %v2070 = vshrl.u32 %v2069, 7
    %v2071 = vsub.s32 0, %v2070
    %v2072 = vrot.slane %v2067, %v2071
    %v2078 = vunpack.c.l.b16 %v2063
    %v2079 = vunpack.c.l.b16 %v2064
    %v2080 = vunpack.c.l.b16 %v2065
    %v2081 = vunpack.c.l.b16 %v2066
    %v2082 = vpack.c.b16 %v2079, %v2078
    %v2083 = vpack.c.b16 %v2081, %v2080
    %2086 = vmatprep.subr.bf16.mxu0 0
    %2087 = vmatpush1.bf16.msra.mxu0 0
    %2088 = vmatprep.subr.bf16.mxu0 0
    %2089 = vmatpush1.bf16.msra.mxu0 0
    %2090 = vmatprep.subr.bf16.mxu0 0
    %2091 = vmatpush1.bf16.msra.mxu0 0
    %2092 = vmatprep.subr.bf16.mxu0 0
    %2093 = vmatpush1.bf16.msra.mxu0 0
    %2094 = vmatprep.subr.bf16.mxu0 0
    %2095 = vmatpush1.bf16.msra.mxu0 0
    %2096 = vmatprep.subr.bf16.mxu0 0
    %2097 = vmatpush1.bf16.msra.mxu0 0
    %2098 = vmatprep.subr.bf16.mxu0 0
    %2099 = vmatpush1.bf16.msra.mxu0 %v2083
    %2100 = vmatprep.subr.bf16.mxu0 0
    %2101 = vmatpush1.bf16.msra.mxu0 %v2082
    %2102 = vmatprep.subr.bf16.mxu0 0
    %2103 = vmatpush2.bf16.msra.mxu0 0
    %2104 = vmatprep.subr.bf16.mxu0 0
    %2105 = vmatpush2.bf16.msra.mxu0 0
    %2106 = vmatprep.subr.bf16.mxu0 0
    %2107 = vmatpush2.bf16.msra.mxu0 0
    %2108 = vmatprep.subr.bf16.mxu0 0
    %2109 = vmatpush2.bf16.msra.mxu0 0
    %2110 = vmatprep.subr.bf16.mxu0 0
    %2111 = vmatpush2.bf16.msra.mxu0 0
    %2112 = vmatprep.subr.bf16.mxu0 0
    %2113 = vmatpush2.bf16.msra.mxu0 0
    %2114 = vmatprep.subr.bf16.mxu0 0
    %2115 = vmatpush2.bf16.msra.mxu0 0
    %2116 = vmatprep.subr.bf16.mxu0 0
    %2117 = vmatpush2.bf16.msra.mxu0 0
    %2118 = vmatprep.mubr.bf16.mxu0 0
    %2119 = vmatmul.mubr.bf16.gmra.mxu0 %v1881
    %v2120 = vpop.f32.mrf.mxu0
    %v2121 = vadd.f32 %v2072, %v2120
    %v2122 = vpop.f32.mrf.mxu0
    %v2123 = vpop.f32.mrf.mxu0
    %v2124 = vpop.f32.mrf.mxu0
    %2125 = vdwg.mxu0
    %v2126 = vld [vmem:[#allocation18] sm:$0xf]
    %v2127 = vld [vmem:[#allocation18 + $0x4] sm:$0xf]
    %v2128 = vld [vmem:[#allocation18 + $0x8] sm:$0xf]
    %v2129 = vld [vmem:[#allocation18 + $0xc] sm:$0xf]
    %v2130 = vld [vmem:[#allocation24] sm:$0x1]
    %v2132 = vlaneseq
    %v2133 = vshrl.u32 %v2132, 7
    %v2134 = vsub.s32 0, %v2133
    %v2135 = vrot.slane %v2130, %v2134
    %v2141 = vunpack.c.l.b16 %v2126
    %v2142 = vunpack.c.l.b16 %v2127
    %v2143 = vunpack.c.l.b16 %v2128
    %v2144 = vunpack.c.l.b16 %v2129
    %v2145 = vpack.c.b16 %v2142, %v2141
    %v2146 = vpack.c.b16 %v2144, %v2143
    %2149 = vmatprep.subr.bf16.mxu0 0
    %2150 = vmatpush1.bf16.msra.mxu0 0
    %2151 = vmatprep.subr.bf16.mxu0 0
    %2152 = vmatpush1.bf16.msra.mxu0 0
    %2153 = vmatprep.subr.bf16.mxu0 0
    %2154 = vmatpush1.bf16.msra.mxu0 0
    %2155 = vmatprep.subr.bf16.mxu0 0
    %2156 = vmatpush1.bf16.msra.mxu0 0
    %2157 = vmatprep.subr.bf16.mxu0 0
    %2158 = vmatpush1.bf16.msra.mxu0 0
    %2159 = vmatprep.subr.bf16.mxu0 0
    %2160 = vmatpush1.bf16.msra.mxu0 0
    %2161 = vmatprep.subr.bf16.mxu0 0
    %2162 = vmatpush1.bf16.msra.mxu0 %v2146
    %2163 = vmatprep.subr.bf16.mxu0 0
    %2164 = vmatpush1.bf16.msra.mxu0 %v2145
    %2165 = vmatprep.subr.bf16.mxu0 0
    %2166 = vmatpush2.bf16.msra.mxu0 0
    %2167 = vmatprep.subr.bf16.mxu0 0
    %2168 = vmatpush2.bf16.msra.mxu0 0
    %2169 = vmatprep.subr.bf16.mxu0 0
    %2170 = vmatpush2.bf16.msra.mxu0 0
    %2171 = vmatprep.subr.bf16.mxu0 0
    %2172 = vmatpush2.bf16.msra.mxu0 0
    %2173 = vmatprep.subr.bf16.mxu0 0
    %2174 = vmatpush2.bf16.msra.mxu0 0
    %2175 = vmatprep.subr.bf16.mxu0 0
    %2176 = vmatpush2.bf16.msra.mxu0 0
    %2177 = vmatprep.subr.bf16.mxu0 0
    %2178 = vmatpush2.bf16.msra.mxu0 0
    %2179 = vmatprep.subr.bf16.mxu0 0
    %2180 = vmatpush2.bf16.msra.mxu0 0
    %2181 = vmatprep.mubr.bf16.mxu0 0
    %2182 = vmatmul.mubr.bf16.gmra.mxu0 %v1398
    %v2183 = vpop.f32.mrf.mxu0
    %v2184 = vadd.f32 %v2135, %v2183
    %v2185 = vpop.f32.mrf.mxu0
    %v2186 = vpop.f32.mrf.mxu0
    %v2187 = vpop.f32.mrf.mxu0
    %2188 = vdwg.mxu0
    %v2189 = vmul.f32 %v1936, %v2184
    %v2190 = vadd.f32 %v2121, %v2189
    %v2191 = vtanh.pop %v2190
    %v2192 = vsub.f32 1.0, %v2062
    %v2193 = vmul.f32 %v2192, %v2191
    %v2194 = vmul.f32 %v2062, %v711
    %v2195 = vadd.f32 %v2193, %v2194
    %v2196 = vld [vmem:[%s15] sm:$0xff]
    %v2197 = vld [vmem:[%s15 + $0x8] sm:$0xff]
    %v2198 = vld [vmem:[%s15 + $0x10] sm:$0xff]
    %v2199 = vld [vmem:[%s15 + $0x18] sm:$0xff]
    %2200 = vmatprep.subr.mxu0 0.0
    %2201 = vmatpush1.msra.mxu0 0.0
    %2202 = vmatprep.subr.mxu0 0.0
    %2203 = vmatpush1.msra.mxu0 0.0
    %2204 = vmatprep.subr.mxu0 0.0
    %2205 = vmatpush1.msra.mxu0 0.0
    %2206 = vmatprep.subr.mxu0 0.0
    %2207 = vmatpush1.msra.mxu0 0.0
    %2208 = vmatprep.subr.mxu0 0.0
    %2209 = vmatpush1.msra.mxu0 0.0
    %2210 = vmatprep.subr.mxu0 0.0
    %2211 = vmatpush1.msra.mxu0 0.0
    %2212 = vmatprep.subr.mxu0 0.0
    %2213 = vmatpush1.msra.mxu0 0.0
    %2214 = vmatprep.subr.mxu0 0.0
    %2215 = vmatpush1.msra.mxu0 0.0
    %2216 = vmatprep.subr.mxu0 0.0
    %2217 = vmatpush1.msra.mxu0 0.0
    %2218 = vmatprep.subr.mxu0 0.0
    %2219 = vmatpush1.msra.mxu0 0.0
    %2220 = vmatprep.subr.mxu0 0.0
    %2221 = vmatpush1.msra.mxu0 0.0
    %2222 = vmatprep.subr.mxu0 0.0
    %2223 = vmatpush1.msra.mxu0 0.0
    %2224 = vmatprep.subr.mxu0 0.0
    %2225 = vmatpush1.msra.mxu0 %v2199
    %2226 = vmatprep.subr.mxu0 0.0
    %2227 = vmatpush1.msra.mxu0 %v2198
    %2228 = vmatprep.subr.mxu0 0.0
    %2229 = vmatpush1.msra.mxu0 %v2197
    %2230 = vmatprep.subr.mxu0 0.0
    %2231 = vmatpush1.msra.mxu0 %v2196
    %2232 = vmatprep.subr.mxu0 0.0
    %2233 = vmatpush2.msra.mxu0 0.0
    %2234 = vmatprep.subr.mxu0 0.0
    %2235 = vmatpush2.msra.mxu0 0.0
    %2236 = vmatprep.subr.mxu0 0.0
    %2237 = vmatpush2.msra.mxu0 0.0
    %2238 = vmatprep.subr.mxu0 0.0
    %2239 = vmatpush2.msra.mxu0 0.0
    %2240 = vmatprep.subr.mxu0 0.0
    %2241 = vmatpush2.msra.mxu0 0.0
    %2242 = vmatprep.subr.mxu0 0.0
    %2243 = vmatpush2.msra.mxu0 0.0
    %2244 = vmatprep.subr.mxu0 0.0
    %2245 = vmatpush2.msra.mxu0 0.0
    %2246 = vmatprep.subr.mxu0 0.0
    %2247 = vmatpush2.msra.mxu0 0.0
    %2248 = vmatprep.subr.mxu0 0.0
    %2249 = vmatpush2.msra.mxu0 0.0
    %2250 = vmatprep.subr.mxu0 0.0
    %2251 = vmatpush2.msra.mxu0 0.0
    %2252 = vmatprep.subr.mxu0 0.0
    %2253 = vmatpush2.msra.mxu0 0.0
    %2254 = vmatprep.subr.mxu0 0.0
    %2255 = vmatpush2.msra.mxu0 0.0
    %2256 = vmatprep.subr.mxu0 0.0
    %2257 = vmatpush2.msra.mxu0 0.0
    %2258 = vmatprep.subr.mxu0 0.0
    %2259 = vmatpush2.msra.mxu0 0.0
    %2260 = vmatprep.subr.mxu0 0.0
    %2261 = vmatpush2.msra.mxu0 0.0
    %2262 = vmatprep.subr.mxu0 0.0
    %2263 = vmatpush2.msra.mxu0 0.0
    %2264 = vmatprep.mubr.f32.mxu0 0.0
    %2265 = vmatmul.mubr.f32.gmra.mxu0 %v1466
    %v2266 = vpop.f32.mrf.mxu0
    %v2267 = vadd.f32 0.0, %v2266
    %v2268 = vpop.f32.mrf.mxu0
    %2269 = vdwg.mxu0
    %v2271 = vcombine.high %v2267, %v2267
    %v2273 = vunpack.c.l.s4 1966171168
    %v2274 = vunpack.c.0.s8 %v2273
    %v2275 = vlaneseq
    %v2276 = vshrl.u32 %v2275, 7
    %v2277 = vsub.s32 %v2274, %v2276
    %v2278 = vrot.slane %v2267, %v2277
    %v2280 = vunpack.c.l.s4 1966171168
    %v2281 = vunpack.c.0.s8 %v2280
    %v2282 = vlaneseq
    %v2283 = vshrl.u32 %v2282, 7
    %v2284 = vsub.s32 %v2281, %v2283
    %v2285 = vrot.slane %v2271, %v2284
    %v2286 = vcombine.high %v2278, %v2278
    %v2287 = vcombine.high %v2285, %v2285
    %v2289 = vunpack.c.l.s4 1966171168
    %v2290 = vunpack.c.0.s8 %v2289
    %v2291 = vlaneseq
    %v2292 = vshrl.u32 %v2291, 7
    %v2293 = vsub.s32 %v2290, %v2292
    %v2294 = vrot.slane %v2278, %v2293
    %v2296 = vunpack.c.l.s4 1966171168
    %v2297 = vunpack.c.0.s8 %v2296
    %v2298 = vlaneseq
    %v2299 = vshrl.u32 %v2298, 7
    %v2300 = vsub.s32 %v2297, %v2299
    %v2301 = vrot.slane %v2285, %v2300
    %v2303 = vunpack.c.l.s4 1966171168
    %v2304 = vunpack.c.0.s8 %v2303
    %v2305 = vlaneseq
    %v2306 = vshrl.u32 %v2305, 7
    %v2307 = vsub.s32 %v2304, %v2306
    %v2308 = vrot.slane %v2286, %v2307
    %v2310 = vunpack.c.l.s4 1966171168
    %v2311 = vunpack.c.0.s8 %v2310
    %v2312 = vlaneseq
    %v2313 = vshrl.u32 %v2312, 7
    %v2314 = vsub.s32 %v2311, %v2313
    %v2315 = vrot.slane %v2287, %v2314
    %v2316 = vcombine.high %v2294, %v2294
    %v2317 = vcombine.high %v2301, %v2301
    %v2318 = vcombine.high %v2308, %v2308
    %v2319 = vcombine.high %v2315, %v2315
    %v2320 = vlaneseq
    %v2321 = vshrl.u32 %v2320, 7
    %v2322 = vsub.s32 0, %v2321
    %v2323 = vrot.slane %v2294, %v2322
    %v2324 = vlaneseq
    %v2325 = vshrl.u32 %v2324, 7
    %v2326 = vsub.s32 0, %v2325
    %v2327 = vrot.slane %v2308, %v2326
    %v2328 = vlaneseq
    %v2329 = vshrl.u32 %v2328, 7
    %v2330 = vsub.s32 0, %v2329
    %v2331 = vrot.slane %v2316, %v2330
    %v2332 = vlaneseq
    %v2333 = vshrl.u32 %v2332, 7
    %v2334 = vsub.s32 0, %v2333
    %v2335 = vrot.slane %v2318, %v2334
    %v2336 = vlaneseq
    %v2337 = vshrl.u32 %v2336, 7
    %v2338 = vsub.s32 0, %v2337
    %v2339 = vrot.slane %v2301, %v2338
    %v2340 = vlaneseq
    %v2341 = vshrl.u32 %v2340, 7
    %v2342 = vsub.s32 0, %v2341
    %v2343 = vrot.slane %v2315, %v2342
    %v2344 = vlaneseq
    %v2345 = vshrl.u32 %v2344, 7
    %v2346 = vsub.s32 0, %v2345
    %v2347 = vrot.slane %v2317, %v2346
    %v2348 = vlaneseq
    %v2349 = vshrl.u32 %v2348, 7
    %v2350 = vsub.s32 0, %v2349
    %v2351 = vrot.slane %v2319, %v2350
    %v2360 = vadd.f32 %v292, %v2323
    %v2361 = vadd.f32 %v293, %v2327
    %v2362 = vadd.f32 %v294, %v2331
    %v2363 = vadd.f32 %v295, %v2335
    %v2364 = vadd.f32 %v296, %v2339
    %v2365 = vadd.f32 %v297, %v2343
    %v2366 = vadd.f32 %v298, %v2347
    %v2367 = vadd.f32 %v299, %v2351
    %v2368 = vtanh.pop %v2360
    %v2369 = vtanh.pop %v2361
    %v2370 = vtanh.pop %v2362
    %v2371 = vtanh.pop %v2363
    %v2372 = vtanh.pop %v2364
    %v2373 = vtanh.pop %v2365
    %v2374 = vtanh.pop %v2366
    %v2375 = vtanh.pop %v2367
    %v2376 = vld [vmem:[%s16] sm:$0x1]
    %v2378 = vlaneseq
    %v2379 = vshrl.u32 %v2378, 7
    %v2380 = vsub.s32 0, %v2379
    %v2381 = vrot.slane %v2376, %v2380
    %v2383 = vmul.f32 %v2381, %v2368
    %v2384 = vmul.f32 %v2381, %v2369
    %v2385 = vmul.f32 %v2381, %v2370
    %v2386 = vmul.f32 %v2381, %v2371
    %v2387 = vmul.f32 %v2381, %v2372
    %v2388 = vmul.f32 %v2381, %v2373
    %v2389 = vmul.f32 %v2381, %v2374
    %v2390 = vmul.f32 %v2381, %v2375
    %v2391 = vsel %vm340, %v2383, 0.0
    %2392 = vadd.xlane.f32.xlu0 %v2391
    %v2393 = vpop.xlane.xlu0 %2392
    %v2394 = vsel %vm340, %v2384, 0.0
    %2395 = vadd.xlane.f32.xlu0 %v2394
    %v2396 = vpop.xlane.xlu0 %2395
    %v2397 = vsel %vm340, %v2385, 0.0
    %2398 = vadd.xlane.f32.xlu0 %v2397
    %v2399 = vpop.xlane.xlu0 %2398
    %v2400 = vsel %vm340, %v2386, 0.0
    %2401 = vadd.xlane.f32.xlu0 %v2400
    %v2402 = vpop.xlane.xlu0 %2401
    %v2403 = vsel %vm340, %v2387, 0.0
    %2404 = vadd.xlane.f32.xlu0 %v2403
    %v2405 = vpop.xlane.xlu0 %2404
    %v2406 = vsel %vm340, %v2388, 0.0
    %2407 = vadd.xlane.f32.xlu0 %v2406
    %v2408 = vpop.xlane.xlu0 %2407
    %v2409 = vsel %vm340, %v2389, 0.0
    %2410 = vadd.xlane.f32.xlu0 %v2409
    %v2411 = vpop.xlane.xlu0 %2410
    %v2412 = vsel %vm340, %v2390, 0.0
    %2413 = vadd.xlane.f32.xlu0 %v2412
    %v2414 = vpop.xlane.xlu0 %2413
    %v2423 = vlaneseq
    %v2424 = vshrl.u32 %v2423, 7
    %v2425 = vsub.s32 %v943, %v2424
    %v2426 = vrot.slane %v2393, %v2425
    %v2427 = vlaneseq
    %v2428 = vshrl.u32 %v2427, 7
    %v2429 = vsub.s32 %v943, %v2428
    %v2430 = vrot.slane %v2396, %v2429
    %v2431 = vlaneseq
    %v2432 = vshrl.u32 %v2431, 7
    %v2433 = vsub.s32 %v943, %v2432
    %v2434 = vrot.slane %v2399, %v2433
    %v2435 = vlaneseq
    %v2436 = vshrl.u32 %v2435, 7
    %v2437 = vsub.s32 %v943, %v2436
    %v2438 = vrot.slane %v2402, %v2437
    %v2439 = vlaneseq
    %v2440 = vshrl.u32 %v2439, 7
    %v2441 = vsub.s32 %v943, %v2440
    %v2442 = vrot.slane %v2405, %v2441
    %v2443 = vlaneseq
    %v2444 = vshrl.u32 %v2443, 7
    %v2445 = vsub.s32 %v943, %v2444
    %v2446 = vrot.slane %v2408, %v2445
    %v2447 = vlaneseq
    %v2448 = vshrl.u32 %v2447, 7
    %v2449 = vsub.s32 %v943, %v2448
    %v2450 = vrot.slane %v2411, %v2449
    %v2451 = vlaneseq
    %v2452 = vshrl.u32 %v2451, 7
    %v2453 = vsub.s32 %v943, %v2452
    %v2454 = vrot.slane %v2414, %v2453
    %v2455 = vsel %vm976, %v2430, %v2426
    %v2456 = vsel %vm978, %v2434, %v2455
    %v2457 = vsel %vm980, %v2438, %v2456
    %v2458 = vsel %vm982, %v2442, %v2457
    %v2459 = vsel %vm984, %v2446, %v2458
    %v2460 = vsel %vm986, %v2450, %v2459
    %v2461 = vsel %vm988, %v2454, %v2460
    %v2463 = vsel %vm991, %v2461, -inf
    %2464 = vmax.xlane.f32.xlu0 %v2463
    %v2465 = vpop.xlane.xlu0 %2464
    %v2467 = vlaneseq
    %v2468 = vshrl.u32 %v2467, 7
    %v2469 = vsub.s32 0, %v2468
    %v2470 = vrot.slane %v2465, %v2469
    %v2471 = vlaneseq
    %v2472 = vshrl.u32 %v2471, 7
    %v2473 = vsub.s32 1, %v2472
    %v2474 = vrot.slane %v2465, %v2473
    %v2475 = vlaneseq
    %v2476 = vshrl.u32 %v2475, 7
    %v2477 = vsub.s32 2, %v2476
    %v2478 = vrot.slane %v2465, %v2477
    %v2479 = vlaneseq
    %v2480 = vshrl.u32 %v2479, 7
    %v2481 = vsub.s32 3, %v2480
    %v2482 = vrot.slane %v2465, %v2481
    %v2483 = vlaneseq
    %v2484 = vshrl.u32 %v2483, 7
    %v2485 = vsub.s32 4, %v2484
    %v2486 = vrot.slane %v2465, %v2485
    %v2487 = vlaneseq
    %v2488 = vshrl.u32 %v2487, 7
    %v2489 = vsub.s32 5, %v2488
    %v2490 = vrot.slane %v2465, %v2489
    %v2491 = vlaneseq
    %v2492 = vshrl.u32 %v2491, 7
    %v2493 = vsub.s32 6, %v2492
    %v2494 = vrot.slane %v2465, %v2493
    %v2495 = vlaneseq
    %v2496 = vshrl.u32 %v2495, 7
    %v2497 = vsub.s32 7, %v2496
    %v2498 = vrot.slane %v2465, %v2497
    %v2507 = vsub.f32 %v2393, %v2470
    %v2508 = vsub.f32 %v2396, %v2474
    %v2509 = vsub.f32 %v2399, %v2478
    %v2510 = vsub.f32 %v2402, %v2482
    %v2511 = vsub.f32 %v2405, %v2486
    %v2512 = vsub.f32 %v2408, %v2490
    %v2513 = vsub.f32 %v2411, %v2494
    %v2514 = vsub.f32 %v2414, %v2498
    %v2515 = vmul.f32 %v2507, 1.442695
    %v2516 = vpow.pop %v2515
    %v2517 = vmul.f32 %v2508, 1.442695
    %v2518 = vpow.pop %v2517
    %v2519 = vmul.f32 %v2509, 1.442695
    %v2520 = vpow.pop %v2519
    %v2521 = vmul.f32 %v2510, 1.442695
    %v2522 = vpow.pop %v2521
    %v2523 = vmul.f32 %v2511, 1.442695
    %v2524 = vpow.pop %v2523
    %v2525 = vmul.f32 %v2512, 1.442695
    %v2526 = vpow.pop %v2525
    %v2527 = vmul.f32 %v2513, 1.442695
    %v2528 = vpow.pop %v2527
    %v2529 = vmul.f32 %v2514, 1.442695
    %v2530 = vpow.pop %v2529
    %2539 = vset.pattern.permute.xlu0 0
    %2540 = vperm.xlu0 %2539, %v2516
    %v2541 = vpop.permute.xlu0 %2540
    %2542 = vset.pattern.permute.xlu0 0
    %2543 = vperm.xlu0 %2542, %v2518
    %v2544 = vpop.permute.xlu0 %2543
    %2545 = vset.pattern.permute.xlu0 0
    %2546 = vperm.xlu0 %2545, %v2520
    %v2547 = vpop.permute.xlu0 %2546
    %2548 = vset.pattern.permute.xlu0 0
    %2549 = vperm.xlu0 %2548, %v2522
    %v2550 = vpop.permute.xlu0 %2549
    %2551 = vset.pattern.permute.xlu0 0
    %2552 = vperm.xlu0 %2551, %v2524
    %v2553 = vpop.permute.xlu0 %2552
    %2554 = vset.pattern.permute.xlu0 0
    %2555 = vperm.xlu0 %2554, %v2526
    %v2556 = vpop.permute.xlu0 %2555
    %2557 = vset.pattern.permute.xlu0 0
    %2558 = vperm.xlu0 %2557, %v2528
    %v2559 = vpop.permute.xlu0 %2558
    %2560 = vset.pattern.permute.xlu0 0
    %2561 = vperm.xlu0 %2560, %v2530
    %v2562 = vpop.permute.xlu0 %2561
    %v2563 = vlaneseq
    %v2564 = vshrl.u32 %v2563, 7
    %v2565 = vsub.s32 %v943, %v2564
    %v2566 = vrot.slane %v2541, %v2565
    %v2567 = vlaneseq
    %v2568 = vshrl.u32 %v2567, 7
    %v2569 = vsub.s32 %v943, %v2568
    %v2570 = vrot.slane %v2544, %v2569
    %v2571 = vlaneseq
    %v2572 = vshrl.u32 %v2571, 7
    %v2573 = vsub.s32 %v943, %v2572
    %v2574 = vrot.slane %v2547, %v2573
    %v2575 = vlaneseq
    %v2576 = vshrl.u32 %v2575, 7
    %v2577 = vsub.s32 %v943, %v2576
    %v2578 = vrot.slane %v2550, %v2577
    %v2579 = vlaneseq
    %v2580 = vshrl.u32 %v2579, 7
    %v2581 = vsub.s32 %v943, %v2580
    %v2582 = vrot.slane %v2553, %v2581
    %v2583 = vlaneseq
    %v2584 = vshrl.u32 %v2583, 7
    %v2585 = vsub.s32 %v943, %v2584
    %v2586 = vrot.slane %v2556, %v2585
    %v2587 = vlaneseq
    %v2588 = vshrl.u32 %v2587, 7
    %v2589 = vsub.s32 %v943, %v2588
    %v2590 = vrot.slane %v2559, %v2589
    %v2591 = vlaneseq
    %v2592 = vshrl.u32 %v2591, 7
    %v2593 = vsub.s32 %v943, %v2592
    %v2594 = vrot.slane %v2562, %v2593
    %v2595 = vsel %vm976, %v2570, %v2566
    %v2596 = vsel %vm978, %v2574, %v2595
    %v2597 = vsel %vm980, %v2578, %v2596
    %v2598 = vsel %vm982, %v2582, %v2597
    %v2599 = vsel %vm984, %v2586, %v2598
    %v2600 = vsel %vm986, %v2590, %v2599
    %v2601 = vsel %vm988, %v2594, %v2600
    %v2603 = vsel %vm991, %v2601, 0.0
    %2604 = vadd.xlane.f32.xlu0 %v2603
    %v2605 = vpop.xlane.xlu0 %2604
    %v2606 = vrcp.pop %v2605
    %v2608 = vlaneseq
    %v2609 = vshrl.u32 %v2608, 7
    %v2610 = vsub.s32 0, %v2609
    %v2611 = vrot.slane %v2606, %v2610
    %v2612 = vlaneseq
    %v2613 = vshrl.u32 %v2612, 7
    %v2614 = vsub.s32 1, %v2613
    %v2615 = vrot.slane %v2606, %v2614
    %v2616 = vlaneseq
    %v2617 = vshrl.u32 %v2616, 7
    %v2618 = vsub.s32 2, %v2617
    %v2619 = vrot.slane %v2606, %v2618
    %v2620 = vlaneseq
    %v2621 = vshrl.u32 %v2620, 7
    %v2622 = vsub.s32 3, %v2621
    %v2623 = vrot.slane %v2606, %v2622
    %v2624 = vlaneseq
    %v2625 = vshrl.u32 %v2624, 7
    %v2626 = vsub.s32 4, %v2625
    %v2627 = vrot.slane %v2606, %v2626
    %v2628 = vlaneseq
    %v2629 = vshrl.u32 %v2628, 7
    %v2630 = vsub.s32 5, %v2629
    %v2631 = vrot.slane %v2606, %v2630
    %v2632 = vlaneseq
    %v2633 = vshrl.u32 %v2632, 7
    %v2634 = vsub.s32 6, %v2633
    %v2635 = vrot.slane %v2606, %v2634
    %v2636 = vlaneseq
    %v2637 = vshrl.u32 %v2636, 7
    %v2638 = vsub.s32 7, %v2637
    %v2639 = vrot.slane %v2606, %v2638
    %v2648 = vmul.f32 %v2516, %v2611
    %v2649 = vmul.f32 %v2518, %v2615
    %v2650 = vmul.f32 %v2520, %v2619
    %v2651 = vmul.f32 %v2522, %v2623
    %v2652 = vmul.f32 %v2524, %v2627
    %v2653 = vmul.f32 %v2526, %v2631
    %v2654 = vmul.f32 %v2528, %v2635
    %v2655 = vmul.f32 %v2530, %v2639
    %2657 = vset.pattern.permute.xlu0 0
    %2658 = vperm.xlu0 %2657, %v2648
    %v2659 = vpop.permute.xlu0 %2658
    %2662 = vset.pattern.permute.xlu0 0
    %2663 = vperm.xlu0 %2662, %v2649
    %v2664 = vpop.permute.xlu0 %2663
    %2667 = vset.pattern.permute.xlu0 0
    %2668 = vperm.xlu0 %2667, %v2650
    %v2669 = vpop.permute.xlu0 %2668
    %2672 = vset.pattern.permute.xlu0 0
    %2673 = vperm.xlu0 %2672, %v2651
    %v2674 = vpop.permute.xlu0 %2673
    %2677 = vset.pattern.permute.xlu0 0
    %2678 = vperm.xlu0 %2677, %v2652
    %v2679 = vpop.permute.xlu0 %2678
    %2682 = vset.pattern.permute.xlu0 0
    %2683 = vperm.xlu0 %2682, %v2653
    %v2684 = vpop.permute.xlu0 %2683
    %2687 = vset.pattern.permute.xlu0 0
    %2688 = vperm.xlu0 %2687, %v2654
    %v2689 = vpop.permute.xlu0 %2688
    %2692 = vset.pattern.permute.xlu0 0
    %2693 = vperm.xlu0 %2692, %v2655
    %v2694 = vpop.permute.xlu0 %2693
    %v2696 = vmul.f32 %v284, %v2659
    %v2697 = vmul.f32 %v285, %v2664
    %v2698 = vmul.f32 %v286, %v2669
    %v2699 = vmul.f32 %v287, %v2674
    %v2700 = vmul.f32 %v288, %v2679
    %v2701 = vmul.f32 %v289, %v2684
    %v2702 = vmul.f32 %v290, %v2689
    %v2703 = vmul.f32 %v291, %v2694
    %v2704 = vsel %vm340, %v2696, 0.0
    %v2705 = vrot.slane %v2704, 4
    %v2706 = vadd.f32 %v2704, %v2705
    %v2707 = vrot.slane %v2706, 2
    %v2708 = vadd.f32 %v2706, %v2707
    %v2709 = vrot.slane %v2708, 1
    %v2710 = vadd.f32 %v2708, %v2709
    %v2711 = vsel %vm340, %v2697, 0.0
    %v2712 = vrot.slane %v2711, 4
    %v2713 = vadd.f32 %v2711, %v2712
    %v2714 = vrot.slane %v2713, 2
    %v2715 = vadd.f32 %v2713, %v2714
    %v2716 = vrot.slane %v2715, 1
    %v2717 = vadd.f32 %v2715, %v2716
    %v2718 = vsel %vm340, %v2698, 0.0
    %v2719 = vrot.slane %v2718, 4
    %v2720 = vadd.f32 %v2718, %v2719
    %v2721 = vrot.slane %v2720, 2
    %v2722 = vadd.f32 %v2720, %v2721
    %v2723 = vrot.slane %v2722, 1
    %v2724 = vadd.f32 %v2722, %v2723
    %v2725 = vsel %vm340, %v2699, 0.0
    %v2726 = vrot.slane %v2725, 4
    %v2727 = vadd.f32 %v2725, %v2726
    %v2728 = vrot.slane %v2727, 2
    %v2729 = vadd.f32 %v2727, %v2728
    %v2730 = vrot.slane %v2729, 1
    %v2731 = vadd.f32 %v2729, %v2730
    %v2732 = vsel %vm340, %v2700, 0.0
    %v2733 = vrot.slane %v2732, 4
    %v2734 = vadd.f32 %v2732, %v2733
    %v2735 = vrot.slane %v2734, 2
    %v2736 = vadd.f32 %v2734, %v2735
    %v2737 = vrot.slane %v2736, 1
    %v2738 = vadd.f32 %v2736, %v2737
    %v2739 = vsel %vm340, %v2701, 0.0
    %v2740 = vrot.slane %v2739, 4
    %v2741 = vadd.f32 %v2739, %v2740
    %v2742 = vrot.slane %v2741, 2
    %v2743 = vadd.f32 %v2741, %v2742
    %v2744 = vrot.slane %v2743, 1
    %v2745 = vadd.f32 %v2743, %v2744
    %v2746 = vsel %vm340, %v2702, 0.0
    %v2747 = vrot.slane %v2746, 4
    %v2748 = vadd.f32 %v2746, %v2747
    %v2749 = vrot.slane %v2748, 2
    %v2750 = vadd.f32 %v2748, %v2749
    %v2751 = vrot.slane %v2750, 1
    %v2752 = vadd.f32 %v2750, %v2751
    %v2753 = vsel %vm340, %v2703, 0.0
    %v2754 = vrot.slane %v2753, 4
    %v2755 = vadd.f32 %v2753, %v2754
    %v2756 = vrot.slane %v2755, 2
    %v2757 = vadd.f32 %v2755, %v2756
    %v2758 = vrot.slane %v2757, 1
    %v2759 = vadd.f32 %v2757, %v2758
    %v2760 = vpack.c.bf16 %v2195, %v2195
    %v2761 = vld [vmem:[#allocation25] sm:$0xf]
    %v2762 = vld [vmem:[#allocation25 + $0x4] sm:$0xf]
    %v2763 = vld [vmem:[#allocation25 + $0x8] sm:$0xf]
    %v2764 = vld [vmem:[#allocation25 + $0xc] sm:$0xf]
    %v2765 = vpack.c.bf16 %v2710, %v2710
    %v2766 = vpack.c.bf16 %v2717, %v2717
    %v2767 = vpack.c.bf16 %v2724, %v2724
    %v2768 = vpack.c.bf16 %v2731, %v2731
    %v2769 = vpack.c.bf16 %v2738, %v2738
    %v2770 = vpack.c.bf16 %v2745, %v2745
    %v2771 = vpack.c.bf16 %v2752, %v2752
    %v2772 = vpack.c.bf16 %v2759, %v2759
    %v2773 = vld [vmem:[#allocation27] sm:$0xf]
    %v2774 = vld [vmem:[#allocation27 + $0x4] sm:$0xf]
    %v2775 = vld [vmem:[#allocation27 + $0x8] sm:$0xf]
    %v2776 = vld [vmem:[#allocation27 + $0xc] sm:$0xf]
    %v2785 = vunpack.c.l.b16 %v2765
    %v2786 = vunpack.c.l.b16 %v2766
    %v2787 = vunpack.c.l.b16 %v2767
    %v2788 = vunpack.c.l.b16 %v2768
    %v2789 = vunpack.c.l.b16 %v2769
    %v2790 = vunpack.c.l.b16 %v2770
    %v2791 = vunpack.c.l.b16 %v2771
    %v2792 = vunpack.c.l.b16 %v2772
    %v2793 = vsel %vm976, %v2786, %v2785
    %v2794 = vsel %vm978, %v2787, %v2793
    %v2795 = vsel %vm980, %v2788, %v2794
    %v2796 = vsel %vm982, %v2789, %v2795
    %v2797 = vsel %vm984, %v2790, %v2796
    %v2798 = vsel %vm986, %v2791, %v2797
    %v2799 = vsel %vm988, %v2792, %v2798
    %v2800 = vpack.c.b16 %v2799, %v2799
    %v2805 = vunpack.c.l.b16 %v2773
    %v2806 = vunpack.c.l.b16 %v2774
    %v2807 = vunpack.c.l.b16 %v2775
    %v2808 = vunpack.c.l.b16 %v2776
    %v2809 = vpack.c.b16 %v2806, %v2805
    %v2810 = vpack.c.b16 %v2808, %v2807
    %v2814 = vsel %vm340, %v2800, 0
    %2816 = vmatprep.subr.bf16.mxu0 0
    %2817 = vmatpush1.bf16.msra.mxu0 0
    %2818 = vmatprep.subr.bf16.mxu0 0
    %2819 = vmatpush1.bf16.msra.mxu0 0
    %2820 = vmatprep.subr.bf16.mxu0 0
    %2821 = vmatpush1.bf16.msra.mxu0 0
    %2822 = vmatprep.subr.bf16.mxu0 0
    %2823 = vmatpush1.bf16.msra.mxu0 0
    %2824 = vmatprep.subr.bf16.mxu0 0
    %2825 = vmatpush1.bf16.msra.mxu0 0
    %2826 = vmatprep.subr.bf16.mxu0 0
    %2827 = vmatpush1.bf16.msra.mxu0 0
    %2828 = vmatprep.subr.bf16.mxu0 0
    %2829 = vmatpush1.bf16.msra.mxu0 %v2810
    %2830 = vmatprep.subr.bf16.mxu0 0
    %2831 = vmatpush1.bf16.msra.mxu0 %v2809
    %2832 = vmatprep.subr.bf16.mxu0 0
    %2833 = vmatpush2.bf16.msra.mxu0 0
    %2834 = vmatprep.subr.bf16.mxu0 0
    %2835 = vmatpush2.bf16.msra.mxu0 0
    %2836 = vmatprep.subr.bf16.mxu0 0
    %2837 = vmatpush2.bf16.msra.mxu0 0
    %2838 = vmatprep.subr.bf16.mxu0 0
    %2839 = vmatpush2.bf16.msra.mxu0 0
    %2840 = vmatprep.subr.bf16.mxu0 0
    %2841 = vmatpush2.bf16.msra.mxu0 0
    %2842 = vmatprep.subr.bf16.mxu0 0
    %2843 = vmatpush2.bf16.msra.mxu0 0
    %2844 = vmatprep.subr.bf16.mxu0 0
    %2845 = vmatpush2.bf16.msra.mxu0 0
    %2846 = vmatprep.subr.bf16.mxu0 0
    %2847 = vmatpush2.bf16.msra.mxu0 0
    %2848 = vmatprep.mubr.bf16.mxu0 0
    %2849 = vmatmul.mubr.bf16.gmra.mxu0 %v2814
    %v2850 = vpop.f32.mrf.mxu0
    %v2851 = vadd.f32 0.0, %v2850
    %v2852 = vpop.f32.mrf.mxu0
    %v2853 = vpop.f32.mrf.mxu0
    %v2854 = vpop.f32.mrf.mxu0
    %2855 = vdwg.mxu0
    %v2860 = vunpack.c.l.b16 %v2761
    %v2861 = vunpack.c.l.b16 %v2762
    %v2862 = vunpack.c.l.b16 %v2763
    %v2863 = vunpack.c.l.b16 %v2764
    %v2864 = vpack.c.b16 %v2861, %v2860
    %v2865 = vpack.c.b16 %v2863, %v2862
    %v2869 = vsel %vm340, %v2760, 0
    %2871 = vmatprep.subr.bf16.mxu0 0
    %2872 = vmatpush1.bf16.msra.mxu0 0
    %2873 = vmatprep.subr.bf16.mxu0 0
    %2874 = vmatpush1.bf16.msra.mxu0 0
    %2875 = vmatprep.subr.bf16.mxu0 0
    %2876 = vmatpush1.bf16.msra.mxu0 0
    %2877 = vmatprep.subr.bf16.mxu0 0
    %2878 = vmatpush1.bf16.msra.mxu0 0
    %2879 = vmatprep.subr.bf16.mxu0 0
    %2880 = vmatpush1.bf16.msra.mxu0 0
    %2881 = vmatprep.subr.bf16.mxu0 0
    %2882 = vmatpush1.bf16.msra.mxu0 0
    %2883 = vmatprep.subr.bf16.mxu0 0
    %2884 = vmatpush1.bf16.msra.mxu0 %v2865
    %2885 = vmatprep.subr.bf16.mxu0 0
    %2886 = vmatpush1.bf16.msra.mxu0 %v2864
    %2887 = vmatprep.subr.bf16.mxu0 0
    %2888 = vmatpush2.bf16.msra.mxu0 0
    %2889 = vmatprep.subr.bf16.mxu0 0
    %2890 = vmatpush2.bf16.msra.mxu0 0
    %2891 = vmatprep.subr.bf16.mxu0 0
    %2892 = vmatpush2.bf16.msra.mxu0 0
    %2893 = vmatprep.subr.bf16.mxu0 0
    %2894 = vmatpush2.bf16.msra.mxu0 0
    %2895 = vmatprep.subr.bf16.mxu0 0
    %2896 = vmatpush2.bf16.msra.mxu0 0
    %2897 = vmatprep.subr.bf16.mxu0 0
    %2898 = vmatpush2.bf16.msra.mxu0 0
    %2899 = vmatprep.subr.bf16.mxu0 0
    %2900 = vmatpush2.bf16.msra.mxu0 0
    %2901 = vmatprep.subr.bf16.mxu0 0
    %2902 = vmatpush2.bf16.msra.mxu0 0
    %2903 = vmatprep.mubr.bf16.mxu0 0
    %2904 = vmatmul.mubr.bf16.gmra.mxu0 %v2869
    %v2905 = vpop.f32.mrf.mxu0
    %v2906 = vadd.f32 %v2851, %v2905
    %v2907 = vpop.f32.mrf.mxu0
    %v2908 = vpop.f32.mrf.mxu0
    %v2909 = vpop.f32.mrf.mxu0
    %2910 = vdwg.mxu0
    %v2911 = vld [vmem:[%s19] sm:$0x1]
    %v2913 = vlaneseq
    %v2914 = vshrl.u32 %v2913, 7
    %v2915 = vsub.s32 0, %v2914
    %v2916 = vrot.slane %v2911, %v2915
    %v2918 = vadd.f32 %v2906, %v2916
    %2919 = vmax.xlane.f32.xlu0 %v2918
    %v2920 = vpop.xlane.xlu0 %2919
    %v2921 = vsub.f32 %v2918, %v2920
    %v2922 = vmul.f32 %v2921, 1.442695
    %v2923 = vpow.pop %v2922
    %2924 = vadd.xlane.f32.xlu0 %v2923
    %v2925 = vpop.xlane.xlu0 %2924
    %v2926 = vrcp.pop %v2925
    %v2927 = vmul.f32 %v2923, %v2926
    %v2928 = vld [vmem:[%s20] sm:$0xff]
    %v2929 = vld [vmem:[%s20 + $0x8] sm:$0xff]
    %v2930 = vld [vmem:[%s20 + $0x10] sm:$0xff]
    %v2931 = vld [vmem:[%s20 + $0x18] sm:$0xff]
    %v2932 = vld [vmem:[%s21] sm:$0xff]
    %v2933 = vld [vmem:[%s21 + $0x8] sm:$0xff]
    %v2934 = vld [vmem:[%s21 + $0x10] sm:$0xff]
    %v2935 = vld [vmem:[%s21 + $0x18] sm:$0xff]
    %v2937 = vsel %vm340, %v2195, 0
    %2939 = vmatprep.subr.mxu0 0.0
    %2940 = vmatpush1.msra.mxu0 0.0
    %2941 = vmatprep.subr.mxu0 0.0
    %2942 = vmatpush1.msra.mxu0 0.0
    %2943 = vmatprep.subr.mxu0 0.0
    %2944 = vmatpush1.msra.mxu0 0.0
    %2945 = vmatprep.subr.mxu0 0.0
    %2946 = vmatpush1.msra.mxu0 0.0
    %2947 = vmatprep.subr.mxu0 0.0
    %2948 = vmatpush1.msra.mxu0 0.0
    %2949 = vmatprep.subr.mxu0 0.0
    %2950 = vmatpush1.msra.mxu0 0.0
    %2951 = vmatprep.subr.mxu0 0.0
    %2952 = vmatpush1.msra.mxu0 0.0
    %2953 = vmatprep.subr.mxu0 0.0
    %2954 = vmatpush1.msra.mxu0 0.0
    %2955 = vmatprep.subr.mxu0 0.0
    %2956 = vmatpush1.msra.mxu0 0.0
    %2957 = vmatprep.subr.mxu0 0.0
    %2958 = vmatpush1.msra.mxu0 0.0
    %2959 = vmatprep.subr.mxu0 0.0
    %2960 = vmatpush1.msra.mxu0 0.0
    %2961 = vmatprep.subr.mxu0 0.0
    %2962 = vmatpush1.msra.mxu0 0.0
    %2963 = vmatprep.subr.mxu0 0.0
    %2964 = vmatpush1.msra.mxu0 %v2935
    %2965 = vmatprep.subr.mxu0 0.0
    %2966 = vmatpush1.msra.mxu0 %v2934
    %2967 = vmatprep.subr.mxu0 0.0
    %2968 = vmatpush1.msra.mxu0 %v2933
    %2969 = vmatprep.subr.mxu0 0.0
    %2970 = vmatpush1.msra.mxu0 %v2932
    %2971 = vmatprep.subr.mxu0 0.0
    %2972 = vmatpush2.msra.mxu0 0.0
    %2973 = vmatprep.subr.mxu0 0.0
    %2974 = vmatpush2.msra.mxu0 0.0
    %2975 = vmatprep.subr.mxu0 0.0
    %2976 = vmatpush2.msra.mxu0 0.0
    %2977 = vmatprep.subr.mxu0 0.0
    %2978 = vmatpush2.msra.mxu0 0.0
    %2979 = vmatprep.subr.mxu0 0.0
    %2980 = vmatpush2.msra.mxu0 0.0
    %2981 = vmatprep.subr.mxu0 0.0
    %2982 = vmatpush2.msra.mxu0 0.0
    %2983 = vmatprep.subr.mxu0 0.0
    %2984 = vmatpush2.msra.mxu0 0.0
    %2985 = vmatprep.subr.mxu0 0.0
    %2986 = vmatpush2.msra.mxu0 0.0
    %2987 = vmatprep.subr.mxu0 0.0
    %2988 = vmatpush2.msra.mxu0 0.0
    %2989 = vmatprep.subr.mxu0 0.0
    %2990 = vmatpush2.msra.mxu0 0.0
    %2991 = vmatprep.subr.mxu0 0.0
    %2992 = vmatpush2.msra.mxu0 0.0
    %2993 = vmatprep.subr.mxu0 0.0
    %2994 = vmatpush2.msra.mxu0 0.0
    %2995 = vmatprep.subr.mxu0 0.0
    %2996 = vmatpush2.msra.mxu0 0.0
    %2997 = vmatprep.subr.mxu0 0.0
    %2998 = vmatpush2.msra.mxu0 0.0
    %2999 = vmatprep.subr.mxu0 0.0
    %3000 = vmatpush2.msra.mxu0 0.0
    %3001 = vmatprep.subr.mxu0 0.0
    %3002 = vmatpush2.msra.mxu0 0.0
    %3003 = vmatprep.mubr.f32.mxu0 0.0
    %3004 = vmatmul.mubr.f32.gmra.mxu0 %v2937
    %v3005 = vpop.f32.mrf.mxu0
    %v3006 = vadd.f32 0.0, %v3005
    %v3007 = vpop.f32.mrf.mxu0
    %3008 = vdwg.mxu0
    %v3017 = vsel %vm976, %v2717, %v2710
    %v3018 = vsel %vm978, %v2724, %v3017
    %v3019 = vsel %vm980, %v2731, %v3018
    %v3020 = vsel %vm982, %v2738, %v3019
    %v3021 = vsel %vm984, %v2745, %v3020
    %v3022 = vsel %vm986, %v2752, %v3021
    %v3023 = vsel %vm988, %v2759, %v3022
    %v3024 = vsel %vm340, %v3023, 0
    %3026 = vmatprep.subr.mxu0 0.0
    %3027 = vmatpush1.msra.mxu0 0.0
    %3028 = vmatprep.subr.mxu0 0.0
    %3029 = vmatpush1.msra.mxu0 0.0
    %3030 = vmatprep.subr.mxu0 0.0
    %3031 = vmatpush1.msra.mxu0 0.0
    %3032 = vmatprep.subr.mxu0 0.0
    %3033 = vmatpush1.msra.mxu0 0.0
    %3034 = vmatprep.subr.mxu0 0.0
    %3035 = vmatpush1.msra.mxu0 0.0
    %3036 = vmatprep.subr.mxu0 0.0
    %3037 = vmatpush1.msra.mxu0 0.0
    %3038 = vmatprep.subr.mxu0 0.0
    %3039 = vmatpush1.msra.mxu0 0.0
    %3040 = vmatprep.subr.mxu0 0.0
    %3041 = vmatpush1.msra.mxu0 0.0
    %3042 = vmatprep.subr.mxu0 0.0
    %3043 = vmatpush1.msra.mxu0 0.0
    %3044 = vmatprep.subr.mxu0 0.0
    %3045 = vmatpush1.msra.mxu0 0.0
    %3046 = vmatprep.subr.mxu0 0.0
    %3047 = vmatpush1.msra.mxu0 0.0
    %3048 = vmatprep.subr.mxu0 0.0
    %3049 = vmatpush1.msra.mxu0 0.0
    %3050 = vmatprep.subr.mxu0 0.0
    %3051 = vmatpush1.msra.mxu0 %v2931
    %3052 = vmatprep.subr.mxu0 0.0
    %3053 = vmatpush1.msra.mxu0 %v2930
    %3054 = vmatprep.subr.mxu0 0.0
    %3055 = vmatpush1.msra.mxu0 %v2929
    %3056 = vmatprep.subr.mxu0 0.0
    %3057 = vmatpush1.msra.mxu0 %v2928
    %3058 = vmatprep.subr.mxu0 0.0
    %3059 = vmatpush2.msra.mxu0 0.0
    %3060 = vmatprep.subr.mxu0 0.0
    %3061 = vmatpush2.msra.mxu0 0.0
    %3062 = vmatprep.subr.mxu0 0.0
    %3063 = vmatpush2.msra.mxu0 0.0
    %3064 = vmatprep.subr.mxu0 0.0
    %3065 = vmatpush2.msra.mxu0 0.0
    %3066 = vmatprep.subr.mxu0 0.0
    %3067 = vmatpush2.msra.mxu0 0.0
    %3068 = vmatprep.subr.mxu0 0.0
    %3069 = vmatpush2.msra.mxu0 0.0
    %3070 = vmatprep.subr.mxu0 0.0
    %3071 = vmatpush2.msra.mxu0 0.0
    %3072 = vmatprep.subr.mxu0 0.0
    %3073 = vmatpush2.msra.mxu0 0.0
    %3074 = vmatprep.subr.mxu0 0.0
    %3075 = vmatpush2.msra.mxu0 0.0
    %3076 = vmatprep.subr.mxu0 0.0
    %3077 = vmatpush2.msra.mxu0 0.0
    %3078 = vmatprep.subr.mxu0 0.0
    %3079 = vmatpush2.msra.mxu0 0.0
    %3080 = vmatprep.subr.mxu0 0.0
    %3081 = vmatpush2.msra.mxu0 0.0
    %3082 = vmatprep.subr.mxu0 0.0
    %3083 = vmatpush2.msra.mxu0 0.0
    %3084 = vmatprep.subr.mxu0 0.0
    %3085 = vmatpush2.msra.mxu0 0.0
    %3086 = vmatprep.subr.mxu0 0.0
    %3087 = vmatpush2.msra.mxu0 0.0
    %3088 = vmatprep.subr.mxu0 0.0
    %3089 = vmatpush2.msra.mxu0 0.0
    %3090 = vmatprep.mubr.f32.mxu0 0.0
    %3091 = vmatmul.mubr.f32.gmra.mxu0 %v3024
    %v3092 = vpop.f32.mrf.mxu0
    %v3093 = vadd.f32 %v3006, %v3092
    %v3094 = vpop.f32.mrf.mxu0
    %3095 = vdwg.mxu0
    %v3096 = vld [vmem:[%s22] sm:$0xff]
    %v3097 = vld [vmem:[%s22 + $0x8] sm:$0xff]
    %v3098 = vld [vmem:[%s22 + $0x10] sm:$0xff]
    %v3099 = vld [vmem:[%s22 + $0x18] sm:$0xff]
    %v3101 = vsel %vm340, %v1806, 0
    %3103 = vmatprep.subr.mxu0 0.0
    %3104 = vmatpush1.msra.mxu0 0.0
    %3105 = vmatprep.subr.mxu0 0.0
    %3106 = vmatpush1.msra.mxu0 0.0
    %3107 = vmatprep.subr.mxu0 0.0
    %3108 = vmatpush1.msra.mxu0 0.0
    %3109 = vmatprep.subr.mxu0 0.0
    %3110 = vmatpush1.msra.mxu0 0.0
    %3111 = vmatprep.subr.mxu0 0.0
    %3112 = vmatpush1.msra.mxu0 0.0
    %3113 = vmatprep.subr.mxu0 0.0
    %3114 = vmatpush1.msra.mxu0 0.0
    %3115 = vmatprep.subr.mxu0 0.0
    %3116 = vmatpush1.msra.mxu0 0.0
    %3117 = vmatprep.subr.mxu0 0.0
    %3118 = vmatpush1.msra.mxu0 0.0
    %3119 = vmatprep.subr.mxu0 0.0
    %3120 = vmatpush1.msra.mxu0 0.0
    %3121 = vmatprep.subr.mxu0 0.0
    %3122 = vmatpush1.msra.mxu0 0.0
    %3123 = vmatprep.subr.mxu0 0.0
    %3124 = vmatpush1.msra.mxu0 0.0
    %3125 = vmatprep.subr.mxu0 0.0
    %3126 = vmatpush1.msra.mxu0 0.0
    %3127 = vmatprep.subr.mxu0 0.0
    %3128 = vmatpush1.msra.mxu0 %v3099
    %3129 = vmatprep.subr.mxu0 0.0
    %3130 = vmatpush1.msra.mxu0 %v3098
    %3131 = vmatprep.subr.mxu0 0.0
    %3132 = vmatpush1.msra.mxu0 %v3097
    %3133 = vmatprep.subr.mxu0 0.0
    %3134 = vmatpush1.msra.mxu0 %v3096
    %3135 = vmatprep.subr.mxu0 0.0
    %3136 = vmatpush2.msra.mxu0 0.0
    %3137 = vmatprep.subr.mxu0 0.0
    %3138 = vmatpush2.msra.mxu0 0.0
    %3139 = vmatprep.subr.mxu0 0.0
    %3140 = vmatpush2.msra.mxu0 0.0
    %3141 = vmatprep.subr.mxu0 0.0
    %3142 = vmatpush2.msra.mxu0 0.0
    %3143 = vmatprep.subr.mxu0 0.0
    %3144 = vmatpush2.msra.mxu0 0.0
    %3145 = vmatprep.subr.mxu0 0.0
    %3146 = vmatpush2.msra.mxu0 0.0
    %3147 = vmatprep.subr.mxu0 0.0
    %3148 = vmatpush2.msra.mxu0 0.0
    %3149 = vmatprep.subr.mxu0 0.0
    %3150 = vmatpush2.msra.mxu0 0.0
    %3151 = vmatprep.subr.mxu0 0.0
    %3152 = vmatpush2.msra.mxu0 0.0
    %3153 = vmatprep.subr.mxu0 0.0
    %3154 = vmatpush2.msra.mxu0 0.0
    %3155 = vmatprep.subr.mxu0 0.0
    %3156 = vmatpush2.msra.mxu0 0.0
    %3157 = vmatprep.subr.mxu0 0.0
    %3158 = vmatpush2.msra.mxu0 0.0
    %3159 = vmatprep.subr.mxu0 0.0
    %3160 = vmatpush2.msra.mxu0 0.0
    %3161 = vmatprep.subr.mxu0 0.0
    %3162 = vmatpush2.msra.mxu0 0.0
    %3163 = vmatprep.subr.mxu0 0.0
    %3164 = vmatpush2.msra.mxu0 0.0
    %3165 = vmatprep.subr.mxu0 0.0
    %3166 = vmatpush2.msra.mxu0 0.0
    %3167 = vmatprep.mubr.f32.mxu0 0.0
    %3168 = vmatmul.mubr.f32.gmra.mxu0 %v3101
    %v3169 = vpop.f32.mrf.mxu0
    %v3170 = vadd.f32 0.0, %v3169
    %v3171 = vpop.f32.mrf.mxu0
    %3172 = vdwg.mxu0
    %v3173 = vadd.f32 %v3093, %v3170
    %v3174 = vld [vmem:[#allocation3] sm:$0x1]
    %v3176 = vlaneseq
    %v3177 = vshrl.u32 %v3176, 7
    %v3178 = vsub.s32 0, %v3177
    %v3179 = vrot.slane %v3174, %v3178
    %v3181 = vadd.f32 %v3173, %v3179
    %v3182 = vxor.u32 %v3181, 2147483648
    %v3183 = vmul.f32 %v3182, 1.442695
    %v3184 = vpow.pop %v3183
    %v3185 = vadd.f32 %v3184, 1.0
    %v3186 = vrcp.pop %v3185
    %v3187 = vmul.f32 1.0, %v3186
    %v3188 = vmul.f32 %v2659, %v308
    %v3189 = vmul.f32 %v2664, %v309
    %v3190 = vmul.f32 %v2669, %v310
    %v3191 = vmul.f32 %v2674, %v311
    %v3192 = vmul.f32 %v2679, %v312
    %v3193 = vmul.f32 %v2684, %v313
    %v3194 = vmul.f32 %v2689, %v314
    %v3195 = vmul.f32 %v2694, %v315
    %v3196 = vrot.slane %v3188, 4
    %v3197 = vadd.f32 %v3188, %v3196
    %v3198 = vrot.slane %v3197, 2
    %v3199 = vadd.f32 %v3197, %v3198
    %v3200 = vrot.slane %v3199, 1
    %v3201 = vadd.f32 %v3199, %v3200
    %v3202 = vrot.slane %v3189, 4
    %v3203 = vadd.f32 %v3189, %v3202
    %v3204 = vrot.slane %v3203, 2
    %v3205 = vadd.f32 %v3203, %v3204
    %v3206 = vrot.slane %v3205, 1
    %v3207 = vadd.f32 %v3205, %v3206
    %v3208 = vrot.slane %v3190, 4
    %v3209 = vadd.f32 %v3190, %v3208
    %v3210 = vrot.slane %v3209, 2
    %v3211 = vadd.f32 %v3209, %v3210
    %v3212 = vrot.slane %v3211, 1
    %v3213 = vadd.f32 %v3211, %v3212
    %v3214 = vrot.slane %v3191, 4
    %v3215 = vadd.f32 %v3191, %v3214
    %v3216 = vrot.slane %v3215, 2
    %v3217 = vadd.f32 %v3215, %v3216
    %v3218 = vrot.slane %v3217, 1
    %v3219 = vadd.f32 %v3217, %v3218
    %v3220 = vrot.slane %v3192, 4
    %v3221 = vadd.f32 %v3192, %v3220
    %v3222 = vrot.slane %v3221, 2
    %v3223 = vadd.f32 %v3221, %v3222
    %v3224 = vrot.slane %v3223, 1
    %v3225 = vadd.f32 %v3223, %v3224
    %v3226 = vrot.slane %v3193, 4
    %v3227 = vadd.f32 %v3193, %v3226
    %v3228 = vrot.slane %v3227, 2
    %v3229 = vadd.f32 %v3227, %v3228
    %v3230 = vrot.slane %v3229, 1
    %v3231 = vadd.f32 %v3229, %v3230
    %v3232 = vrot.slane %v3194, 4
    %v3233 = vadd.f32 %v3194, %v3232
    %v3234 = vrot.slane %v3233, 2
    %v3235 = vadd.f32 %v3233, %v3234
    %v3236 = vrot.slane %v3235, 1
    %v3237 = vadd.f32 %v3235, %v3236
    %v3238 = vrot.slane %v3195, 4
    %v3239 = vadd.f32 %v3195, %v3238
    %v3240 = vrot.slane %v3239, 2
    %v3241 = vadd.f32 %v3239, %v3240
    %v3242 = vrot.slane %v3241, 1
    %v3243 = vadd.f32 %v3241, %v3242
    %3245 = vset.pattern.permute.xlu0 0
    %3246 = vperm.xlu0 %3245, %v3187
    %v3247 = vpop.permute.xlu0 %3246
    %v3249 = vmul.f32 %v3247, %v2927
    %v3250 = vsub.f32 1.0, %v3187
    %3252 = vset.pattern.permute.xlu0 0
    %3253 = vperm.xlu0 %3252, %v3250
    %v3254 = vpop.permute.xlu0 %3253
    %v3264 = vsel %vm976, %v3207, %v3201
    %v3265 = vsel %vm978, %v3213, %v3264
    %v3266 = vsel %vm980, %v3219, %v3265
    %v3267 = vsel %vm982, %v3225, %v3266
    %v3268 = vsel %vm984, %v3231, %v3267
    %v3269 = vsel %vm986, %v3237, %v3268
    %v3270 = vsel %vm988, %v3243, %v3269
    %v3272 = vmul.f32 %v3254, %v3270
    %v3273 = vadd.f32 %v3249, %v3272
    %v3274 = vmax.f32 %v3273, 1e-08
    %s3275 = scalar_lea.vmem [#allocation28], 8
    %3276 = vst [vmem:[%s3275] sm:$0xff] %v3274
    %s3277 = scalar_lea.vmem %s0, 16
    %v3278 = vld [vmem:[%s3277] sm:$0xff]
    %v3279 = vpack.c.bf16 %v3278, %v3278
    %v3280 = vld [vmem:[#allocation10] sm:$0xf]
    %v3281 = vld [vmem:[#allocation10 + $0x4] sm:$0xf]
    %v3282 = vld [vmem:[#allocation10 + $0x8] sm:$0xf]
    %v3283 = vld [vmem:[#allocation10 + $0xc] sm:$0xf]
    %v3284 = vld [vmem:[#allocation15] sm:$0xf]
    %v3285 = vld [vmem:[#allocation15 + $0x4] sm:$0xf]
    %v3286 = vld [vmem:[#allocation15 + $0x8] sm:$0xf]
    %v3287 = vld [vmem:[#allocation15 + $0xc] sm:$0xf]
    %v3292 = vunpack.c.l.b16 %v3284
    %v3293 = vunpack.c.l.b16 %v3285
    %v3294 = vunpack.c.l.b16 %v3286
    %v3295 = vunpack.c.l.b16 %v3287
    %v3296 = vpack.c.b16 %v3293, %v3292
    %v3297 = vpack.c.b16 %v3295, %v3294
    %3300 = vmatprep.subr.bf16.mxu0 0
    %3301 = vmatpush1.bf16.msra.mxu0 0
    %3302 = vmatprep.subr.bf16.mxu0 0
    %3303 = vmatpush1.bf16.msra.mxu0 0
    %3304 = vmatprep.subr.bf16.mxu0 0
    %3305 = vmatpush1.bf16.msra.mxu0 0
    %3306 = vmatprep.subr.bf16.mxu0 0
    %3307 = vmatpush1.bf16.msra.mxu0 0
    %3308 = vmatprep.subr.bf16.mxu0 0
    %3309 = vmatpush1.bf16.msra.mxu0 0
    %3310 = vmatprep.subr.bf16.mxu0 0
    %3311 = vmatpush1.bf16.msra.mxu0 0
    %3312 = vmatprep.subr.bf16.mxu0 0
    %3313 = vmatpush1.bf16.msra.mxu0 %v3297
    %3314 = vmatprep.subr.bf16.mxu0 0
    %3315 = vmatpush1.bf16.msra.mxu0 %v3296
    %3316 = vmatprep.subr.bf16.mxu0 0
    %3317 = vmatpush2.bf16.msra.mxu0 0
    %3318 = vmatprep.subr.bf16.mxu0 0
    %3319 = vmatpush2.bf16.msra.mxu0 0
    %3320 = vmatprep.subr.bf16.mxu0 0
    %3321 = vmatpush2.bf16.msra.mxu0 0
    %3322 = vmatprep.subr.bf16.mxu0 0
    %3323 = vmatpush2.bf16.msra.mxu0 0
    %3324 = vmatprep.subr.bf16.mxu0 0
    %3325 = vmatpush2.bf16.msra.mxu0 0
    %3326 = vmatprep.subr.bf16.mxu0 0
    %3327 = vmatpush2.bf16.msra.mxu0 0
    %3328 = vmatprep.subr.bf16.mxu0 0
    %3329 = vmatpush2.bf16.msra.mxu0 0
    %3330 = vmatprep.subr.bf16.mxu0 0
    %3331 = vmatpush2.bf16.msra.mxu0 0
    %3332 = vmatprep.mubr.bf16.mxu0 0
    %3333 = vmatmul.mubr.bf16.gmra.mxu0 %v2869
    %v3334 = vpop.f32.mrf.mxu0
    %v3335 = vadd.f32 0.0, %v3334
    %v3336 = vpop.f32.mrf.mxu0
    %v3337 = vpop.f32.mrf.mxu0
    %v3338 = vpop.f32.mrf.mxu0
    %3339 = vdwg.mxu0
    %v3344 = vunpack.c.l.b16 %v3280
    %v3345 = vunpack.c.l.b16 %v3281
    %v3346 = vunpack.c.l.b16 %v3282
    %v3347 = vunpack.c.l.b16 %v3283
    %v3348 = vpack.c.b16 %v3345, %v3344
    %v3349 = vpack.c.b16 %v3347, %v3346
    %v3353 = vsel %vm340, %v3279, 0
    %3355 = vmatprep.subr.bf16.mxu0 0
    %3356 = vmatpush1.bf16.msra.mxu0 0
    %3357 = vmatprep.subr.bf16.mxu0 0
    %3358 = vmatpush1.bf16.msra.mxu0 0
    %3359 = vmatprep.subr.bf16.mxu0 0
    %3360 = vmatpush1.bf16.msra.mxu0 0
    %3361 = vmatprep.subr.bf16.mxu0 0
    %3362 = vmatpush1.bf16.msra.mxu0 0
    %3363 = vmatprep.subr.bf16.mxu0 0
    %3364 = vmatpush1.bf16.msra.mxu0 0
    %3365 = vmatprep.subr.bf16.mxu0 0
    %3366 = vmatpush1.bf16.msra.mxu0 0
    %3367 = vmatprep.subr.bf16.mxu0 0
    %3368 = vmatpush1.bf16.msra.mxu0 %v3349
    %3369 = vmatprep.subr.bf16.mxu0 0
    %3370 = vmatpush1.bf16.msra.mxu0 %v3348
    %3371 = vmatprep.subr.bf16.mxu0 0
    %3372 = vmatpush2.bf16.msra.mxu0 0
    %3373 = vmatprep.subr.bf16.mxu0 0
    %3374 = vmatpush2.bf16.msra.mxu0 0
    %3375 = vmatprep.subr.bf16.mxu0 0
    %3376 = vmatpush2.bf16.msra.mxu0 0
    %3377 = vmatprep.subr.bf16.mxu0 0
    %3378 = vmatpush2.bf16.msra.mxu0 0
    %3379 = vmatprep.subr.bf16.mxu0 0
    %3380 = vmatpush2.bf16.msra.mxu0 0
    %3381 = vmatprep.subr.bf16.mxu0 0
    %3382 = vmatpush2.bf16.msra.mxu0 0
    %3383 = vmatprep.subr.bf16.mxu0 0
    %3384 = vmatpush2.bf16.msra.mxu0 0
    %3385 = vmatprep.subr.bf16.mxu0 0
    %3386 = vmatpush2.bf16.msra.mxu0 0
    %3387 = vmatprep.mubr.bf16.mxu0 0
    %3388 = vmatmul.mubr.bf16.gmra.mxu0 %v3353
    %v3389 = vpop.f32.mrf.mxu0
    %v3390 = vadd.f32 %v3335, %v3389
    %v3391 = vpop.f32.mrf.mxu0
    %v3392 = vpop.f32.mrf.mxu0
    %v3393 = vpop.f32.mrf.mxu0
    %3394 = vdwg.mxu0
    %v3395 = vld [vmem:[#allocation19] sm:$0x1]
    %v3397 = vlaneseq
    %v3398 = vshrl.u32 %v3397, 7
    %v3399 = vsub.s32 0, %v3398
    %v3400 = vrot.slane %v3395, %v3399
    %v3402 = vadd.f32 %v3390, %v3400
    %v3403 = vxor.u32 %v3402, 2147483648
    %v3404 = vmul.f32 %v3403, 1.442695
    %v3405 = vpow.pop %v3404
    %v3406 = vadd.f32 %v3405, 1.0
    %v3407 = vrcp.pop %v3406
    %v3408 = vmul.f32 1.0, %v3407
    %v3409 = vld [vmem:[#allocation12] sm:$0xf]
    %v3410 = vld [vmem:[#allocation12 + $0x4] sm:$0xf]
    %v3411 = vld [vmem:[#allocation12 + $0x8] sm:$0xf]
    %v3412 = vld [vmem:[#allocation12 + $0xc] sm:$0xf]
    %v3413 = vld [vmem:[#allocation16] sm:$0xf]
    %v3414 = vld [vmem:[#allocation16 + $0x4] sm:$0xf]
    %v3415 = vld [vmem:[#allocation16 + $0x8] sm:$0xf]
    %v3416 = vld [vmem:[#allocation16 + $0xc] sm:$0xf]
    %v3421 = vunpack.c.l.b16 %v3413
    %v3422 = vunpack.c.l.b16 %v3414
    %v3423 = vunpack.c.l.b16 %v3415
    %v3424 = vunpack.c.l.b16 %v3416
    %v3425 = vpack.c.b16 %v3422, %v3421
    %v3426 = vpack.c.b16 %v3424, %v3423
    %3429 = vmatprep.subr.bf16.mxu0 0
    %3430 = vmatpush1.bf16.msra.mxu0 0
    %3431 = vmatprep.subr.bf16.mxu0 0
    %3432 = vmatpush1.bf16.msra.mxu0 0
    %3433 = vmatprep.subr.bf16.mxu0 0
    %3434 = vmatpush1.bf16.msra.mxu0 0
    %3435 = vmatprep.subr.bf16.mxu0 0
    %3436 = vmatpush1.bf16.msra.mxu0 0
    %3437 = vmatprep.subr.bf16.mxu0 0
    %3438 = vmatpush1.bf16.msra.mxu0 0
    %3439 = vmatprep.subr.bf16.mxu0 0
    %3440 = vmatpush1.bf16.msra.mxu0 0
    %3441 = vmatprep.subr.bf16.mxu0 0
    %3442 = vmatpush1.bf16.msra.mxu0 %v3426
    %3443 = vmatprep.subr.bf16.mxu0 0
    %3444 = vmatpush1.bf16.msra.mxu0 %v3425
    %3445 = vmatprep.subr.bf16.mxu0 0
    %3446 = vmatpush2.bf16.msra.mxu0 0
    %3447 = vmatprep.subr.bf16.mxu0 0
    %3448 = vmatpush2.bf16.msra.mxu0 0
    %3449 = vmatprep.subr.bf16.mxu0 0
    %3450 = vmatpush2.bf16.msra.mxu0 0
    %3451 = vmatprep.subr.bf16.mxu0 0
    %3452 = vmatpush2.bf16.msra.mxu0 0
    %3453 = vmatprep.subr.bf16.mxu0 0
    %3454 = vmatpush2.bf16.msra.mxu0 0
    %3455 = vmatprep.subr.bf16.mxu0 0
    %3456 = vmatpush2.bf16.msra.mxu0 0
    %3457 = vmatprep.subr.bf16.mxu0 0
    %3458 = vmatpush2.bf16.msra.mxu0 0
    %3459 = vmatprep.subr.bf16.mxu0 0
    %3460 = vmatpush2.bf16.msra.mxu0 0
    %3461 = vmatprep.mubr.bf16.mxu0 0
    %3462 = vmatmul.mubr.bf16.gmra.mxu0 %v2869
    %v3463 = vpop.f32.mrf.mxu0
    %v3464 = vadd.f32 0.0, %v3463
    %v3465 = vpop.f32.mrf.mxu0
    %v3466 = vpop.f32.mrf.mxu0
    %v3467 = vpop.f32.mrf.mxu0
    %3468 = vdwg.mxu0
    %v3473 = vunpack.c.l.b16 %v3409
    %v3474 = vunpack.c.l.b16 %v3410
    %v3475 = vunpack.c.l.b16 %v3411
    %v3476 = vunpack.c.l.b16 %v3412
    %v3477 = vpack.c.b16 %v3474, %v3473
    %v3478 = vpack.c.b16 %v3476, %v3475
    %3481 = vmatprep.subr.bf16.mxu0 0
    %3482 = vmatpush1.bf16.msra.mxu0 0
    %3483 = vmatprep.subr.bf16.mxu0 0
    %3484 = vmatpush1.bf16.msra.mxu0 0
    %3485 = vmatprep.subr.bf16.mxu0 0
    %3486 = vmatpush1.bf16.msra.mxu0 0
    %3487 = vmatprep.subr.bf16.mxu0 0
    %3488 = vmatpush1.bf16.msra.mxu0 0
    %3489 = vmatprep.subr.bf16.mxu0 0
    %3490 = vmatpush1.bf16.msra.mxu0 0
    %3491 = vmatprep.subr.bf16.mxu0 0
    %3492 = vmatpush1.bf16.msra.mxu0 0
    %3493 = vmatprep.subr.bf16.mxu0 0
    %3494 = vmatpush1.bf16.msra.mxu0 %v3478
    %3495 = vmatprep.subr.bf16.mxu0 0
    %3496 = vmatpush1.bf16.msra.mxu0 %v3477
    %3497 = vmatprep.subr.bf16.mxu0 0
    %3498 = vmatpush2.bf16.msra.mxu0 0
    %3499 = vmatprep.subr.bf16.mxu0 0
    %3500 = vmatpush2.bf16.msra.mxu0 0
    %3501 = vmatprep.subr.bf16.mxu0 0
    %3502 = vmatpush2.bf16.msra.mxu0 0
    %3503 = vmatprep.subr.bf16.mxu0 0
    %3504 = vmatpush2.bf16.msra.mxu0 0
    %3505 = vmatprep.subr.bf16.mxu0 0
    %3506 = vmatpush2.bf16.msra.mxu0 0
    %3507 = vmatprep.subr.bf16.mxu0 0
    %3508 = vmatpush2.bf16.msra.mxu0 0
    %3509 = vmatprep.subr.bf16.mxu0 0
    %3510 = vmatpush2.bf16.msra.mxu0 0
    %3511 = vmatprep.subr.bf16.mxu0 0
    %3512 = vmatpush2.bf16.msra.mxu0 0
    %3513 = vmatprep.mubr.bf16.mxu0 0
    %3514 = vmatmul.mubr.bf16.gmra.mxu0 %v3353
    %v3515 = vpop.f32.mrf.mxu0
    %v3516 = vadd.f32 %v3464, %v3515
    %v3517 = vpop.f32.mrf.mxu0
    %v3518 = vpop.f32.mrf.mxu0
    %v3519 = vpop.f32.mrf.mxu0
    %3520 = vdwg.mxu0
    %v3521 = vld [vmem:[#allocation21] sm:$0x1]
    %v3523 = vlaneseq
    %v3524 = vshrl.u32 %v3523, 7
    %v3525 = vsub.s32 0, %v3524
    %v3526 = vrot.slane %v3521, %v3525
    %v3528 = vadd.f32 %v3516, %v3526
    %v3529 = vxor.u32 %v3528, 2147483648
    %v3530 = vmul.f32 %v3529, 1.442695
    %v3531 = vpow.pop %v3530
    %v3532 = vadd.f32 %v3531, 1.0
    %v3533 = vrcp.pop %v3532
    %v3534 = vmul.f32 1.0, %v3533
    %v3535 = vld [vmem:[#allocation13] sm:$0xf]
    %v3536 = vld [vmem:[#allocation13 + $0x4] sm:$0xf]
    %v3537 = vld [vmem:[#allocation13 + $0x8] sm:$0xf]
    %v3538 = vld [vmem:[#allocation13 + $0xc] sm:$0xf]
    %v3539 = vld [vmem:[#allocation22] sm:$0x1]
    %v3541 = vlaneseq
    %v3542 = vshrl.u32 %v3541, 7
    %v3543 = vsub.s32 0, %v3542
    %v3544 = vrot.slane %v3539, %v3543
    %v3550 = vunpack.c.l.b16 %v3535
    %v3551 = vunpack.c.l.b16 %v3536
    %v3552 = vunpack.c.l.b16 %v3537
    %v3553 = vunpack.c.l.b16 %v3538
    %v3554 = vpack.c.b16 %v3551, %v3550
    %v3555 = vpack.c.b16 %v3553, %v3552
    %3558 = vmatprep.subr.bf16.mxu0 0
    %3559 = vmatpush1.bf16.msra.mxu0 0
    %3560 = vmatprep.subr.bf16.mxu0 0
    %3561 = vmatpush1.bf16.msra.mxu0 0
    %3562 = vmatprep.subr.bf16.mxu0 0
    %3563 = vmatpush1.bf16.msra.mxu0 0
    %3564 = vmatprep.subr.bf16.mxu0 0
    %3565 = vmatpush1.bf16.msra.mxu0 0
    %3566 = vmatprep.subr.bf16.mxu0 0
    %3567 = vmatpush1.bf16.msra.mxu0 0
    %3568 = vmatprep.subr.bf16.mxu0 0
    %3569 = vmatpush1.bf16.msra.mxu0 0
    %3570 = vmatprep.subr.bf16.mxu0 0
    %3571 = vmatpush1.bf16.msra.mxu0 %v3555
    %3572 = vmatprep.subr.bf16.mxu0 0
    %3573 = vmatpush1.bf16.msra.mxu0 %v3554
    %3574 = vmatprep.subr.bf16.mxu0 0
    %3575 = vmatpush2.bf16.msra.mxu0 0
    %3576 = vmatprep.subr.bf16.mxu0 0
    %3577 = vmatpush2.bf16.msra.mxu0 0
    %3578 = vmatprep.subr.bf16.mxu0 0
    %3579 = vmatpush2.bf16.msra.mxu0 0
    %3580 = vmatprep.subr.bf16.mxu0 0
    %3581 = vmatpush2.bf16.msra.mxu0 0
    %3582 = vmatprep.subr.bf16.mxu0 0
    %3583 = vmatpush2.bf16.msra.mxu0 0
    %3584 = vmatprep.subr.bf16.mxu0 0
    %3585 = vmatpush2.bf16.msra.mxu0 0
    %3586 = vmatprep.subr.bf16.mxu0 0
    %3587 = vmatpush2.bf16.msra.mxu0 0
    %3588 = vmatprep.subr.bf16.mxu0 0
    %3589 = vmatpush2.bf16.msra.mxu0 0
    %3590 = vmatprep.mubr.bf16.mxu0 0
    %3591 = vmatmul.mubr.bf16.gmra.mxu0 %v3353
    %v3592 = vpop.f32.mrf.mxu0
    %v3593 = vadd.f32 %v3544, %v3592
    %v3594 = vpop.f32.mrf.mxu0
    %v3595 = vpop.f32.mrf.mxu0
    %v3596 = vpop.f32.mrf.mxu0
    %3597 = vdwg.mxu0
    %v3598 = vld [vmem:[#allocation18] sm:$0xf]
    %v3599 = vld [vmem:[#allocation18 + $0x4] sm:$0xf]
    %v3600 = vld [vmem:[#allocation18 + $0x8] sm:$0xf]
    %v3601 = vld [vmem:[#allocation18 + $0xc] sm:$0xf]
    %v3602 = vld [vmem:[#allocation24] sm:$0x1]
    %v3604 = vlaneseq
    %v3605 = vshrl.u32 %v3604, 7
    %v3606 = vsub.s32 0, %v3605
    %v3607 = vrot.slane %v3602, %v3606
    %v3613 = vunpack.c.l.b16 %v3598
    %v3614 = vunpack.c.l.b16 %v3599
    %v3615 = vunpack.c.l.b16 %v3600
    %v3616 = vunpack.c.l.b16 %v3601
    %v3617 = vpack.c.b16 %v3614, %v3613
    %v3618 = vpack.c.b16 %v3616, %v3615
    %3621 = vmatprep.subr.bf16.mxu0 0
    %3622 = vmatpush1.bf16.msra.mxu0 0
    %3623 = vmatprep.subr.bf16.mxu0 0
    %3624 = vmatpush1.bf16.msra.mxu0 0
    %3625 = vmatprep.subr.bf16.mxu0 0
    %3626 = vmatpush1.bf16.msra.mxu0 0
    %3627 = vmatprep.subr.bf16.mxu0 0
    %3628 = vmatpush1.bf16.msra.mxu0 0
    %3629 = vmatprep.subr.bf16.mxu0 0
    %3630 = vmatpush1.bf16.msra.mxu0 0
    %3631 = vmatprep.subr.bf16.mxu0 0
    %3632 = vmatpush1.bf16.msra.mxu0 0
    %3633 = vmatprep.subr.bf16.mxu0 0
    %3634 = vmatpush1.bf16.msra.mxu0 %v3618
    %3635 = vmatprep.subr.bf16.mxu0 0
    %3636 = vmatpush1.bf16.msra.mxu0 %v3617
    %3637 = vmatprep.subr.bf16.mxu0 0
    %3638 = vmatpush2.bf16.msra.mxu0 0
    %3639 = vmatprep.subr.bf16.mxu0 0
    %3640 = vmatpush2.bf16.msra.mxu0 0
    %3641 = vmatprep.subr.bf16.mxu0 0
    %3642 = vmatpush2.bf16.msra.mxu0 0
    %3643 = vmatprep.subr.bf16.mxu0 0
    %3644 = vmatpush2.bf16.msra.mxu0 0
    %3645 = vmatprep.subr.bf16.mxu0 0
    %3646 = vmatpush2.bf16.msra.mxu0 0
    %3647 = vmatprep.subr.bf16.mxu0 0
    %3648 = vmatpush2.bf16.msra.mxu0 0
    %3649 = vmatprep.subr.bf16.mxu0 0
    %3650 = vmatpush2.bf16.msra.mxu0 0
    %3651 = vmatprep.subr.bf16.mxu0 0
    %3652 = vmatpush2.bf16.msra.mxu0 0
    %3653 = vmatprep.mubr.bf16.mxu0 0
    %3654 = vmatmul.mubr.bf16.gmra.mxu0 %v2869
    %v3655 = vpop.f32.mrf.mxu0
    %v3656 = vadd.f32 %v3607, %v3655
    %v3657 = vpop.f32.mrf.mxu0
    %v3658 = vpop.f32.mrf.mxu0
    %v3659 = vpop.f32.mrf.mxu0
    %3660 = vdwg.mxu0
    %v3661 = vmul.f32 %v3408, %v3656
    %v3662 = vadd.f32 %v3593, %v3661
    %v3663 = vtanh.pop %v3662
    %v3664 = vsub.f32 1.0, %v3534
    %v3665 = vmul.f32 %v3664, %v3663
    %v3666 = vmul.f32 %v3534, %v2195
    %v3667 = vadd.f32 %v3665, %v3666
    %v3668 = vld [vmem:[%s15] sm:$0xff]
    %v3669 = vld [vmem:[%s15 + $0x8] sm:$0xff]
    %v3670 = vld [vmem:[%s15 + $0x10] sm:$0xff]
    %v3671 = vld [vmem:[%s15 + $0x18] sm:$0xff]
    %3672 = vmatprep.subr.mxu0 0.0
    %3673 = vmatpush1.msra.mxu0 0.0
    %3674 = vmatprep.subr.mxu0 0.0
    %3675 = vmatpush1.msra.mxu0 0.0
    %3676 = vmatprep.subr.mxu0 0.0
    %3677 = vmatpush1.msra.mxu0 0.0
    %3678 = vmatprep.subr.mxu0 0.0
    %3679 = vmatpush1.msra.mxu0 0.0
    %3680 = vmatprep.subr.mxu0 0.0
    %3681 = vmatpush1.msra.mxu0 0.0
    %3682 = vmatprep.subr.mxu0 0.0
    %3683 = vmatpush1.msra.mxu0 0.0
    %3684 = vmatprep.subr.mxu0 0.0
    %3685 = vmatpush1.msra.mxu0 0.0
    %3686 = vmatprep.subr.mxu0 0.0
    %3687 = vmatpush1.msra.mxu0 0.0
    %3688 = vmatprep.subr.mxu0 0.0
    %3689 = vmatpush1.msra.mxu0 0.0
    %3690 = vmatprep.subr.mxu0 0.0
    %3691 = vmatpush1.msra.mxu0 0.0
    %3692 = vmatprep.subr.mxu0 0.0
    %3693 = vmatpush1.msra.mxu0 0.0
    %3694 = vmatprep.subr.mxu0 0.0
    %3695 = vmatpush1.msra.mxu0 0.0
    %3696 = vmatprep.subr.mxu0 0.0
    %3697 = vmatpush1.msra.mxu0 %v3671
    %3698 = vmatprep.subr.mxu0 0.0
    %3699 = vmatpush1.msra.mxu0 %v3670
    %3700 = vmatprep.subr.mxu0 0.0
    %3701 = vmatpush1.msra.mxu0 %v3669
    %3702 = vmatprep.subr.mxu0 0.0
    %3703 = vmatpush1.msra.mxu0 %v3668
    %3704 = vmatprep.subr.mxu0 0.0
    %3705 = vmatpush2.msra.mxu0 0.0
    %3706 = vmatprep.subr.mxu0 0.0
    %3707 = vmatpush2.msra.mxu0 0.0
    %3708 = vmatprep.subr.mxu0 0.0
    %3709 = vmatpush2.msra.mxu0 0.0
    %3710 = vmatprep.subr.mxu0 0.0
    %3711 = vmatpush2.msra.mxu0 0.0
    %3712 = vmatprep.subr.mxu0 0.0
    %3713 = vmatpush2.msra.mxu0 0.0
    %3714 = vmatprep.subr.mxu0 0.0
    %3715 = vmatpush2.msra.mxu0 0.0
    %3716 = vmatprep.subr.mxu0 0.0
    %3717 = vmatpush2.msra.mxu0 0.0
    %3718 = vmatprep.subr.mxu0 0.0
    %3719 = vmatpush2.msra.mxu0 0.0
    %3720 = vmatprep.subr.mxu0 0.0
    %3721 = vmatpush2.msra.mxu0 0.0
    %3722 = vmatprep.subr.mxu0 0.0
    %3723 = vmatpush2.msra.mxu0 0.0
    %3724 = vmatprep.subr.mxu0 0.0
    %3725 = vmatpush2.msra.mxu0 0.0
    %3726 = vmatprep.subr.mxu0 0.0
    %3727 = vmatpush2.msra.mxu0 0.0
    %3728 = vmatprep.subr.mxu0 0.0
    %3729 = vmatpush2.msra.mxu0 0.0
    %3730 = vmatprep.subr.mxu0 0.0
    %3731 = vmatpush2.msra.mxu0 0.0
    %3732 = vmatprep.subr.mxu0 0.0
    %3733 = vmatpush2.msra.mxu0 0.0
    %3734 = vmatprep.subr.mxu0 0.0
    %3735 = vmatpush2.msra.mxu0 0.0
    %3736 = vmatprep.mubr.f32.mxu0 0.0
    %3737 = vmatmul.mubr.f32.gmra.mxu0 %v2937
    %v3738 = vpop.f32.mrf.mxu0
    %v3739 = vadd.f32 0.0, %v3738
    %v3740 = vpop.f32.mrf.mxu0
    %3741 = vdwg.mxu0
    %v3743 = vcombine.high %v3739, %v3739
    %v3745 = vunpack.c.l.s4 1966171168
    %v3746 = vunpack.c.0.s8 %v3745
    %v3747 = vlaneseq
    %v3748 = vshrl.u32 %v3747, 7
    %v3749 = vsub.s32 %v3746, %v3748
    %v3750 = vrot.slane %v3739, %v3749
    %v3752 = vunpack.c.l.s4 1966171168
    %v3753 = vunpack.c.0.s8 %v3752
    %v3754 = vlaneseq
    %v3755 = vshrl.u32 %v3754, 7
    %v3756 = vsub.s32 %v3753, %v3755
    %v3757 = vrot.slane %v3743, %v3756
    %v3758 = vcombine.high %v3750, %v3750
    %v3759 = vcombine.high %v3757, %v3757
    %v3761 = vunpack.c.l.s4 1966171168
    %v3762 = vunpack.c.0.s8 %v3761
    %v3763 = vlaneseq
    %v3764 = vshrl.u32 %v3763, 7
    %v3765 = vsub.s32 %v3762, %v3764
    %v3766 = vrot.slane %v3750, %v3765
    %v3768 = vunpack.c.l.s4 1966171168
    %v3769 = vunpack.c.0.s8 %v3768
    %v3770 = vlaneseq
    %v3771 = vshrl.u32 %v3770, 7
    %v3772 = vsub.s32 %v3769, %v3771
    %v3773 = vrot.slane %v3757, %v3772
    %v3775 = vunpack.c.l.s4 1966171168
    %v3776 = vunpack.c.0.s8 %v3775
    %v3777 = vlaneseq
    %v3778 = vshrl.u32 %v3777, 7
    %v3779 = vsub.s32 %v3776, %v3778
    %v3780 = vrot.slane %v3758, %v3779
    %v3782 = vunpack.c.l.s4 1966171168
    %v3783 = vunpack.c.0.s8 %v3782
    %v3784 = vlaneseq
    %v3785 = vshrl.u32 %v3784, 7
    %v3786 = vsub.s32 %v3783, %v3785
    %v3787 = vrot.slane %v3759, %v3786
    %v3788 = vcombine.high %v3766, %v3766
    %v3789 = vcombine.high %v3773, %v3773
    %v3790 = vcombine.high %v3780, %v3780
    %v3791 = vcombine.high %v3787, %v3787
    %v3792 = vlaneseq
    %v3793 = vshrl.u32 %v3792, 7
    %v3794 = vsub.s32 0, %v3793
    %v3795 = vrot.slane %v3766, %v3794
    %v3796 = vlaneseq
    %v3797 = vshrl.u32 %v3796, 7
    %v3798 = vsub.s32 0, %v3797
    %v3799 = vrot.slane %v3780, %v3798
    %v3800 = vlaneseq
    %v3801 = vshrl.u32 %v3800, 7
    %v3802 = vsub.s32 0, %v3801
    %v3803 = vrot.slane %v3788, %v3802
    %v3804 = vlaneseq
    %v3805 = vshrl.u32 %v3804, 7
    %v3806 = vsub.s32 0, %v3805
    %v3807 = vrot.slane %v3790, %v3806
    %v3808 = vlaneseq
    %v3809 = vshrl.u32 %v3808, 7
    %v3810 = vsub.s32 0, %v3809
    %v3811 = vrot.slane %v3773, %v3810
    %v3812 = vlaneseq
    %v3813 = vshrl.u32 %v3812, 7
    %v3814 = vsub.s32 0, %v3813
    %v3815 = vrot.slane %v3787, %v3814
    %v3816 = vlaneseq
    %v3817 = vshrl.u32 %v3816, 7
    %v3818 = vsub.s32 0, %v3817
    %v3819 = vrot.slane %v3789, %v3818
    %v3820 = vlaneseq
    %v3821 = vshrl.u32 %v3820, 7
    %v3822 = vsub.s32 0, %v3821
    %v3823 = vrot.slane %v3791, %v3822
    %v3832 = vadd.f32 %v292, %v3795
    %v3833 = vadd.f32 %v293, %v3799
    %v3834 = vadd.f32 %v294, %v3803
    %v3835 = vadd.f32 %v295, %v3807
    %v3836 = vadd.f32 %v296, %v3811
    %v3837 = vadd.f32 %v297, %v3815
    %v3838 = vadd.f32 %v298, %v3819
    %v3839 = vadd.f32 %v299, %v3823
    %v3840 = vtanh.pop %v3832
    %v3841 = vtanh.pop %v3833
    %v3842 = vtanh.pop %v3834
    %v3843 = vtanh.pop %v3835
    %v3844 = vtanh.pop %v3836
    %v3845 = vtanh.pop %v3837
    %v3846 = vtanh.pop %v3838
    %v3847 = vtanh.pop %v3839
    %v3848 = vld [vmem:[%s16] sm:$0x1]
    %v3850 = vlaneseq
    %v3851 = vshrl.u32 %v3850, 7
    %v3852 = vsub.s32 0, %v3851
    %v3853 = vrot.slane %v3848, %v3852
    %v3855 = vmul.f32 %v3853, %v3840
    %v3856 = vmul.f32 %v3853, %v3841
    %v3857 = vmul.f32 %v3853, %v3842
    %v3858 = vmul.f32 %v3853, %v3843
    %v3859 = vmul.f32 %v3853, %v3844
    %v3860 = vmul.f32 %v3853, %v3845
    %v3861 = vmul.f32 %v3853, %v3846
    %v3862 = vmul.f32 %v3853, %v3847
    %v3863 = vsel %vm340, %v3855, 0.0
    %3864 = vadd.xlane.f32.xlu0 %v3863
    %v3865 = vpop.xlane.xlu0 %3864
    %v3866 = vsel %vm340, %v3856, 0.0
    %3867 = vadd.xlane.f32.xlu0 %v3866
    %v3868 = vpop.xlane.xlu0 %3867
    %v3869 = vsel %vm340, %v3857, 0.0
    %3870 = vadd.xlane.f32.xlu0 %v3869
    %v3871 = vpop.xlane.xlu0 %3870
    %v3872 = vsel %vm340, %v3858, 0.0
    %3873 = vadd.xlane.f32.xlu0 %v3872
    %v3874 = vpop.xlane.xlu0 %3873
    %v3875 = vsel %vm340, %v3859, 0.0
    %3876 = vadd.xlane.f32.xlu0 %v3875
    %v3877 = vpop.xlane.xlu0 %3876
    %v3878 = vsel %vm340, %v3860, 0.0
    %3879 = vadd.xlane.f32.xlu0 %v3878
    %v3880 = vpop.xlane.xlu0 %3879
    %v3881 = vsel %vm340, %v3861, 0.0
    %3882 = vadd.xlane.f32.xlu0 %v3881
    %v3883 = vpop.xlane.xlu0 %3882
    %v3884 = vsel %vm340, %v3862, 0.0
    %3885 = vadd.xlane.f32.xlu0 %v3884
    %v3886 = vpop.xlane.xlu0 %3885
    %v3895 = vlaneseq
    %v3896 = vshrl.u32 %v3895, 7
    %v3897 = vsub.s32 %v943, %v3896
    %v3898 = vrot.slane %v3865, %v3897
    %v3899 = vlaneseq
    %v3900 = vshrl.u32 %v3899, 7
    %v3901 = vsub.s32 %v943, %v3900
    %v3902 = vrot.slane %v3868, %v3901
    %v3903 = vlaneseq
    %v3904 = vshrl.u32 %v3903, 7
    %v3905 = vsub.s32 %v943, %v3904
    %v3906 = vrot.slane %v3871, %v3905
    %v3907 = vlaneseq
    %v3908 = vshrl.u32 %v3907, 7
    %v3909 = vsub.s32 %v943, %v3908
    %v3910 = vrot.slane %v3874, %v3909
    %v3911 = vlaneseq
    %v3912 = vshrl.u32 %v3911, 7
    %v3913 = vsub.s32 %v943, %v3912
    %v3914 = vrot.slane %v3877, %v3913
    %v3915 = vlaneseq
    %v3916 = vshrl.u32 %v3915, 7
    %v3917 = vsub.s32 %v943, %v3916
    %v3918 = vrot.slane %v3880, %v3917
    %v3919 = vlaneseq
    %v3920 = vshrl.u32 %v3919, 7
    %v3921 = vsub.s32 %v943, %v3920
    %v3922 = vrot.slane %v3883, %v3921
    %v3923 = vlaneseq
    %v3924 = vshrl.u32 %v3923, 7
    %v3925 = vsub.s32 %v943, %v3924
    %v3926 = vrot.slane %v3886, %v3925
    %v3927 = vsel %vm976, %v3902, %v3898
    %v3928 = vsel %vm978, %v3906, %v3927
    %v3929 = vsel %vm980, %v3910, %v3928
    %v3930 = vsel %vm982, %v3914, %v3929
    %v3931 = vsel %vm984, %v3918, %v3930
    %v3932 = vsel %vm986, %v3922, %v3931
    %v3933 = vsel %vm988, %v3926, %v3932
    %v3935 = vsel %vm991, %v3933, -inf
    %3936 = vmax.xlane.f32.xlu0 %v3935
    %v3937 = vpop.xlane.xlu0 %3936
    %v3939 = vlaneseq
    %v3940 = vshrl.u32 %v3939, 7
    %v3941 = vsub.s32 0, %v3940
    %v3942 = vrot.slane %v3937, %v3941
    %v3943 = vlaneseq
    %v3944 = vshrl.u32 %v3943, 7
    %v3945 = vsub.s32 1, %v3944
    %v3946 = vrot.slane %v3937, %v3945
    %v3947 = vlaneseq
    %v3948 = vshrl.u32 %v3947, 7
    %v3949 = vsub.s32 2, %v3948
    %v3950 = vrot.slane %v3937, %v3949
    %v3951 = vlaneseq
    %v3952 = vshrl.u32 %v3951, 7
    %v3953 = vsub.s32 3, %v3952
    %v3954 = vrot.slane %v3937, %v3953
    %v3955 = vlaneseq
    %v3956 = vshrl.u32 %v3955, 7
    %v3957 = vsub.s32 4, %v3956
    %v3958 = vrot.slane %v3937, %v3957
    %v3959 = vlaneseq
    %v3960 = vshrl.u32 %v3959, 7
    %v3961 = vsub.s32 5, %v3960
    %v3962 = vrot.slane %v3937, %v3961
    %v3963 = vlaneseq
    %v3964 = vshrl.u32 %v3963, 7
    %v3965 = vsub.s32 6, %v3964
    %v3966 = vrot.slane %v3937, %v3965
    %v3967 = vlaneseq
    %v3968 = vshrl.u32 %v3967, 7
    %v3969 = vsub.s32 7, %v3968
    %v3970 = vrot.slane %v3937, %v3969
    %v3979 = vsub.f32 %v3865, %v3942
    %v3980 = vsub.f32 %v3868, %v3946
    %v3981 = vsub.f32 %v3871, %v3950
    %v3982 = vsub.f32 %v3874, %v3954
    %v3983 = vsub.f32 %v3877, %v3958
    %v3984 = vsub.f32 %v3880, %v3962
    %v3985 = vsub.f32 %v3883, %v3966
    %v3986 = vsub.f32 %v3886, %v3970
    %v3987 = vmul.f32 %v3979, 1.442695
    %v3988 = vpow.pop %v3987
    %v3989 = vmul.f32 %v3980, 1.442695
    %v3990 = vpow.pop %v3989
    %v3991 = vmul.f32 %v3981, 1.442695
    %v3992 = vpow.pop %v3991
    %v3993 = vmul.f32 %v3982, 1.442695
    %v3994 = vpow.pop %v3993
    %v3995 = vmul.f32 %v3983, 1.442695
    %v3996 = vpow.pop %v3995
    %v3997 = vmul.f32 %v3984, 1.442695
    %v3998 = vpow.pop %v3997
    %v3999 = vmul.f32 %v3985, 1.442695
    %v4000 = vpow.pop %v3999
    %v4001 = vmul.f32 %v3986, 1.442695
    %v4002 = vpow.pop %v4001
    %4011 = vset.pattern.permute.xlu0 0
    %4012 = vperm.xlu0 %4011, %v3988
    %v4013 = vpop.permute.xlu0 %4012
    %4014 = vset.pattern.permute.xlu0 0
    %4015 = vperm.xlu0 %4014, %v3990
    %v4016 = vpop.permute.xlu0 %4015
    %4017 = vset.pattern.permute.xlu0 0
    %4018 = vperm.xlu0 %4017, %v3992
    %v4019 = vpop.permute.xlu0 %4018
    %4020 = vset.pattern.permute.xlu0 0
    %4021 = vperm.xlu0 %4020, %v3994
    %v4022 = vpop.permute.xlu0 %4021
    %4023 = vset.pattern.permute.xlu0 0
    %4024 = vperm.xlu0 %4023, %v3996
    %v4025 = vpop.permute.xlu0 %4024
    %4026 = vset.pattern.permute.xlu0 0
    %4027 = vperm.xlu0 %4026, %v3998
    %v4028 = vpop.permute.xlu0 %4027
    %4029 = vset.pattern.permute.xlu0 0
    %4030 = vperm.xlu0 %4029, %v4000
    %v4031 = vpop.permute.xlu0 %4030
    %4032 = vset.pattern.permute.xlu0 0
    %4033 = vperm.xlu0 %4032, %v4002
    %v4034 = vpop.permute.xlu0 %4033
    %v4035 = vlaneseq
    %v4036 = vshrl.u32 %v4035, 7
    %v4037 = vsub.s32 %v943, %v4036
    %v4038 = vrot.slane %v4013, %v4037
    %v4039 = vlaneseq
    %v4040 = vshrl.u32 %v4039, 7
    %v4041 = vsub.s32 %v943, %v4040
    %v4042 = vrot.slane %v4016, %v4041
    %v4043 = vlaneseq
    %v4044 = vshrl.u32 %v4043, 7
    %v4045 = vsub.s32 %v943, %v4044
    %v4046 = vrot.slane %v4019, %v4045
    %v4047 = vlaneseq
    %v4048 = vshrl.u32 %v4047, 7
    %v4049 = vsub.s32 %v943, %v4048
    %v4050 = vrot.slane %v4022, %v4049
    %v4051 = vlaneseq
    %v4052 = vshrl.u32 %v4051, 7
    %v4053 = vsub.s32 %v943, %v4052
    %v4054 = vrot.slane %v4025, %v4053
    %v4055 = vlaneseq
    %v4056 = vshrl.u32 %v4055, 7
    %v4057 = vsub.s32 %v943, %v4056
    %v4058 = vrot.slane %v4028, %v4057
    %v4059 = vlaneseq
    %v4060 = vshrl.u32 %v4059, 7
    %v4061 = vsub.s32 %v943, %v4060
    %v4062 = vrot.slane %v4031, %v4061
    %v4063 = vlaneseq
    %v4064 = vshrl.u32 %v4063, 7
    %v4065 = vsub.s32 %v943, %v4064
    %v4066 = vrot.slane %v4034, %v4065
    %v4067 = vsel %vm976, %v4042, %v4038
    %v4068 = vsel %vm978, %v4046, %v4067
    %v4069 = vsel %vm980, %v4050, %v4068
    %v4070 = vsel %vm982, %v4054, %v4069
    %v4071 = vsel %vm984, %v4058, %v4070
    %v4072 = vsel %vm986, %v4062, %v4071
    %v4073 = vsel %vm988, %v4066, %v4072
    %v4075 = vsel %vm991, %v4073, 0.0
    %4076 = vadd.xlane.f32.xlu0 %v4075
    %v4077 = vpop.xlane.xlu0 %4076
    %v4078 = vrcp.pop %v4077
    %v4080 = vlaneseq
    %v4081 = vshrl.u32 %v4080, 7
    %v4082 = vsub.s32 0, %v4081
    %v4083 = vrot.slane %v4078, %v4082
    %v4084 = vlaneseq
    %v4085 = vshrl.u32 %v4084, 7
    %v4086 = vsub.s32 1, %v4085
    %v4087 = vrot.slane %v4078, %v4086
    %v4088 = vlaneseq
    %v4089 = vshrl.u32 %v4088, 7
    %v4090 = vsub.s32 2, %v4089
    %v4091 = vrot.slane %v4078, %v4090
    %v4092 = vlaneseq
    %v4093 = vshrl.u32 %v4092, 7
    %v4094 = vsub.s32 3, %v4093
    %v4095 = vrot.slane %v4078, %v4094
    %v4096 = vlaneseq
    %v4097 = vshrl.u32 %v4096, 7
    %v4098 = vsub.s32 4, %v4097
    %v4099 = vrot.slane %v4078, %v4098
    %v4100 = vlaneseq
    %v4101 = vshrl.u32 %v4100, 7
    %v4102 = vsub.s32 5, %v4101
    %v4103 = vrot.slane %v4078, %v4102
    %v4104 = vlaneseq
    %v4105 = vshrl.u32 %v4104, 7
    %v4106 = vsub.s32 6, %v4105
    %v4107 = vrot.slane %v4078, %v4106
    %v4108 = vlaneseq
    %v4109 = vshrl.u32 %v4108, 7
    %v4110 = vsub.s32 7, %v4109
    %v4111 = vrot.slane %v4078, %v4110
    %v4120 = vmul.f32 %v3988, %v4083
    %v4121 = vmul.f32 %v3990, %v4087
    %v4122 = vmul.f32 %v3992, %v4091
    %v4123 = vmul.f32 %v3994, %v4095
    %v4124 = vmul.f32 %v3996, %v4099
    %v4125 = vmul.f32 %v3998, %v4103
    %v4126 = vmul.f32 %v4000, %v4107
    %v4127 = vmul.f32 %v4002, %v4111
    %4129 = vset.pattern.permute.xlu0 0
    %4130 = vperm.xlu0 %4129, %v4120
    %v4131 = vpop.permute.xlu0 %4130
    %4134 = vset.pattern.permute.xlu0 0
    %4135 = vperm.xlu0 %4134, %v4121
    %v4136 = vpop.permute.xlu0 %4135
    %4139 = vset.pattern.permute.xlu0 0
    %4140 = vperm.xlu0 %4139, %v4122
    %v4141 = vpop.permute.xlu0 %4140
    %4144 = vset.pattern.permute.xlu0 0
    %4145 = vperm.xlu0 %4144, %v4123
    %v4146 = vpop.permute.xlu0 %4145
    %4149 = vset.pattern.permute.xlu0 0
    %4150 = vperm.xlu0 %4149, %v4124
    %v4151 = vpop.permute.xlu0 %4150
    %4154 = vset.pattern.permute.xlu0 0
    %4155 = vperm.xlu0 %4154, %v4125
    %v4156 = vpop.permute.xlu0 %4155
    %4159 = vset.pattern.permute.xlu0 0
    %4160 = vperm.xlu0 %4159, %v4126
    %v4161 = vpop.permute.xlu0 %4160
    %4164 = vset.pattern.permute.xlu0 0
    %4165 = vperm.xlu0 %4164, %v4127
    %v4166 = vpop.permute.xlu0 %4165
    %v4168 = vmul.f32 %v284, %v4131
    %v4169 = vmul.f32 %v285, %v4136
    %v4170 = vmul.f32 %v286, %v4141
    %v4171 = vmul.f32 %v287, %v4146
    %v4172 = vmul.f32 %v288, %v4151
    %v4173 = vmul.f32 %v289, %v4156
    %v4174 = vmul.f32 %v290, %v4161
    %v4175 = vmul.f32 %v291, %v4166
    %v4176 = vsel %vm340, %v4168, 0.0
    %v4177 = vrot.slane %v4176, 4
    %v4178 = vadd.f32 %v4176, %v4177
    %v4179 = vrot.slane %v4178, 2
    %v4180 = vadd.f32 %v4178, %v4179
    %v4181 = vrot.slane %v4180, 1
    %v4182 = vadd.f32 %v4180, %v4181
    %v4183 = vsel %vm340, %v4169, 0.0
    %v4184 = vrot.slane %v4183, 4
    %v4185 = vadd.f32 %v4183, %v4184
    %v4186 = vrot.slane %v4185, 2
    %v4187 = vadd.f32 %v4185, %v4186
    %v4188 = vrot.slane %v4187, 1
    %v4189 = vadd.f32 %v4187, %v4188
    %v4190 = vsel %vm340, %v4170, 0.0
    %v4191 = vrot.slane %v4190, 4
    %v4192 = vadd.f32 %v4190, %v4191
    %v4193 = vrot.slane %v4192, 2
    %v4194 = vadd.f32 %v4192, %v4193
    %v4195 = vrot.slane %v4194, 1
    %v4196 = vadd.f32 %v4194, %v4195
    %v4197 = vsel %vm340, %v4171, 0.0
    %v4198 = vrot.slane %v4197, 4
    %v4199 = vadd.f32 %v4197, %v4198
    %v4200 = vrot.slane %v4199, 2
    %v4201 = vadd.f32 %v4199, %v4200
    %v4202 = vrot.slane %v4201, 1
    %v4203 = vadd.f32 %v4201, %v4202
    %v4204 = vsel %vm340, %v4172, 0.0
    %v4205 = vrot.slane %v4204, 4
    %v4206 = vadd.f32 %v4204, %v4205
    %v4207 = vrot.slane %v4206, 2
    %v4208 = vadd.f32 %v4206, %v4207
    %v4209 = vrot.slane %v4208, 1
    %v4210 = vadd.f32 %v4208, %v4209
    %v4211 = vsel %vm340, %v4173, 0.0
    %v4212 = vrot.slane %v4211, 4
    %v4213 = vadd.f32 %v4211, %v4212
    %v4214 = vrot.slane %v4213, 2
    %v4215 = vadd.f32 %v4213, %v4214
    %v4216 = vrot.slane %v4215, 1
    %v4217 = vadd.f32 %v4215, %v4216
    %v4218 = vsel %vm340, %v4174, 0.0
    %v4219 = vrot.slane %v4218, 4
    %v4220 = vadd.f32 %v4218, %v4219
    %v4221 = vrot.slane %v4220, 2
    %v4222 = vadd.f32 %v4220, %v4221
    %v4223 = vrot.slane %v4222, 1
    %v4224 = vadd.f32 %v4222, %v4223
    %v4225 = vsel %vm340, %v4175, 0.0
    %v4226 = vrot.slane %v4225, 4
    %v4227 = vadd.f32 %v4225, %v4226
    %v4228 = vrot.slane %v4227, 2
    %v4229 = vadd.f32 %v4227, %v4228
    %v4230 = vrot.slane %v4229, 1
    %v4231 = vadd.f32 %v4229, %v4230
    %v4232 = vpack.c.bf16 %v3667, %v3667
    %v4233 = vld [vmem:[#allocation25] sm:$0xf]
    %v4234 = vld [vmem:[#allocation25 + $0x4] sm:$0xf]
    %v4235 = vld [vmem:[#allocation25 + $0x8] sm:$0xf]
    %v4236 = vld [vmem:[#allocation25 + $0xc] sm:$0xf]
    %v4237 = vpack.c.bf16 %v4182, %v4182
    %v4238 = vpack.c.bf16 %v4189, %v4189
    %v4239 = vpack.c.bf16 %v4196, %v4196
    %v4240 = vpack.c.bf16 %v4203, %v4203
    %v4241 = vpack.c.bf16 %v4210, %v4210
    %v4242 = vpack.c.bf16 %v4217, %v4217
    %v4243 = vpack.c.bf16 %v4224, %v4224
    %v4244 = vpack.c.bf16 %v4231, %v4231
    %v4245 = vld [vmem:[#allocation27] sm:$0xf]
    %v4246 = vld [vmem:[#allocation27 + $0x4] sm:$0xf]
    %v4247 = vld [vmem:[#allocation27 + $0x8] sm:$0xf]
    %v4248 = vld [vmem:[#allocation27 + $0xc] sm:$0xf]
    %v4257 = vunpack.c.l.b16 %v4237
    %v4258 = vunpack.c.l.b16 %v4238
    %v4259 = vunpack.c.l.b16 %v4239
    %v4260 = vunpack.c.l.b16 %v4240
    %v4261 = vunpack.c.l.b16 %v4241
    %v4262 = vunpack.c.l.b16 %v4242
    %v4263 = vunpack.c.l.b16 %v4243
    %v4264 = vunpack.c.l.b16 %v4244
    %v4265 = vsel %vm976, %v4258, %v4257
    %v4266 = vsel %vm978, %v4259, %v4265
    %v4267 = vsel %vm980, %v4260, %v4266
    %v4268 = vsel %vm982, %v4261, %v4267
    %v4269 = vsel %vm984, %v4262, %v4268
    %v4270 = vsel %vm986, %v4263, %v4269
    %v4271 = vsel %vm988, %v4264, %v4270
    %v4272 = vpack.c.b16 %v4271, %v4271
    %v4277 = vunpack.c.l.b16 %v4245
    %v4278 = vunpack.c.l.b16 %v4246
    %v4279 = vunpack.c.l.b16 %v4247
    %v4280 = vunpack.c.l.b16 %v4248
    %v4281 = vpack.c.b16 %v4278, %v4277
    %v4282 = vpack.c.b16 %v4280, %v4279
    %v4286 = vsel %vm340, %v4272, 0
    %4288 = vmatprep.subr.bf16.mxu0 0
    %4289 = vmatpush1.bf16.msra.mxu0 0
    %4290 = vmatprep.subr.bf16.mxu0 0
    %4291 = vmatpush1.bf16.msra.mxu0 0
    %4292 = vmatprep.subr.bf16.mxu0 0
    %4293 = vmatpush1.bf16.msra.mxu0 0
    %4294 = vmatprep.subr.bf16.mxu0 0
    %4295 = vmatpush1.bf16.msra.mxu0 0
    %4296 = vmatprep.subr.bf16.mxu0 0
    %4297 = vmatpush1.bf16.msra.mxu0 0
    %4298 = vmatprep.subr.bf16.mxu0 0
    %4299 = vmatpush1.bf16.msra.mxu0 0
    %4300 = vmatprep.subr.bf16.mxu0 0
    %4301 = vmatpush1.bf16.msra.mxu0 %v4282
    %4302 = vmatprep.subr.bf16.mxu0 0
    %4303 = vmatpush1.bf16.msra.mxu0 %v4281
    %4304 = vmatprep.subr.bf16.mxu0 0
    %4305 = vmatpush2.bf16.msra.mxu0 0
    %4306 = vmatprep.subr.bf16.mxu0 0
    %4307 = vmatpush2.bf16.msra.mxu0 0
    %4308 = vmatprep.subr.bf16.mxu0 0
    %4309 = vmatpush2.bf16.msra.mxu0 0
    %4310 = vmatprep.subr.bf16.mxu0 0
    %4311 = vmatpush2.bf16.msra.mxu0 0
    %4312 = vmatprep.subr.bf16.mxu0 0
    %4313 = vmatpush2.bf16.msra.mxu0 0
    %4314 = vmatprep.subr.bf16.mxu0 0
    %4315 = vmatpush2.bf16.msra.mxu0 0
    %4316 = vmatprep.subr.bf16.mxu0 0
    %4317 = vmatpush2.bf16.msra.mxu0 0
    %4318 = vmatprep.subr.bf16.mxu0 0
    %4319 = vmatpush2.bf16.msra.mxu0 0
    %4320 = vmatprep.mubr.bf16.mxu0 0
    %4321 = vmatmul.mubr.bf16.gmra.mxu0 %v4286
    %v4322 = vpop.f32.mrf.mxu0
    %v4323 = vadd.f32 0.0, %v4322
    %v4324 = vpop.f32.mrf.mxu0
    %v4325 = vpop.f32.mrf.mxu0
    %v4326 = vpop.f32.mrf.mxu0
    %4327 = vdwg.mxu0
    %v4332 = vunpack.c.l.b16 %v4233
    %v4333 = vunpack.c.l.b16 %v4234
    %v4334 = vunpack.c.l.b16 %v4235
    %v4335 = vunpack.c.l.b16 %v4236
    %v4336 = vpack.c.b16 %v4333, %v4332
    %v4337 = vpack.c.b16 %v4335, %v4334
    %v4341 = vsel %vm340, %v4232, 0
    %4343 = vmatprep.subr.bf16.mxu0 0
    %4344 = vmatpush1.bf16.msra.mxu0 0
    %4345 = vmatprep.subr.bf16.mxu0 0
    %4346 = vmatpush1.bf16.msra.mxu0 0
    %4347 = vmatprep.subr.bf16.mxu0 0
    %4348 = vmatpush1.bf16.msra.mxu0 0
    %4349 = vmatprep.subr.bf16.mxu0 0
    %4350 = vmatpush1.bf16.msra.mxu0 0
    %4351 = vmatprep.subr.bf16.mxu0 0
    %4352 = vmatpush1.bf16.msra.mxu0 0
    %4353 = vmatprep.subr.bf16.mxu0 0
    %4354 = vmatpush1.bf16.msra.mxu0 0
    %4355 = vmatprep.subr.bf16.mxu0 0
    %4356 = vmatpush1.bf16.msra.mxu0 %v4337
    %4357 = vmatprep.subr.bf16.mxu0 0
    %4358 = vmatpush1.bf16.msra.mxu0 %v4336
    %4359 = vmatprep.subr.bf16.mxu0 0
    %4360 = vmatpush2.bf16.msra.mxu0 0
    %4361 = vmatprep.subr.bf16.mxu0 0
    %4362 = vmatpush2.bf16.msra.mxu0 0
    %4363 = vmatprep.subr.bf16.mxu0 0
    %4364 = vmatpush2.bf16.msra.mxu0 0
    %4365 = vmatprep.subr.bf16.mxu0 0
    %4366 = vmatpush2.bf16.msra.mxu0 0
    %4367 = vmatprep.subr.bf16.mxu0 0
    %4368 = vmatpush2.bf16.msra.mxu0 0
    %4369 = vmatprep.subr.bf16.mxu0 0
    %4370 = vmatpush2.bf16.msra.mxu0 0
    %4371 = vmatprep.subr.bf16.mxu0 0
    %4372 = vmatpush2.bf16.msra.mxu0 0
    %4373 = vmatprep.subr.bf16.mxu0 0
    %4374 = vmatpush2.bf16.msra.mxu0 0
    %4375 = vmatprep.mubr.bf16.mxu0 0
    %4376 = vmatmul.mubr.bf16.gmra.mxu0 %v4341
    %v4377 = vpop.f32.mrf.mxu0
    %v4378 = vadd.f32 %v4323, %v4377
    %v4379 = vpop.f32.mrf.mxu0
    %v4380 = vpop.f32.mrf.mxu0
    %v4381 = vpop.f32.mrf.mxu0
    %4382 = vdwg.mxu0
    %v4383 = vld [vmem:[%s19] sm:$0x1]
    %v4385 = vlaneseq
    %v4386 = vshrl.u32 %v4385, 7
    %v4387 = vsub.s32 0, %v4386
    %v4388 = vrot.slane %v4383, %v4387
    %v4390 = vadd.f32 %v4378, %v4388
    %4391 = vmax.xlane.f32.xlu0 %v4390
    %v4392 = vpop.xlane.xlu0 %4391
    %v4393 = vsub.f32 %v4390, %v4392
    %v4394 = vmul.f32 %v4393, 1.442695
    %v4395 = vpow.pop %v4394
    %4396 = vadd.xlane.f32.xlu0 %v4395
    %v4397 = vpop.xlane.xlu0 %4396
    %v4398 = vrcp.pop %v4397
    %v4399 = vmul.f32 %v4395, %v4398
    %v4400 = vld [vmem:[%s20] sm:$0xff]
    %v4401 = vld [vmem:[%s20 + $0x8] sm:$0xff]
    %v4402 = vld [vmem:[%s20 + $0x10] sm:$0xff]
    %v4403 = vld [vmem:[%s20 + $0x18] sm:$0xff]
    %v4404 = vld [vmem:[%s21] sm:$0xff]
    %v4405 = vld [vmem:[%s21 + $0x8] sm:$0xff]
    %v4406 = vld [vmem:[%s21 + $0x10] sm:$0xff]
    %v4407 = vld [vmem:[%s21 + $0x18] sm:$0xff]
    %v4409 = vsel %vm340, %v3667, 0
    %4411 = vmatprep.subr.mxu0 0.0
    %4412 = vmatpush1.msra.mxu0 0.0
    %4413 = vmatprep.subr.mxu0 0.0
    %4414 = vmatpush1.msra.mxu0 0.0
    %4415 = vmatprep.subr.mxu0 0.0
    %4416 = vmatpush1.msra.mxu0 0.0
    %4417 = vmatprep.subr.mxu0 0.0
    %4418 = vmatpush1.msra.mxu0 0.0
    %4419 = vmatprep.subr.mxu0 0.0
    %4420 = vmatpush1.msra.mxu0 0.0
    %4421 = vmatprep.subr.mxu0 0.0
    %4422 = vmatpush1.msra.mxu0 0.0
    %4423 = vmatprep.subr.mxu0 0.0
    %4424 = vmatpush1.msra.mxu0 0.0
    %4425 = vmatprep.subr.mxu0 0.0
    %4426 = vmatpush1.msra.mxu0 0.0
    %4427 = vmatprep.subr.mxu0 0.0
    %4428 = vmatpush1.msra.mxu0 0.0
    %4429 = vmatprep.subr.mxu0 0.0
    %4430 = vmatpush1.msra.mxu0 0.0
    %4431 = vmatprep.subr.mxu0 0.0
    %4432 = vmatpush1.msra.mxu0 0.0
    %4433 = vmatprep.subr.mxu0 0.0
    %4434 = vmatpush1.msra.mxu0 0.0
    %4435 = vmatprep.subr.mxu0 0.0
    %4436 = vmatpush1.msra.mxu0 %v4407
    %4437 = vmatprep.subr.mxu0 0.0
    %4438 = vmatpush1.msra.mxu0 %v4406
    %4439 = vmatprep.subr.mxu0 0.0
    %4440 = vmatpush1.msra.mxu0 %v4405
    %4441 = vmatprep.subr.mxu0 0.0
    %4442 = vmatpush1.msra.mxu0 %v4404
    %4443 = vmatprep.subr.mxu0 0.0
    %4444 = vmatpush2.msra.mxu0 0.0
    %4445 = vmatprep.subr.mxu0 0.0
    %4446 = vmatpush2.msra.mxu0 0.0
    %4447 = vmatprep.subr.mxu0 0.0
    %4448 = vmatpush2.msra.mxu0 0.0
    %4449 = vmatprep.subr.mxu0 0.0
    %4450 = vmatpush2.msra.mxu0 0.0
    %4451 = vmatprep.subr.mxu0 0.0
    %4452 = vmatpush2.msra.mxu0 0.0
    %4453 = vmatprep.subr.mxu0 0.0
    %4454 = vmatpush2.msra.mxu0 0.0
    %4455 = vmatprep.subr.mxu0 0.0
    %4456 = vmatpush2.msra.mxu0 0.0
    %4457 = vmatprep.subr.mxu0 0.0
    %4458 = vmatpush2.msra.mxu0 0.0
    %4459 = vmatprep.subr.mxu0 0.0
    %4460 = vmatpush2.msra.mxu0 0.0
    %4461 = vmatprep.subr.mxu0 0.0
    %4462 = vmatpush2.msra.mxu0 0.0
    %4463 = vmatprep.subr.mxu0 0.0
    %4464 = vmatpush2.msra.mxu0 0.0
    %4465 = vmatprep.subr.mxu0 0.0
    %4466 = vmatpush2.msra.mxu0 0.0
    %4467 = vmatprep.subr.mxu0 0.0
    %4468 = vmatpush2.msra.mxu0 0.0
    %4469 = vmatprep.subr.mxu0 0.0
    %4470 = vmatpush2.msra.mxu0 0.0
    %4471 = vmatprep.subr.mxu0 0.0
    %4472 = vmatpush2.msra.mxu0 0.0
    %4473 = vmatprep.subr.mxu0 0.0
    %4474 = vmatpush2.msra.mxu0 0.0
    %4475 = vmatprep.mubr.f32.mxu0 0.0
    %4476 = vmatmul.mubr.f32.gmra.mxu0 %v4409
    %v4477 = vpop.f32.mrf.mxu0
    %v4478 = vadd.f32 0.0, %v4477
    %v4479 = vpop.f32.mrf.mxu0
    %4480 = vdwg.mxu0
    %v4489 = vsel %vm976, %v4189, %v4182
    %v4490 = vsel %vm978, %v4196, %v4489
    %v4491 = vsel %vm980, %v4203, %v4490
    %v4492 = vsel %vm982, %v4210, %v4491
    %v4493 = vsel %vm984, %v4217, %v4492
    %v4494 = vsel %vm986, %v4224, %v4493
    %v4495 = vsel %vm988, %v4231, %v4494
    %v4496 = vsel %vm340, %v4495, 0
    %4498 = vmatprep.subr.mxu0 0.0
    %4499 = vmatpush1.msra.mxu0 0.0
    %4500 = vmatprep.subr.mxu0 0.0
    %4501 = vmatpush1.msra.mxu0 0.0
    %4502 = vmatprep.subr.mxu0 0.0
    %4503 = vmatpush1.msra.mxu0 0.0
    %4504 = vmatprep.subr.mxu0 0.0
    %4505 = vmatpush1.msra.mxu0 0.0
    %4506 = vmatprep.subr.mxu0 0.0
    %4507 = vmatpush1.msra.mxu0 0.0
    %4508 = vmatprep.subr.mxu0 0.0
    %4509 = vmatpush1.msra.mxu0 0.0
    %4510 = vmatprep.subr.mxu0 0.0
    %4511 = vmatpush1.msra.mxu0 0.0
    %4512 = vmatprep.subr.mxu0 0.0
    %4513 = vmatpush1.msra.mxu0 0.0
    %4514 = vmatprep.subr.mxu0 0.0
    %4515 = vmatpush1.msra.mxu0 0.0
    %4516 = vmatprep.subr.mxu0 0.0
    %4517 = vmatpush1.msra.mxu0 0.0
    %4518 = vmatprep.subr.mxu0 0.0
    %4519 = vmatpush1.msra.mxu0 0.0
    %4520 = vmatprep.subr.mxu0 0.0
    %4521 = vmatpush1.msra.mxu0 0.0
    %4522 = vmatprep.subr.mxu0 0.0
    %4523 = vmatpush1.msra.mxu0 %v4403
    %4524 = vmatprep.subr.mxu0 0.0
    %4525 = vmatpush1.msra.mxu0 %v4402
    %4526 = vmatprep.subr.mxu0 0.0
    %4527 = vmatpush1.msra.mxu0 %v4401
    %4528 = vmatprep.subr.mxu0 0.0
    %4529 = vmatpush1.msra.mxu0 %v4400
    %4530 = vmatprep.subr.mxu0 0.0
    %4531 = vmatpush2.msra.mxu0 0.0
    %4532 = vmatprep.subr.mxu0 0.0
    %4533 = vmatpush2.msra.mxu0 0.0
    %4534 = vmatprep.subr.mxu0 0.0
    %4535 = vmatpush2.msra.mxu0 0.0
    %4536 = vmatprep.subr.mxu0 0.0
    %4537 = vmatpush2.msra.mxu0 0.0
    %4538 = vmatprep.subr.mxu0 0.0
    %4539 = vmatpush2.msra.mxu0 0.0
    %4540 = vmatprep.subr.mxu0 0.0
    %4541 = vmatpush2.msra.mxu0 0.0
    %4542 = vmatprep.subr.mxu0 0.0
    %4543 = vmatpush2.msra.mxu0 0.0
    %4544 = vmatprep.subr.mxu0 0.0
    %4545 = vmatpush2.msra.mxu0 0.0
    %4546 = vmatprep.subr.mxu0 0.0
    %4547 = vmatpush2.msra.mxu0 0.0
    %4548 = vmatprep.subr.mxu0 0.0
    %4549 = vmatpush2.msra.mxu0 0.0
    %4550 = vmatprep.subr.mxu0 0.0
    %4551 = vmatpush2.msra.mxu0 0.0
    %4552 = vmatprep.subr.mxu0 0.0
    %4553 = vmatpush2.msra.mxu0 0.0
    %4554 = vmatprep.subr.mxu0 0.0
    %4555 = vmatpush2.msra.mxu0 0.0
    %4556 = vmatprep.subr.mxu0 0.0
    %4557 = vmatpush2.msra.mxu0 0.0
    %4558 = vmatprep.subr.mxu0 0.0
    %4559 = vmatpush2.msra.mxu0 0.0
    %4560 = vmatprep.subr.mxu0 0.0
    %4561 = vmatpush2.msra.mxu0 0.0
    %4562 = vmatprep.mubr.f32.mxu0 0.0
    %4563 = vmatmul.mubr.f32.gmra.mxu0 %v4496
    %v4564 = vpop.f32.mrf.mxu0
    %v4565 = vadd.f32 %v4478, %v4564
    %v4566 = vpop.f32.mrf.mxu0
    %4567 = vdwg.mxu0
    %v4568 = vld [vmem:[%s22] sm:$0xff]
    %v4569 = vld [vmem:[%s22 + $0x8] sm:$0xff]
    %v4570 = vld [vmem:[%s22 + $0x10] sm:$0xff]
    %v4571 = vld [vmem:[%s22 + $0x18] sm:$0xff]
    %v4573 = vsel %vm340, %v3278, 0
    %4575 = vmatprep.subr.mxu0 0.0
    %4576 = vmatpush1.msra.mxu0 0.0
    %4577 = vmatprep.subr.mxu0 0.0
    %4578 = vmatpush1.msra.mxu0 0.0
    %4579 = vmatprep.subr.mxu0 0.0
    %4580 = vmatpush1.msra.mxu0 0.0
    %4581 = vmatprep.subr.mxu0 0.0
    %4582 = vmatpush1.msra.mxu0 0.0
    %4583 = vmatprep.subr.mxu0 0.0
    %4584 = vmatpush1.msra.mxu0 0.0
    %4585 = vmatprep.subr.mxu0 0.0
    %4586 = vmatpush1.msra.mxu0 0.0
    %4587 = vmatprep.subr.mxu0 0.0
    %4588 = vmatpush1.msra.mxu0 0.0
    %4589 = vmatprep.subr.mxu0 0.0
    %4590 = vmatpush1.msra.mxu0 0.0
    %4591 = vmatprep.subr.mxu0 0.0
    %4592 = vmatpush1.msra.mxu0 0.0
    %4593 = vmatprep.subr.mxu0 0.0
    %4594 = vmatpush1.msra.mxu0 0.0
    %4595 = vmatprep.subr.mxu0 0.0
    %4596 = vmatpush1.msra.mxu0 0.0
    %4597 = vmatprep.subr.mxu0 0.0
    %4598 = vmatpush1.msra.mxu0 0.0
    %4599 = vmatprep.subr.mxu0 0.0
    %4600 = vmatpush1.msra.mxu0 %v4571
    %4601 = vmatprep.subr.mxu0 0.0
    %4602 = vmatpush1.msra.mxu0 %v4570
    %4603 = vmatprep.subr.mxu0 0.0
    %4604 = vmatpush1.msra.mxu0 %v4569
    %4605 = vmatprep.subr.mxu0 0.0
    %4606 = vmatpush1.msra.mxu0 %v4568
    %4607 = vmatprep.subr.mxu0 0.0
    %4608 = vmatpush2.msra.mxu0 0.0
    %4609 = vmatprep.subr.mxu0 0.0
    %4610 = vmatpush2.msra.mxu0 0.0
    %4611 = vmatprep.subr.mxu0 0.0
    %4612 = vmatpush2.msra.mxu0 0.0
    %4613 = vmatprep.subr.mxu0 0.0
    %4614 = vmatpush2.msra.mxu0 0.0
    %4615 = vmatprep.subr.mxu0 0.0
    %4616 = vmatpush2.msra.mxu0 0.0
    %4617 = vmatprep.subr.mxu0 0.0
    %4618 = vmatpush2.msra.mxu0 0.0
    %4619 = vmatprep.subr.mxu0 0.0
    %4620 = vmatpush2.msra.mxu0 0.0
    %4621 = vmatprep.subr.mxu0 0.0
    %4622 = vmatpush2.msra.mxu0 0.0
    %4623 = vmatprep.subr.mxu0 0.0
    %4624 = vmatpush2.msra.mxu0 0.0
    %4625 = vmatprep.subr.mxu0 0.0
    %4626 = vmatpush2.msra.mxu0 0.0
    %4627 = vmatprep.subr.mxu0 0.0
    %4628 = vmatpush2.msra.mxu0 0.0
    %4629 = vmatprep.subr.mxu0 0.0
    %4630 = vmatpush2.msra.mxu0 0.0
    %4631 = vmatprep.subr.mxu0 0.0
    %4632 = vmatpush2.msra.mxu0 0.0
    %4633 = vmatprep.subr.mxu0 0.0
    %4634 = vmatpush2.msra.mxu0 0.0
    %4635 = vmatprep.subr.mxu0 0.0
    %4636 = vmatpush2.msra.mxu0 0.0
    %4637 = vmatprep.subr.mxu0 0.0
    %4638 = vmatpush2.msra.mxu0 0.0
    %4639 = vmatprep.mubr.f32.mxu0 0.0
    %4640 = vmatmul.mubr.f32.gmra.mxu0 %v4573
    %v4641 = vpop.f32.mrf.mxu0
    %v4642 = vadd.f32 0.0, %v4641
    %v4643 = vpop.f32.mrf.mxu0
    %4644 = vdwg.mxu0
    %v4645 = vadd.f32 %v4565, %v4642
    %v4646 = vld [vmem:[#allocation3] sm:$0x1]
    %v4648 = vlaneseq
    %v4649 = vshrl.u32 %v4648, 7
    %v4650 = vsub.s32 0, %v4649
    %v4651 = vrot.slane %v4646, %v4650
    %v4653 = vadd.f32 %v4645, %v4651
    %v4654 = vxor.u32 %v4653, 2147483648
    %v4655 = vmul.f32 %v4654, 1.442695
    %v4656 = vpow.pop %v4655
    %v4657 = vadd.f32 %v4656, 1.0
    %v4658 = vrcp.pop %v4657
    %v4659 = vmul.f32 1.0, %v4658
    %v4660 = vmul.f32 %v4131, %v308
    %v4661 = vmul.f32 %v4136, %v309
    %v4662 = vmul.f32 %v4141, %v310
    %v4663 = vmul.f32 %v4146, %v311
    %v4664 = vmul.f32 %v4151, %v312
    %v4665 = vmul.f32 %v4156, %v313
    %v4666 = vmul.f32 %v4161, %v314
    %v4667 = vmul.f32 %v4166, %v315
    %v4668 = vrot.slane %v4660, 4
    %v4669 = vadd.f32 %v4660, %v4668
    %v4670 = vrot.slane %v4669, 2
    %v4671 = vadd.f32 %v4669, %v4670
    %v4672 = vrot.slane %v4671, 1
    %v4673 = vadd.f32 %v4671, %v4672
    %v4674 = vrot.slane %v4661, 4
    %v4675 = vadd.f32 %v4661, %v4674
    %v4676 = vrot.slane %v4675, 2
    %v4677 = vadd.f32 %v4675, %v4676
    %v4678 = vrot.slane %v4677, 1
    %v4679 = vadd.f32 %v4677, %v4678
    %v4680 = vrot.slane %v4662, 4
    %v4681 = vadd.f32 %v4662, %v4680
    %v4682 = vrot.slane %v4681, 2
    %v4683 = vadd.f32 %v4681, %v4682
    %v4684 = vrot.slane %v4683, 1
    %v4685 = vadd.f32 %v4683, %v4684
    %v4686 = vrot.slane %v4663, 4
    %v4687 = vadd.f32 %v4663, %v4686
    %v4688 = vrot.slane %v4687, 2
    %v4689 = vadd.f32 %v4687, %v4688
    %v4690 = vrot.slane %v4689, 1
    %v4691 = vadd.f32 %v4689, %v4690
    %v4692 = vrot.slane %v4664, 4
    %v4693 = vadd.f32 %v4664, %v4692
    %v4694 = vrot.slane %v4693, 2
    %v4695 = vadd.f32 %v4693, %v4694
    %v4696 = vrot.slane %v4695, 1
    %v4697 = vadd.f32 %v4695, %v4696
    %v4698 = vrot.slane %v4665, 4
    %v4699 = vadd.f32 %v4665, %v4698
    %v4700 = vrot.slane %v4699, 2
    %v4701 = vadd.f32 %v4699, %v4700
    %v4702 = vrot.slane %v4701, 1
    %v4703 = vadd.f32 %v4701, %v4702
    %v4704 = vrot.slane %v4666, 4
    %v4705 = vadd.f32 %v4666, %v4704
    %v4706 = vrot.slane %v4705, 2
    %v4707 = vadd.f32 %v4705, %v4706
    %v4708 = vrot.slane %v4707, 1
    %v4709 = vadd.f32 %v4707, %v4708
    %v4710 = vrot.slane %v4667, 4
    %v4711 = vadd.f32 %v4667, %v4710
    %v4712 = vrot.slane %v4711, 2
    %v4713 = vadd.f32 %v4711, %v4712
    %v4714 = vrot.slane %v4713, 1
    %v4715 = vadd.f32 %v4713, %v4714
    %4717 = vset.pattern.permute.xlu0 0
    %4718 = vperm.xlu0 %4717, %v4659
    %v4719 = vpop.permute.xlu0 %4718
    %v4721 = vmul.f32 %v4719, %v4399
    %v4722 = vsub.f32 1.0, %v4659
    %4724 = vset.pattern.permute.xlu0 0
    %4725 = vperm.xlu0 %4724, %v4722
    %v4726 = vpop.permute.xlu0 %4725
    %v4736 = vsel %vm976, %v4679, %v4673
    %v4737 = vsel %vm978, %v4685, %v4736
    %v4738 = vsel %vm980, %v4691, %v4737
    %v4739 = vsel %vm982, %v4697, %v4738
    %v4740 = vsel %vm984, %v4703, %v4739
    %v4741 = vsel %vm986, %v4709, %v4740
    %v4742 = vsel %vm988, %v4715, %v4741
    %v4744 = vmul.f32 %v4726, %v4742
    %v4745 = vadd.f32 %v4721, %v4744
    %v4746 = vmax.f32 %v4745, 1e-08
    %s4747 = scalar_lea.vmem [#allocation28], 16
    %4748 = vst [vmem:[%s4747] sm:$0xff] %v4746
    %s4749 = scalar_lea.vmem %s0, 24
    %v4750 = vld [vmem:[%s4749] sm:$0xff]
    %v4751 = vpack.c.bf16 %v4750, %v4750
    %v4752 = vld [vmem:[#allocation10] sm:$0xf]
    %v4753 = vld [vmem:[#allocation10 + $0x4] sm:$0xf]
    %v4754 = vld [vmem:[#allocation10 + $0x8] sm:$0xf]
    %v4755 = vld [vmem:[#allocation10 + $0xc] sm:$0xf]
    %v4756 = vld [vmem:[#allocation15] sm:$0xf]
    %v4757 = vld [vmem:[#allocation15 + $0x4] sm:$0xf]
    %v4758 = vld [vmem:[#allocation15 + $0x8] sm:$0xf]
    %v4759 = vld [vmem:[#allocation15 + $0xc] sm:$0xf]
    %v4764 = vunpack.c.l.b16 %v4756
    %v4765 = vunpack.c.l.b16 %v4757
    %v4766 = vunpack.c.l.b16 %v4758
    %v4767 = vunpack.c.l.b16 %v4759
    %v4768 = vpack.c.b16 %v4765, %v4764
    %v4769 = vpack.c.b16 %v4767, %v4766
    %4772 = vmatprep.subr.bf16.mxu0 0
    %4773 = vmatpush1.bf16.msra.mxu0 0
    %4774 = vmatprep.subr.bf16.mxu0 0
    %4775 = vmatpush1.bf16.msra.mxu0 0
    %4776 = vmatprep.subr.bf16.mxu0 0
    %4777 = vmatpush1.bf16.msra.mxu0 0
    %4778 = vmatprep.subr.bf16.mxu0 0
    %4779 = vmatpush1.bf16.msra.mxu0 0
    %4780 = vmatprep.subr.bf16.mxu0 0
    %4781 = vmatpush1.bf16.msra.mxu0 0
    %4782 = vmatprep.subr.bf16.mxu0 0
    %4783 = vmatpush1.bf16.msra.mxu0 0
    %4784 = vmatprep.subr.bf16.mxu0 0
    %4785 = vmatpush1.bf16.msra.mxu0 %v4769
    %4786 = vmatprep.subr.bf16.mxu0 0
    %4787 = vmatpush1.bf16.msra.mxu0 %v4768
    %4788 = vmatprep.subr.bf16.mxu0 0
    %4789 = vmatpush2.bf16.msra.mxu0 0
    %4790 = vmatprep.subr.bf16.mxu0 0
    %4791 = vmatpush2.bf16.msra.mxu0 0
    %4792 = vmatprep.subr.bf16.mxu0 0
    %4793 = vmatpush2.bf16.msra.mxu0 0
    %4794 = vmatprep.subr.bf16.mxu0 0
    %4795 = vmatpush2.bf16.msra.mxu0 0
    %4796 = vmatprep.subr.bf16.mxu0 0
    %4797 = vmatpush2.bf16.msra.mxu0 0
    %4798 = vmatprep.subr.bf16.mxu0 0
    %4799 = vmatpush2.bf16.msra.mxu0 0
    %4800 = vmatprep.subr.bf16.mxu0 0
    %4801 = vmatpush2.bf16.msra.mxu0 0
    %4802 = vmatprep.subr.bf16.mxu0 0
    %4803 = vmatpush2.bf16.msra.mxu0 0
    %4804 = vmatprep.mubr.bf16.mxu0 0
    %4805 = vmatmul.mubr.bf16.gmra.mxu0 %v4341
    %v4806 = vpop.f32.mrf.mxu0
    %v4807 = vadd.f32 0.0, %v4806
    %v4808 = vpop.f32.mrf.mxu0
    %v4809 = vpop.f32.mrf.mxu0
    %v4810 = vpop.f32.mrf.mxu0
    %4811 = vdwg.mxu0
    %v4816 = vunpack.c.l.b16 %v4752
    %v4817 = vunpack.c.l.b16 %v4753
    %v4818 = vunpack.c.l.b16 %v4754
    %v4819 = vunpack.c.l.b16 %v4755
    %v4820 = vpack.c.b16 %v4817, %v4816
    %v4821 = vpack.c.b16 %v4819, %v4818
    %v4825 = vsel %vm340, %v4751, 0
    %4827 = vmatprep.subr.bf16.mxu0 0
    %4828 = vmatpush1.bf16.msra.mxu0 0
    %4829 = vmatprep.subr.bf16.mxu0 0
    %4830 = vmatpush1.bf16.msra.mxu0 0
    %4831 = vmatprep.subr.bf16.mxu0 0
    %4832 = vmatpush1.bf16.msra.mxu0 0
    %4833 = vmatprep.subr.bf16.mxu0 0
    %4834 = vmatpush1.bf16.msra.mxu0 0
    %4835 = vmatprep.subr.bf16.mxu0 0
    %4836 = vmatpush1.bf16.msra.mxu0 0
    %4837 = vmatprep.subr.bf16.mxu0 0
    %4838 = vmatpush1.bf16.msra.mxu0 0
    %4839 = vmatprep.subr.bf16.mxu0 0
    %4840 = vmatpush1.bf16.msra.mxu0 %v4821
    %4841 = vmatprep.subr.bf16.mxu0 0
    %4842 = vmatpush1.bf16.msra.mxu0 %v4820
    %4843 = vmatprep.subr.bf16.mxu0 0
    %4844 = vmatpush2.bf16.msra.mxu0 0
    %4845 = vmatprep.subr.bf16.mxu0 0
    %4846 = vmatpush2.bf16.msra.mxu0 0
    %4847 = vmatprep.subr.bf16.mxu0 0
    %4848 = vmatpush2.bf16.msra.mxu0 0
    %4849 = vmatprep.subr.bf16.mxu0 0
    %4850 = vmatpush2.bf16.msra.mxu0 0
    %4851 = vmatprep.subr.bf16.mxu0 0
    %4852 = vmatpush2.bf16.msra.mxu0 0
    %4853 = vmatprep.subr.bf16.mxu0 0
    %4854 = vmatpush2.bf16.msra.mxu0 0
    %4855 = vmatprep.subr.bf16.mxu0 0
    %4856 = vmatpush2.bf16.msra.mxu0 0
    %4857 = vmatprep.subr.bf16.mxu0 0
    %4858 = vmatpush2.bf16.msra.mxu0 0
    %4859 = vmatprep.mubr.bf16.mxu0 0
    %4860 = vmatmul.mubr.bf16.gmra.mxu0 %v4825
    %v4861 = vpop.f32.mrf.mxu0
    %v4862 = vadd.f32 %v4807, %v4861
    %v4863 = vpop.f32.mrf.mxu0
    %v4864 = vpop.f32.mrf.mxu0
    %v4865 = vpop.f32.mrf.mxu0
    %4866 = vdwg.mxu0
    %v4867 = vld [vmem:[#allocation19] sm:$0x1]
    %v4869 = vlaneseq
    %v4870 = vshrl.u32 %v4869, 7
    %v4871 = vsub.s32 0, %v4870
    %v4872 = vrot.slane %v4867, %v4871
    %v4874 = vadd.f32 %v4862, %v4872
    %v4875 = vxor.u32 %v4874, 2147483648
    %v4876 = vmul.f32 %v4875, 1.442695
    %v4877 = vpow.pop %v4876
    %v4878 = vadd.f32 %v4877, 1.0
    %v4879 = vrcp.pop %v4878
    %v4880 = vmul.f32 1.0, %v4879
    %v4881 = vld [vmem:[#allocation12] sm:$0xf]
    %v4882 = vld [vmem:[#allocation12 + $0x4] sm:$0xf]
    %v4883 = vld [vmem:[#allocation12 + $0x8] sm:$0xf]
    %v4884 = vld [vmem:[#allocation12 + $0xc] sm:$0xf]
    %v4885 = vld [vmem:[#allocation16] sm:$0xf]
    %v4886 = vld [vmem:[#allocation16 + $0x4] sm:$0xf]
    %v4887 = vld [vmem:[#allocation16 + $0x8] sm:$0xf]
    %v4888 = vld [vmem:[#allocation16 + $0xc] sm:$0xf]
    %v4893 = vunpack.c.l.b16 %v4885
    %v4894 = vunpack.c.l.b16 %v4886
    %v4895 = vunpack.c.l.b16 %v4887
    %v4896 = vunpack.c.l.b16 %v4888
    %v4897 = vpack.c.b16 %v4894, %v4893
    %v4898 = vpack.c.b16 %v4896, %v4895
    %4901 = vmatprep.subr.bf16.mxu0 0
    %4902 = vmatpush1.bf16.msra.mxu0 0
    %4903 = vmatprep.subr.bf16.mxu0 0
    %4904 = vmatpush1.bf16.msra.mxu0 0
    %4905 = vmatprep.subr.bf16.mxu0 0
    %4906 = vmatpush1.bf16.msra.mxu0 0
    %4907 = vmatprep.subr.bf16.mxu0 0
    %4908 = vmatpush1.bf16.msra.mxu0 0
    %4909 = vmatprep.subr.bf16.mxu0 0
    %4910 = vmatpush1.bf16.msra.mxu0 0
    %4911 = vmatprep.subr.bf16.mxu0 0
    %4912 = vmatpush1.bf16.msra.mxu0 0
    %4913 = vmatprep.subr.bf16.mxu0 0
    %4914 = vmatpush1.bf16.msra.mxu0 %v4898
    %4915 = vmatprep.subr.bf16.mxu0 0
    %4916 = vmatpush1.bf16.msra.mxu0 %v4897
    %4917 = vmatprep.subr.bf16.mxu0 0
    %4918 = vmatpush2.bf16.msra.mxu0 0
    %4919 = vmatprep.subr.bf16.mxu0 0
    %4920 = vmatpush2.bf16.msra.mxu0 0
    %4921 = vmatprep.subr.bf16.mxu0 0
    %4922 = vmatpush2.bf16.msra.mxu0 0
    %4923 = vmatprep.subr.bf16.mxu0 0
    %4924 = vmatpush2.bf16.msra.mxu0 0
    %4925 = vmatprep.subr.bf16.mxu0 0
    %4926 = vmatpush2.bf16.msra.mxu0 0
    %4927 = vmatprep.subr.bf16.mxu0 0
    %4928 = vmatpush2.bf16.msra.mxu0 0
    %4929 = vmatprep.subr.bf16.mxu0 0
    %4930 = vmatpush2.bf16.msra.mxu0 0
    %4931 = vmatprep.subr.bf16.mxu0 0
    %4932 = vmatpush2.bf16.msra.mxu0 0
    %4933 = vmatprep.mubr.bf16.mxu0 0
    %4934 = vmatmul.mubr.bf16.gmra.mxu0 %v4341
    %v4935 = vpop.f32.mrf.mxu0
    %v4936 = vadd.f32 0.0, %v4935
    %v4937 = vpop.f32.mrf.mxu0
    %v4938 = vpop.f32.mrf.mxu0
    %v4939 = vpop.f32.mrf.mxu0
    %4940 = vdwg.mxu0
    %v4945 = vunpack.c.l.b16 %v4881
    %v4946 = vunpack.c.l.b16 %v4882
    %v4947 = vunpack.c.l.b16 %v4883
    %v4948 = vunpack.c.l.b16 %v4884
    %v4949 = vpack.c.b16 %v4946, %v4945
    %v4950 = vpack.c.b16 %v4948, %v4947
    %4953 = vmatprep.subr.bf16.mxu0 0
    %4954 = vmatpush1.bf16.msra.mxu0 0
    %4955 = vmatprep.subr.bf16.mxu0 0
    %4956 = vmatpush1.bf16.msra.mxu0 0
    %4957 = vmatprep.subr.bf16.mxu0 0
    %4958 = vmatpush1.bf16.msra.mxu0 0
    %4959 = vmatprep.subr.bf16.mxu0 0
    %4960 = vmatpush1.bf16.msra.mxu0 0
    %4961 = vmatprep.subr.bf16.mxu0 0
    %4962 = vmatpush1.bf16.msra.mxu0 0
    %4963 = vmatprep.subr.bf16.mxu0 0
    %4964 = vmatpush1.bf16.msra.mxu0 0
    %4965 = vmatprep.subr.bf16.mxu0 0
    %4966 = vmatpush1.bf16.msra.mxu0 %v4950
    %4967 = vmatprep.subr.bf16.mxu0 0
    %4968 = vmatpush1.bf16.msra.mxu0 %v4949
    %4969 = vmatprep.subr.bf16.mxu0 0
    %4970 = vmatpush2.bf16.msra.mxu0 0
    %4971 = vmatprep.subr.bf16.mxu0 0
    %4972 = vmatpush2.bf16.msra.mxu0 0
    %4973 = vmatprep.subr.bf16.mxu0 0
    %4974 = vmatpush2.bf16.msra.mxu0 0
    %4975 = vmatprep.subr.bf16.mxu0 0
    %4976 = vmatpush2.bf16.msra.mxu0 0
    %4977 = vmatprep.subr.bf16.mxu0 0
    %4978 = vmatpush2.bf16.msra.mxu0 0
    %4979 = vmatprep.subr.bf16.mxu0 0
    %4980 = vmatpush2.bf16.msra.mxu0 0
    %4981 = vmatprep.subr.bf16.mxu0 0
    %4982 = vmatpush2.bf16.msra.mxu0 0
    %4983 = vmatprep.subr.bf16.mxu0 0
    %4984 = vmatpush2.bf16.msra.mxu0 0
    %4985 = vmatprep.mubr.bf16.mxu0 0
    %4986 = vmatmul.mubr.bf16.gmra.mxu0 %v4825
    %v4987 = vpop.f32.mrf.mxu0
    %v4988 = vadd.f32 %v4936, %v4987
    %v4989 = vpop.f32.mrf.mxu0
    %v4990 = vpop.f32.mrf.mxu0
    %v4991 = vpop.f32.mrf.mxu0
    %4992 = vdwg.mxu0
    %v4993 = vld [vmem:[#allocation21] sm:$0x1]
    %v4995 = vlaneseq
    %v4996 = vshrl.u32 %v4995, 7
    %v4997 = vsub.s32 0, %v4996
    %v4998 = vrot.slane %v4993, %v4997
    %v5000 = vadd.f32 %v4988, %v4998
    %v5001 = vxor.u32 %v5000, 2147483648
    %v5002 = vmul.f32 %v5001, 1.442695
    %v5003 = vpow.pop %v5002
    %v5004 = vadd.f32 %v5003, 1.0
    %v5005 = vrcp.pop %v5004
    %v5006 = vmul.f32 1.0, %v5005
    %v5007 = vld [vmem:[#allocation13] sm:$0xf]
    %v5008 = vld [vmem:[#allocation13 + $0x4] sm:$0xf]
    %v5009 = vld [vmem:[#allocation13 + $0x8] sm:$0xf]
    %v5010 = vld [vmem:[#allocation13 + $0xc] sm:$0xf]
    %v5011 = vld [vmem:[#allocation22] sm:$0x1]
    %v5013 = vlaneseq
    %v5014 = vshrl.u32 %v5013, 7
    %v5015 = vsub.s32 0, %v5014
    %v5016 = vrot.slane %v5011, %v5015
    %v5022 = vunpack.c.l.b16 %v5007
    %v5023 = vunpack.c.l.b16 %v5008
    %v5024 = vunpack.c.l.b16 %v5009
    %v5025 = vunpack.c.l.b16 %v5010
    %v5026 = vpack.c.b16 %v5023, %v5022
    %v5027 = vpack.c.b16 %v5025, %v5024
    %5030 = vmatprep.subr.bf16.mxu0 0
    %5031 = vmatpush1.bf16.msra.mxu0 0
    %5032 = vmatprep.subr.bf16.mxu0 0
    %5033 = vmatpush1.bf16.msra.mxu0 0
    %5034 = vmatprep.subr.bf16.mxu0 0
    %5035 = vmatpush1.bf16.msra.mxu0 0
    %5036 = vmatprep.subr.bf16.mxu0 0
    %5037 = vmatpush1.bf16.msra.mxu0 0
    %5038 = vmatprep.subr.bf16.mxu0 0
    %5039 = vmatpush1.bf16.msra.mxu0 0
    %5040 = vmatprep.subr.bf16.mxu0 0
    %5041 = vmatpush1.bf16.msra.mxu0 0
    %5042 = vmatprep.subr.bf16.mxu0 0
    %5043 = vmatpush1.bf16.msra.mxu0 %v5027
    %5044 = vmatprep.subr.bf16.mxu0 0
    %5045 = vmatpush1.bf16.msra.mxu0 %v5026
    %5046 = vmatprep.subr.bf16.mxu0 0
    %5047 = vmatpush2.bf16.msra.mxu0 0
    %5048 = vmatprep.subr.bf16.mxu0 0
    %5049 = vmatpush2.bf16.msra.mxu0 0
    %5050 = vmatprep.subr.bf16.mxu0 0
    %5051 = vmatpush2.bf16.msra.mxu0 0
    %5052 = vmatprep.subr.bf16.mxu0 0
    %5053 = vmatpush2.bf16.msra.mxu0 0
    %5054 = vmatprep.subr.bf16.mxu0 0
    %5055 = vmatpush2.bf16.msra.mxu0 0
    %5056 = vmatprep.subr.bf16.mxu0 0
    %5057 = vmatpush2.bf16.msra.mxu0 0
    %5058 = vmatprep.subr.bf16.mxu0 0
    %5059 = vmatpush2.bf16.msra.mxu0 0
    %5060 = vmatprep.subr.bf16.mxu0 0
    %5061 = vmatpush2.bf16.msra.mxu0 0
    %5062 = vmatprep.mubr.bf16.mxu0 0
    %5063 = vmatmul.mubr.bf16.gmra.mxu0 %v4825
    %v5064 = vpop.f32.mrf.mxu0
    %v5065 = vadd.f32 %v5016, %v5064
    %v5066 = vpop.f32.mrf.mxu0
    %v5067 = vpop.f32.mrf.mxu0
    %v5068 = vpop.f32.mrf.mxu0
    %5069 = vdwg.mxu0
    %v5070 = vld [vmem:[#allocation18] sm:$0xf]
    %v5071 = vld [vmem:[#allocation18 + $0x4] sm:$0xf]
    %v5072 = vld [vmem:[#allocation18 + $0x8] sm:$0xf]
    %v5073 = vld [vmem:[#allocation18 + $0xc] sm:$0xf]
    %v5074 = vld [vmem:[#allocation24] sm:$0x1]
    %v5076 = vlaneseq
    %v5077 = vshrl.u32 %v5076, 7
    %v5078 = vsub.s32 0, %v5077
    %v5079 = vrot.slane %v5074, %v5078
    %v5085 = vunpack.c.l.b16 %v5070
    %v5086 = vunpack.c.l.b16 %v5071
    %v5087 = vunpack.c.l.b16 %v5072
    %v5088 = vunpack.c.l.b16 %v5073
    %v5089 = vpack.c.b16 %v5086, %v5085
    %v5090 = vpack.c.b16 %v5088, %v5087
    %5093 = vmatprep.subr.bf16.mxu0 0
    %5094 = vmatpush1.bf16.msra.mxu0 0
    %5095 = vmatprep.subr.bf16.mxu0 0
    %5096 = vmatpush1.bf16.msra.mxu0 0
    %5097 = vmatprep.subr.bf16.mxu0 0
    %5098 = vmatpush1.bf16.msra.mxu0 0
    %5099 = vmatprep.subr.bf16.mxu0 0
    %5100 = vmatpush1.bf16.msra.mxu0 0
    %5101 = vmatprep.subr.bf16.mxu0 0
    %5102 = vmatpush1.bf16.msra.mxu0 0
    %5103 = vmatprep.subr.bf16.mxu0 0
    %5104 = vmatpush1.bf16.msra.mxu0 0
    %5105 = vmatprep.subr.bf16.mxu0 0
    %5106 = vmatpush1.bf16.msra.mxu0 %v5090
    %5107 = vmatprep.subr.bf16.mxu0 0
    %5108 = vmatpush1.bf16.msra.mxu0 %v5089
    %5109 = vmatprep.subr.bf16.mxu0 0
    %5110 = vmatpush2.bf16.msra.mxu0 0
    %5111 = vmatprep.subr.bf16.mxu0 0
    %5112 = vmatpush2.bf16.msra.mxu0 0
    %5113 = vmatprep.subr.bf16.mxu0 0
    %5114 = vmatpush2.bf16.msra.mxu0 0
    %5115 = vmatprep.subr.bf16.mxu0 0
    %5116 = vmatpush2.bf16.msra.mxu0 0
    %5117 = vmatprep.subr.bf16.mxu0 0
    %5118 = vmatpush2.bf16.msra.mxu0 0
    %5119 = vmatprep.subr.bf16.mxu0 0
    %5120 = vmatpush2.bf16.msra.mxu0 0
    %5121 = vmatprep.subr.bf16.mxu0 0
    %5122 = vmatpush2.bf16.msra.mxu0 0
    %5123 = vmatprep.subr.bf16.mxu0 0
    %5124 = vmatpush2.bf16.msra.mxu0 0
    %5125 = vmatprep.mubr.bf16.mxu0 0
    %5126 = vmatmul.mubr.bf16.gmra.mxu0 %v4341
    %v5127 = vpop.f32.mrf.mxu0
    %v5128 = vadd.f32 %v5079, %v5127
    %v5129 = vpop.f32.mrf.mxu0
    %v5130 = vpop.f32.mrf.mxu0
    %v5131 = vpop.f32.mrf.mxu0
    %5132 = vdwg.mxu0
    %v5133 = vmul.f32 %v4880, %v5128
    %v5134 = vadd.f32 %v5065, %v5133
    %v5135 = vtanh.pop %v5134
    %v5136 = vsub.f32 1.0, %v5006
    %v5137 = vmul.f32 %v5136, %v5135
    %v5138 = vmul.f32 %v5006, %v3667
    %v5139 = vadd.f32 %v5137, %v5138
    %v5140 = vld [vmem:[%s15] sm:$0xff]
    %v5141 = vld [vmem:[%s15 + $0x8] sm:$0xff]
    %v5142 = vld [vmem:[%s15 + $0x10] sm:$0xff]
    %v5143 = vld [vmem:[%s15 + $0x18] sm:$0xff]
    %5144 = vmatprep.subr.mxu0 0.0
    %5145 = vmatpush1.msra.mxu0 0.0
    %5146 = vmatprep.subr.mxu0 0.0
    %5147 = vmatpush1.msra.mxu0 0.0
    %5148 = vmatprep.subr.mxu0 0.0
    %5149 = vmatpush1.msra.mxu0 0.0
    %5150 = vmatprep.subr.mxu0 0.0
    %5151 = vmatpush1.msra.mxu0 0.0
    %5152 = vmatprep.subr.mxu0 0.0
    %5153 = vmatpush1.msra.mxu0 0.0
    %5154 = vmatprep.subr.mxu0 0.0
    %5155 = vmatpush1.msra.mxu0 0.0
    %5156 = vmatprep.subr.mxu0 0.0
    %5157 = vmatpush1.msra.mxu0 0.0
    %5158 = vmatprep.subr.mxu0 0.0
    %5159 = vmatpush1.msra.mxu0 0.0
    %5160 = vmatprep.subr.mxu0 0.0
    %5161 = vmatpush1.msra.mxu0 0.0
    %5162 = vmatprep.subr.mxu0 0.0
    %5163 = vmatpush1.msra.mxu0 0.0
    %5164 = vmatprep.subr.mxu0 0.0
    %5165 = vmatpush1.msra.mxu0 0.0
    %5166 = vmatprep.subr.mxu0 0.0
    %5167 = vmatpush1.msra.mxu0 0.0
    %5168 = vmatprep.subr.mxu0 0.0
    %5169 = vmatpush1.msra.mxu0 %v5143
    %5170 = vmatprep.subr.mxu0 0.0
    %5171 = vmatpush1.msra.mxu0 %v5142
    %5172 = vmatprep.subr.mxu0 0.0
    %5173 = vmatpush1.msra.mxu0 %v5141
    %5174 = vmatprep.subr.mxu0 0.0
    %5175 = vmatpush1.msra.mxu0 %v5140
    %5176 = vmatprep.subr.mxu0 0.0
    %5177 = vmatpush2.msra.mxu0 0.0
    %5178 = vmatprep.subr.mxu0 0.0
    %5179 = vmatpush2.msra.mxu0 0.0
    %5180 = vmatprep.subr.mxu0 0.0
    %5181 = vmatpush2.msra.mxu0 0.0
    %5182 = vmatprep.subr.mxu0 0.0
    %5183 = vmatpush2.msra.mxu0 0.0
    %5184 = vmatprep.subr.mxu0 0.0
    %5185 = vmatpush2.msra.mxu0 0.0
    %5186 = vmatprep.subr.mxu0 0.0
    %5187 = vmatpush2.msra.mxu0 0.0
    %5188 = vmatprep.subr.mxu0 0.0
    %5189 = vmatpush2.msra.mxu0 0.0
    %5190 = vmatprep.subr.mxu0 0.0
    %5191 = vmatpush2.msra.mxu0 0.0
    %5192 = vmatprep.subr.mxu0 0.0
    %5193 = vmatpush2.msra.mxu0 0.0
    %5194 = vmatprep.subr.mxu0 0.0
    %5195 = vmatpush2.msra.mxu0 0.0
    %5196 = vmatprep.subr.mxu0 0.0
    %5197 = vmatpush2.msra.mxu0 0.0
    %5198 = vmatprep.subr.mxu0 0.0
    %5199 = vmatpush2.msra.mxu0 0.0
    %5200 = vmatprep.subr.mxu0 0.0
    %5201 = vmatpush2.msra.mxu0 0.0
    %5202 = vmatprep.subr.mxu0 0.0
    %5203 = vmatpush2.msra.mxu0 0.0
    %5204 = vmatprep.subr.mxu0 0.0
    %5205 = vmatpush2.msra.mxu0 0.0
    %5206 = vmatprep.subr.mxu0 0.0
    %5207 = vmatpush2.msra.mxu0 0.0
    %5208 = vmatprep.mubr.f32.mxu0 0.0
    %5209 = vmatmul.mubr.f32.gmra.mxu0 %v4409
    %v5210 = vpop.f32.mrf.mxu0
    %v5211 = vadd.f32 0.0, %v5210
    %v5212 = vpop.f32.mrf.mxu0
    %5213 = vdwg.mxu0
    %v5215 = vcombine.high %v5211, %v5211
    %v5217 = vunpack.c.l.s4 1966171168
    %v5218 = vunpack.c.0.s8 %v5217
    %v5219 = vlaneseq
    %v5220 = vshrl.u32 %v5219, 7
    %v5221 = vsub.s32 %v5218, %v5220
    %v5222 = vrot.slane %v5211, %v5221
    %v5224 = vunpack.c.l.s4 1966171168
    %v5225 = vunpack.c.0.s8 %v5224
    %v5226 = vlaneseq
    %v5227 = vshrl.u32 %v5226, 7
    %v5228 = vsub.s32 %v5225, %v5227
    %v5229 = vrot.slane %v5215, %v5228
    %v5230 = vcombine.high %v5222, %v5222
    %v5231 = vcombine.high %v5229, %v5229
    %v5233 = vunpack.c.l.s4 1966171168
    %v5234 = vunpack.c.0.s8 %v5233
    %v5235 = vlaneseq
    %v5236 = vshrl.u32 %v5235, 7
    %v5237 = vsub.s32 %v5234, %v5236
    %v5238 = vrot.slane %v5222, %v5237
    %v5240 = vunpack.c.l.s4 1966171168
    %v5241 = vunpack.c.0.s8 %v5240
    %v5242 = vlaneseq
    %v5243 = vshrl.u32 %v5242, 7
    %v5244 = vsub.s32 %v5241, %v5243
    %v5245 = vrot.slane %v5229, %v5244
    %v5247 = vunpack.c.l.s4 1966171168
    %v5248 = vunpack.c.0.s8 %v5247
    %v5249 = vlaneseq
    %v5250 = vshrl.u32 %v5249, 7
    %v5251 = vsub.s32 %v5248, %v5250
    %v5252 = vrot.slane %v5230, %v5251
    %v5254 = vunpack.c.l.s4 1966171168
    %v5255 = vunpack.c.0.s8 %v5254
    %v5256 = vlaneseq
    %v5257 = vshrl.u32 %v5256, 7
    %v5258 = vsub.s32 %v5255, %v5257
    %v5259 = vrot.slane %v5231, %v5258
    %v5260 = vcombine.high %v5238, %v5238
    %v5261 = vcombine.high %v5245, %v5245
    %v5262 = vcombine.high %v5252, %v5252
    %v5263 = vcombine.high %v5259, %v5259
    %v5264 = vlaneseq
    %v5265 = vshrl.u32 %v5264, 7
    %v5266 = vsub.s32 0, %v5265
    %v5267 = vrot.slane %v5238, %v5266
    %v5268 = vlaneseq
    %v5269 = vshrl.u32 %v5268, 7
    %v5270 = vsub.s32 0, %v5269
    %v5271 = vrot.slane %v5252, %v5270
    %v5272 = vlaneseq
    %v5273 = vshrl.u32 %v5272, 7
    %v5274 = vsub.s32 0, %v5273
    %v5275 = vrot.slane %v5260, %v5274
    %v5276 = vlaneseq
    %v5277 = vshrl.u32 %v5276, 7
    %v5278 = vsub.s32 0, %v5277
    %v5279 = vrot.slane %v5262, %v5278
    %v5280 = vlaneseq
    %v5281 = vshrl.u32 %v5280, 7
    %v5282 = vsub.s32 0, %v5281
    %v5283 = vrot.slane %v5245, %v5282
    %v5284 = vlaneseq
    %v5285 = vshrl.u32 %v5284, 7
    %v5286 = vsub.s32 0, %v5285
    %v5287 = vrot.slane %v5259, %v5286
    %v5288 = vlaneseq
    %v5289 = vshrl.u32 %v5288, 7
    %v5290 = vsub.s32 0, %v5289
    %v5291 = vrot.slane %v5261, %v5290
    %v5292 = vlaneseq
    %v5293 = vshrl.u32 %v5292, 7
    %v5294 = vsub.s32 0, %v5293
    %v5295 = vrot.slane %v5263, %v5294
    %v5304 = vadd.f32 %v292, %v5267
    %v5305 = vadd.f32 %v293, %v5271
    %v5306 = vadd.f32 %v294, %v5275
    %v5307 = vadd.f32 %v295, %v5279
    %v5308 = vadd.f32 %v296, %v5283
    %v5309 = vadd.f32 %v297, %v5287
    %v5310 = vadd.f32 %v298, %v5291
    %v5311 = vadd.f32 %v299, %v5295
    %v5312 = vtanh.pop %v5304
    %v5313 = vtanh.pop %v5305
    %v5314 = vtanh.pop %v5306
    %v5315 = vtanh.pop %v5307
    %v5316 = vtanh.pop %v5308
    %v5317 = vtanh.pop %v5309
    %v5318 = vtanh.pop %v5310
    %v5319 = vtanh.pop %v5311
    %v5320 = vld [vmem:[%s16] sm:$0x1]
    %v5322 = vlaneseq
    %v5323 = vshrl.u32 %v5322, 7
    %v5324 = vsub.s32 0, %v5323
    %v5325 = vrot.slane %v5320, %v5324
    %v5327 = vmul.f32 %v5325, %v5312
    %v5328 = vmul.f32 %v5325, %v5313
    %v5329 = vmul.f32 %v5325, %v5314
    %v5330 = vmul.f32 %v5325, %v5315
    %v5331 = vmul.f32 %v5325, %v5316
    %v5332 = vmul.f32 %v5325, %v5317
    %v5333 = vmul.f32 %v5325, %v5318
    %v5334 = vmul.f32 %v5325, %v5319
    %v5335 = vsel %vm340, %v5327, 0.0
    %5336 = vadd.xlane.f32.xlu0 %v5335
    %v5337 = vpop.xlane.xlu0 %5336
    %v5338 = vsel %vm340, %v5328, 0.0
    %5339 = vadd.xlane.f32.xlu0 %v5338
    %v5340 = vpop.xlane.xlu0 %5339
    %v5341 = vsel %vm340, %v5329, 0.0
    %5342 = vadd.xlane.f32.xlu0 %v5341
    %v5343 = vpop.xlane.xlu0 %5342
    %v5344 = vsel %vm340, %v5330, 0.0
    %5345 = vadd.xlane.f32.xlu0 %v5344
    %v5346 = vpop.xlane.xlu0 %5345
    %v5347 = vsel %vm340, %v5331, 0.0
    %5348 = vadd.xlane.f32.xlu0 %v5347
    %v5349 = vpop.xlane.xlu0 %5348
    %v5350 = vsel %vm340, %v5332, 0.0
    %5351 = vadd.xlane.f32.xlu0 %v5350
    %v5352 = vpop.xlane.xlu0 %5351
    %v5353 = vsel %vm340, %v5333, 0.0
    %5354 = vadd.xlane.f32.xlu0 %v5353
    %v5355 = vpop.xlane.xlu0 %5354
    %v5356 = vsel %vm340, %v5334, 0.0
    %5357 = vadd.xlane.f32.xlu0 %v5356
    %v5358 = vpop.xlane.xlu0 %5357
    %v5367 = vlaneseq
    %v5368 = vshrl.u32 %v5367, 7
    %v5369 = vsub.s32 %v943, %v5368
    %v5370 = vrot.slane %v5337, %v5369
    %v5371 = vlaneseq
    %v5372 = vshrl.u32 %v5371, 7
    %v5373 = vsub.s32 %v943, %v5372
    %v5374 = vrot.slane %v5340, %v5373
    %v5375 = vlaneseq
    %v5376 = vshrl.u32 %v5375, 7
    %v5377 = vsub.s32 %v943, %v5376
    %v5378 = vrot.slane %v5343, %v5377
    %v5379 = vlaneseq
    %v5380 = vshrl.u32 %v5379, 7
    %v5381 = vsub.s32 %v943, %v5380
    %v5382 = vrot.slane %v5346, %v5381
    %v5383 = vlaneseq
    %v5384 = vshrl.u32 %v5383, 7
    %v5385 = vsub.s32 %v943, %v5384
    %v5386 = vrot.slane %v5349, %v5385
    %v5387 = vlaneseq
    %v5388 = vshrl.u32 %v5387, 7
    %v5389 = vsub.s32 %v943, %v5388
    %v5390 = vrot.slane %v5352, %v5389
    %v5391 = vlaneseq
    %v5392 = vshrl.u32 %v5391, 7
    %v5393 = vsub.s32 %v943, %v5392
    %v5394 = vrot.slane %v5355, %v5393
    %v5395 = vlaneseq
    %v5396 = vshrl.u32 %v5395, 7
    %v5397 = vsub.s32 %v943, %v5396
    %v5398 = vrot.slane %v5358, %v5397
    %v5399 = vsel %vm976, %v5374, %v5370
    %v5400 = vsel %vm978, %v5378, %v5399
    %v5401 = vsel %vm980, %v5382, %v5400
    %v5402 = vsel %vm982, %v5386, %v5401
    %v5403 = vsel %vm984, %v5390, %v5402
    %v5404 = vsel %vm986, %v5394, %v5403
    %v5405 = vsel %vm988, %v5398, %v5404
    %v5407 = vsel %vm991, %v5405, -inf
    %5408 = vmax.xlane.f32.xlu0 %v5407
    %v5409 = vpop.xlane.xlu0 %5408
    %v5411 = vlaneseq
    %v5412 = vshrl.u32 %v5411, 7
    %v5413 = vsub.s32 0, %v5412
    %v5414 = vrot.slane %v5409, %v5413
    %v5415 = vlaneseq
    %v5416 = vshrl.u32 %v5415, 7
    %v5417 = vsub.s32 1, %v5416
    %v5418 = vrot.slane %v5409, %v5417
    %v5419 = vlaneseq
    %v5420 = vshrl.u32 %v5419, 7
    %v5421 = vsub.s32 2, %v5420
    %v5422 = vrot.slane %v5409, %v5421
    %v5423 = vlaneseq
    %v5424 = vshrl.u32 %v5423, 7
    %v5425 = vsub.s32 3, %v5424
    %v5426 = vrot.slane %v5409, %v5425
    %v5427 = vlaneseq
    %v5428 = vshrl.u32 %v5427, 7
    %v5429 = vsub.s32 4, %v5428
    %v5430 = vrot.slane %v5409, %v5429
    %v5431 = vlaneseq
    %v5432 = vshrl.u32 %v5431, 7
    %v5433 = vsub.s32 5, %v5432
    %v5434 = vrot.slane %v5409, %v5433
    %v5435 = vlaneseq
    %v5436 = vshrl.u32 %v5435, 7
    %v5437 = vsub.s32 6, %v5436
    %v5438 = vrot.slane %v5409, %v5437
    %v5439 = vlaneseq
    %v5440 = vshrl.u32 %v5439, 7
    %v5441 = vsub.s32 7, %v5440
    %v5442 = vrot.slane %v5409, %v5441
    %v5451 = vsub.f32 %v5337, %v5414
    %v5452 = vsub.f32 %v5340, %v5418
    %v5453 = vsub.f32 %v5343, %v5422
    %v5454 = vsub.f32 %v5346, %v5426
    %v5455 = vsub.f32 %v5349, %v5430
    %v5456 = vsub.f32 %v5352, %v5434
    %v5457 = vsub.f32 %v5355, %v5438
    %v5458 = vsub.f32 %v5358, %v5442
    %v5459 = vmul.f32 %v5451, 1.442695
    %v5460 = vpow.pop %v5459
    %v5461 = vmul.f32 %v5452, 1.442695
    %v5462 = vpow.pop %v5461
    %v5463 = vmul.f32 %v5453, 1.442695
    %v5464 = vpow.pop %v5463
    %v5465 = vmul.f32 %v5454, 1.442695
    %v5466 = vpow.pop %v5465
    %v5467 = vmul.f32 %v5455, 1.442695
    %v5468 = vpow.pop %v5467
    %v5469 = vmul.f32 %v5456, 1.442695
    %v5470 = vpow.pop %v5469
    %v5471 = vmul.f32 %v5457, 1.442695
    %v5472 = vpow.pop %v5471
    %v5473 = vmul.f32 %v5458, 1.442695
    %v5474 = vpow.pop %v5473
    %5483 = vset.pattern.permute.xlu0 0
    %5484 = vperm.xlu0 %5483, %v5460
    %v5485 = vpop.permute.xlu0 %5484
    %5486 = vset.pattern.permute.xlu0 0
    %5487 = vperm.xlu0 %5486, %v5462
    %v5488 = vpop.permute.xlu0 %5487
    %5489 = vset.pattern.permute.xlu0 0
    %5490 = vperm.xlu0 %5489, %v5464
    %v5491 = vpop.permute.xlu0 %5490
    %5492 = vset.pattern.permute.xlu0 0
    %5493 = vperm.xlu0 %5492, %v5466
    %v5494 = vpop.permute.xlu0 %5493
    %5495 = vset.pattern.permute.xlu0 0
    %5496 = vperm.xlu0 %5495, %v5468
    %v5497 = vpop.permute.xlu0 %5496
    %5498 = vset.pattern.permute.xlu0 0
    %5499 = vperm.xlu0 %5498, %v5470
    %v5500 = vpop.permute.xlu0 %5499
    %5501 = vset.pattern.permute.xlu0 0
    %5502 = vperm.xlu0 %5501, %v5472
    %v5503 = vpop.permute.xlu0 %5502
    %5504 = vset.pattern.permute.xlu0 0
    %5505 = vperm.xlu0 %5504, %v5474
    %v5506 = vpop.permute.xlu0 %5505
    %v5507 = vlaneseq
    %v5508 = vshrl.u32 %v5507, 7
    %v5509 = vsub.s32 %v943, %v5508
    %v5510 = vrot.slane %v5485, %v5509
    %v5511 = vlaneseq
    %v5512 = vshrl.u32 %v5511, 7
    %v5513 = vsub.s32 %v943, %v5512
    %v5514 = vrot.slane %v5488, %v5513
    %v5515 = vlaneseq
    %v5516 = vshrl.u32 %v5515, 7
    %v5517 = vsub.s32 %v943, %v5516
    %v5518 = vrot.slane %v5491, %v5517
    %v5519 = vlaneseq
    %v5520 = vshrl.u32 %v5519, 7
    %v5521 = vsub.s32 %v943, %v5520
    %v5522 = vrot.slane %v5494, %v5521
    %v5523 = vlaneseq
    %v5524 = vshrl.u32 %v5523, 7
    %v5525 = vsub.s32 %v943, %v5524
    %v5526 = vrot.slane %v5497, %v5525
    %v5527 = vlaneseq
    %v5528 = vshrl.u32 %v5527, 7
    %v5529 = vsub.s32 %v943, %v5528
    %v5530 = vrot.slane %v5500, %v5529
    %v5531 = vlaneseq
    %v5532 = vshrl.u32 %v5531, 7
    %v5533 = vsub.s32 %v943, %v5532
    %v5534 = vrot.slane %v5503, %v5533
    %v5535 = vlaneseq
    %v5536 = vshrl.u32 %v5535, 7
    %v5537 = vsub.s32 %v943, %v5536
    %v5538 = vrot.slane %v5506, %v5537
    %v5539 = vsel %vm976, %v5514, %v5510
    %v5540 = vsel %vm978, %v5518, %v5539
    %v5541 = vsel %vm980, %v5522, %v5540
    %v5542 = vsel %vm982, %v5526, %v5541
    %v5543 = vsel %vm984, %v5530, %v5542
    %v5544 = vsel %vm986, %v5534, %v5543
    %v5545 = vsel %vm988, %v5538, %v5544
    %v5547 = vsel %vm991, %v5545, 0.0
    %5548 = vadd.xlane.f32.xlu0 %v5547
    %v5549 = vpop.xlane.xlu0 %5548
    %v5550 = vrcp.pop %v5549
    %v5552 = vlaneseq
    %v5553 = vshrl.u32 %v5552, 7
    %v5554 = vsub.s32 0, %v5553
    %v5555 = vrot.slane %v5550, %v5554
    %v5556 = vlaneseq
    %v5557 = vshrl.u32 %v5556, 7
    %v5558 = vsub.s32 1, %v5557
    %v5559 = vrot.slane %v5550, %v5558
    %v5560 = vlaneseq
    %v5561 = vshrl.u32 %v5560, 7
    %v5562 = vsub.s32 2, %v5561
    %v5563 = vrot.slane %v5550, %v5562
    %v5564 = vlaneseq
    %v5565 = vshrl.u32 %v5564, 7
    %v5566 = vsub.s32 3, %v5565
    %v5567 = vrot.slane %v5550, %v5566
    %v5568 = vlaneseq
    %v5569 = vshrl.u32 %v5568, 7
    %v5570 = vsub.s32 4, %v5569
    %v5571 = vrot.slane %v5550, %v5570
    %v5572 = vlaneseq
    %v5573 = vshrl.u32 %v5572, 7
    %v5574 = vsub.s32 5, %v5573
    %v5575 = vrot.slane %v5550, %v5574
    %v5576 = vlaneseq
    %v5577 = vshrl.u32 %v5576, 7
    %v5578 = vsub.s32 6, %v5577
    %v5579 = vrot.slane %v5550, %v5578
    %v5580 = vlaneseq
    %v5581 = vshrl.u32 %v5580, 7
    %v5582 = vsub.s32 7, %v5581
    %v5583 = vrot.slane %v5550, %v5582
    %v5592 = vmul.f32 %v5460, %v5555
    %v5593 = vmul.f32 %v5462, %v5559
    %v5594 = vmul.f32 %v5464, %v5563
    %v5595 = vmul.f32 %v5466, %v5567
    %v5596 = vmul.f32 %v5468, %v5571
    %v5597 = vmul.f32 %v5470, %v5575
    %v5598 = vmul.f32 %v5472, %v5579
    %v5599 = vmul.f32 %v5474, %v5583
    %5601 = vset.pattern.permute.xlu0 0
    %5602 = vperm.xlu0 %5601, %v5592
    %v5603 = vpop.permute.xlu0 %5602
    %5606 = vset.pattern.permute.xlu0 0
    %5607 = vperm.xlu0 %5606, %v5593
    %v5608 = vpop.permute.xlu0 %5607
    %5611 = vset.pattern.permute.xlu0 0
    %5612 = vperm.xlu0 %5611, %v5594
    %v5613 = vpop.permute.xlu0 %5612
    %5616 = vset.pattern.permute.xlu0 0
    %5617 = vperm.xlu0 %5616, %v5595
    %v5618 = vpop.permute.xlu0 %5617
    %5621 = vset.pattern.permute.xlu0 0
    %5622 = vperm.xlu0 %5621, %v5596
    %v5623 = vpop.permute.xlu0 %5622
    %5626 = vset.pattern.permute.xlu0 0
    %5627 = vperm.xlu0 %5626, %v5597
    %v5628 = vpop.permute.xlu0 %5627
    %5631 = vset.pattern.permute.xlu0 0
    %5632 = vperm.xlu0 %5631, %v5598
    %v5633 = vpop.permute.xlu0 %5632
    %5636 = vset.pattern.permute.xlu0 0
    %5637 = vperm.xlu0 %5636, %v5599
    %v5638 = vpop.permute.xlu0 %5637
    %v5640 = vmul.f32 %v284, %v5603
    %v5641 = vmul.f32 %v285, %v5608
    %v5642 = vmul.f32 %v286, %v5613
    %v5643 = vmul.f32 %v287, %v5618
    %v5644 = vmul.f32 %v288, %v5623
    %v5645 = vmul.f32 %v289, %v5628
    %v5646 = vmul.f32 %v290, %v5633
    %v5647 = vmul.f32 %v291, %v5638
    %v5648 = vsel %vm340, %v5640, 0.0
    %v5649 = vrot.slane %v5648, 4
    %v5650 = vadd.f32 %v5648, %v5649
    %v5651 = vrot.slane %v5650, 2
    %v5652 = vadd.f32 %v5650, %v5651
    %v5653 = vrot.slane %v5652, 1
    %v5654 = vadd.f32 %v5652, %v5653
    %v5655 = vsel %vm340, %v5641, 0.0
    %v5656 = vrot.slane %v5655, 4
    %v5657 = vadd.f32 %v5655, %v5656
    %v5658 = vrot.slane %v5657, 2
    %v5659 = vadd.f32 %v5657, %v5658
    %v5660 = vrot.slane %v5659, 1
    %v5661 = vadd.f32 %v5659, %v5660
    %v5662 = vsel %vm340, %v5642, 0.0
    %v5663 = vrot.slane %v5662, 4
    %v5664 = vadd.f32 %v5662, %v5663
    %v5665 = vrot.slane %v5664, 2
    %v5666 = vadd.f32 %v5664, %v5665
    %v5667 = vrot.slane %v5666, 1
    %v5668 = vadd.f32 %v5666, %v5667
    %v5669 = vsel %vm340, %v5643, 0.0
    %v5670 = vrot.slane %v5669, 4
    %v5671 = vadd.f32 %v5669, %v5670
    %v5672 = vrot.slane %v5671, 2
    %v5673 = vadd.f32 %v5671, %v5672
    %v5674 = vrot.slane %v5673, 1
    %v5675 = vadd.f32 %v5673, %v5674
    %v5676 = vsel %vm340, %v5644, 0.0
    %v5677 = vrot.slane %v5676, 4
    %v5678 = vadd.f32 %v5676, %v5677
    %v5679 = vrot.slane %v5678, 2
    %v5680 = vadd.f32 %v5678, %v5679
    %v5681 = vrot.slane %v5680, 1
    %v5682 = vadd.f32 %v5680, %v5681
    %v5683 = vsel %vm340, %v5645, 0.0
    %v5684 = vrot.slane %v5683, 4
    %v5685 = vadd.f32 %v5683, %v5684
    %v5686 = vrot.slane %v5685, 2
    %v5687 = vadd.f32 %v5685, %v5686
    %v5688 = vrot.slane %v5687, 1
    %v5689 = vadd.f32 %v5687, %v5688
    %v5690 = vsel %vm340, %v5646, 0.0
    %v5691 = vrot.slane %v5690, 4
    %v5692 = vadd.f32 %v5690, %v5691
    %v5693 = vrot.slane %v5692, 2
    %v5694 = vadd.f32 %v5692, %v5693
    %v5695 = vrot.slane %v5694, 1
    %v5696 = vadd.f32 %v5694, %v5695
    %v5697 = vsel %vm340, %v5647, 0.0
    %v5698 = vrot.slane %v5697, 4
    %v5699 = vadd.f32 %v5697, %v5698
    %v5700 = vrot.slane %v5699, 2
    %v5701 = vadd.f32 %v5699, %v5700
    %v5702 = vrot.slane %v5701, 1
    %v5703 = vadd.f32 %v5701, %v5702
    %v5704 = vpack.c.bf16 %v5139, %v5139
    %v5705 = vld [vmem:[#allocation25] sm:$0xf]
    %v5706 = vld [vmem:[#allocation25 + $0x4] sm:$0xf]
    %v5707 = vld [vmem:[#allocation25 + $0x8] sm:$0xf]
    %v5708 = vld [vmem:[#allocation25 + $0xc] sm:$0xf]
    %v5709 = vpack.c.bf16 %v5654, %v5654
    %v5710 = vpack.c.bf16 %v5661, %v5661
    %v5711 = vpack.c.bf16 %v5668, %v5668
    %v5712 = vpack.c.bf16 %v5675, %v5675
    %v5713 = vpack.c.bf16 %v5682, %v5682
    %v5714 = vpack.c.bf16 %v5689, %v5689
    %v5715 = vpack.c.bf16 %v5696, %v5696
    %v5716 = vpack.c.bf16 %v5703, %v5703
    %v5717 = vld [vmem:[#allocation27] sm:$0xf]
    %v5718 = vld [vmem:[#allocation27 + $0x4] sm:$0xf]
    %v5719 = vld [vmem:[#allocation27 + $0x8] sm:$0xf]
    %v5720 = vld [vmem:[#allocation27 + $0xc] sm:$0xf]
    %v5729 = vunpack.c.l.b16 %v5709
    %v5730 = vunpack.c.l.b16 %v5710
    %v5731 = vunpack.c.l.b16 %v5711
    %v5732 = vunpack.c.l.b16 %v5712
    %v5733 = vunpack.c.l.b16 %v5713
    %v5734 = vunpack.c.l.b16 %v5714
    %v5735 = vunpack.c.l.b16 %v5715
    %v5736 = vunpack.c.l.b16 %v5716
    %v5737 = vsel %vm976, %v5730, %v5729
    %v5738 = vsel %vm978, %v5731, %v5737
    %v5739 = vsel %vm980, %v5732, %v5738
    %v5740 = vsel %vm982, %v5733, %v5739
    %v5741 = vsel %vm984, %v5734, %v5740
    %v5742 = vsel %vm986, %v5735, %v5741
    %v5743 = vsel %vm988, %v5736, %v5742
    %v5744 = vpack.c.b16 %v5743, %v5743
    %v5749 = vunpack.c.l.b16 %v5717
    %v5750 = vunpack.c.l.b16 %v5718
    %v5751 = vunpack.c.l.b16 %v5719
    %v5752 = vunpack.c.l.b16 %v5720
    %v5753 = vpack.c.b16 %v5750, %v5749
    %v5754 = vpack.c.b16 %v5752, %v5751
    %v5758 = vsel %vm340, %v5744, 0
    %5760 = vmatprep.subr.bf16.mxu0 0
    %5761 = vmatpush1.bf16.msra.mxu0 0
    %5762 = vmatprep.subr.bf16.mxu0 0
    %5763 = vmatpush1.bf16.msra.mxu0 0
    %5764 = vmatprep.subr.bf16.mxu0 0
    %5765 = vmatpush1.bf16.msra.mxu0 0
    %5766 = vmatprep.subr.bf16.mxu0 0
    %5767 = vmatpush1.bf16.msra.mxu0 0
    %5768 = vmatprep.subr.bf16.mxu0 0
    %5769 = vmatpush1.bf16.msra.mxu0 0
    %5770 = vmatprep.subr.bf16.mxu0 0
    %5771 = vmatpush1.bf16.msra.mxu0 0
    %5772 = vmatprep.subr.bf16.mxu0 0
    %5773 = vmatpush1.bf16.msra.mxu0 %v5754
    %5774 = vmatprep.subr.bf16.mxu0 0
    %5775 = vmatpush1.bf16.msra.mxu0 %v5753
    %5776 = vmatprep.subr.bf16.mxu0 0
    %5777 = vmatpush2.bf16.msra.mxu0 0
    %5778 = vmatprep.subr.bf16.mxu0 0
    %5779 = vmatpush2.bf16.msra.mxu0 0
    %5780 = vmatprep.subr.bf16.mxu0 0
    %5781 = vmatpush2.bf16.msra.mxu0 0
    %5782 = vmatprep.subr.bf16.mxu0 0
    %5783 = vmatpush2.bf16.msra.mxu0 0
    %5784 = vmatprep.subr.bf16.mxu0 0
    %5785 = vmatpush2.bf16.msra.mxu0 0
    %5786 = vmatprep.subr.bf16.mxu0 0
    %5787 = vmatpush2.bf16.msra.mxu0 0
    %5788 = vmatprep.subr.bf16.mxu0 0
    %5789 = vmatpush2.bf16.msra.mxu0 0
    %5790 = vmatprep.subr.bf16.mxu0 0
    %5791 = vmatpush2.bf16.msra.mxu0 0
    %5792 = vmatprep.mubr.bf16.mxu0 0
    %5793 = vmatmul.mubr.bf16.gmra.mxu0 %v5758
    %v5794 = vpop.f32.mrf.mxu0
    %v5795 = vadd.f32 0.0, %v5794
    %v5796 = vpop.f32.mrf.mxu0
    %v5797 = vpop.f32.mrf.mxu0
    %v5798 = vpop.f32.mrf.mxu0
    %5799 = vdwg.mxu0
    %v5804 = vunpack.c.l.b16 %v5705
    %v5805 = vunpack.c.l.b16 %v5706
    %v5806 = vunpack.c.l.b16 %v5707
    %v5807 = vunpack.c.l.b16 %v5708
    %v5808 = vpack.c.b16 %v5805, %v5804
    %v5809 = vpack.c.b16 %v5807, %v5806
    %v5813 = vsel %vm340, %v5704, 0
    %5815 = vmatprep.subr.bf16.mxu0 0
    %5816 = vmatpush1.bf16.msra.mxu0 0
    %5817 = vmatprep.subr.bf16.mxu0 0
    %5818 = vmatpush1.bf16.msra.mxu0 0
    %5819 = vmatprep.subr.bf16.mxu0 0
    %5820 = vmatpush1.bf16.msra.mxu0 0
    %5821 = vmatprep.subr.bf16.mxu0 0
    %5822 = vmatpush1.bf16.msra.mxu0 0
    %5823 = vmatprep.subr.bf16.mxu0 0
    %5824 = vmatpush1.bf16.msra.mxu0 0
    %5825 = vmatprep.subr.bf16.mxu0 0
    %5826 = vmatpush1.bf16.msra.mxu0 0
    %5827 = vmatprep.subr.bf16.mxu0 0
    %5828 = vmatpush1.bf16.msra.mxu0 %v5809
    %5829 = vmatprep.subr.bf16.mxu0 0
    %5830 = vmatpush1.bf16.msra.mxu0 %v5808
    %5831 = vmatprep.subr.bf16.mxu0 0
    %5832 = vmatpush2.bf16.msra.mxu0 0
    %5833 = vmatprep.subr.bf16.mxu0 0
    %5834 = vmatpush2.bf16.msra.mxu0 0
    %5835 = vmatprep.subr.bf16.mxu0 0
    %5836 = vmatpush2.bf16.msra.mxu0 0
    %5837 = vmatprep.subr.bf16.mxu0 0
    %5838 = vmatpush2.bf16.msra.mxu0 0
    %5839 = vmatprep.subr.bf16.mxu0 0
    %5840 = vmatpush2.bf16.msra.mxu0 0
    %5841 = vmatprep.subr.bf16.mxu0 0
    %5842 = vmatpush2.bf16.msra.mxu0 0
    %5843 = vmatprep.subr.bf16.mxu0 0
    %5844 = vmatpush2.bf16.msra.mxu0 0
    %5845 = vmatprep.subr.bf16.mxu0 0
    %5846 = vmatpush2.bf16.msra.mxu0 0
    %5847 = vmatprep.mubr.bf16.mxu0 0
    %5848 = vmatmul.mubr.bf16.gmra.mxu0 %v5813
    %v5849 = vpop.f32.mrf.mxu0
    %v5850 = vadd.f32 %v5795, %v5849
    %v5851 = vpop.f32.mrf.mxu0
    %v5852 = vpop.f32.mrf.mxu0
    %v5853 = vpop.f32.mrf.mxu0
    %5854 = vdwg.mxu0
    %v5855 = vld [vmem:[%s19] sm:$0x1]
    %v5857 = vlaneseq
    %v5858 = vshrl.u32 %v5857, 7
    %v5859 = vsub.s32 0, %v5858
    %v5860 = vrot.slane %v5855, %v5859
    %v5862 = vadd.f32 %v5850, %v5860
    %5863 = vmax.xlane.f32.xlu0 %v5862
    %v5864 = vpop.xlane.xlu0 %5863
    %v5865 = vsub.f32 %v5862, %v5864
    %v5866 = vmul.f32 %v5865, 1.442695
    %v5867 = vpow.pop %v5866
    %5868 = vadd.xlane.f32.xlu0 %v5867
    %v5869 = vpop.xlane.xlu0 %5868
    %v5870 = vrcp.pop %v5869
    %v5871 = vmul.f32 %v5867, %v5870
    %v5872 = vld [vmem:[%s20] sm:$0xff]
    %v5873 = vld [vmem:[%s20 + $0x8] sm:$0xff]
    %v5874 = vld [vmem:[%s20 + $0x10] sm:$0xff]
    %v5875 = vld [vmem:[%s20 + $0x18] sm:$0xff]
    %v5876 = vld [vmem:[%s21] sm:$0xff]
    %v5877 = vld [vmem:[%s21 + $0x8] sm:$0xff]
    %v5878 = vld [vmem:[%s21 + $0x10] sm:$0xff]
    %v5879 = vld [vmem:[%s21 + $0x18] sm:$0xff]
    %v5881 = vsel %vm340, %v5139, 0
    %5883 = vmatprep.subr.mxu0 0.0
    %5884 = vmatpush1.msra.mxu0 0.0
    %5885 = vmatprep.subr.mxu0 0.0
    %5886 = vmatpush1.msra.mxu0 0.0
    %5887 = vmatprep.subr.mxu0 0.0
    %5888 = vmatpush1.msra.mxu0 0.0
    %5889 = vmatprep.subr.mxu0 0.0
    %5890 = vmatpush1.msra.mxu0 0.0
    %5891 = vmatprep.subr.mxu0 0.0
    %5892 = vmatpush1.msra.mxu0 0.0
    %5893 = vmatprep.subr.mxu0 0.0
    %5894 = vmatpush1.msra.mxu0 0.0
    %5895 = vmatprep.subr.mxu0 0.0
    %5896 = vmatpush1.msra.mxu0 0.0
    %5897 = vmatprep.subr.mxu0 0.0
    %5898 = vmatpush1.msra.mxu0 0.0
    %5899 = vmatprep.subr.mxu0 0.0
    %5900 = vmatpush1.msra.mxu0 0.0
    %5901 = vmatprep.subr.mxu0 0.0
    %5902 = vmatpush1.msra.mxu0 0.0
    %5903 = vmatprep.subr.mxu0 0.0
    %5904 = vmatpush1.msra.mxu0 0.0
    %5905 = vmatprep.subr.mxu0 0.0
    %5906 = vmatpush1.msra.mxu0 0.0
    %5907 = vmatprep.subr.mxu0 0.0
    %5908 = vmatpush1.msra.mxu0 %v5879
    %5909 = vmatprep.subr.mxu0 0.0
    %5910 = vmatpush1.msra.mxu0 %v5878
    %5911 = vmatprep.subr.mxu0 0.0
    %5912 = vmatpush1.msra.mxu0 %v5877
    %5913 = vmatprep.subr.mxu0 0.0
    %5914 = vmatpush1.msra.mxu0 %v5876
    %5915 = vmatprep.subr.mxu0 0.0
    %5916 = vmatpush2.msra.mxu0 0.0
    %5917 = vmatprep.subr.mxu0 0.0
    %5918 = vmatpush2.msra.mxu0 0.0
    %5919 = vmatprep.subr.mxu0 0.0
    %5920 = vmatpush2.msra.mxu0 0.0
    %5921 = vmatprep.subr.mxu0 0.0
    %5922 = vmatpush2.msra.mxu0 0.0
    %5923 = vmatprep.subr.mxu0 0.0
    %5924 = vmatpush2.msra.mxu0 0.0
    %5925 = vmatprep.subr.mxu0 0.0
    %5926 = vmatpush2.msra.mxu0 0.0
    %5927 = vmatprep.subr.mxu0 0.0
    %5928 = vmatpush2.msra.mxu0 0.0
    %5929 = vmatprep.subr.mxu0 0.0
    %5930 = vmatpush2.msra.mxu0 0.0
    %5931 = vmatprep.subr.mxu0 0.0
    %5932 = vmatpush2.msra.mxu0 0.0
    %5933 = vmatprep.subr.mxu0 0.0
    %5934 = vmatpush2.msra.mxu0 0.0
    %5935 = vmatprep.subr.mxu0 0.0
    %5936 = vmatpush2.msra.mxu0 0.0
    %5937 = vmatprep.subr.mxu0 0.0
    %5938 = vmatpush2.msra.mxu0 0.0
    %5939 = vmatprep.subr.mxu0 0.0
    %5940 = vmatpush2.msra.mxu0 0.0
    %5941 = vmatprep.subr.mxu0 0.0
    %5942 = vmatpush2.msra.mxu0 0.0
    %5943 = vmatprep.subr.mxu0 0.0
    %5944 = vmatpush2.msra.mxu0 0.0
    %5945 = vmatprep.subr.mxu0 0.0
    %5946 = vmatpush2.msra.mxu0 0.0
    %5947 = vmatprep.mubr.f32.mxu0 0.0
    %5948 = vmatmul.mubr.f32.gmra.mxu0 %v5881
    %v5949 = vpop.f32.mrf.mxu0
    %v5950 = vadd.f32 0.0, %v5949
    %v5951 = vpop.f32.mrf.mxu0
    %5952 = vdwg.mxu0
    %v5961 = vsel %vm976, %v5661, %v5654
    %v5962 = vsel %vm978, %v5668, %v5961
    %v5963 = vsel %vm980, %v5675, %v5962
    %v5964 = vsel %vm982, %v5682, %v5963
    %v5965 = vsel %vm984, %v5689, %v5964
    %v5966 = vsel %vm986, %v5696, %v5965
    %v5967 = vsel %vm988, %v5703, %v5966
    %v5968 = vsel %vm340, %v5967, 0
    %5970 = vmatprep.subr.mxu0 0.0
    %5971 = vmatpush1.msra.mxu0 0.0
    %5972 = vmatprep.subr.mxu0 0.0
    %5973 = vmatpush1.msra.mxu0 0.0
    %5974 = vmatprep.subr.mxu0 0.0
    %5975 = vmatpush1.msra.mxu0 0.0
    %5976 = vmatprep.subr.mxu0 0.0
    %5977 = vmatpush1.msra.mxu0 0.0
    %5978 = vmatprep.subr.mxu0 0.0
    %5979 = vmatpush1.msra.mxu0 0.0
    %5980 = vmatprep.subr.mxu0 0.0
    %5981 = vmatpush1.msra.mxu0 0.0
    %5982 = vmatprep.subr.mxu0 0.0
    %5983 = vmatpush1.msra.mxu0 0.0
    %5984 = vmatprep.subr.mxu0 0.0
    %5985 = vmatpush1.msra.mxu0 0.0
    %5986 = vmatprep.subr.mxu0 0.0
    %5987 = vmatpush1.msra.mxu0 0.0
    %5988 = vmatprep.subr.mxu0 0.0
    %5989 = vmatpush1.msra.mxu0 0.0
    %5990 = vmatprep.subr.mxu0 0.0
    %5991 = vmatpush1.msra.mxu0 0.0
    %5992 = vmatprep.subr.mxu0 0.0
    %5993 = vmatpush1.msra.mxu0 0.0
    %5994 = vmatprep.subr.mxu0 0.0
    %5995 = vmatpush1.msra.mxu0 %v5875
    %5996 = vmatprep.subr.mxu0 0.0
    %5997 = vmatpush1.msra.mxu0 %v5874
    %5998 = vmatprep.subr.mxu0 0.0
    %5999 = vmatpush1.msra.mxu0 %v5873
    %6000 = vmatprep.subr.mxu0 0.0
    %6001 = vmatpush1.msra.mxu0 %v5872
    %6002 = vmatprep.subr.mxu0 0.0
    %6003 = vmatpush2.msra.mxu0 0.0
    %6004 = vmatprep.subr.mxu0 0.0
    %6005 = vmatpush2.msra.mxu0 0.0
    %6006 = vmatprep.subr.mxu0 0.0
    %6007 = vmatpush2.msra.mxu0 0.0
    %6008 = vmatprep.subr.mxu0 0.0
    %6009 = vmatpush2.msra.mxu0 0.0
    %6010 = vmatprep.subr.mxu0 0.0
    %6011 = vmatpush2.msra.mxu0 0.0
    %6012 = vmatprep.subr.mxu0 0.0
    %6013 = vmatpush2.msra.mxu0 0.0
    %6014 = vmatprep.subr.mxu0 0.0
    %6015 = vmatpush2.msra.mxu0 0.0
    %6016 = vmatprep.subr.mxu0 0.0
    %6017 = vmatpush2.msra.mxu0 0.0
    %6018 = vmatprep.subr.mxu0 0.0
    %6019 = vmatpush2.msra.mxu0 0.0
    %6020 = vmatprep.subr.mxu0 0.0
    %6021 = vmatpush2.msra.mxu0 0.0
    %6022 = vmatprep.subr.mxu0 0.0
    %6023 = vmatpush2.msra.mxu0 0.0
    %6024 = vmatprep.subr.mxu0 0.0
    %6025 = vmatpush2.msra.mxu0 0.0
    %6026 = vmatprep.subr.mxu0 0.0
    %6027 = vmatpush2.msra.mxu0 0.0
    %6028 = vmatprep.subr.mxu0 0.0
    %6029 = vmatpush2.msra.mxu0 0.0
    %6030 = vmatprep.subr.mxu0 0.0
    %6031 = vmatpush2.msra.mxu0 0.0
    %6032 = vmatprep.subr.mxu0 0.0
    %6033 = vmatpush2.msra.mxu0 0.0
    %6034 = vmatprep.mubr.f32.mxu0 0.0
    %6035 = vmatmul.mubr.f32.gmra.mxu0 %v5968
    %v6036 = vpop.f32.mrf.mxu0
    %v6037 = vadd.f32 %v5950, %v6036
    %v6038 = vpop.f32.mrf.mxu0
    %6039 = vdwg.mxu0
    %v6040 = vld [vmem:[%s22] sm:$0xff]
    %v6041 = vld [vmem:[%s22 + $0x8] sm:$0xff]
    %v6042 = vld [vmem:[%s22 + $0x10] sm:$0xff]
    %v6043 = vld [vmem:[%s22 + $0x18] sm:$0xff]
    %v6045 = vsel %vm340, %v4750, 0
    %6047 = vmatprep.subr.mxu0 0.0
    %6048 = vmatpush1.msra.mxu0 0.0
    %6049 = vmatprep.subr.mxu0 0.0
    %6050 = vmatpush1.msra.mxu0 0.0
    %6051 = vmatprep.subr.mxu0 0.0
    %6052 = vmatpush1.msra.mxu0 0.0
    %6053 = vmatprep.subr.mxu0 0.0
    %6054 = vmatpush1.msra.mxu0 0.0
    %6055 = vmatprep.subr.mxu0 0.0
    %6056 = vmatpush1.msra.mxu0 0.0
    %6057 = vmatprep.subr.mxu0 0.0
    %6058 = vmatpush1.msra.mxu0 0.0
    %6059 = vmatprep.subr.mxu0 0.0
    %6060 = vmatpush1.msra.mxu0 0.0
    %6061 = vmatprep.subr.mxu0 0.0
    %6062 = vmatpush1.msra.mxu0 0.0
    %6063 = vmatprep.subr.mxu0 0.0
    %6064 = vmatpush1.msra.mxu0 0.0
    %6065 = vmatprep.subr.mxu0 0.0
    %6066 = vmatpush1.msra.mxu0 0.0
    %6067 = vmatprep.subr.mxu0 0.0
    %6068 = vmatpush1.msra.mxu0 0.0
    %6069 = vmatprep.subr.mxu0 0.0
    %6070 = vmatpush1.msra.mxu0 0.0
    %6071 = vmatprep.subr.mxu0 0.0
    %6072 = vmatpush1.msra.mxu0 %v6043
    %6073 = vmatprep.subr.mxu0 0.0
    %6074 = vmatpush1.msra.mxu0 %v6042
    %6075 = vmatprep.subr.mxu0 0.0
    %6076 = vmatpush1.msra.mxu0 %v6041
    %6077 = vmatprep.subr.mxu0 0.0
    %6078 = vmatpush1.msra.mxu0 %v6040
    %6079 = vmatprep.subr.mxu0 0.0
    %6080 = vmatpush2.msra.mxu0 0.0
    %6081 = vmatprep.subr.mxu0 0.0
    %6082 = vmatpush2.msra.mxu0 0.0
    %6083 = vmatprep.subr.mxu0 0.0
    %6084 = vmatpush2.msra.mxu0 0.0
    %6085 = vmatprep.subr.mxu0 0.0
    %6086 = vmatpush2.msra.mxu0 0.0
    %6087 = vmatprep.subr.mxu0 0.0
    %6088 = vmatpush2.msra.mxu0 0.0
    %6089 = vmatprep.subr.mxu0 0.0
    %6090 = vmatpush2.msra.mxu0 0.0
    %6091 = vmatprep.subr.mxu0 0.0
    %6092 = vmatpush2.msra.mxu0 0.0
    %6093 = vmatprep.subr.mxu0 0.0
    %6094 = vmatpush2.msra.mxu0 0.0
    %6095 = vmatprep.subr.mxu0 0.0
    %6096 = vmatpush2.msra.mxu0 0.0
    %6097 = vmatprep.subr.mxu0 0.0
    %6098 = vmatpush2.msra.mxu0 0.0
    %6099 = vmatprep.subr.mxu0 0.0
    %6100 = vmatpush2.msra.mxu0 0.0
    %6101 = vmatprep.subr.mxu0 0.0
    %6102 = vmatpush2.msra.mxu0 0.0
    %6103 = vmatprep.subr.mxu0 0.0
    %6104 = vmatpush2.msra.mxu0 0.0
    %6105 = vmatprep.subr.mxu0 0.0
    %6106 = vmatpush2.msra.mxu0 0.0
    %6107 = vmatprep.subr.mxu0 0.0
    %6108 = vmatpush2.msra.mxu0 0.0
    %6109 = vmatprep.subr.mxu0 0.0
    %6110 = vmatpush2.msra.mxu0 0.0
    %6111 = vmatprep.mubr.f32.mxu0 0.0
    %6112 = vmatmul.mubr.f32.gmra.mxu0 %v6045
    %v6113 = vpop.f32.mrf.mxu0
    %v6114 = vadd.f32 0.0, %v6113
    %v6115 = vpop.f32.mrf.mxu0
    %6116 = vdwg.mxu0
    %v6117 = vadd.f32 %v6037, %v6114
    %v6118 = vld [vmem:[#allocation3] sm:$0x1]
    %v6120 = vlaneseq
    %v6121 = vshrl.u32 %v6120, 7
    %v6122 = vsub.s32 0, %v6121
    %v6123 = vrot.slane %v6118, %v6122
    %v6125 = vadd.f32 %v6117, %v6123
    %v6126 = vxor.u32 %v6125, 2147483648
    %v6127 = vmul.f32 %v6126, 1.442695
    %v6128 = vpow.pop %v6127
    %v6129 = vadd.f32 %v6128, 1.0
    %v6130 = vrcp.pop %v6129
    %v6131 = vmul.f32 1.0, %v6130
    %v6132 = vmul.f32 %v5603, %v308
    %v6133 = vmul.f32 %v5608, %v309
    %v6134 = vmul.f32 %v5613, %v310
    %v6135 = vmul.f32 %v5618, %v311
    %v6136 = vmul.f32 %v5623, %v312
    %v6137 = vmul.f32 %v5628, %v313
    %v6138 = vmul.f32 %v5633, %v314
    %v6139 = vmul.f32 %v5638, %v315
    %v6140 = vrot.slane %v6132, 4
    %v6141 = vadd.f32 %v6132, %v6140
    %v6142 = vrot.slane %v6141, 2
    %v6143 = vadd.f32 %v6141, %v6142
    %v6144 = vrot.slane %v6143, 1
    %v6145 = vadd.f32 %v6143, %v6144
    %v6146 = vrot.slane %v6133, 4
    %v6147 = vadd.f32 %v6133, %v6146
    %v6148 = vrot.slane %v6147, 2
    %v6149 = vadd.f32 %v6147, %v6148
    %v6150 = vrot.slane %v6149, 1
    %v6151 = vadd.f32 %v6149, %v6150
    %v6152 = vrot.slane %v6134, 4
    %v6153 = vadd.f32 %v6134, %v6152
    %v6154 = vrot.slane %v6153, 2
    %v6155 = vadd.f32 %v6153, %v6154
    %v6156 = vrot.slane %v6155, 1
    %v6157 = vadd.f32 %v6155, %v6156
    %v6158 = vrot.slane %v6135, 4
    %v6159 = vadd.f32 %v6135, %v6158
    %v6160 = vrot.slane %v6159, 2
    %v6161 = vadd.f32 %v6159, %v6160
    %v6162 = vrot.slane %v6161, 1
    %v6163 = vadd.f32 %v6161, %v6162
    %v6164 = vrot.slane %v6136, 4
    %v6165 = vadd.f32 %v6136, %v6164
    %v6166 = vrot.slane %v6165, 2
    %v6167 = vadd.f32 %v6165, %v6166
    %v6168 = vrot.slane %v6167, 1
    %v6169 = vadd.f32 %v6167, %v6168
    %v6170 = vrot.slane %v6137, 4
    %v6171 = vadd.f32 %v6137, %v6170
    %v6172 = vrot.slane %v6171, 2
    %v6173 = vadd.f32 %v6171, %v6172
    %v6174 = vrot.slane %v6173, 1
    %v6175 = vadd.f32 %v6173, %v6174
    %v6176 = vrot.slane %v6138, 4
    %v6177 = vadd.f32 %v6138, %v6176
    %v6178 = vrot.slane %v6177, 2
    %v6179 = vadd.f32 %v6177, %v6178
    %v6180 = vrot.slane %v6179, 1
    %v6181 = vadd.f32 %v6179, %v6180
    %v6182 = vrot.slane %v6139, 4
    %v6183 = vadd.f32 %v6139, %v6182
    %v6184 = vrot.slane %v6183, 2
    %v6185 = vadd.f32 %v6183, %v6184
    %v6186 = vrot.slane %v6185, 1
    %v6187 = vadd.f32 %v6185, %v6186
    %6189 = vset.pattern.permute.xlu0 0
    %6190 = vperm.xlu0 %6189, %v6131
    %v6191 = vpop.permute.xlu0 %6190
    %v6193 = vmul.f32 %v6191, %v5871
    %v6194 = vsub.f32 1.0, %v6131
    %6196 = vset.pattern.permute.xlu0 0
    %6197 = vperm.xlu0 %6196, %v6194
    %v6198 = vpop.permute.xlu0 %6197
    %v6208 = vsel %vm976, %v6151, %v6145
    %v6209 = vsel %vm978, %v6157, %v6208
    %v6210 = vsel %vm980, %v6163, %v6209
    %v6211 = vsel %vm982, %v6169, %v6210
    %v6212 = vsel %vm984, %v6175, %v6211
    %v6213 = vsel %vm986, %v6181, %v6212
    %v6214 = vsel %vm988, %v6187, %v6213
    %v6216 = vmul.f32 %v6198, %v6214
    %v6217 = vadd.f32 %v6193, %v6216
    %v6218 = vmax.f32 %v6217, 1e-08
    %s6219 = scalar_lea.vmem [#allocation28], 24
    %6220 = vst [vmem:[%s6219] sm:$0xff] %v6218
    %6221 = vst.msk [vmem:[#allocation2] sm:$0xff] %vm340, %v5139
    %6222 = vst.msk [vmem:[#allocation29] sm:$0xff] %vm340, %v5139
    // Predicated region
    $region162: #{tpu_custom_call.1} parent=1 // pred_check
      _
    $region163: #{tpu_custom_call.1} parent=1 // pred_check_branch
      %6224 = sbr.rel (0) target = $region165
    $region164: #{tpu_custom_call.1} parent=1 // pred_region
      %s6226 = ssub.s32 512, 512
      %6227 = vsyncadd [#allocation6], %s6226
      %s6228 = sshll.u32 [#allocation28], 4
      %s6229 = int_to_ptr.vmem [resolvable:$true] %s6228
      %6234 = dma.vmem_to_hbm [thread:$0]  %s6229, 512, %s24, [#allocation6], 128, 128, 8
    $region165: #{tpu_custom_call.1} parent=1 // pred_fallthru
      _
    // Predicated region
    $region166: #{tpu_custom_call.1} parent=1 // pred_check
      _
    $region167: #{tpu_custom_call.1} parent=1 // pred_check_branch
      %6236 = sbr.rel (0) target = $region169
    $region168: #{tpu_custom_call.1} parent=1 // pred_region
      %s6238 = ssub.s32 128, 128
      %6239 = vsyncadd [#allocation30], %s6238
      %s6241 = sshll.u32 [#allocation29], 4
      %s6242 = int_to_ptr.vmem [resolvable:$true] %s6241
      %6244 = dma.vmem_to_hbm [thread:$0]  %s6242, 128, %s25, [#allocation30]
    $region169: #{tpu_custom_call.1} parent=1 // pred_fallthru
      _
    // Predicated region
    $region170: #{tpu_custom_call.1} parent=1 // pred_check
      _
    $region171: #{tpu_custom_call.1} parent=1 // pred_check_branch
      %6246 = sbr.rel (0) target = $region173
    $region172: #{tpu_custom_call.1} parent=1 // pred_region
      %6247 = dma.done [#allocation6], 512
    $region173: #{tpu_custom_call.1} parent=1 // pred_fallthru
      _
    // Predicated region
    $region174: #{tpu_custom_call.1} parent=1 // pred_check
      _
    $region175: #{tpu_custom_call.1} parent=1 // pred_check_branch
      %6249 = sbr.rel (0) target = $region177
    $region176: #{tpu_custom_call.1} parent=1 // pred_region
      %6250 = dma.done [#allocation30], 128
    $region177: #{tpu_custom_call.1} parent=1 // pred_fallthru
      _
    %6251 = vsyncpa [#allocation5], 1
    %6252 = vsyncpa [#allocation8], 1
    %6253 = vsyncpa [#allocation11], 1
    %6254 = vsyncpa [#allocation14], 1
    %6255 = vsyncpa [#allocation17], 1
    %6256 = vsyncpa [#allocation20], 1
    %6257 = vsyncpa [#allocation23], 1
    %6258 = vsyncpa [#allocation26], 1
    %6259 = vsyncpa [#allocation6], 1
    %6260 = vsyncpa [#allocation30], 1

</llo_original>
